<compile_context>
chip_gen: v5e
topology: v5e:2x2
jax: 0.10.0
libtpu: 0.0.40
codegen_flags: <defaults>
</compile_context>

<pallas_src>
import math

import jax
import jax.numpy as jnp
from jax.experimental import pallas as pl
from jax.experimental.pallas import tpu as pltpu

_VMEM_SPEC = pl.BlockSpec(memory_space=pltpu.MemorySpace.VMEM)
_VMEM_LIMIT = 32 * 1024 * 1024  # safe scoped-VMEM budget on v5e/v6e/v7x


def _round_up(x, m):
    return (x + m - 1) // m * m


# --------------------------- fused tiled matmul ------------------------------
#
# out = epilogue( prologue(A) @ B ) where
#   prologue(A) = relu(A * a_scale + a_shift)      (per-K, folded BatchNorm)
#   epilogue(Y) = [relu]( Y * o_scale + o_shift )  (per-N, folded BatchNorm/bias)
# A, B are bf16; accumulation is f32 in a VMEM scratch tile.

def _make_mm_kernel(has_pro, has_epi, relu_out):
    def kernel(*refs):
        idx = 0
        a_ref = refs[idx]; idx += 1
        b_ref = refs[idx]; idx += 1
        if has_pro:
            asc_ref, ash_ref = refs[idx], refs[idx + 1]; idx += 2
        if has_epi:
            osc_ref, osh_ref = refs[idx], refs[idx + 1]; idx += 2
        o_ref = refs[idx]
        acc_ref = refs[idx + 1]

        k = pl.program_id(2)

        @pl.when(k == 0)
        def _init():
            acc_ref[...] = jnp.zeros_like(acc_ref)

        a = a_ref[...]
        if has_pro:
            a = jnp.maximum(a.astype(jnp.float32) * asc_ref[...] + ash_ref[...], 0.0)
            a = a.astype(jnp.bfloat16)
        acc_ref[...] += jnp.dot(a, b_ref[...], preferred_element_type=jnp.float32)

        @pl.when(k == pl.num_programs(2) - 1)
        def _finish():
            y = acc_ref[...]
            if has_epi:
                y = y * osc_ref[...] + osh_ref[...]
            if relu_out:
                y = jnp.maximum(y, 0.0)
            o_ref[...] = y.astype(o_ref.dtype)

    return kernel


def fused_matmul(a, b, *, a_scale=None, a_shift=None, o_scale=None, o_shift=None,
                 relu_out=False, out_dtype=jnp.bfloat16):
    """a: (M, K), b: (K, N) -> (M, N). bf16 MXU matmul with fused BN/ReLU."""
    M, K = a.shape
    K2, N = b.shape
    assert K == K2
    has_pro = a_scale is not None
    has_epi = (o_scale is not None) or (o_shift is not None)
    if has_epi:
        if o_scale is None:
            o_scale = jnp.ones((N,), jnp.float32)
        if o_shift is None:
            o_shift = jnp.zeros((N,), jnp.float32)

    tm = 512 if M >= 512 else _round_up(M, 8)
    tn = 128
    tk = 256 if K >= 256 else _round_up(K, 128)
    Mp, Kp, Np = _round_up(M, tm), _round_up(K, tk), _round_up(N, tn)

    a_p = jnp.pad(a.astype(jnp.bfloat16), ((0, Mp - M), (0, Kp - K)))
    b_p = jnp.pad(b.astype(jnp.bfloat16), ((0, Kp - K), (0, Np - N)))

    inputs = [a_p, b_p]
    in_specs = [pl.BlockSpec((tm, tk), lambda i, j, k: (i, k)),
                pl.BlockSpec((tk, tn), lambda i, j, k: (k, j))]
    if has_pro:
        asc = jnp.pad(a_scale.astype(jnp.float32).reshape(1, K), ((0, 0), (0, Kp - K)))
        ash = jnp.pad(a_shift.astype(jnp.float32).reshape(1, K), ((0, 0), (0, Kp - K)))
        inputs += [asc, ash]
        in_specs += [pl.BlockSpec((1, tk), lambda i, j, k: (0, k))] * 2
    if has_epi:
        osc = jnp.pad(o_scale.astype(jnp.float32).reshape(1, N), ((0, 0), (0, Np - N)),
                      constant_values=1.0)
        osh = jnp.pad(o_shift.astype(jnp.float32).reshape(1, N), ((0, 0), (0, Np - N)))
        inputs += [osc, osh]
        in_specs += [pl.BlockSpec((1, tn), lambda i, j, k: (0, j))] * 2

    grid = (Mp // tm, Np // tn, Kp // tk)
    flops = 2 * Mp * Np * Kp
    bytes_accessed = Mp * Kp * 2 + Kp * Np * 2 + Mp * Np * jnp.dtype(out_dtype).itemsize

    out = pl.pallas_call(
        _make_mm_kernel(has_pro, has_epi, relu_out),
        out_shape=jax.ShapeDtypeStruct((Mp, Np), out_dtype),
        grid_spec=pltpu.PrefetchScalarGridSpec(
            num_scalar_prefetch=0,
            grid=grid,
            in_specs=in_specs,
            out_specs=pl.BlockSpec((tm, tn), lambda i, j, k: (i, j)),
            scratch_shapes=[pltpu.VMEM((tm, tn), jnp.float32)],
        ),
        compiler_params=pltpu.CompilerParams(
            dimension_semantics=("parallel", "parallel", "arbitrary"),
            vmem_limit_bytes=_VMEM_LIMIT,
        ),
        cost_estimate=pl.CostEstimate(flops=flops, transcendentals=0,
                                      bytes_accessed=bytes_accessed),
    )(*inputs)
    return out[:M, :N]


# ----------------------------- pooling kernels --------------------------------

def _make_pool_kernel(op):
    def kernel(x_ref, o_ref):
        x = x_ref[...].astype(jnp.float32)          # (Kwin, tm, C)
        r = jnp.max(x, axis=0) if op == "max" else jnp.mean(x, axis=0)
        o_ref[...] = r.astype(o_ref.dtype)
    return kernel


def window_reduce(stacked, op, out_dtype=jnp.bfloat16):
    """stacked: (Kwin, M, C) -> (M, C); gridded over M tiles."""
    Kw, M, C = stacked.shape
    tm = 512 if M >= 512 else _round_up(M, 8)
    Mp = _round_up(M, tm)
    xp = jnp.pad(stacked.astype(jnp.bfloat16), ((0, 0), (0, Mp - M), (0, 0)))
    out = pl.pallas_call(
        _make_pool_kernel(op),
        out_shape=jax.ShapeDtypeStruct((Mp, C), out_dtype),
        grid_spec=pltpu.PrefetchScalarGridSpec(
            num_scalar_prefetch=0,
            grid=(Mp // tm,),
            in_specs=[pl.BlockSpec((Kw, tm, C), lambda i: (0, i, 0))],
            out_specs=pl.BlockSpec((tm, C), lambda i: (i, 0)),
        ),
        compiler_params=pltpu.CompilerParams(
            dimension_semantics=("parallel",),
            vmem_limit_bytes=_VMEM_LIMIT,
        ),
    )(xp)
    return out[:M]


def max_pool_3x3_s2_p1(x):
    N, H, W, C = x.shape
    xp = jnp.pad(x, ((0, 0), (1, 1), (1, 1), (0, 0)), constant_values=-jnp.inf)
    OH = (H + 2 - 3) // 2 + 1
    OW = (W + 2 - 3) // 2 + 1
    wins = [xp[:, i:i + 2 * (OH - 1) + 1:2, j:j + 2 * (OW - 1) + 1:2, :]
            .reshape(N * OH * OW, C) for i in range(3) for j in range(3)]
    stacked = jnp.stack(wins, axis=0)               # (9, M, C)
    return window_reduce(stacked, "max").reshape(N, OH, OW, C)


def avg_pool_2x2_s2(x):
    N, H, W, C = x.shape
    OH, OW = H // 2, W // 2
    wins = [x[:, i::2, j::2, :].reshape(N * OH * OW, C)
            for i in range(2) for j in range(2)]
    stacked = jnp.stack(wins, axis=0)               # (4, M, C)
    return window_reduce(stacked, "mean").reshape(N, OH, OW, C)


def _gap_bn_relu_kernel(x_ref, sc_ref, sh_ref, o_ref):
    x = x_ref[...].astype(jnp.float32)              # (HW, N, C)
    y = jnp.maximum(x * sc_ref[...] + sh_ref[...], 0.0)
    o_ref[...] = jnp.mean(y, axis=0).astype(o_ref.dtype)


def global_avg_pool_bn_relu(x_nhwc, scale, shift):
    """norm5 + relu + adaptive_avg_pool2d((1,1)) + flatten, fused."""
    N, H, W, C = x_nhwc.shape
    x3 = jnp.transpose(x_nhwc.reshape(N, H * W, C), (1, 0, 2)).astype(jnp.bfloat16)
    return pl.pallas_call(
        _gap_bn_relu_kernel,
        out_shape=jax.ShapeDtypeStruct((N, C), jnp.float32),
        in_specs=[_VMEM_SPEC, _VMEM_SPEC, _VMEM_SPEC],
        out_specs=_VMEM_SPEC,
    )(x3, scale.reshape(1, 1, C).astype(jnp.float32),
      shift.reshape(1, 1, C).astype(jnp.float32))


# ------------------------------- conv wrappers ---------------------------------

def conv2d_im2col(x, w_hwio, stride, padding, *, o_scale=None, o_shift=None,
                  relu_out=False):
    """Bias-free conv via bf16 im2col + tiled fused matmul (optional BN/ReLU epilogue)."""
    # TODO(synk): replace materialized im2col with in-kernel tap accumulation
    # (grid axis over kh*kw taps reading shifted tiles directly from NHWC).
    N, H, W, Cin = x.shape
    kh, kw, cin, cout = w_hwio.shape
    assert cin == Cin
    if padding:
        x = jnp.pad(x, ((0, 0), (padding, padding), (padding, padding), (0, 0)))
    OH = (H + 2 * padding - kh) // stride + 1
    OW = (W + 2 * padding - kw) // stride + 1
    xb = x.astype(jnp.bfloat16)
    patches = [xb[:, i:i + stride * (OH - 1) + 1:stride,
                  j:j + stride * (OW - 1) + 1:stride, :]
               for i in range(kh) for j in range(kw)]
    a = jnp.stack(patches, axis=3).reshape(N * OH * OW, kh * kw * Cin)
    b = w_hwio.reshape(kh * kw * Cin, cout)
    out = fused_matmul(a, b, o_scale=o_scale, o_shift=o_shift, relu_out=relu_out)
    return out.reshape(N, OH, OW, cout)


def conv1x1(x, w_hwio, *, a_scale=None, a_shift=None, o_scale=None, o_shift=None,
            relu_out=False):
    """1x1 conv as a plain matmul with optional fused BN/ReLU prologue/epilogue."""
    N, H, W, Cin = x.shape
    cout = w_hwio.shape[-1]
    out = fused_matmul(x.reshape(N * H * W, Cin), w_hwio.reshape(Cin, cout),
                       a_scale=a_scale, a_shift=a_shift,
                       o_scale=o_scale, o_shift=o_shift, relu_out=relu_out)
    return out.reshape(N, H, W, cout)


# --------------------------- deterministic params ------------------------------

def _bn_init(key, c):
    k1, k2, k3, k4 = jax.random.split(key, 4)
    gamma = 1.0 + 0.1 * jax.random.normal(k1, (c,), jnp.float32)
    beta = 0.1 * jax.random.normal(k2, (c,), jnp.float32)
    running_mean = 0.1 * jax.random.normal(k3, (c,), jnp.float32)
    running_var = 1.0 + 0.1 * jnp.abs(jax.random.normal(k4, (c,), jnp.float32))
    eps = 1e-5
    scale = gamma / jnp.sqrt(running_var + eps)
    shift = beta - running_mean * scale
    return scale, shift                      # folded inference BN: y = x*scale + shift


def _conv_init(key, kh, kw, cin, cout):
    fan_in = kh * kw * cin
    return jax.random.normal(key, (kh, kw, cin, cout), jnp.float32) * math.sqrt(2.0 / fan_in)


def init_params(key, *, growth_rate, block_config, num_init_features, bn_size,
                num_classes):
    keys = iter(jax.random.split(key, 4096))
    p = {}
    p["conv0"] = _conv_init(next(keys), 7, 7, 3, num_init_features)
    p["norm0"] = _bn_init(next(keys), num_init_features)
    num_features = num_init_features
    blocks = []
    for bi, num_layers in enumerate(block_config):
        layers = []
        for li in range(num_layers):
            cin = num_features + li * growth_rate
            layers.append({
                "norm1": _bn_init(next(keys), cin),
                "conv1": _conv_init(next(keys), 1, 1, cin, bn_size * growth_rate),
                "norm2": _bn_init(next(keys), bn_size * growth_rate),
                "conv2": _conv_init(next(keys), 3, 3, bn_size * growth_rate, growth_rate),
            })
        num_features = num_features + num_layers * growth_rate
        block = {"layers": layers}
        if bi != len(block_config) - 1:
            block["transition"] = {
                "norm": _bn_init(next(keys), num_features),
                "conv": _conv_init(next(keys), 1, 1, num_features, num_features // 2),
            }
            num_features = num_features // 2
        blocks.append(block)
    p["blocks"] = blocks
    p["norm5"] = _bn_init(next(keys), num_features)
    k_w, k_b = jax.random.split(next(keys))
    p["classifier_w"] = (jax.random.normal(k_w, (num_features, num_classes), jnp.float32)
                         / math.sqrt(num_features))
    p["classifier_b"] = 0.01 * jax.random.normal(k_b, (num_classes,), jnp.float32)
    return p


# ---------------------------------- forward ------------------------------------

def _dense_layer(x, lp):
    # torch: BN1 -> ReLU -> 1x1 conv -> BN2 -> ReLU -> 3x3 conv, dense concat.
    # Here: BN1+ReLU fused as conv1 prologue, BN2+ReLU fused as conv1 epilogue,
    # so the 3x3 conv sees zero-padding of already-activated values (exact).
    s1, b1 = lp["norm1"]
    s2, b2 = lp["norm2"]
    y = conv1x1(x, lp["conv1"], a_scale=s1, a_shift=b1,
                o_scale=s2, o_shift=b2, relu_out=True)
    z = conv2d_im2col(y, lp["conv2"], stride=1, padding=1)
    # TODO(synk): replace per-layer concat with a pre-allocated block buffer
    # written slice-wise (input_output_aliases) to remove O(L^2) copy traffic.
    return jnp.concatenate([x, z.astype(x.dtype)], axis=-1)


def densenet_privacy_forward(params, x_nchw, dropout_rate=0.0):
    # NCHW (PyTorch) -> NHWC (kernel layout)
    x = jnp.transpose(x_nchw, (0, 2, 3, 1))
    # features: conv0 -> norm0 -> relu0 (fused epilogue) -> pool0
    s0, b0 = params["norm0"]
    x = conv2d_im2col(x, params["conv0"], stride=2, padding=3,
                      o_scale=s0, o_shift=b0, relu_out=True)
    x = max_pool_3x3_s2_p1(x)
    # dense blocks + transitions
    for block in params["blocks"]:
        for lp in block["layers"]:
            x = _dense_layer(x, lp)
        if "transition" in block:
            st, bt = block["transition"]["norm"]
            x = conv1x1(x, block["transition"]["conv"], a_scale=st, a_shift=bt)
            x = avg_pool_2x2_s2(x)
    # norm5 + F.relu + adaptive_avg_pool2d((1,1)) + flatten, fused in one kernel
    s5, b5 = params["norm5"]
    feats = global_avg_pool_bn_relu(x, s5, b5)      # (N, C) f32
    # classifier = nn.Sequential(nn.Dropout(p=dropout_rate), nn.Linear(C, num_classes))
    # TODO(synk): nn.Dropout is identity in eval mode; training-mode stochastic
    # dropout (rate=dropout_rate) is not implemented.
    logits = fused_matmul(feats, params["classifier_w"],
                          o_shift=params["classifier_b"], out_dtype=jnp.float32)
    return logits


# ------------------------------------ main --------------------------------------

if __name__ == "__main__":
    # Scaled-down DenseNet121 hyper-parameters for a small, fast demo.
    # Real DenseNet121: growth_rate=32, block_config=(6, 12, 24, 16),
    # num_init_features=64, bn_size=4, classifier in_features=1024.
    GROWTH_RATE = 8
    BLOCK_CONFIG = (2, 2, 2, 2)
    NUM_INIT_FEATURES = 16
    BN_SIZE = 4
    NUM_CLASSES = 2
    DROPOUT_RATE = 0.5

    key = jax.random.PRNGKey(0)
    k_params, k_x = jax.random.split(key)
    params = init_params(
        k_params,
        growth_rate=GROWTH_RATE,
        block_config=BLOCK_CONFIG,
        num_init_features=NUM_INIT_FEATURES,
        bn_size=BN_SIZE,
        num_classes=NUM_CLASSES,
    )
    x = jax.random.normal(k_x, (2, 3, 32, 32), jnp.float32)   # NCHW like PyTorch

    fwd = jax.jit(lambda p, xx: densenet_privacy_forward(p, xx, dropout_rate=DROPOUT_RATE))
    logits = jax.block_until_ready(fwd(params, x))
    assert logits.shape == (2, NUM_CLASSES), logits.shape
    assert bool(jnp.all(jnp.isfinite(logits)))
    print("KERNEL_OK")
</pallas_src>

<mosaic_0001>
module attributes {stable_mosaic.version = 11 : i64} {
  func.func @kernel(%arg0: i32, %arg1: i32, %arg2: i32, %arg3: memref<512x256xbf16, #tpu.memory_space<vmem>>, %arg4: memref<256x128xbf16, #tpu.memory_space<vmem>>, %arg5: memref<1x128xf32, #tpu.memory_space<vmem>>, %arg6: memref<1x128xf32, #tpu.memory_space<vmem>>, %arg7: memref<512x128xbf16, #tpu.memory_space<vmem>>, %arg8: memref<512x128xf32, #tpu.memory_space<vmem>>) attributes {dimension_semantics = [#tpu.dimension_semantics<parallel>, #tpu.dimension_semantics<parallel>, #tpu.dimension_semantics<arbitrary>], iteration_bounds = array<i64: 1, 1, 1>, scalar_prefetch = 0 : i64, scratch_operands = 1 : i64, tpu.core_type = #tpu.core_type<tc>, window_params = [{transform_indices = @transform_0, window_bounds = array<i64: 512, 256>}, {transform_indices = @transform_1, window_bounds = array<i64: 256, 128>}, {transform_indices = @transform_2, window_bounds = array<i64: 1, 128>}, {transform_indices = @transform_3, window_bounds = array<i64: 1, 128>}, {transform_indices = @transform_4, window_bounds = array<i64: 512, 128>}]} {
    %c0_i32 = arith.constant 0 : i32
    %0 = arith.cmpi eq, %arg2, %c0_i32 : i32
    %1 = arith.extui %0 : i1 to i32
    %c0_i32_0 = arith.constant 0 : i32
    %2 = arith.cmpi ne, %1, %c0_i32_0 : i32
    scf.if %2 {
      %cst_10 = arith.constant 0.000000e+00 : f32
      %12 = vector.broadcast %cst_10 : f32 to vector<512x128xf32>
      %c0_11 = arith.constant 0 : index
      %c0_12 = arith.constant 0 : index
      %13 = vector.load %arg8[%c0_11, %c0_12] : memref<512x128xf32, #tpu.memory_space<vmem>>, vector<512x128xf32>
      tpu.vector_store %arg8[%c0_11, %c0_12], %12 {strides = array<i32>} : memref<512x128xf32, #tpu.memory_space<vmem>>, vector<512x128xf32>,
    } else {
    }
    %c0 = arith.constant 0 : index
    %c0_1 = arith.constant 0 : index
    %3 = vector.load %arg3[%c0, %c0_1] : memref<512x256xbf16, #tpu.memory_space<vmem>>, vector<512x256xbf16>
    %c0_2 = arith.constant 0 : index
    %c0_3 = arith.constant 0 : index
    %4 = vector.load %arg8[%c0_2, %c0_3] : memref<512x128xf32, #tpu.memory_space<vmem>>, vector<512x128xf32>
    %c0_4 = arith.constant 0 : index
    %c0_5 = arith.constant 0 : index
    %5 = vector.load %arg4[%c0_4, %c0_5] : memref<256x128xbf16, #tpu.memory_space<vmem>>, vector<256x128xbf16>
    %cst = arith.constant dense<0.000000e+00> : vector<512x128xf32>
    %6 = tpu.matmul %3, %5, %cst {dimension_numbers = #tpu.dot_dimension_numbers<[1], [0], [0], [1], [0, 0, 1, 1], [], []>} : vector<512x256xbf16>, vector<256x128xbf16>, vector<512x128xf32> -> vector<512x128xf32>
    %7 = arith.addf %4, %6 : vector<512x128xf32>
    %c0_6 = arith.constant 0 : index
    %c0_7 = arith.constant 0 : index
    %8 = vector.load %arg8[%c0_6, %c0_7] : memref<512x128xf32, #tpu.memory_space<vmem>>, vector<512x128xf32>
    tpu.vector_store %arg8[%c0_6, %c0_7], %7 {strides = array<i32>} : memref<512x128xf32, #tpu.memory_space<vmem>>, vector<512x128xf32>,
    %c0_i32_8 = arith.constant 0 : i32
    %9 = arith.cmpi eq, %arg2, %c0_i32_8 : i32
    %10 = arith.extui %9 : i1 to i32
    %c0_i32_9 = arith.constant 0 : i32
    %11 = arith.cmpi ne, %10, %c0_i32_9 : i32
    scf.if %11 {
      %c0_10 = arith.constant 0 : index
      %c0_11 = arith.constant 0 : index
      %12 = vector.load %arg8[%c0_10, %c0_11] : memref<512x128xf32, #tpu.memory_space<vmem>>, vector<512x128xf32>
      %c0_12 = arith.constant 0 : index
      %c0_13 = arith.constant 0 : index
      %13 = vector.load %arg5[%c0_12, %c0_13] : memref<1x128xf32, #tpu.memory_space<vmem>>, vector<1x128xf32>
      %14 = vector.broadcast %13 : vector<1x128xf32> to vector<512x128xf32>
      %15 = arith.mulf %12, %14 : vector<512x128xf32>
      %c0_14 = arith.constant 0 : index
      %c0_15 = arith.constant 0 : index
      %16 = vector.load %arg6[%c0_14, %c0_15] : memref<1x128xf32, #tpu.memory_space<vmem>>, vector<1x128xf32>
      %17 = vector.broadcast %16 : vector<1x128xf32> to vector<512x128xf32>
      %18 = arith.addf %15, %17 : vector<512x128xf32>
      %cst_16 = arith.constant 0.000000e+00 : f32
      %19 = vector.broadcast %cst_16 : f32 to vector<512x128xf32>
      %20 = arith.maximumf %18, %19 : vector<512x128xf32>
      %21 = arith.truncf %20 : vector<512x128xf32> to vector<512x128xbf16>
      %c0_17 = arith.constant 0 : index
      %c0_18 = arith.constant 0 : index
      %22 = vector.load %arg7[%c0_17, %c0_18] : memref<512x128xbf16, #tpu.memory_space<vmem>>, vector<512x128xbf16>
      tpu.vector_store %arg7[%c0_17, %c0_18], %21 {strides = array<i32>} : memref<512x128xbf16, #tpu.memory_space<vmem>>, vector<512x128xbf16>,
    } else {
    }
    return
  }
  func.func @transform_0(%arg0: i32, %arg1: i32, %arg2: i32) -> (i32, i32) {
    %c0_i32 = arith.constant 0 : i32
    return %arg0, %arg2 : i32, i32
  }
  func.func @transform_1(%arg0: i32, %arg1: i32, %arg2: i32) -> (i32, i32) {
    %c0_i32 = arith.constant 0 : i32
    return %arg2, %arg1 : i32, i32
  }
  func.func @transform_2(%arg0: i32, %arg1: i32, %arg2: i32) -> (i32, i32) {
    %c0_i32 = arith.constant 0 : i32
    %c0_i32_0 = arith.constant 0 : i32
    return %c0_i32, %arg1 : i32, i32
  }
  func.func @transform_3(%arg0: i32, %arg1: i32, %arg2: i32) -> (i32, i32) {
    %c0_i32 = arith.constant 0 : i32
    %c0_i32_0 = arith.constant 0 : i32
    return %c0_i32, %arg1 : i32, i32
  }
  func.func @transform_4(%arg0: i32, %arg1: i32, %arg2: i32) -> (i32, i32) {
    %c0_i32 = arith.constant 0 : i32
    return %arg0, %arg1 : i32, i32
  }
}

module attributes {stable_mosaic.version = 11 : i64} {
  func.func @kernel(%arg0: i32, %arg1: memref<9x128x16xbf16, #tpu.memory_space<vmem>>, %arg2: memref<128x16xbf16, #tpu.memory_space<vmem>>) attributes {dimension_semantics = [#tpu.dimension_semantics<parallel>], iteration_bounds = array<i64: 1>, scalar_prefetch = 0 : i64, scratch_operands = 0 : i64, tpu.core_type = #tpu.core_type<tc>, window_params = [{transform_indices = @transform_0, window_bounds = array<i64: 9, 128, 16>}, {transform_indices = @transform_1, window_bounds = array<i64: 128, 16>}]} {
    %c0 = arith.constant 0 : index
    %c0_0 = arith.constant 0 : index
    %c0_1 = arith.constant 0 : index
    %0 = vector.load %arg1[%c0, %c0_0, %c0_1] : memref<9x128x16xbf16, #tpu.memory_space<vmem>>, vector<9x128x16xbf16>
    %1 = arith.extf %0 : vector<9x128x16xbf16> to vector<9x128x16xf32>
    %cst = arith.constant dense<0xFF800000> : vector<128x16xf32>
    %2 = vector.multi_reduction <maximumf>, %1, %cst [0] : vector<9x128x16xf32> to vector<128x16xf32>
    %3 = arith.truncf %2 : vector<128x16xf32> to vector<128x16xbf16>
    %c0_2 = arith.constant 0 : index
    %c0_3 = arith.constant 0 : index
    %4 = vector.load %arg2[%c0_2, %c0_3] : memref<128x16xbf16, #tpu.memory_space<vmem>>, vector<128x16xbf16>
    tpu.vector_store %arg2[%c0_2, %c0_3], %3 {strides = array<i32>} : memref<128x16xbf16, #tpu.memory_space<vmem>>, vector<128x16xbf16>,
    return
  }
  func.func @transform_0(%arg0: i32) -> (i32, i32, i32) {
    %c0_i32 = arith.constant 0 : i32
    %c0_i32_0 = arith.constant 0 : i32
    %c0_i32_1 = arith.constant 0 : i32
    return %c0_i32, %arg0, %c0_i32_0 : i32, i32, i32
  }
  func.func @transform_1(%arg0: i32) -> (i32, i32) {
    %c0_i32 = arith.constant 0 : i32
    %c0_i32_0 = arith.constant 0 : i32
    return %arg0, %c0_i32 : i32, i32
  }
}

module attributes {stable_mosaic.version = 11 : i64} {
  func.func @kernel(%arg0: i32, %arg1: i32, %arg2: i32, %arg3: memref<128x128xbf16, #tpu.memory_space<vmem>>, %arg4: memref<128x128xbf16, #tpu.memory_space<vmem>>, %arg5: memref<1x128xf32, #tpu.memory_space<vmem>>, %arg6: memref<1x128xf32, #tpu.memory_space<vmem>>, %arg7: memref<1x128xf32, #tpu.memory_space<vmem>>, %arg8: memref<1x128xf32, #tpu.memory_space<vmem>>, %arg9: memref<128x128xbf16, #tpu.memory_space<vmem>>, %arg10: memref<128x128xf32, #tpu.memory_space<vmem>>) attributes {dimension_semantics = [#tpu.dimension_semantics<parallel>, #tpu.dimension_semantics<parallel>, #tpu.dimension_semantics<arbitrary>], iteration_bounds = array<i64: 1, 1, 1>, scalar_prefetch = 0 : i64, scratch_operands = 1 : i64, tpu.core_type = #tpu.core_type<tc>, window_params = [{transform_indices = @transform_0, window_bounds = array<i64: 128, 128>}, {transform_indices = @transform_1, window_bounds = array<i64: 128, 128>}, {transform_indices = @transform_2, window_bounds = array<i64: 1, 128>}, {transform_indices = @transform_3, window_bounds = array<i64: 1, 128>}, {transform_indices = @transform_4, window_bounds = array<i64: 1, 128>}, {transform_indices = @transform_5, window_bounds = array<i64: 1, 128>}, {transform_indices = @transform_6, window_bounds = array<i64: 128, 128>}]} {
    %c0_i32 = arith.constant 0 : i32
    %0 = arith.cmpi eq, %arg2, %c0_i32 : i32
    %1 = arith.extui %0 : i1 to i32
    %c0_i32_0 = arith.constant 0 : i32
    %2 = arith.cmpi ne, %1, %c0_i32_0 : i32
    scf.if %2 {
      %cst_15 = arith.constant 0.000000e+00 : f32
      %22 = vector.broadcast %cst_15 : f32 to vector<128x128xf32>
      %c0_16 = arith.constant 0 : index
      %c0_17 = arith.constant 0 : index
      %23 = vector.load %arg10[%c0_16, %c0_17] : memref<128x128xf32, #tpu.memory_space<vmem>>, vector<128x128xf32>
      tpu.vector_store %arg10[%c0_16, %c0_17], %22 {strides = array<i32>} : memref<128x128xf32, #tpu.memory_space<vmem>>, vector<128x128xf32>,
    } else {
    }
    %c0 = arith.constant 0 : index
    %c0_1 = arith.constant 0 : index
    %3 = vector.load %arg3[%c0, %c0_1] : memref<128x128xbf16, #tpu.memory_space<vmem>>, vector<128x128xbf16>
    %4 = arith.extf %3 : vector<128x128xbf16> to vector<128x128xf32>
    %c0_2 = arith.constant 0 : index
    %c0_3 = arith.constant 0 : index
    %5 = vector.load %arg5[%c0_2, %c0_3] : memref<1x128xf32, #tpu.memory_space<vmem>>, vector<1x128xf32>
    %6 = vector.broadcast %5 : vector<1x128xf32> to vector<128x128xf32>
    %7 = arith.mulf %4, %6 : vector<128x128xf32>
    %c0_4 = arith.constant 0 : index
    %c0_5 = arith.constant 0 : index
    %8 = vector.load %arg6[%c0_4, %c0_5] : memref<1x128xf32, #tpu.memory_space<vmem>>, vector<1x128xf32>
    %9 = vector.broadcast %8 : vector<1x128xf32> to vector<128x128xf32>
    %10 = arith.addf %7, %9 : vector<128x128xf32>
    %cst = arith.constant 0.000000e+00 : f32
    %11 = vector.broadcast %cst : f32 to vector<128x128xf32>
    %12 = arith.maximumf %10, %11 : vector<128x128xf32>
    %13 = arith.truncf %12 : vector<128x128xf32> to vector<128x128xbf16>
    %c0_6 = arith.constant 0 : index
    %c0_7 = arith.constant 0 : index
    %14 = vector.load %arg10[%c0_6, %c0_7] : memref<128x128xf32, #tpu.memory_space<vmem>>, vector<128x128xf32>
    %c0_8 = arith.constant 0 : index
    %c0_9 = arith.constant 0 : index
    %15 = vector.load %arg4[%c0_8, %c0_9] : memref<128x128xbf16, #tpu.memory_space<vmem>>, vector<128x128xbf16>
    %cst_10 = arith.constant dense<0.000000e+00> : vector<128x128xf32>
    %16 = tpu.matmul %13, %15, %cst_10 {dimension_numbers = #tpu.dot_dimension_numbers<[1], [0], [0], [1], [0, 0, 1, 1], [], []>} : vector<128x128xbf16>, vector<128x128xbf16>, vector<128x128xf32> -> vector<128x128xf32>
    %17 = arith.addf %14, %16 : vector<128x128xf32>
    %c0_11 = arith.constant 0 : index
    %c0_12 = arith.constant 0 : index
    %18 = vector.load %arg10[%c0_11, %c0_12] : memref<128x128xf32, #tpu.memory_space<vmem>>, vector<128x128xf32>
    tpu.vector_store %arg10[%c0_11, %c0_12], %17 {strides = array<i32>} : memref<128x128xf32, #tpu.memory_space<vmem>>, vector<128x128xf32>,
    %c0_i32_13 = arith.constant 0 : i32
    %19 = arith.cmpi eq, %arg2, %c0_i32_13 : i32
    %20 = arith.extui %19 : i1 to i32
    %c0_i32_14 = arith.constant 0 : i32
    %21 = arith.cmpi ne, %20, %c0_i32_14 : i32
    scf.if %21 {
      %c0_15 = arith.constant 0 : index
      %c0_16 = arith.constant 0 : index
      %22 = vector.load %arg10[%c0_15, %c0_16] : memref<128x128xf32, #tpu.memory_space<vmem>>, vector<128x128xf32>
      %c0_17 = arith.constant 0 : index
      %c0_18 = arith.constant 0 : index
      %23 = vector.load %arg7[%c0_17, %c0_18] : memref<1x128xf32, #tpu.memory_space<vmem>>, vector<1x128xf32>
      %24 = vector.broadcast %23 : vector<1x128xf32> to vector<128x128xf32>
      %25 = arith.mulf %22, %24 : vector<128x128xf32>
      %c0_19 = arith.constant 0 : index
      %c0_20 = arith.constant 0 : index
      %26 = vector.load %arg8[%c0_19, %c0_20] : memref<1x128xf32, #tpu.memory_space<vmem>>, vector<1x128xf32>
      %27 = vector.broadcast %26 : vector<1x128xf32> to vector<128x128xf32>
      %28 = arith.addf %25, %27 : vector<128x128xf32>
      %cst_21 = arith.constant 0.000000e+00 : f32
      %29 = vector.broadcast %cst_21 : f32 to vector<128x128xf32>
      %30 = arith.maximumf %28, %29 : vector<128x128xf32>
      %31 = arith.truncf %30 : vector<128x128xf32> to vector<128x128xbf16>
      %c0_22 = arith.constant 0 : index
      %c0_23 = arith.constant 0 : index
      %32 = vector.load %arg9[%c0_22, %c0_23] : memref<128x128xbf16, #tpu.memory_space<vmem>>, vector<128x128xbf16>
      tpu.vector_store %arg9[%c0_22, %c0_23], %31 {strides = array<i32>} : memref<128x128xbf16, #tpu.memory_space<vmem>>, vector<128x128xbf16>,
    } else {
    }
    return
  }
  func.func @transform_0(%arg0: i32, %arg1: i32, %arg2: i32) -> (i32, i32) {
    %c0_i32 = arith.constant 0 : i32
    return %arg0, %arg2 : i32, i32
  }
  func.func @transform_1(%arg0: i32, %arg1: i32, %arg2: i32) -> (i32, i32) {
    %c0_i32 = arith.constant 0 : i32
    return %arg2, %arg1 : i32, i32
  }
  func.func @transform_2(%arg0: i32, %arg1: i32, %arg2: i32) -> (i32, i32) {
    %c0_i32 = arith.constant 0 : i32
    %c0_i32_0 = arith.constant 0 : i32
    return %c0_i32, %arg2 : i32, i32
  }
  func.func @transform_3(%arg0: i32, %arg1: i32, %arg2: i32) -> (i32, i32) {
    %c0_i32 = arith.constant 0 : i32
    %c0_i32_0 = arith.constant 0 : i32
    return %c0_i32, %arg2 : i32, i32
  }
  func.func @transform_4(%arg0: i32, %arg1: i32, %arg2: i32) -> (i32, i32) {
    %c0_i32 = arith.constant 0 : i32
    %c0_i32_0 = arith.constant 0 : i32
    return %c0_i32, %arg1 : i32, i32
  }
  func.func @transform_5(%arg0: i32, %arg1: i32, %arg2: i32) -> (i32, i32) {
    %c0_i32 = arith.constant 0 : i32
    %c0_i32_0 = arith.constant 0 : i32
    return %c0_i32, %arg1 : i32, i32
  }
  func.func @transform_6(%arg0: i32, %arg1: i32, %arg2: i32) -> (i32, i32) {
    %c0_i32 = arith.constant 0 : i32
    return %arg0, %arg1 : i32, i32
  }
}

module attributes {stable_mosaic.version = 11 : i64} {
  func.func @kernel(%arg0: i32, %arg1: i32, %arg2: i32, %arg3: memref<128x256xbf16, #tpu.memory_space<vmem>>, %arg4: memref<256x128xbf16, #tpu.memory_space<vmem>>, %arg5: memref<128x128xbf16, #tpu.memory_space<vmem>>, %arg6: memref<128x128xf32, #tpu.memory_space<vmem>>) attributes {dimension_semantics = [#tpu.dimension_semantics<parallel>, #tpu.dimension_semantics<parallel>, #tpu.dimension_semantics<arbitrary>], iteration_bounds = array<i64: 1, 1, 2>, scalar_prefetch = 0 : i64, scratch_operands = 1 : i64, tpu.core_type = #tpu.core_type<tc>, window_params = [{transform_indices = @transform_0, window_bounds = array<i64: 128, 256>}, {transform_indices = @transform_1, window_bounds = array<i64: 256, 128>}, {transform_indices = @transform_2, window_bounds = array<i64: 128, 128>}]} {
    %c0_i32 = arith.constant 0 : i32
    %0 = arith.cmpi eq, %arg2, %c0_i32 : i32
    %1 = arith.extui %0 : i1 to i32
    %c0_i32_0 = arith.constant 0 : i32
    %2 = arith.cmpi ne, %1, %c0_i32_0 : i32
    scf.if %2 {
      %cst_9 = arith.constant 0.000000e+00 : f32
      %12 = vector.broadcast %cst_9 : f32 to vector<128x128xf32>
      %c0_10 = arith.constant 0 : index
      %c0_11 = arith.constant 0 : index
      %13 = vector.load %arg6[%c0_10, %c0_11] : memref<128x128xf32, #tpu.memory_space<vmem>>, vector<128x128xf32>
      tpu.vector_store %arg6[%c0_10, %c0_11], %12 {strides = array<i32>} : memref<128x128xf32, #tpu.memory_space<vmem>>, vector<128x128xf32>,
    } else {
    }
    %c0 = arith.constant 0 : index
    %c0_1 = arith.constant 0 : index
    %3 = vector.load %arg3[%c0, %c0_1] : memref<128x256xbf16, #tpu.memory_space<vmem>>, vector<128x256xbf16>
    %c0_2 = arith.constant 0 : index
    %c0_3 = arith.constant 0 : index
    %4 = vector.load %arg6[%c0_2, %c0_3] : memref<128x128xf32, #tpu.memory_space<vmem>>, vector<128x128xf32>
    %c0_4 = arith.constant 0 : index
    %c0_5 = arith.constant 0 : index
    %5 = vector.load %arg4[%c0_4, %c0_5] : memref<256x128xbf16, #tpu.memory_space<vmem>>, vector<256x128xbf16>
    %cst = arith.constant dense<0.000000e+00> : vector<128x128xf32>
    %6 = tpu.matmul %3, %5, %cst {dimension_numbers = #tpu.dot_dimension_numbers<[1], [0], [0], [1], [0, 0, 1, 1], [], []>} : vector<128x256xbf16>, vector<256x128xbf16>, vector<128x128xf32> -> vector<128x128xf32>
    %7 = arith.addf %4, %6 : vector<128x128xf32>
    %c0_6 = arith.constant 0 : index
    %c0_7 = arith.constant 0 : index
    %8 = vector.load %arg6[%c0_6, %c0_7] : memref<128x128xf32, #tpu.memory_space<vmem>>, vector<128x128xf32>
    tpu.vector_store %arg6[%c0_6, %c0_7], %7 {strides = array<i32>} : memref<128x128xf32, #tpu.memory_space<vmem>>, vector<128x128xf32>,
    %c1_i32 = arith.constant 1 : i32
    %9 = arith.cmpi eq, %arg2, %c1_i32 : i32
    %10 = arith.extui %9 : i1 to i32
    %c0_i32_8 = arith.constant 0 : i32
    %11 = arith.cmpi ne, %10, %c0_i32_8 : i32
    scf.if %11 {
      %c0_9 = arith.constant 0 : index
      %c0_10 = arith.constant 0 : index
      %12 = vector.load %arg6[%c0_9, %c0_10] : memref<128x128xf32, #tpu.memory_space<vmem>>, vector<128x128xf32>
      %13 = arith.truncf %12 : vector<128x128xf32> to vector<128x128xbf16>
      %c0_11 = arith.constant 0 : index
      %c0_12 = arith.constant 0 : index
      %14 = vector.load %arg5[%c0_11, %c0_12] : memref<128x128xbf16, #tpu.memory_space<vmem>>, vector<128x128xbf16>
      tpu.vector_store %arg5[%c0_11, %c0_12], %13 {strides = array<i32>} : memref<128x128xbf16, #tpu.memory_space<vmem>>, vector<128x128xbf16>,
    } else {
    }
    return
  }
  func.func @transform_0(%arg0: i32, %arg1: i32, %arg2: i32) -> (i32, i32) {
    %c0_i32 = arith.constant 0 : i32
    return %arg0, %arg2 : i32, i32
  }
  func.func @transform_1(%arg0: i32, %arg1: i32, %arg2: i32) -> (i32, i32) {
    %c0_i32 = arith.constant 0 : i32
    return %arg2, %arg1 : i32, i32
  }
  func.func @transform_2(%arg0: i32, %arg1: i32, %arg2: i32) -> (i32, i32) {
    %c0_i32 = arith.constant 0 : i32
    return %arg0, %arg1 : i32, i32
  }
}

module attributes {stable_mosaic.version = 11 : i64} {
  func.func @kernel(%arg0: i32, %arg1: i32, %arg2: i32, %arg3: memref<128x128xbf16, #tpu.memory_space<vmem>>, %arg4: memref<128x128xbf16, #tpu.memory_space<vmem>>, %arg5: memref<1x128xf32, #tpu.memory_space<vmem>>, %arg6: memref<1x128xf32, #tpu.memory_space<vmem>>, %arg7: memref<128x128xbf16, #tpu.memory_space<vmem>>, %arg8: memref<128x128xf32, #tpu.memory_space<vmem>>) attributes {dimension_semantics = [#tpu.dimension_semantics<parallel>, #tpu.dimension_semantics<parallel>, #tpu.dimension_semantics<arbitrary>], iteration_bounds = array<i64: 1, 1, 1>, scalar_prefetch = 0 : i64, scratch_operands = 1 : i64, tpu.core_type = #tpu.core_type<tc>, window_params = [{transform_indices = @transform_0, window_bounds = array<i64: 128, 128>}, {transform_indices = @transform_1, window_bounds = array<i64: 128, 128>}, {transform_indices = @transform_2, window_bounds = array<i64: 1, 128>}, {transform_indices = @transform_3, window_bounds = array<i64: 1, 128>}, {transform_indices = @transform_4, window_bounds = array<i64: 128, 128>}]} {
    %c0_i32 = arith.constant 0 : i32
    %0 = arith.cmpi eq, %arg2, %c0_i32 : i32
    %1 = arith.extui %0 : i1 to i32
    %c0_i32_0 = arith.constant 0 : i32
    %2 = arith.cmpi ne, %1, %c0_i32_0 : i32
    scf.if %2 {
      %cst_15 = arith.constant 0.000000e+00 : f32
      %22 = vector.broadcast %cst_15 : f32 to vector<128x128xf32>
      %c0_16 = arith.constant 0 : index
      %c0_17 = arith.constant 0 : index
      %23 = vector.load %arg8[%c0_16, %c0_17] : memref<128x128xf32, #tpu.memory_space<vmem>>, vector<128x128xf32>
      tpu.vector_store %arg8[%c0_16, %c0_17], %22 {strides = array<i32>} : memref<128x128xf32, #tpu.memory_space<vmem>>, vector<128x128xf32>,
    } else {
    }
    %c0 = arith.constant 0 : index
    %c0_1 = arith.constant 0 : index
    %3 = vector.load %arg3[%c0, %c0_1] : memref<128x128xbf16, #tpu.memory_space<vmem>>, vector<128x128xbf16>
    %4 = arith.extf %3 : vector<128x128xbf16> to vector<128x128xf32>
    %c0_2 = arith.constant 0 : index
    %c0_3 = arith.constant 0 : index
    %5 = vector.load %arg5[%c0_2, %c0_3] : memref<1x128xf32, #tpu.memory_space<vmem>>, vector<1x128xf32>
    %6 = vector.broadcast %5 : vector<1x128xf32> to vector<128x128xf32>
    %7 = arith.mulf %4, %6 : vector<128x128xf32>
    %c0_4 = arith.constant 0 : index
    %c0_5 = arith.constant 0 : index
    %8 = vector.load %arg6[%c0_4, %c0_5] : memref<1x128xf32, #tpu.memory_space<vmem>>, vector<1x128xf32>
    %9 = vector.broadcast %8 : vector<1x128xf32> to vector<128x128xf32>
    %10 = arith.addf %7, %9 : vector<128x128xf32>
    %cst = arith.constant 0.000000e+00 : f32
    %11 = vector.broadcast %cst : f32 to vector<128x128xf32>
    %12 = arith.maximumf %10, %11 : vector<128x128xf32>
    %13 = arith.truncf %12 : vector<128x128xf32> to vector<128x128xbf16>
    %c0_6 = arith.constant 0 : index
    %c0_7 = arith.constant 0 : index
    %14 = vector.load %arg8[%c0_6, %c0_7] : memref<128x128xf32, #tpu.memory_space<vmem>>, vector<128x128xf32>
    %c0_8 = arith.constant 0 : index
    %c0_9 = arith.constant 0 : index
    %15 = vector.load %arg4[%c0_8, %c0_9] : memref<128x128xbf16, #tpu.memory_space<vmem>>, vector<128x128xbf16>
    %cst_10 = arith.constant dense<0.000000e+00> : vector<128x128xf32>
    %16 = tpu.matmul %13, %15, %cst_10 {dimension_numbers = #tpu.dot_dimension_numbers<[1], [0], [0], [1], [0, 0, 1, 1], [], []>} : vector<128x128xbf16>, vector<128x128xbf16>, vector<128x128xf32> -> vector<128x128xf32>
    %17 = arith.addf %14, %16 : vector<128x128xf32>
    %c0_11 = arith.constant 0 : index
    %c0_12 = arith.constant 0 : index
    %18 = vector.load %arg8[%c0_11, %c0_12] : memref<128x128xf32, #tpu.memory_space<vmem>>, vector<128x128xf32>
    tpu.vector_store %arg8[%c0_11, %c0_12], %17 {strides = array<i32>} : memref<128x128xf32, #tpu.memory_space<vmem>>, vector<128x128xf32>,
    %c0_i32_13 = arith.constant 0 : i32
    %19 = arith.cmpi eq, %arg2, %c0_i32_13 : i32
    %20 = arith.extui %19 : i1 to i32
    %c0_i32_14 = arith.constant 0 : i32
    %21 = arith.cmpi ne, %20, %c0_i32_14 : i32
    scf.if %21 {
      %c0_15 = arith.constant 0 : index
      %c0_16 = arith.constant 0 : index
      %22 = vector.load %arg8[%c0_15, %c0_16] : memref<128x128xf32, #tpu.memory_space<vmem>>, vector<128x128xf32>
      %23 = arith.truncf %22 : vector<128x128xf32> to vector<128x128xbf16>
      %c0_17 = arith.constant 0 : index
      %c0_18 = arith.constant 0 : index
      %24 = vector.load %arg7[%c0_17, %c0_18] : memref<128x128xbf16, #tpu.memory_space<vmem>>, vector<128x128xbf16>
      tpu.vector_store %arg7[%c0_17, %c0_18], %23 {strides = array<i32>} : memref<128x128xbf16, #tpu.memory_space<vmem>>, vector<128x128xbf16>,
    } else {
    }
    return
  }
  func.func @transform_0(%arg0: i32, %arg1: i32, %arg2: i32) -> (i32, i32) {
    %c0_i32 = arith.constant 0 : i32
    return %arg0, %arg2 : i32, i32
  }
  func.func @transform_1(%arg0: i32, %arg1: i32, %arg2: i32) -> (i32, i32) {
    %c0_i32 = arith.constant 0 : i32
    return %arg2, %arg1 : i32, i32
  }
  func.func @transform_2(%arg0: i32, %arg1: i32, %arg2: i32) -> (i32, i32) {
    %c0_i32 = arith.constant 0 : i32
    %c0_i32_0 = arith.constant 0 : i32
    return %c0_i32, %arg2 : i32, i32
  }
  func.func @transform_3(%arg0: i32, %arg1: i32, %arg2: i32) -> (i32, i32) {
    %c0_i32 = arith.constant 0 : i32
    %c0_i32_0 = arith.constant 0 : i32
    return %c0_i32, %arg2 : i32, i32
  }
  func.func @transform_4(%arg0: i32, %arg1: i32, %arg2: i32) -> (i32, i32) {
    %c0_i32 = arith.constant 0 : i32
    return %arg0, %arg1 : i32, i32
  }
}

module attributes {stable_mosaic.version = 11 : i64} {
  func.func @kernel(%arg0: i32, %arg1: memref<4x32x16xbf16, #tpu.memory_space<vmem>>, %arg2: memref<32x16xbf16, #tpu.memory_space<vmem>>) attributes {dimension_semantics = [#tpu.dimension_semantics<parallel>], iteration_bounds = array<i64: 1>, scalar_prefetch = 0 : i64, scratch_operands = 0 : i64, tpu.core_type = #tpu.core_type<tc>, window_params = [{transform_indices = @transform_0, window_bounds = array<i64: 4, 32, 16>}, {transform_indices = @transform_1, window_bounds = array<i64: 32, 16>}]} {
    %c0 = arith.constant 0 : index
    %c0_0 = arith.constant 0 : index
    %c0_1 = arith.constant 0 : index
    %0 = vector.load %arg1[%c0, %c0_0, %c0_1] : memref<4x32x16xbf16, #tpu.memory_space<vmem>>, vector<4x32x16xbf16>
    %1 = arith.extf %0 : vector<4x32x16xbf16> to vector<4x32x16xf32>
    %cst = arith.constant dense<0.000000e+00> : vector<32x16xf32>
    %2 = vector.multi_reduction <add>, %1, %cst [0] : vector<4x32x16xf32> to vector<32x16xf32>
    %cst_2 = arith.constant 4.000000e+00 : f32
    %3 = vector.broadcast %cst_2 : f32 to vector<32x16xf32>
    %4 = arith.divf %2, %3 : vector<32x16xf32>
    %5 = arith.truncf %4 : vector<32x16xf32> to vector<32x16xbf16>
    %c0_3 = arith.constant 0 : index
    %c0_4 = arith.constant 0 : index
    %6 = vector.load %arg2[%c0_3, %c0_4] : memref<32x16xbf16, #tpu.memory_space<vmem>>, vector<32x16xbf16>
    tpu.vector_store %arg2[%c0_3, %c0_4], %5 {strides = array<i32>} : memref<32x16xbf16, #tpu.memory_space<vmem>>, vector<32x16xbf16>,
    return
  }
  func.func @transform_0(%arg0: i32) -> (i32, i32, i32) {
    %c0_i32 = arith.constant 0 : i32
    %c0_i32_0 = arith.constant 0 : i32
    %c0_i32_1 = arith.constant 0 : i32
    return %c0_i32, %arg0, %c0_i32_0 : i32, i32, i32
  }
  func.func @transform_1(%arg0: i32) -> (i32, i32) {
    %c0_i32 = arith.constant 0 : i32
    %c0_i32_0 = arith.constant 0 : i32
    return %arg0, %c0_i32 : i32, i32
  }
}

module attributes {stable_mosaic.version = 11 : i64} {
  func.func @kernel(%arg0: i32, %arg1: i32, %arg2: i32, %arg3: memref<32x128xbf16, #tpu.memory_space<vmem>>, %arg4: memref<128x128xbf16, #tpu.memory_space<vmem>>, %arg5: memref<1x128xf32, #tpu.memory_space<vmem>>, %arg6: memref<1x128xf32, #tpu.memory_space<vmem>>, %arg7: memref<1x128xf32, #tpu.memory_space<vmem>>, %arg8: memref<1x128xf32, #tpu.memory_space<vmem>>, %arg9: memref<32x128xbf16, #tpu.memory_space<vmem>>, %arg10: memref<32x128xf32, #tpu.memory_space<vmem>>) attributes {dimension_semantics = [#tpu.dimension_semantics<parallel>, #tpu.dimension_semantics<parallel>, #tpu.dimension_semantics<arbitrary>], iteration_bounds = array<i64: 1, 1, 1>, scalar_prefetch = 0 : i64, scratch_operands = 1 : i64, tpu.core_type = #tpu.core_type<tc>, window_params = [{transform_indices = @transform_0, window_bounds = array<i64: 32, 128>}, {transform_indices = @transform_1, window_bounds = array<i64: 128, 128>}, {transform_indices = @transform_2, window_bounds = array<i64: 1, 128>}, {transform_indices = @transform_3, window_bounds = array<i64: 1, 128>}, {transform_indices = @transform_4, window_bounds = array<i64: 1, 128>}, {transform_indices = @transform_5, window_bounds = array<i64: 1, 128>}, {transform_indices = @transform_6, window_bounds = array<i64: 32, 128>}]} {
    %c0_i32 = arith.constant 0 : i32
    %0 = arith.cmpi eq, %arg2, %c0_i32 : i32
    %1 = arith.extui %0 : i1 to i32
    %c0_i32_0 = arith.constant 0 : i32
    %2 = arith.cmpi ne, %1, %c0_i32_0 : i32
    scf.if %2 {
      %cst_15 = arith.constant 0.000000e+00 : f32
      %22 = vector.broadcast %cst_15 : f32 to vector<32x128xf32>
      %c0_16 = arith.constant 0 : index
      %c0_17 = arith.constant 0 : index
      %23 = vector.load %arg10[%c0_16, %c0_17] : memref<32x128xf32, #tpu.memory_space<vmem>>, vector<32x128xf32>
      tpu.vector_store %arg10[%c0_16, %c0_17], %22 {strides = array<i32>} : memref<32x128xf32, #tpu.memory_space<vmem>>, vector<32x128xf32>,
    } else {
    }
    %c0 = arith.constant 0 : index
    %c0_1 = arith.constant 0 : index
    %3 = vector.load %arg3[%c0, %c0_1] : memref<32x128xbf16, #tpu.memory_space<vmem>>, vector<32x128xbf16>
    %4 = arith.extf %3 : vector<32x128xbf16> to vector<32x128xf32>
    %c0_2 = arith.constant 0 : index
    %c0_3 = arith.constant 0 : index
    %5 = vector.load %arg5[%c0_2, %c0_3] : memref<1x128xf32, #tpu.memory_space<vmem>>, vector<1x128xf32>
    %6 = vector.broadcast %5 : vector<1x128xf32> to vector<32x128xf32>
    %7 = arith.mulf %4, %6 : vector<32x128xf32>
    %c0_4 = arith.constant 0 : index
    %c0_5 = arith.constant 0 : index
    %8 = vector.load %arg6[%c0_4, %c0_5] : memref<1x128xf32, #tpu.memory_space<vmem>>, vector<1x128xf32>
    %9 = vector.broadcast %8 : vector<1x128xf32> to vector<32x128xf32>
    %10 = arith.addf %7, %9 : vector<32x128xf32>
    %cst = arith.constant 0.000000e+00 : f32
    %11 = vector.broadcast %cst : f32 to vector<32x128xf32>
    %12 = arith.maximumf %10, %11 : vector<32x128xf32>
    %13 = arith.truncf %12 : vector<32x128xf32> to vector<32x128xbf16>
    %c0_6 = arith.constant 0 : index
    %c0_7 = arith.constant 0 : index
    %14 = vector.load %arg10[%c0_6, %c0_7] : memref<32x128xf32, #tpu.memory_space<vmem>>, vector<32x128xf32>
    %c0_8 = arith.constant 0 : index
    %c0_9 = arith.constant 0 : index
    %15 = vector.load %arg4[%c0_8, %c0_9] : memref<128x128xbf16, #tpu.memory_space<vmem>>, vector<128x128xbf16>
    %cst_10 = arith.constant dense<0.000000e+00> : vector<32x128xf32>
    %16 = tpu.matmul %13, %15, %cst_10 {dimension_numbers = #tpu.dot_dimension_numbers<[1], [0], [0], [1], [0, 0, 1, 1], [], []>} : vector<32x128xbf16>, vector<128x128xbf16>, vector<32x128xf32> -> vector<32x128xf32>
    %17 = arith.addf %14, %16 : vector<32x128xf32>
    %c0_11 = arith.constant 0 : index
    %c0_12 = arith.constant 0 : index
    %18 = vector.load %arg10[%c0_11, %c0_12] : memref<32x128xf32, #tpu.memory_space<vmem>>, vector<32x128xf32>
    tpu.vector_store %arg10[%c0_11, %c0_12], %17 {strides = array<i32>} : memref<32x128xf32, #tpu.memory_space<vmem>>, vector<32x128xf32>,
    %c0_i32_13 = arith.constant 0 : i32
    %19 = arith.cmpi eq, %arg2, %c0_i32_13 : i32
    %20 = arith.extui %19 : i1 to i32
    %c0_i32_14 = arith.constant 0 : i32
    %21 = arith.cmpi ne, %20, %c0_i32_14 : i32
    scf.if %21 {
      %c0_15 = arith.constant 0 : index
      %c0_16 = arith.constant 0 : index
      %22 = vector.load %arg10[%c0_15, %c0_16] : memref<32x128xf32, #tpu.memory_space<vmem>>, vector<32x128xf32>
      %c0_17 = arith.constant 0 : index
      %c0_18 = arith.constant 0 : index
      %23 = vector.load %arg7[%c0_17, %c0_18] : memref<1x128xf32, #tpu.memory_space<vmem>>, vector<1x128xf32>
      %24 = vector.broadcast %23 : vector<1x128xf32> to vector<32x128xf32>
      %25 = arith.mulf %22, %24 : vector<32x128xf32>
      %c0_19 = arith.constant 0 : index
      %c0_20 = arith.constant 0 : index
      %26 = vector.load %arg8[%c0_19, %c0_20] : memref<1x128xf32, #tpu.memory_space<vmem>>, vector<1x128xf32>
      %27 = vector.broadcast %26 : vector<1x128xf32> to vector<32x128xf32>
      %28 = arith.addf %25, %27 : vector<32x128xf32>
      %cst_21 = arith.constant 0.000000e+00 : f32
      %29 = vector.broadcast %cst_21 : f32 to vector<32x128xf32>
      %30 = arith.maximumf %28, %29 : vector<32x128xf32>
      %31 = arith.truncf %30 : vector<32x128xf32> to vector<32x128xbf16>
      %c0_22 = arith.constant 0 : index
      %c0_23 = arith.constant 0 : index
      %32 = vector.load %arg9[%c0_22, %c0_23] : memref<32x128xbf16, #tpu.memory_space<vmem>>, vector<32x128xbf16>
      tpu.vector_store %arg9[%c0_22, %c0_23], %31 {strides = array<i32>} : memref<32x128xbf16, #tpu.memory_space<vmem>>, vector<32x128xbf16>,
    } else {
    }
    return
  }
  func.func @transform_0(%arg0: i32, %arg1: i32, %arg2: i32) -> (i32, i32) {
    %c0_i32 = arith.constant 0 : i32
    return %arg0, %arg2 : i32, i32
  }
  func.func @transform_1(%arg0: i32, %arg1: i32, %arg2: i32) -> (i32, i32) {
    %c0_i32 = arith.constant 0 : i32
    return %arg2, %arg1 : i32, i32
  }
  func.func @transform_2(%arg0: i32, %arg1: i32, %arg2: i32) -> (i32, i32) {
    %c0_i32 = arith.constant 0 : i32
    %c0_i32_0 = arith.constant 0 : i32
    return %c0_i32, %arg2 : i32, i32
  }
  func.func @transform_3(%arg0: i32, %arg1: i32, %arg2: i32) -> (i32, i32) {
    %c0_i32 = arith.constant 0 : i32
    %c0_i32_0 = arith.constant 0 : i32
    return %c0_i32, %arg2 : i32, i32
  }
  func.func @transform_4(%arg0: i32, %arg1: i32, %arg2: i32) -> (i32, i32) {
    %c0_i32 = arith.constant 0 : i32
    %c0_i32_0 = arith.constant 0 : i32
    return %c0_i32, %arg1 : i32, i32
  }
  func.func @transform_5(%arg0: i32, %arg1: i32, %arg2: i32) -> (i32, i32) {
    %c0_i32 = arith.constant 0 : i32
    %c0_i32_0 = arith.constant 0 : i32
    return %c0_i32, %arg1 : i32, i32
  }
  func.func @transform_6(%arg0: i32, %arg1: i32, %arg2: i32) -> (i32, i32) {
    %c0_i32 = arith.constant 0 : i32
    return %arg0, %arg1 : i32, i32
  }
}

module attributes {stable_mosaic.version = 11 : i64} {
  func.func @kernel(%arg0: i32, %arg1: i32, %arg2: i32, %arg3: memref<32x256xbf16, #tpu.memory_space<vmem>>, %arg4: memref<256x128xbf16, #tpu.memory_space<vmem>>, %arg5: memref<32x128xbf16, #tpu.memory_space<vmem>>, %arg6: memref<32x128xf32, #tpu.memory_space<vmem>>) attributes {dimension_semantics = [#tpu.dimension_semantics<parallel>, #tpu.dimension_semantics<parallel>, #tpu.dimension_semantics<arbitrary>], iteration_bounds = array<i64: 1, 1, 2>, scalar_prefetch = 0 : i64, scratch_operands = 1 : i64, tpu.core_type = #tpu.core_type<tc>, window_params = [{transform_indices = @transform_0, window_bounds = array<i64: 32, 256>}, {transform_indices = @transform_1, window_bounds = array<i64: 256, 128>}, {transform_indices = @transform_2, window_bounds = array<i64: 32, 128>}]} {
    %c0_i32 = arith.constant 0 : i32
    %0 = arith.cmpi eq, %arg2, %c0_i32 : i32
    %1 = arith.extui %0 : i1 to i32
    %c0_i32_0 = arith.constant 0 : i32
    %2 = arith.cmpi ne, %1, %c0_i32_0 : i32
    scf.if %2 {
      %cst_9 = arith.constant 0.000000e+00 : f32
      %12 = vector.broadcast %cst_9 : f32 to vector<32x128xf32>
      %c0_10 = arith.constant 0 : index
      %c0_11 = arith.constant 0 : index
      %13 = vector.load %arg6[%c0_10, %c0_11] : memref<32x128xf32, #tpu.memory_space<vmem>>, vector<32x128xf32>
      tpu.vector_store %arg6[%c0_10, %c0_11], %12 {strides = array<i32>} : memref<32x128xf32, #tpu.memory_space<vmem>>, vector<32x128xf32>,
    } else {
    }
    %c0 = arith.constant 0 : index
    %c0_1 = arith.constant 0 : index
    %3 = vector.load %arg3[%c0, %c0_1] : memref<32x256xbf16, #tpu.memory_space<vmem>>, vector<32x256xbf16>
    %c0_2 = arith.constant 0 : index
    %c0_3 = arith.constant 0 : index
    %4 = vector.load %arg6[%c0_2, %c0_3] : memref<32x128xf32, #tpu.memory_space<vmem>>, vector<32x128xf32>
    %c0_4 = arith.constant 0 : index
    %c0_5 = arith.constant 0 : index
    %5 = vector.load %arg4[%c0_4, %c0_5] : memref<256x128xbf16, #tpu.memory_space<vmem>>, vector<256x128xbf16>
    %cst = arith.constant dense<0.000000e+00> : vector<32x128xf32>
    %6 = tpu.matmul %3, %5, %cst {dimension_numbers = #tpu.dot_dimension_numbers<[1], [0], [0], [1], [0, 0, 1, 1], [], []>} : vector<32x256xbf16>, vector<256x128xbf16>, vector<32x128xf32> -> vector<32x128xf32>
    %7 = arith.addf %4, %6 : vector<32x128xf32>
    %c0_6 = arith.constant 0 : index
    %c0_7 = arith.constant 0 : index
    %8 = vector.load %arg6[%c0_6, %c0_7] : memref<32x128xf32, #tpu.memory_space<vmem>>, vector<32x128xf32>
    tpu.vector_store %arg6[%c0_6, %c0_7], %7 {strides = array<i32>} : memref<32x128xf32, #tpu.memory_space<vmem>>, vector<32x128xf32>,
    %c1_i32 = arith.constant 1 : i32
    %9 = arith.cmpi eq, %arg2, %c1_i32 : i32
    %10 = arith.extui %9 : i1 to i32
    %c0_i32_8 = arith.constant 0 : i32
    %11 = arith.cmpi ne, %10, %c0_i32_8 : i32
    scf.if %11 {
      %c0_9 = arith.constant 0 : index
      %c0_10 = arith.constant 0 : index
      %12 = vector.load %arg6[%c0_9, %c0_10] : memref<32x128xf32, #tpu.memory_space<vmem>>, vector<32x128xf32>
      %13 = arith.truncf %12 : vector<32x128xf32> to vector<32x128xbf16>
      %c0_11 = arith.constant 0 : index
      %c0_12 = arith.constant 0 : index
      %14 = vector.load %arg5[%c0_11, %c0_12] : memref<32x128xbf16, #tpu.memory_space<vmem>>, vector<32x128xbf16>
      tpu.vector_store %arg5[%c0_11, %c0_12], %13 {strides = array<i32>} : memref<32x128xbf16, #tpu.memory_space<vmem>>, vector<32x128xbf16>,
    } else {
    }
    return
  }
  func.func @transform_0(%arg0: i32, %arg1: i32, %arg2: i32) -> (i32, i32) {
    %c0_i32 = arith.constant 0 : i32
    return %arg0, %arg2 : i32, i32
  }
  func.func @transform_1(%arg0: i32, %arg1: i32, %arg2: i32) -> (i32, i32) {
    %c0_i32 = arith.constant 0 : i32
    return %arg2, %arg1 : i32, i32
  }
  func.func @transform_2(%arg0: i32, %arg1: i32, %arg2: i32) -> (i32, i32) {
    %c0_i32 = arith.constant 0 : i32
    return %arg0, %arg1 : i32, i32
  }
}

module attributes {stable_mosaic.version = 11 : i64} {
  func.func @kernel(%arg0: i32, %arg1: i32, %arg2: i32, %arg3: memref<32x128xbf16, #tpu.memory_space<vmem>>, %arg4: memref<128x128xbf16, #tpu.memory_space<vmem>>, %arg5: memref<1x128xf32, #tpu.memory_space<vmem>>, %arg6: memref<1x128xf32, #tpu.memory_space<vmem>>, %arg7: memref<32x128xbf16, #tpu.memory_space<vmem>>, %arg8: memref<32x128xf32, #tpu.memory_space<vmem>>) attributes {dimension_semantics = [#tpu.dimension_semantics<parallel>, #tpu.dimension_semantics<parallel>, #tpu.dimension_semantics<arbitrary>], iteration_bounds = array<i64: 1, 1, 1>, scalar_prefetch = 0 : i64, scratch_operands = 1 : i64, tpu.core_type = #tpu.core_type<tc>, window_params = [{transform_indices = @transform_0, window_bounds = array<i64: 32, 128>}, {transform_indices = @transform_1, window_bounds = array<i64: 128, 128>}, {transform_indices = @transform_2, window_bounds = array<i64: 1, 128>}, {transform_indices = @transform_3, window_bounds = array<i64: 1, 128>}, {transform_indices = @transform_4, window_bounds = array<i64: 32, 128>}]} {
    %c0_i32 = arith.constant 0 : i32
    %0 = arith.cmpi eq, %arg2, %c0_i32 : i32
    %1 = arith.extui %0 : i1 to i32
    %c0_i32_0 = arith.constant 0 : i32
    %2 = arith.cmpi ne, %1, %c0_i32_0 : i32
    scf.if %2 {
      %cst_15 = arith.constant 0.000000e+00 : f32
      %22 = vector.broadcast %cst_15 : f32 to vector<32x128xf32>
      %c0_16 = arith.constant 0 : index
      %c0_17 = arith.constant 0 : index
      %23 = vector.load %arg8[%c0_16, %c0_17] : memref<32x128xf32, #tpu.memory_space<vmem>>, vector<32x128xf32>
      tpu.vector_store %arg8[%c0_16, %c0_17], %22 {strides = array<i32>} : memref<32x128xf32, #tpu.memory_space<vmem>>, vector<32x128xf32>,
    } else {
    }
    %c0 = arith.constant 0 : index
    %c0_1 = arith.constant 0 : index
    %3 = vector.load %arg3[%c0, %c0_1] : memref<32x128xbf16, #tpu.memory_space<vmem>>, vector<32x128xbf16>
    %4 = arith.extf %3 : vector<32x128xbf16> to vector<32x128xf32>
    %c0_2 = arith.constant 0 : index
    %c0_3 = arith.constant 0 : index
    %5 = vector.load %arg5[%c0_2, %c0_3] : memref<1x128xf32, #tpu.memory_space<vmem>>, vector<1x128xf32>
    %6 = vector.broadcast %5 : vector<1x128xf32> to vector<32x128xf32>
    %7 = arith.mulf %4, %6 : vector<32x128xf32>
    %c0_4 = arith.constant 0 : index
    %c0_5 = arith.constant 0 : index
    %8 = vector.load %arg6[%c0_4, %c0_5] : memref<1x128xf32, #tpu.memory_space<vmem>>, vector<1x128xf32>
    %9 = vector.broadcast %8 : vector<1x128xf32> to vector<32x128xf32>
    %10 = arith.addf %7, %9 : vector<32x128xf32>
    %cst = arith.constant 0.000000e+00 : f32
    %11 = vector.broadcast %cst : f32 to vector<32x128xf32>
    %12 = arith.maximumf %10, %11 : vector<32x128xf32>
    %13 = arith.truncf %12 : vector<32x128xf32> to vector<32x128xbf16>
    %c0_6 = arith.constant 0 : index
    %c0_7 = arith.constant 0 : index
    %14 = vector.load %arg8[%c0_6, %c0_7] : memref<32x128xf32, #tpu.memory_space<vmem>>, vector<32x128xf32>
    %c0_8 = arith.constant 0 : index
    %c0_9 = arith.constant 0 : index
    %15 = vector.load %arg4[%c0_8, %c0_9] : memref<128x128xbf16, #tpu.memory_space<vmem>>, vector<128x128xbf16>
    %cst_10 = arith.constant dense<0.000000e+00> : vector<32x128xf32>
    %16 = tpu.matmul %13, %15, %cst_10 {dimension_numbers = #tpu.dot_dimension_numbers<[1], [0], [0], [1], [0, 0, 1, 1], [], []>} : vector<32x128xbf16>, vector<128x128xbf16>, vector<32x128xf32> -> vector<32x128xf32>
    %17 = arith.addf %14, %16 : vector<32x128xf32>
    %c0_11 = arith.constant 0 : index
    %c0_12 = arith.constant 0 : index
    %18 = vector.load %arg8[%c0_11, %c0_12] : memref<32x128xf32, #tpu.memory_space<vmem>>, vector<32x128xf32>
    tpu.vector_store %arg8[%c0_11, %c0_12], %17 {strides = array<i32>} : memref<32x128xf32, #tpu.memory_space<vmem>>, vector<32x128xf32>,
    %c0_i32_13 = arith.constant 0 : i32
    %19 = arith.cmpi eq, %arg2, %c0_i32_13 : i32
    %20 = arith.extui %19 : i1 to i32
    %c0_i32_14 = arith.constant 0 : i32
    %21 = arith.cmpi ne, %20, %c0_i32_14 : i32
    scf.if %21 {
      %c0_15 = arith.constant 0 : index
      %c0_16 = arith.constant 0 : index
      %22 = vector.load %arg8[%c0_15, %c0_16] : memref<32x128xf32, #tpu.memory_space<vmem>>, vector<32x128xf32>
      %23 = arith.truncf %22 : vector<32x128xf32> to vector<32x128xbf16>
      %c0_17 = arith.constant 0 : index
      %c0_18 = arith.constant 0 : index
      %24 = vector.load %arg7[%c0_17, %c0_18] : memref<32x128xbf16, #tpu.memory_space<vmem>>, vector<32x128xbf16>
      tpu.vector_store %arg7[%c0_17, %c0_18], %23 {strides = array<i32>} : memref<32x128xbf16, #tpu.memory_space<vmem>>, vector<32x128xbf16>,
    } else {
    }
    return
  }
  func.func @transform_0(%arg0: i32, %arg1: i32, %arg2: i32) -> (i32, i32) {
    %c0_i32 = arith.constant 0 : i32
    return %arg0, %arg2 : i32, i32
  }
  func.func @transform_1(%arg0: i32, %arg1: i32, %arg2: i32) -> (i32, i32) {
    %c0_i32 = arith.constant 0 : i32
    return %arg2, %arg1 : i32, i32
  }
  func.func @transform_2(%arg0: i32, %arg1: i32, %arg2: i32) -> (i32, i32) {
    %c0_i32 = arith.constant 0 : i32
    %c0_i32_0 = arith.constant 0 : i32
    return %c0_i32, %arg2 : i32, i32
  }
  func.func @transform_3(%arg0: i32, %arg1: i32, %arg2: i32) -> (i32, i32) {
    %c0_i32 = arith.constant 0 : i32
    %c0_i32_0 = arith.constant 0 : i32
    return %c0_i32, %arg2 : i32, i32
  }
  func.func @transform_4(%arg0: i32, %arg1: i32, %arg2: i32) -> (i32, i32) {
    %c0_i32 = arith.constant 0 : i32
    return %arg0, %arg1 : i32, i32
  }
}

module attributes {stable_mosaic.version = 11 : i64} {
  func.func @kernel(%arg0: i32, %arg1: memref<4x8x16xbf16, #tpu.memory_space<vmem>>, %arg2: memref<8x16xbf16, #tpu.memory_space<vmem>>) attributes {dimension_semantics = [#tpu.dimension_semantics<parallel>], iteration_bounds = array<i64: 1>, scalar_prefetch = 0 : i64, scratch_operands = 0 : i64, tpu.core_type = #tpu.core_type<tc>, window_params = [{transform_indices = @transform_0, window_bounds = array<i64: 4, 8, 16>}, {transform_indices = @transform_1, window_bounds = array<i64: 8, 16>}]} {
    %c0 = arith.constant 0 : index
    %c0_0 = arith.constant 0 : index
    %c0_1 = arith.constant 0 : index
    %0 = vector.load %arg1[%c0, %c0_0, %c0_1] : memref<4x8x16xbf16, #tpu.memory_space<vmem>>, vector<4x8x16xbf16>
    %1 = arith.extf %0 : vector<4x8x16xbf16> to vector<4x8x16xf32>
    %cst = arith.constant dense<0.000000e+00> : vector<8x16xf32>
    %2 = vector.multi_reduction <add>, %1, %cst [0] : vector<4x8x16xf32> to vector<8x16xf32>
    %cst_2 = arith.constant 4.000000e+00 : f32
    %3 = vector.broadcast %cst_2 : f32 to vector<8x16xf32>
    %4 = arith.divf %2, %3 : vector<8x16xf32>
    %5 = arith.truncf %4 : vector<8x16xf32> to vector<8x16xbf16>
    %c0_3 = arith.constant 0 : index
    %c0_4 = arith.constant 0 : index
    %6 = vector.load %arg2[%c0_3, %c0_4] : memref<8x16xbf16, #tpu.memory_space<vmem>>, vector<8x16xbf16>
    tpu.vector_store %arg2[%c0_3, %c0_4], %5 {strides = array<i32>} : memref<8x16xbf16, #tpu.memory_space<vmem>>, vector<8x16xbf16>,
    return
  }
  func.func @transform_0(%arg0: i32) -> (i32, i32, i32) {
    %c0_i32 = arith.constant 0 : i32
    %c0_i32_0 = arith.constant 0 : i32
    %c0_i32_1 = arith.constant 0 : i32
    return %c0_i32, %arg0, %c0_i32_0 : i32, i32, i32
  }
  func.func @transform_1(%arg0: i32) -> (i32, i32) {
    %c0_i32 = arith.constant 0 : i32
    %c0_i32_0 = arith.constant 0 : i32
    return %arg0, %c0_i32 : i32, i32
  }
}

module attributes {stable_mosaic.version = 11 : i64} {
  func.func @kernel(%arg0: i32, %arg1: i32, %arg2: i32, %arg3: memref<8x128xbf16, #tpu.memory_space<vmem>>, %arg4: memref<128x128xbf16, #tpu.memory_space<vmem>>, %arg5: memref<1x128xf32, #tpu.memory_space<vmem>>, %arg6: memref<1x128xf32, #tpu.memory_space<vmem>>, %arg7: memref<1x128xf32, #tpu.memory_space<vmem>>, %arg8: memref<1x128xf32, #tpu.memory_space<vmem>>, %arg9: memref<8x128xbf16, #tpu.memory_space<vmem>>, %arg10: memref<8x128xf32, #tpu.memory_space<vmem>>) attributes {dimension_semantics = [#tpu.dimension_semantics<parallel>, #tpu.dimension_semantics<parallel>, #tpu.dimension_semantics<arbitrary>], iteration_bounds = array<i64: 1, 1, 1>, scalar_prefetch = 0 : i64, scratch_operands = 1 : i64, tpu.core_type = #tpu.core_type<tc>, window_params = [{transform_indices = @transform_0, window_bounds = array<i64: 8, 128>}, {transform_indices = @transform_1, window_bounds = array<i64: 128, 128>}, {transform_indices = @transform_2, window_bounds = array<i64: 1, 128>}, {transform_indices = @transform_3, window_bounds = array<i64: 1, 128>}, {transform_indices = @transform_4, window_bounds = array<i64: 1, 128>}, {transform_indices = @transform_5, window_bounds = array<i64: 1, 128>}, {transform_indices = @transform_6, window_bounds = array<i64: 8, 128>}]} {
    %c0_i32 = arith.constant 0 : i32
    %0 = arith.cmpi eq, %arg2, %c0_i32 : i32
    %1 = arith.extui %0 : i1 to i32
    %c0_i32_0 = arith.constant 0 : i32
    %2 = arith.cmpi ne, %1, %c0_i32_0 : i32
    scf.if %2 {
      %cst_15 = arith.constant 0.000000e+00 : f32
      %22 = vector.broadcast %cst_15 : f32 to vector<8x128xf32>
      %c0_16 = arith.constant 0 : index
      %c0_17 = arith.constant 0 : index
      %23 = vector.load %arg10[%c0_16, %c0_17] : memref<8x128xf32, #tpu.memory_space<vmem>>, vector<8x128xf32>
      tpu.vector_store %arg10[%c0_16, %c0_17], %22 {strides = array<i32>} : memref<8x128xf32, #tpu.memory_space<vmem>>, vector<8x128xf32>,
    } else {
    }
    %c0 = arith.constant 0 : index
    %c0_1 = arith.constant 0 : index
    %3 = vector.load %arg3[%c0, %c0_1] : memref<8x128xbf16, #tpu.memory_space<vmem>>, vector<8x128xbf16>
    %4 = arith.extf %3 : vector<8x128xbf16> to vector<8x128xf32>
    %c0_2 = arith.constant 0 : index
    %c0_3 = arith.constant 0 : index
    %5 = vector.load %arg5[%c0_2, %c0_3] : memref<1x128xf32, #tpu.memory_space<vmem>>, vector<1x128xf32>
    %6 = vector.broadcast %5 : vector<1x128xf32> to vector<8x128xf32>
    %7 = arith.mulf %4, %6 : vector<8x128xf32>
    %c0_4 = arith.constant 0 : index
    %c0_5 = arith.constant 0 : index
    %8 = vector.load %arg6[%c0_4, %c0_5] : memref<1x128xf32, #tpu.memory_space<vmem>>, vector<1x128xf32>
    %9 = vector.broadcast %8 : vector<1x128xf32> to vector<8x128xf32>
    %10 = arith.addf %7, %9 : vector<8x128xf32>
    %cst = arith.constant 0.000000e+00 : f32
    %11 = vector.broadcast %cst : f32 to vector<8x128xf32>
    %12 = arith.maximumf %10, %11 : vector<8x128xf32>
    %13 = arith.truncf %12 : vector<8x128xf32> to vector<8x128xbf16>
    %c0_6 = arith.constant 0 : index
    %c0_7 = arith.constant 0 : index
    %14 = vector.load %arg10[%c0_6, %c0_7] : memref<8x128xf32, #tpu.memory_space<vmem>>, vector<8x128xf32>
    %c0_8 = arith.constant 0 : index
    %c0_9 = arith.constant 0 : index
    %15 = vector.load %arg4[%c0_8, %c0_9] : memref<128x128xbf16, #tpu.memory_space<vmem>>, vector<128x128xbf16>
    %cst_10 = arith.constant dense<0.000000e+00> : vector<8x128xf32>
    %16 = tpu.matmul %13, %15, %cst_10 {dimension_numbers = #tpu.dot_dimension_numbers<[1], [0], [0], [1], [0, 0, 1, 1], [], []>} : vector<8x128xbf16>, vector<128x128xbf16>, vector<8x128xf32> -> vector<8x128xf32>
    %17 = arith.addf %14, %16 : vector<8x128xf32>
    %c0_11 = arith.constant 0 : index
    %c0_12 = arith.constant 0 : index
    %18 = vector.load %arg10[%c0_11, %c0_12] : memref<8x128xf32, #tpu.memory_space<vmem>>, vector<8x128xf32>
    tpu.vector_store %arg10[%c0_11, %c0_12], %17 {strides = array<i32>} : memref<8x128xf32, #tpu.memory_space<vmem>>, vector<8x128xf32>,
    %c0_i32_13 = arith.constant 0 : i32
    %19 = arith.cmpi eq, %arg2, %c0_i32_13 : i32
    %20 = arith.extui %19 : i1 to i32
    %c0_i32_14 = arith.constant 0 : i32
    %21 = arith.cmpi ne, %20, %c0_i32_14 : i32
    scf.if %21 {
      %c0_15 = arith.constant 0 : index
      %c0_16 = arith.constant 0 : index
      %22 = vector.load %arg10[%c0_15, %c0_16] : memref<8x128xf32, #tpu.memory_space<vmem>>, vector<8x128xf32>
      %c0_17 = arith.constant 0 : index
      %c0_18 = arith.constant 0 : index
      %23 = vector.load %arg7[%c0_17, %c0_18] : memref<1x128xf32, #tpu.memory_space<vmem>>, vector<1x128xf32>
      %24 = vector.broadcast %23 : vector<1x128xf32> to vector<8x128xf32>
      %25 = arith.mulf %22, %24 : vector<8x128xf32>
      %c0_19 = arith.constant 0 : index
      %c0_20 = arith.constant 0 : index
      %26 = vector.load %arg8[%c0_19, %c0_20] : memref<1x128xf32, #tpu.memory_space<vmem>>, vector<1x128xf32>
      %27 = vector.broadcast %26 : vector<1x128xf32> to vector<8x128xf32>
      %28 = arith.addf %25, %27 : vector<8x128xf32>
      %cst_21 = arith.constant 0.000000e+00 : f32
      %29 = vector.broadcast %cst_21 : f32 to vector<8x128xf32>
      %30 = arith.maximumf %28, %29 : vector<8x128xf32>
      %31 = arith.truncf %30 : vector<8x128xf32> to vector<8x128xbf16>
      %c0_22 = arith.constant 0 : index
      %c0_23 = arith.constant 0 : index
      %32 = vector.load %arg9[%c0_22, %c0_23] : memref<8x128xbf16, #tpu.memory_space<vmem>>, vector<8x128xbf16>
      tpu.vector_store %arg9[%c0_22, %c0_23], %31 {strides = array<i32>} : memref<8x128xbf16, #tpu.memory_space<vmem>>, vector<8x128xbf16>,
    } else {
    }
    return
  }
  func.func @transform_0(%arg0: i32, %arg1: i32, %arg2: i32) -> (i32, i32) {
    %c0_i32 = arith.constant 0 : i32
    return %arg0, %arg2 : i32, i32
  }
  func.func @transform_1(%arg0: i32, %arg1: i32, %arg2: i32) -> (i32, i32) {
    %c0_i32 = arith.constant 0 : i32
    return %arg2, %arg1 : i32, i32
  }
  func.func @transform_2(%arg0: i32, %arg1: i32, %arg2: i32) -> (i32, i32) {
    %c0_i32 = arith.constant 0 : i32
    %c0_i32_0 = arith.constant 0 : i32
    return %c0_i32, %arg2 : i32, i32
  }
  func.func @transform_3(%arg0: i32, %arg1: i32, %arg2: i32) -> (i32, i32) {
    %c0_i32 = arith.constant 0 : i32
    %c0_i32_0 = arith.constant 0 : i32
    return %c0_i32, %arg2 : i32, i32
  }
  func.func @transform_4(%arg0: i32, %arg1: i32, %arg2: i32) -> (i32, i32) {
    %c0_i32 = arith.constant 0 : i32
    %c0_i32_0 = arith.constant 0 : i32
    return %c0_i32, %arg1 : i32, i32
  }
  func.func @transform_5(%arg0: i32, %arg1: i32, %arg2: i32) -> (i32, i32) {
    %c0_i32 = arith.constant 0 : i32
    %c0_i32_0 = arith.constant 0 : i32
    return %c0_i32, %arg1 : i32, i32
  }
  func.func @transform_6(%arg0: i32, %arg1: i32, %arg2: i32) -> (i32, i32) {
    %c0_i32 = arith.constant 0 : i32
    return %arg0, %arg1 : i32, i32
  }
}

module attributes {stable_mosaic.version = 11 : i64} {
  func.func @kernel(%arg0: i32, %arg1: i32, %arg2: i32, %arg3: memref<8x256xbf16, #tpu.memory_space<vmem>>, %arg4: memref<256x128xbf16, #tpu.memory_space<vmem>>, %arg5: memref<8x128xbf16, #tpu.memory_space<vmem>>, %arg6: memref<8x128xf32, #tpu.memory_space<vmem>>) attributes {dimension_semantics = [#tpu.dimension_semantics<parallel>, #tpu.dimension_semantics<parallel>, #tpu.dimension_semantics<arbitrary>], iteration_bounds = array<i64: 1, 1, 2>, scalar_prefetch = 0 : i64, scratch_operands = 1 : i64, tpu.core_type = #tpu.core_type<tc>, window_params = [{transform_indices = @transform_0, window_bounds = array<i64: 8, 256>}, {transform_indices = @transform_1, window_bounds = array<i64: 256, 128>}, {transform_indices = @transform_2, window_bounds = array<i64: 8, 128>}]} {
    %c0_i32 = arith.constant 0 : i32
    %0 = arith.cmpi eq, %arg2, %c0_i32 : i32
    %1 = arith.extui %0 : i1 to i32
    %c0_i32_0 = arith.constant 0 : i32
    %2 = arith.cmpi ne, %1, %c0_i32_0 : i32
    scf.if %2 {
      %cst_9 = arith.constant 0.000000e+00 : f32
      %12 = vector.broadcast %cst_9 : f32 to vector<8x128xf32>
      %c0_10 = arith.constant 0 : index
      %c0_11 = arith.constant 0 : index
      %13 = vector.load %arg6[%c0_10, %c0_11] : memref<8x128xf32, #tpu.memory_space<vmem>>, vector<8x128xf32>
      tpu.vector_store %arg6[%c0_10, %c0_11], %12 {strides = array<i32>} : memref<8x128xf32, #tpu.memory_space<vmem>>, vector<8x128xf32>,
    } else {
    }
    %c0 = arith.constant 0 : index
    %c0_1 = arith.constant 0 : index
    %3 = vector.load %arg3[%c0, %c0_1] : memref<8x256xbf16, #tpu.memory_space<vmem>>, vector<8x256xbf16>
    %c0_2 = arith.constant 0 : index
    %c0_3 = arith.constant 0 : index
    %4 = vector.load %arg6[%c0_2, %c0_3] : memref<8x128xf32, #tpu.memory_space<vmem>>, vector<8x128xf32>
    %c0_4 = arith.constant 0 : index
    %c0_5 = arith.constant 0 : index
    %5 = vector.load %arg4[%c0_4, %c0_5] : memref<256x128xbf16, #tpu.memory_space<vmem>>, vector<256x128xbf16>
    %cst = arith.constant dense<0.000000e+00> : vector<8x128xf32>
    %6 = tpu.matmul %3, %5, %cst {dimension_numbers = #tpu.dot_dimension_numbers<[1], [0], [0], [1], [0, 0, 1, 1], [], []>} : vector<8x256xbf16>, vector<256x128xbf16>, vector<8x128xf32> -> vector<8x128xf32>
    %7 = arith.addf %4, %6 : vector<8x128xf32>
    %c0_6 = arith.constant 0 : index
    %c0_7 = arith.constant 0 : index
    %8 = vector.load %arg6[%c0_6, %c0_7] : memref<8x128xf32, #tpu.memory_space<vmem>>, vector<8x128xf32>
    tpu.vector_store %arg6[%c0_6, %c0_7], %7 {strides = array<i32>} : memref<8x128xf32, #tpu.memory_space<vmem>>, vector<8x128xf32>,
    %c1_i32 = arith.constant 1 : i32
    %9 = arith.cmpi eq, %arg2, %c1_i32 : i32
    %10 = arith.extui %9 : i1 to i32
    %c0_i32_8 = arith.constant 0 : i32
    %11 = arith.cmpi ne, %10, %c0_i32_8 : i32
    scf.if %11 {
      %c0_9 = arith.constant 0 : index
      %c0_10 = arith.constant 0 : index
      %12 = vector.load %arg6[%c0_9, %c0_10] : memref<8x128xf32, #tpu.memory_space<vmem>>, vector<8x128xf32>
      %13 = arith.truncf %12 : vector<8x128xf32> to vector<8x128xbf16>
      %c0_11 = arith.constant 0 : index
      %c0_12 = arith.constant 0 : index
      %14 = vector.load %arg5[%c0_11, %c0_12] : memref<8x128xbf16, #tpu.memory_space<vmem>>, vector<8x128xbf16>
      tpu.vector_store %arg5[%c0_11, %c0_12], %13 {strides = array<i32>} : memref<8x128xbf16, #tpu.memory_space<vmem>>, vector<8x128xbf16>,
    } else {
    }
    return
  }
  func.func @transform_0(%arg0: i32, %arg1: i32, %arg2: i32) -> (i32, i32) {
    %c0_i32 = arith.constant 0 : i32
    return %arg0, %arg2 : i32, i32
  }
  func.func @transform_1(%arg0: i32, %arg1: i32, %arg2: i32) -> (i32, i32) {
    %c0_i32 = arith.constant 0 : i32
    return %arg2, %arg1 : i32, i32
  }
  func.func @transform_2(%arg0: i32, %arg1: i32, %arg2: i32) -> (i32, i32) {
    %c0_i32 = arith.constant 0 : i32
    return %arg0, %arg1 : i32, i32
  }
}

module attributes {stable_mosaic.version = 11 : i64} {
  func.func @kernel(%arg0: i32, %arg1: i32, %arg2: i32, %arg3: memref<8x128xbf16, #tpu.memory_space<vmem>>, %arg4: memref<128x128xbf16, #tpu.memory_space<vmem>>, %arg5: memref<1x128xf32, #tpu.memory_space<vmem>>, %arg6: memref<1x128xf32, #tpu.memory_space<vmem>>, %arg7: memref<8x128xbf16, #tpu.memory_space<vmem>>, %arg8: memref<8x128xf32, #tpu.memory_space<vmem>>) attributes {dimension_semantics = [#tpu.dimension_semantics<parallel>, #tpu.dimension_semantics<parallel>, #tpu.dimension_semantics<arbitrary>], iteration_bounds = array<i64: 1, 1, 1>, scalar_prefetch = 0 : i64, scratch_operands = 1 : i64, tpu.core_type = #tpu.core_type<tc>, window_params = [{transform_indices = @transform_0, window_bounds = array<i64: 8, 128>}, {transform_indices = @transform_1, window_bounds = array<i64: 128, 128>}, {transform_indices = @transform_2, window_bounds = array<i64: 1, 128>}, {transform_indices = @transform_3, window_bounds = array<i64: 1, 128>}, {transform_indices = @transform_4, window_bounds = array<i64: 8, 128>}]} {
    %c0_i32 = arith.constant 0 : i32
    %0 = arith.cmpi eq, %arg2, %c0_i32 : i32
    %1 = arith.extui %0 : i1 to i32
    %c0_i32_0 = arith.constant 0 : i32
    %2 = arith.cmpi ne, %1, %c0_i32_0 : i32
    scf.if %2 {
      %cst_15 = arith.constant 0.000000e+00 : f32
      %22 = vector.broadcast %cst_15 : f32 to vector<8x128xf32>
      %c0_16 = arith.constant 0 : index
      %c0_17 = arith.constant 0 : index
      %23 = vector.load %arg8[%c0_16, %c0_17] : memref<8x128xf32, #tpu.memory_space<vmem>>, vector<8x128xf32>
      tpu.vector_store %arg8[%c0_16, %c0_17], %22 {strides = array<i32>} : memref<8x128xf32, #tpu.memory_space<vmem>>, vector<8x128xf32>,
    } else {
    }
    %c0 = arith.constant 0 : index
    %c0_1 = arith.constant 0 : index
    %3 = vector.load %arg3[%c0, %c0_1] : memref<8x128xbf16, #tpu.memory_space<vmem>>, vector<8x128xbf16>
    %4 = arith.extf %3 : vector<8x128xbf16> to vector<8x128xf32>
    %c0_2 = arith.constant 0 : index
    %c0_3 = arith.constant 0 : index
    %5 = vector.load %arg5[%c0_2, %c0_3] : memref<1x128xf32, #tpu.memory_space<vmem>>, vector<1x128xf32>
    %6 = vector.broadcast %5 : vector<1x128xf32> to vector<8x128xf32>
    %7 = arith.mulf %4, %6 : vector<8x128xf32>
    %c0_4 = arith.constant 0 : index
    %c0_5 = arith.constant 0 : index
    %8 = vector.load %arg6[%c0_4, %c0_5] : memref<1x128xf32, #tpu.memory_space<vmem>>, vector<1x128xf32>
    %9 = vector.broadcast %8 : vector<1x128xf32> to vector<8x128xf32>
    %10 = arith.addf %7, %9 : vector<8x128xf32>
    %cst = arith.constant 0.000000e+00 : f32
    %11 = vector.broadcast %cst : f32 to vector<8x128xf32>
    %12 = arith.maximumf %10, %11 : vector<8x128xf32>
    %13 = arith.truncf %12 : vector<8x128xf32> to vector<8x128xbf16>
    %c0_6 = arith.constant 0 : index
    %c0_7 = arith.constant 0 : index
    %14 = vector.load %arg8[%c0_6, %c0_7] : memref<8x128xf32, #tpu.memory_space<vmem>>, vector<8x128xf32>
    %c0_8 = arith.constant 0 : index
    %c0_9 = arith.constant 0 : index
    %15 = vector.load %arg4[%c0_8, %c0_9] : memref<128x128xbf16, #tpu.memory_space<vmem>>, vector<128x128xbf16>
    %cst_10 = arith.constant dense<0.000000e+00> : vector<8x128xf32>
    %16 = tpu.matmul %13, %15, %cst_10 {dimension_numbers = #tpu.dot_dimension_numbers<[1], [0], [0], [1], [0, 0, 1, 1], [], []>} : vector<8x128xbf16>, vector<128x128xbf16>, vector<8x128xf32> -> vector<8x128xf32>
    %17 = arith.addf %14, %16 : vector<8x128xf32>
    %c0_11 = arith.constant 0 : index
    %c0_12 = arith.constant 0 : index
    %18 = vector.load %arg8[%c0_11, %c0_12] : memref<8x128xf32, #tpu.memory_space<vmem>>, vector<8x128xf32>
    tpu.vector_store %arg8[%c0_11, %c0_12], %17 {strides = array<i32>} : memref<8x128xf32, #tpu.memory_space<vmem>>, vector<8x128xf32>,
    %c0_i32_13 = arith.constant 0 : i32
    %19 = arith.cmpi eq, %arg2, %c0_i32_13 : i32
    %20 = arith.extui %19 : i1 to i32
    %c0_i32_14 = arith.constant 0 : i32
    %21 = arith.cmpi ne, %20, %c0_i32_14 : i32
    scf.if %21 {
      %c0_15 = arith.constant 0 : index
      %c0_16 = arith.constant 0 : index
      %22 = vector.load %arg8[%c0_15, %c0_16] : memref<8x128xf32, #tpu.memory_space<vmem>>, vector<8x128xf32>
      %23 = arith.truncf %22 : vector<8x128xf32> to vector<8x128xbf16>
      %c0_17 = arith.constant 0 : index
      %c0_18 = arith.constant 0 : index
      %24 = vector.load %arg7[%c0_17, %c0_18] : memref<8x128xbf16, #tpu.memory_space<vmem>>, vector<8x128xbf16>
      tpu.vector_store %arg7[%c0_17, %c0_18], %23 {strides = array<i32>} : memref<8x128xbf16, #tpu.memory_space<vmem>>, vector<8x128xbf16>,
    } else {
    }
    return
  }
  func.func @transform_0(%arg0: i32, %arg1: i32, %arg2: i32) -> (i32, i32) {
    %c0_i32 = arith.constant 0 : i32
    return %arg0, %arg2 : i32, i32
  }
  func.func @transform_1(%arg0: i32, %arg1: i32, %arg2: i32) -> (i32, i32) {
    %c0_i32 = arith.constant 0 : i32
    return %arg2, %arg1 : i32, i32
  }
  func.func @transform_2(%arg0: i32, %arg1: i32, %arg2: i32) -> (i32, i32) {
    %c0_i32 = arith.constant 0 : i32
    %c0_i32_0 = arith.constant 0 : i32
    return %c0_i32, %arg2 : i32, i32
  }
  func.func @transform_3(%arg0: i32, %arg1: i32, %arg2: i32) -> (i32, i32) {
    %c0_i32 = arith.constant 0 : i32
    %c0_i32_0 = arith.constant 0 : i32
    return %c0_i32, %arg2 : i32, i32
  }
  func.func @transform_4(%arg0: i32, %arg1: i32, %arg2: i32) -> (i32, i32) {
    %c0_i32 = arith.constant 0 : i32
    return %arg0, %arg1 : i32, i32
  }
}

module attributes {stable_mosaic.version = 11 : i64} {
  func.func @_gap_bn_relu_kernel(%arg0: memref<1x2x32xbf16, #tpu.memory_space<vmem>>, %arg1: memref<1x1x32xf32, #tpu.memory_space<vmem>>, %arg2: memref<1x1x32xf32, #tpu.memory_space<vmem>>, %arg3: memref<2x32xf32, #tpu.memory_space<vmem>>) attributes {dimension_semantics = [], scalar_prefetch = 0 : i64, scratch_operands = 0 : i64, tpu.core_type = #tpu.core_type<tc>} {
    %c0 = arith.constant 0 : index
    %c0_0 = arith.constant 0 : index
    %c0_1 = arith.constant 0 : index
    %0 = vector.load %arg0[%c0, %c0_0, %c0_1] : memref<1x2x32xbf16, #tpu.memory_space<vmem>>, vector<1x2x32xbf16>
    %1 = arith.extf %0 : vector<1x2x32xbf16> to vector<1x2x32xf32>
    %c0_2 = arith.constant 0 : index
    %c0_3 = arith.constant 0 : index
    %c0_4 = arith.constant 0 : index
    %2 = vector.load %arg1[%c0_2, %c0_3, %c0_4] : memref<1x1x32xf32, #tpu.memory_space<vmem>>, vector<1x1x32xf32>
    %3 = vector.broadcast %2 : vector<1x1x32xf32> to vector<1x2x32xf32>
    %4 = arith.mulf %1, %3 : vector<1x2x32xf32>
    %c0_5 = arith.constant 0 : index
    %c0_6 = arith.constant 0 : index
    %c0_7 = arith.constant 0 : index
    %5 = vector.load %arg2[%c0_5, %c0_6, %c0_7] : memref<1x1x32xf32, #tpu.memory_space<vmem>>, vector<1x1x32xf32>
    %6 = vector.broadcast %5 : vector<1x1x32xf32> to vector<1x2x32xf32>
    %7 = arith.addf %4, %6 : vector<1x2x32xf32>
    %cst = arith.constant 0.000000e+00 : f32
    %8 = vector.broadcast %cst : f32 to vector<1x2x32xf32>
    %9 = arith.maximumf %7, %8 : vector<1x2x32xf32>
    %cst_8 = arith.constant dense<0.000000e+00> : vector<2x32xf32>
    %10 = vector.multi_reduction <add>, %9, %cst_8 [0] : vector<1x2x32xf32> to vector<2x32xf32>
    %cst_9 = arith.constant 1.000000e+00 : f32
    %11 = vector.broadcast %cst_9 : f32 to vector<2x32xf32>
    %12 = arith.divf %10, %11 : vector<2x32xf32>
    %c0_10 = arith.constant 0 : index
    %c0_11 = arith.constant 0 : index
    %13 = vector.load %arg3[%c0_10, %c0_11] : memref<2x32xf32, #tpu.memory_space<vmem>>, vector<2x32xf32>
    tpu.vector_store %arg3[%c0_10, %c0_11], %12 {strides = array<i32>} : memref<2x32xf32, #tpu.memory_space<vmem>>, vector<2x32xf32>,
    return
  }
}

module attributes {stable_mosaic.version = 11 : i64} {
  func.func @kernel(%arg0: i32, %arg1: i32, %arg2: i32, %arg3: memref<8x128xbf16, #tpu.memory_space<vmem>>, %arg4: memref<128x128xbf16, #tpu.memory_space<vmem>>, %arg5: memref<1x128xf32, #tpu.memory_space<vmem>>, %arg6: memref<1x128xf32, #tpu.memory_space<vmem>>, %arg7: memref<8x128xf32, #tpu.memory_space<vmem>>, %arg8: memref<8x128xf32, #tpu.memory_space<vmem>>) attributes {dimension_semantics = [#tpu.dimension_semantics<parallel>, #tpu.dimension_semantics<parallel>, #tpu.dimension_semantics<arbitrary>], iteration_bounds = array<i64: 1, 1, 1>, scalar_prefetch = 0 : i64, scratch_operands = 1 : i64, tpu.core_type = #tpu.core_type<tc>, window_params = [{transform_indices = @transform_0, window_bounds = array<i64: 8, 128>}, {transform_indices = @transform_1, window_bounds = array<i64: 128, 128>}, {transform_indices = @transform_2, window_bounds = array<i64: 1, 128>}, {transform_indices = @transform_3, window_bounds = array<i64: 1, 128>}, {transform_indices = @transform_4, window_bounds = array<i64: 8, 128>}]} {
    %c0_i32 = arith.constant 0 : i32
    %0 = arith.cmpi eq, %arg2, %c0_i32 : i32
    %1 = arith.extui %0 : i1 to i32
    %c0_i32_0 = arith.constant 0 : i32
    %2 = arith.cmpi ne, %1, %c0_i32_0 : i32
    scf.if %2 {
      %cst_10 = arith.constant 0.000000e+00 : f32
      %12 = vector.broadcast %cst_10 : f32 to vector<8x128xf32>
      %c0_11 = arith.constant 0 : index
      %c0_12 = arith.constant 0 : index
      %13 = vector.load %arg8[%c0_11, %c0_12] : memref<8x128xf32, #tpu.memory_space<vmem>>, vector<8x128xf32>
      tpu.vector_store %arg8[%c0_11, %c0_12], %12 {strides = array<i32>} : memref<8x128xf32, #tpu.memory_space<vmem>>, vector<8x128xf32>,
    } else {
    }
    %c0 = arith.constant 0 : index
    %c0_1 = arith.constant 0 : index
    %3 = vector.load %arg3[%c0, %c0_1] : memref<8x128xbf16, #tpu.memory_space<vmem>>, vector<8x128xbf16>
    %c0_2 = arith.constant 0 : index
    %c0_3 = arith.constant 0 : index
    %4 = vector.load %arg8[%c0_2, %c0_3] : memref<8x128xf32, #tpu.memory_space<vmem>>, vector<8x128xf32>
    %c0_4 = arith.constant 0 : index
    %c0_5 = arith.constant 0 : index
    %5 = vector.load %arg4[%c0_4, %c0_5] : memref<128x128xbf16, #tpu.memory_space<vmem>>, vector<128x128xbf16>
    %cst = arith.constant dense<0.000000e+00> : vector<8x128xf32>
    %6 = tpu.matmul %3, %5, %cst {dimension_numbers = #tpu.dot_dimension_numbers<[1], [0], [0], [1], [0, 0, 1, 1], [], []>} : vector<8x128xbf16>, vector<128x128xbf16>, vector<8x128xf32> -> vector<8x128xf32>
    %7 = arith.addf %4, %6 : vector<8x128xf32>
    %c0_6 = arith.constant 0 : index
    %c0_7 = arith.constant 0 : index
    %8 = vector.load %arg8[%c0_6, %c0_7] : memref<8x128xf32, #tpu.memory_space<vmem>>, vector<8x128xf32>
    tpu.vector_store %arg8[%c0_6, %c0_7], %7 {strides = array<i32>} : memref<8x128xf32, #tpu.memory_space<vmem>>, vector<8x128xf32>,
    %c0_i32_8 = arith.constant 0 : i32
    %9 = arith.cmpi eq, %arg2, %c0_i32_8 : i32
    %10 = arith.extui %9 : i1 to i32
    %c0_i32_9 = arith.constant 0 : i32
    %11 = arith.cmpi ne, %10, %c0_i32_9 : i32
    scf.if %11 {
      %c0_10 = arith.constant 0 : index
      %c0_11 = arith.constant 0 : index
      %12 = vector.load %arg8[%c0_10, %c0_11] : memref<8x128xf32, #tpu.memory_space<vmem>>, vector<8x128xf32>
      %c0_12 = arith.constant 0 : index
      %c0_13 = arith.constant 0 : index
      %13 = vector.load %arg5[%c0_12, %c0_13] : memref<1x128xf32, #tpu.memory_space<vmem>>, vector<1x128xf32>
      %14 = vector.broadcast %13 : vector<1x128xf32> to vector<8x128xf32>
      %15 = arith.mulf %12, %14 : vector<8x128xf32>
      %c0_14 = arith.constant 0 : index
      %c0_15 = arith.constant 0 : index
      %16 = vector.load %arg6[%c0_14, %c0_15] : memref<1x128xf32, #tpu.memory_space<vmem>>, vector<1x128xf32>
      %17 = vector.broadcast %16 : vector<1x128xf32> to vector<8x128xf32>
      %18 = arith.addf %15, %17 : vector<8x128xf32>
      %c0_16 = arith.constant 0 : index
      %c0_17 = arith.constant 0 : index
      %19 = vector.load %arg7[%c0_16, %c0_17] : memref<8x128xf32, #tpu.memory_space<vmem>>, vector<8x128xf32>
      tpu.vector_store %arg7[%c0_16, %c0_17], %18 {strides = array<i32>} : memref<8x128xf32, #tpu.memory_space<vmem>>, vector<8x128xf32>,
    } else {
    }
    return
  }
  func.func @transform_0(%arg0: i32, %arg1: i32, %arg2: i32) -> (i32, i32) {
    %c0_i32 = arith.constant 0 : i32
    return %arg0, %arg2 : i32, i32
  }
  func.func @transform_1(%arg0: i32, %arg1: i32, %arg2: i32) -> (i32, i32) {
    %c0_i32 = arith.constant 0 : i32
    return %arg2, %arg1 : i32, i32
  }
  func.func @transform_2(%arg0: i32, %arg1: i32, %arg2: i32) -> (i32, i32) {
    %c0_i32 = arith.constant 0 : i32
    %c0_i32_0 = arith.constant 0 : i32
    return %c0_i32, %arg1 : i32, i32
  }
  func.func @transform_3(%arg0: i32, %arg1: i32, %arg2: i32) -> (i32, i32) {
    %c0_i32 = arith.constant 0 : i32
    %c0_i32_0 = arith.constant 0 : i32
    return %c0_i32, %arg1 : i32, i32
  }
  func.func @transform_4(%arg0: i32, %arg1: i32, %arg2: i32) -> (i32, i32) {
    %c0_i32 = arith.constant 0 : i32
    return %arg0, %arg1 : i32, i32
  }
}

</mosaic_0001>

<llo_original>
// kernel: _lambda_.28
$region0: #{_lambda_.28}
  #allocation0 [shape = 'u32[]', space=smem, size = 0x4, offset = 0x4, fixed_abs, tag = 'smem constant byte address 0x4 - core index']
  #allocation1 [shape = 'u32[72,128]{1,0:T(1,128)}', space=vmem, size = 0x9000, scoped, tag = 'internal scratch']
  #allocation2 [shape = 'f32[128,128]{1,0:T(8,128)}', space=vmem, size = 0x10000, scoped, tag = 'scratch operand']
  %s0 = inlined_call_operand.vmem [shape: bf16[128,128], index: 0, kind: input, shape index: {}]
  %s1 = inlined_call_operand.vmem [shape: bf16[128,128], index: 1, kind: input, shape index: {}]
  %s2 = inlined_call_operand.vmem [shape: f32[1,128], index: 2, kind: input, shape index: {}]
  %s3 = inlined_call_operand.vmem [shape: f32[1,128], index: 3, kind: input, shape index: {}]
  %s4 = inlined_call_operand.vmem [shape: f32[1,128], index: 4, kind: input, shape index: {}]
  %s5 = inlined_call_operand.vmem [shape: f32[1,128], index: 5, kind: input, shape index: {}]
  %s6 = inlined_call_operand.vmem [shape: bf16[128,128], index: 6, kind: output, shape index: {}]
  %s7 = sld [smem:[#allocation0]]
  $region42: #{_lambda_.28} parent=0
    _
  %s9 = ssub.s32 1, %s7
  %s10 = scalar_select 0, %s9, %s7
  // Predicated region
  $region2: #{_lambda_.28} parent=0 // pred_check
    _
  $region3: #{_lambda_.28} parent=0 // pred_check_branch
    %12 = sbr.rel (0) target = $region5
  $region4: #{_lambda_.28} parent=0 // pred_region
    _
  $region5: #{_lambda_.28} parent=0 // pred_fallthru
    _
  // Predicated region
  $region6: #{_lambda_.28} parent=0 // pred_check
    _
  $region7: #{_lambda_.28} parent=0 // pred_check_branch
    %14 = sbr.rel (0) target = $region9
  $region8: #{_lambda_.28} parent=0 // pred_region
    _
  $region9: #{_lambda_.28} parent=0 // pred_fallthru
    _
  // Predicated region
  $region10: #{_lambda_.28} parent=0 // pred_check
    _
  $region11: #{_lambda_.28} parent=0 // pred_check_branch
    %16 = sbr.rel (0) target = $region13
  $region12: #{_lambda_.28} parent=0 // pred_region
    _
  $region13: #{_lambda_.28} parent=0 // pred_fallthru
    _
  // Predicated region
  $region14: #{_lambda_.28} parent=0 // pred_check
    _
  $region15: #{_lambda_.28} parent=0 // pred_check_branch
    %18 = sbr.rel (0) target = $region17
  $region16: #{_lambda_.28} parent=0 // pred_region
    _
  $region17: #{_lambda_.28} parent=0 // pred_fallthru
    _
  // Predicated region
  $region18: #{_lambda_.28} parent=0 // pred_check
    _
  $region19: #{_lambda_.28} parent=0 // pred_check_branch
    %20 = sbr.rel (0) target = $region21
  $region20: #{_lambda_.28} parent=0 // pred_region
    _
  $region21: #{_lambda_.28} parent=0 // pred_fallthru
    _
  // Predicated region
  $region22: #{_lambda_.28} parent=0 // pred_check
    _
  $region23: #{_lambda_.28} parent=0 // pred_check_branch
    %22 = sbr.rel (0) target = $region25
  $region24: #{_lambda_.28} parent=0 // pred_region
    _
  $region25: #{_lambda_.28} parent=0 // pred_fallthru
    _
  %p23 = scmp.eq.s32.totalorder 0, 0
  // Predicated region
  $region26: #{_lambda_.28} parent=0 // pred_check
    %p24 = pneg %p23
  $region27: #{_lambda_.28} parent=0 // pred_check_branch
    %26 = sbr.rel (%p24) target = $region29
  $region28: #{_lambda_.28} parent=0 // pred_region
    %27 = vst [vmem:[#allocation2] sm:$0xff] 0.0
    %28 = vst [vmem:[#allocation2 + $0x8] sm:$0xff] 0.0
    %29 = vst [vmem:[#allocation2 + $0x10] sm:$0xff] 0.0
    %30 = vst [vmem:[#allocation2 + $0x18] sm:$0xff] 0.0
    %31 = vst [vmem:[#allocation2 + $0x20] sm:$0xff] 0.0
    %32 = vst [vmem:[#allocation2 + $0x28] sm:$0xff] 0.0
    %33 = vst [vmem:[#allocation2 + $0x30] sm:$0xff] 0.0
    %34 = vst [vmem:[#allocation2 + $0x38] sm:$0xff] 0.0
    %35 = vst [vmem:[#allocation2 + $0x40] sm:$0xff] 0.0
    %36 = vst [vmem:[#allocation2 + $0x48] sm:$0xff] 0.0
    %37 = vst [vmem:[#allocation2 + $0x50] sm:$0xff] 0.0
    %38 = vst [vmem:[#allocation2 + $0x58] sm:$0xff] 0.0
    %39 = vst [vmem:[#allocation2 + $0x60] sm:$0xff] 0.0
    %40 = vst [vmem:[#allocation2 + $0x68] sm:$0xff] 0.0
    %41 = vst [vmem:[#allocation2 + $0x70] sm:$0xff] 0.0
    %42 = vst [vmem:[#allocation2 + $0x78] sm:$0xff] 0.0
  $region29: #{_lambda_.28} parent=0 // pred_fallthru
    _
  %v43 = vld [vmem:[%s0] sm:$0xf]
  %v44 = vld [vmem:[%s0 + $0x4] sm:$0xf]
  %v45 = vld [vmem:[%s0 + $0x8] sm:$0xf]
  %v46 = vld [vmem:[%s0 + $0xc] sm:$0xf]
  %v47 = vld [vmem:[%s0 + $0x10] sm:$0xf]
  %v48 = vld [vmem:[%s0 + $0x14] sm:$0xf]
  %v49 = vld [vmem:[%s0 + $0x18] sm:$0xf]
  %v50 = vld [vmem:[%s0 + $0x1c] sm:$0xf]
  %v51 = vld [vmem:[%s0 + $0x20] sm:$0xf]
  %v52 = vld [vmem:[%s0 + $0x24] sm:$0xf]
  %v53 = vld [vmem:[%s0 + $0x28] sm:$0xf]
  %v54 = vld [vmem:[%s0 + $0x2c] sm:$0xf]
  %v55 = vld [vmem:[%s0 + $0x30] sm:$0xf]
  %v56 = vld [vmem:[%s0 + $0x34] sm:$0xf]
  %v57 = vld [vmem:[%s0 + $0x38] sm:$0xf]
  %v58 = vld [vmem:[%s0 + $0x3c] sm:$0xf]
  %v59 = vunpack.c.l.bf16 %v43
  %v60 = vunpack.c.l.bf16 %v44
  %v61 = vunpack.c.l.bf16 %v45
  %v62 = vunpack.c.l.bf16 %v46
  %v63 = vunpack.c.l.bf16 %v47
  %v64 = vunpack.c.l.bf16 %v48
  %v65 = vunpack.c.l.bf16 %v49
  %v66 = vunpack.c.l.bf16 %v50
  %v67 = vunpack.c.l.bf16 %v51
  %v68 = vunpack.c.l.bf16 %v52
  %v69 = vunpack.c.l.bf16 %v53
  %v70 = vunpack.c.l.bf16 %v54
  %v71 = vunpack.c.l.bf16 %v55
  %v72 = vunpack.c.l.bf16 %v56
  %v73 = vunpack.c.l.bf16 %v57
  %v74 = vunpack.c.l.bf16 %v58
  %v75 = vld [vmem:[%s2] sm:$0x1]
  %v77 = vperm.slane %v75, 0
  %v79 = vmul.f32 %v59, %v77
  %v80 = vmul.f32 %v60, %v77
  %v81 = vmul.f32 %v61, %v77
  %v82 = vmul.f32 %v62, %v77
  %v83 = vmul.f32 %v63, %v77
  %v84 = vmul.f32 %v64, %v77
  %v85 = vmul.f32 %v65, %v77
  %v86 = vmul.f32 %v66, %v77
  %v87 = vmul.f32 %v67, %v77
  %v88 = vmul.f32 %v68, %v77
  %v89 = vmul.f32 %v69, %v77
  %v90 = vmul.f32 %v70, %v77
  %v91 = vmul.f32 %v71, %v77
  %v92 = vmul.f32 %v72, %v77
  %v93 = vmul.f32 %v73, %v77
  %v94 = vmul.f32 %v74, %v77
  %v95 = vld [vmem:[%s3] sm:$0x1]
  %v97 = vperm.slane %v95, 0
  %v99 = vadd.f32 %v79, %v97
  %v100 = vadd.f32 %v80, %v97
  %v101 = vadd.f32 %v81, %v97
  %v102 = vadd.f32 %v82, %v97
  %v103 = vadd.f32 %v83, %v97
  %v104 = vadd.f32 %v84, %v97
  %v105 = vadd.f32 %v85, %v97
  %v106 = vadd.f32 %v86, %v97
  %v107 = vadd.f32 %v87, %v97
  %v108 = vadd.f32 %v88, %v97
  %v109 = vadd.f32 %v89, %v97
  %v110 = vadd.f32 %v90, %v97
  %v111 = vadd.f32 %v91, %v97
  %v112 = vadd.f32 %v92, %v97
  %v113 = vadd.f32 %v93, %v97
  %v114 = vadd.f32 %v94, %v97
  %v115 = vmax.f32 %v99, 0.0
  %v116 = vmax.f32 %v100, 0.0
  %v117 = vmax.f32 %v101, 0.0
  %v118 = vmax.f32 %v102, 0.0
  %v119 = vmax.f32 %v103, 0.0
  %v120 = vmax.f32 %v104, 0.0
  %v121 = vmax.f32 %v105, 0.0
  %v122 = vmax.f32 %v106, 0.0
  %v123 = vmax.f32 %v107, 0.0
  %v124 = vmax.f32 %v108, 0.0
  %v125 = vmax.f32 %v109, 0.0
  %v126 = vmax.f32 %v110, 0.0
  %v127 = vmax.f32 %v111, 0.0
  %v128 = vmax.f32 %v112, 0.0
  %v129 = vmax.f32 %v113, 0.0
  %v130 = vmax.f32 %v114, 0.0
  %v131 = vpack.c.bf16 %v116, %v115
  %v132 = vpack.c.bf16 %v118, %v117
  %v133 = vpack.c.bf16 %v120, %v119
  %v134 = vpack.c.bf16 %v122, %v121
  %v135 = vpack.c.bf16 %v124, %v123
  %v136 = vpack.c.bf16 %v126, %v125
  %v137 = vpack.c.bf16 %v128, %v127
  %v138 = vpack.c.bf16 %v130, %v129
  %v139 = vld [vmem:[#allocation2] sm:$0xff]
  %v140 = vld [vmem:[#allocation2 + $0x8] sm:$0xff]
  %v141 = vld [vmem:[#allocation2 + $0x10] sm:$0xff]
  %v142 = vld [vmem:[#allocation2 + $0x18] sm:$0xff]
  %v143 = vld [vmem:[#allocation2 + $0x20] sm:$0xff]
  %v144 = vld [vmem:[#allocation2 + $0x28] sm:$0xff]
  %v145 = vld [vmem:[#allocation2 + $0x30] sm:$0xff]
  %v146 = vld [vmem:[#allocation2 + $0x38] sm:$0xff]
  %v147 = vld [vmem:[#allocation2 + $0x40] sm:$0xff]
  %v148 = vld [vmem:[#allocation2 + $0x48] sm:$0xff]
  %v149 = vld [vmem:[#allocation2 + $0x50] sm:$0xff]
  %v150 = vld [vmem:[#allocation2 + $0x58] sm:$0xff]
  %v151 = vld [vmem:[#allocation2 + $0x60] sm:$0xff]
  %v152 = vld [vmem:[#allocation2 + $0x68] sm:$0xff]
  %v153 = vld [vmem:[#allocation2 + $0x70] sm:$0xff]
  %v154 = vld [vmem:[#allocation2 + $0x78] sm:$0xff]
  %v155 = vld [vmem:[%s1] sm:$0xf]
  %v156 = vld [vmem:[%s1 + $0x4] sm:$0xf]
  %v157 = vld [vmem:[%s1 + $0x8] sm:$0xf]
  %v158 = vld [vmem:[%s1 + $0xc] sm:$0xf]
  %v159 = vld [vmem:[%s1 + $0x10] sm:$0xf]
  %v160 = vld [vmem:[%s1 + $0x14] sm:$0xf]
  %v161 = vld [vmem:[%s1 + $0x18] sm:$0xf]
  %v162 = vld [vmem:[%s1 + $0x1c] sm:$0xf]
  %v163 = vld [vmem:[%s1 + $0x20] sm:$0xf]
  %v164 = vld [vmem:[%s1 + $0x24] sm:$0xf]
  %v165 = vld [vmem:[%s1 + $0x28] sm:$0xf]
  %v166 = vld [vmem:[%s1 + $0x2c] sm:$0xf]
  %v167 = vld [vmem:[%s1 + $0x30] sm:$0xf]
  %v168 = vld [vmem:[%s1 + $0x34] sm:$0xf]
  %v169 = vld [vmem:[%s1 + $0x38] sm:$0xf]
  %v170 = vld [vmem:[%s1 + $0x3c] sm:$0xf]
  %v187 = vunpack.c.l.b16 %v155
  %v188 = vunpack.c.l.b16 %v156
  %v189 = vunpack.c.l.b16 %v157
  %v190 = vunpack.c.l.b16 %v158
  %v191 = vunpack.c.l.b16 %v159
  %v192 = vunpack.c.l.b16 %v160
  %v193 = vunpack.c.l.b16 %v161
  %v194 = vunpack.c.l.b16 %v162
  %v195 = vunpack.c.l.b16 %v163
  %v196 = vunpack.c.l.b16 %v164
  %v197 = vunpack.c.l.b16 %v165
  %v198 = vunpack.c.l.b16 %v166
  %v199 = vunpack.c.l.b16 %v167
  %v200 = vunpack.c.l.b16 %v168
  %v201 = vunpack.c.l.b16 %v169
  %v202 = vunpack.c.l.b16 %v170
  %v203 = vpack.c.b16 %v188, %v187
  %v204 = vpack.c.b16 %v190, %v189
  %v205 = vpack.c.b16 %v192, %v191
  %v206 = vpack.c.b16 %v194, %v193
  %v207 = vpack.c.b16 %v196, %v195
  %v208 = vpack.c.b16 %v198, %v197
  %v209 = vpack.c.b16 %v200, %v199
  %v210 = vpack.c.b16 %v202, %v201
  %219 = vmatpush.bf16.msra.mxu0 %v210
  %220 = vmatpush.bf16.msra.mxu0 %v209
  %221 = vmatpush.bf16.msra.mxu0 %v208
  %222 = vmatpush.bf16.msra.mxu0 %v207
  %223 = vmatpush.bf16.msra.mxu0 %v206
  %224 = vmatpush.bf16.msra.mxu0 %v205
  %225 = vmatpush.bf16.msra.mxu0 %v204
  %226 = vmatpush.bf16.msra.mxu0 %v203
  %227 = vmatmul.bf16.gmra.mxu0 %v131
  %v228 = vpop.f32.mrf.mxu0
  %v229 = vadd.f32 0.0, %v228
  %v230 = vpop.f32.mrf.mxu0
  %v231 = vadd.f32 0.0, %v230
  %232 = vmatmul.bf16.gmra.mxu0 %v132
  %v233 = vpop.f32.mrf.mxu0
  %v234 = vadd.f32 0.0, %v233
  %v235 = vpop.f32.mrf.mxu0
  %v236 = vadd.f32 0.0, %v235
  %237 = vmatmul.bf16.gmra.mxu0 %v133
  %v238 = vpop.f32.mrf.mxu0
  %v239 = vadd.f32 0.0, %v238
  %v240 = vpop.f32.mrf.mxu0
  %v241 = vadd.f32 0.0, %v240
  %242 = vmatmul.bf16.gmra.mxu0 %v134
  %v243 = vpop.f32.mrf.mxu0
  %v244 = vadd.f32 0.0, %v243
  %v245 = vpop.f32.mrf.mxu0
  %v246 = vadd.f32 0.0, %v245
  %247 = vmatmul.bf16.gmra.mxu0 %v135
  %v248 = vpop.f32.mrf.mxu0
  %v249 = vadd.f32 0.0, %v248
  %v250 = vpop.f32.mrf.mxu0
  %v251 = vadd.f32 0.0, %v250
  %252 = vmatmul.bf16.gmra.mxu0 %v136
  %v253 = vpop.f32.mrf.mxu0
  %v254 = vadd.f32 0.0, %v253
  %v255 = vpop.f32.mrf.mxu0
  %v256 = vadd.f32 0.0, %v255
  %257 = vmatmul.bf16.gmra.mxu0 %v137
  %v258 = vpop.f32.mrf.mxu0
  %v259 = vadd.f32 0.0, %v258
  %v260 = vpop.f32.mrf.mxu0
  %v261 = vadd.f32 0.0, %v260
  %262 = vmatmul.bf16.gmra.mxu0 %v138
  %v263 = vpop.f32.mrf.mxu0
  %v264 = vadd.f32 0.0, %v263
  %v265 = vpop.f32.mrf.mxu0
  %v266 = vadd.f32 0.0, %v265
  %267 = vdwg.mxu0
  %v268 = vadd.f32 %v139, %v229
  %v269 = vadd.f32 %v140, %v231
  %v270 = vadd.f32 %v141, %v234
  %v271 = vadd.f32 %v142, %v236
  %v272 = vadd.f32 %v143, %v239
  %v273 = vadd.f32 %v144, %v241
  %v274 = vadd.f32 %v145, %v244
  %v275 = vadd.f32 %v146, %v246
  %v276 = vadd.f32 %v147, %v249
  %v277 = vadd.f32 %v148, %v251
  %v278 = vadd.f32 %v149, %v254
  %v279 = vadd.f32 %v150, %v256
  %v280 = vadd.f32 %v151, %v259
  %v281 = vadd.f32 %v152, %v261
  %v282 = vadd.f32 %v153, %v264
  %v283 = vadd.f32 %v154, %v266
  %284 = vst [vmem:[#allocation2] sm:$0xff] %v268
  %285 = vst [vmem:[#allocation2 + $0x8] sm:$0xff] %v269
  %286 = vst [vmem:[#allocation2 + $0x10] sm:$0xff] %v270
  %287 = vst [vmem:[#allocation2 + $0x18] sm:$0xff] %v271
  %288 = vst [vmem:[#allocation2 + $0x20] sm:$0xff] %v272
  %289 = vst [vmem:[#allocation2 + $0x28] sm:$0xff] %v273
  %290 = vst [vmem:[#allocation2 + $0x30] sm:$0xff] %v274
  %291 = vst [vmem:[#allocation2 + $0x38] sm:$0xff] %v275
  %292 = vst [vmem:[#allocation2 + $0x40] sm:$0xff] %v276
  %293 = vst [vmem:[#allocation2 + $0x48] sm:$0xff] %v277
  %294 = vst [vmem:[#allocation2 + $0x50] sm:$0xff] %v278
  %295 = vst [vmem:[#allocation2 + $0x58] sm:$0xff] %v279
  %296 = vst [vmem:[#allocation2 + $0x60] sm:$0xff] %v280
  %297 = vst [vmem:[#allocation2 + $0x68] sm:$0xff] %v281
  %298 = vst [vmem:[#allocation2 + $0x70] sm:$0xff] %v282
  %299 = vst [vmem:[#allocation2 + $0x78] sm:$0xff] %v283
  // Predicated region
  $region30: #{_lambda_.28} parent=0 // pred_check
    %p300 = pneg %p23
  $region31: #{_lambda_.28} parent=0 // pred_check_branch
    %302 = sbr.rel (%p300) target = $region33
  $region32: #{_lambda_.28} parent=0 // pred_region
    %v303 = vld [vmem:[#allocation2] sm:$0xff]
    %v304 = vld [vmem:[#allocation2 + $0x8] sm:$0xff]
    %v305 = vld [vmem:[#allocation2 + $0x10] sm:$0xff]
    %v306 = vld [vmem:[#allocation2 + $0x18] sm:$0xff]
    %v307 = vld [vmem:[#allocation2 + $0x20] sm:$0xff]
    %v308 = vld [vmem:[#allocation2 + $0x28] sm:$0xff]
    %v309 = vld [vmem:[#allocation2 + $0x30] sm:$0xff]
    %v310 = vld [vmem:[#allocation2 + $0x38] sm:$0xff]
    %v311 = vld [vmem:[#allocation2 + $0x40] sm:$0xff]
    %v312 = vld [vmem:[#allocation2 + $0x48] sm:$0xff]
    %v313 = vld [vmem:[#allocation2 + $0x50] sm:$0xff]
    %v314 = vld [vmem:[#allocation2 + $0x58] sm:$0xff]
    %v315 = vld [vmem:[#allocation2 + $0x60] sm:$0xff]
    %v316 = vld [vmem:[#allocation2 + $0x68] sm:$0xff]
    %v317 = vld [vmem:[#allocation2 + $0x70] sm:$0xff]
    %v318 = vld [vmem:[#allocation2 + $0x78] sm:$0xff]
    %v319 = vld [vmem:[%s4] sm:$0x1]
    %v321 = vperm.slane %v319, 0
    %v323 = vmul.f32 %v303, %v321
    %v324 = vmul.f32 %v304, %v321
    %v325 = vmul.f32 %v305, %v321
    %v326 = vmul.f32 %v306, %v321
    %v327 = vmul.f32 %v307, %v321
    %v328 = vmul.f32 %v308, %v321
    %v329 = vmul.f32 %v309, %v321
    %v330 = vmul.f32 %v310, %v321
    %v331 = vmul.f32 %v311, %v321
    %v332 = vmul.f32 %v312, %v321
    %v333 = vmul.f32 %v313, %v321
    %v334 = vmul.f32 %v314, %v321
    %v335 = vmul.f32 %v315, %v321
    %v336 = vmul.f32 %v316, %v321
    %v337 = vmul.f32 %v317, %v321
    %v338 = vmul.f32 %v318, %v321
    %v339 = vld [vmem:[%s5] sm:$0x1]
    %v341 = vperm.slane %v339, 0
    %v343 = vadd.f32 %v323, %v341
    %v344 = vadd.f32 %v324, %v341
    %v345 = vadd.f32 %v325, %v341
    %v346 = vadd.f32 %v326, %v341
    %v347 = vadd.f32 %v327, %v341
    %v348 = vadd.f32 %v328, %v341
    %v349 = vadd.f32 %v329, %v341
    %v350 = vadd.f32 %v330, %v341
    %v351 = vadd.f32 %v331, %v341
    %v352 = vadd.f32 %v332, %v341
    %v353 = vadd.f32 %v333, %v341
    %v354 = vadd.f32 %v334, %v341
    %v355 = vadd.f32 %v335, %v341
    %v356 = vadd.f32 %v336, %v341
    %v357 = vadd.f32 %v337, %v341
    %v358 = vadd.f32 %v338, %v341
    %v359 = vmax.f32 %v343, 0.0
    %v360 = vmax.f32 %v344, 0.0
    %v361 = vmax.f32 %v345, 0.0
    %v362 = vmax.f32 %v346, 0.0
    %v363 = vmax.f32 %v347, 0.0
    %v364 = vmax.f32 %v348, 0.0
    %v365 = vmax.f32 %v349, 0.0
    %v366 = vmax.f32 %v350, 0.0
    %v367 = vmax.f32 %v351, 0.0
    %v368 = vmax.f32 %v352, 0.0
    %v369 = vmax.f32 %v353, 0.0
    %v370 = vmax.f32 %v354, 0.0
    %v371 = vmax.f32 %v355, 0.0
    %v372 = vmax.f32 %v356, 0.0
    %v373 = vmax.f32 %v357, 0.0
    %v374 = vmax.f32 %v358, 0.0
    %v375 = vpack.c.bf16 %v359, %v359
    %v376 = vpack.c.bf16 %v360, %v360
    %v377 = vpack.c.bf16 %v361, %v361
    %v378 = vpack.c.bf16 %v362, %v362
    %v379 = vpack.c.bf16 %v363, %v363
    %v380 = vpack.c.bf16 %v364, %v364
    %v381 = vpack.c.bf16 %v365, %v365
    %v382 = vpack.c.bf16 %v366, %v366
    %v383 = vpack.c.bf16 %v367, %v367
    %v384 = vpack.c.bf16 %v368, %v368
    %v385 = vpack.c.bf16 %v369, %v369
    %v386 = vpack.c.bf16 %v370, %v370
    %v387 = vpack.c.bf16 %v371, %v371
    %v388 = vpack.c.bf16 %v372, %v372
    %v389 = vpack.c.bf16 %v373, %v373
    %v390 = vpack.c.bf16 %v374, %v374
    %391 = vst [vmem:[%s6] sm:$0xf] %v375
    %392 = vst [vmem:[%s6 + $0x4] sm:$0xf] %v376
    %393 = vst [vmem:[%s6 + $0x8] sm:$0xf] %v377
    %394 = vst [vmem:[%s6 + $0xc] sm:$0xf] %v378
    %395 = vst [vmem:[%s6 + $0x10] sm:$0xf] %v379
    %396 = vst [vmem:[%s6 + $0x14] sm:$0xf] %v380
    %397 = vst [vmem:[%s6 + $0x18] sm:$0xf] %v381
    %398 = vst [vmem:[%s6 + $0x1c] sm:$0xf] %v382
    %399 = vst [vmem:[%s6 + $0x20] sm:$0xf] %v383
    %400 = vst [vmem:[%s6 + $0x24] sm:$0xf] %v384
    %401 = vst [vmem:[%s6 + $0x28] sm:$0xf] %v385
    %402 = vst [vmem:[%s6 + $0x2c] sm:$0xf] %v386
    %403 = vst [vmem:[%s6 + $0x30] sm:$0xf] %v387
    %404 = vst [vmem:[%s6 + $0x34] sm:$0xf] %v388
    %405 = vst [vmem:[%s6 + $0x38] sm:$0xf] %v389
    %406 = vst [vmem:[%s6 + $0x3c] sm:$0xf] %v390
  $region33: #{_lambda_.28} parent=0 // pred_fallthru
    _
  // Predicated region
  $region34: #{_lambda_.28} parent=0 // pred_check
    _
  $region35: #{_lambda_.28} parent=0 // pred_check_branch
    %408 = sbr.rel (0) target = $region37
  $region36: #{_lambda_.28} parent=0 // pred_region
    _
  $region37: #{_lambda_.28} parent=0 // pred_fallthru
    _
  // Predicated region
  $region38: #{_lambda_.28} parent=0 // pred_check
    _
  $region39: #{_lambda_.28} parent=0 // pred_check_branch
    %410 = sbr.rel (0) target = $region41
  $region40: #{_lambda_.28} parent=0 // pred_region
    _
  $region41: #{_lambda_.28} parent=0 // pred_fallthru
    _

// kernel: _lambda_.26
$region0: #{_lambda_.26}
  #allocation0 [shape = 'u32[]', space=smem, size = 0x4, offset = 0x4, fixed_abs, tag = 'smem constant byte address 0x4 - core index']
  #allocation1 [shape = 'u32[72,128]{1,0:T(1,128)}', space=vmem, size = 0x9000, scoped, tag = 'internal scratch']
  #allocation2 [shape = 'f32[512,128]{1,0:T(8,128)}', space=vmem, size = 0x40000, scoped, tag = 'scratch operand']
  %s0 = inlined_call_operand.vmem [shape: bf16[512,256], index: 0, kind: input, shape index: {}]
  %s1 = inlined_call_operand.vmem [shape: bf16[256,128], index: 1, kind: input, shape index: {}]
  %s2 = inlined_call_operand.vmem [shape: f32[1,128], index: 2, kind: input, shape index: {}]
  %s3 = inlined_call_operand.vmem [shape: f32[1,128], index: 3, kind: input, shape index: {}]
  %s4 = inlined_call_operand.vmem [shape: bf16[512,128], index: 4, kind: output, shape index: {}]
  %s5 = sld [smem:[#allocation0]]
  $region34: #{_lambda_.26} parent=0
    _
  %s7 = ssub.s32 1, %s5
  %s8 = scalar_select 0, %s7, %s5
  // Predicated region
  $region2: #{_lambda_.26} parent=0 // pred_check
    _
  $region3: #{_lambda_.26} parent=0 // pred_check_branch
    %10 = sbr.rel (0) target = $region5
  $region4: #{_lambda_.26} parent=0 // pred_region
    _
  $region5: #{_lambda_.26} parent=0 // pred_fallthru
    _
  // Predicated region
  $region6: #{_lambda_.26} parent=0 // pred_check
    _
  $region7: #{_lambda_.26} parent=0 // pred_check_branch
    %12 = sbr.rel (0) target = $region9
  $region8: #{_lambda_.26} parent=0 // pred_region
    _
  $region9: #{_lambda_.26} parent=0 // pred_fallthru
    _
  // Predicated region
  $region10: #{_lambda_.26} parent=0 // pred_check
    _
  $region11: #{_lambda_.26} parent=0 // pred_check_branch
    %14 = sbr.rel (0) target = $region13
  $region12: #{_lambda_.26} parent=0 // pred_region
    _
  $region13: #{_lambda_.26} parent=0 // pred_fallthru
    _
  // Predicated region
  $region14: #{_lambda_.26} parent=0 // pred_check
    _
  $region15: #{_lambda_.26} parent=0 // pred_check_branch
    %16 = sbr.rel (0) target = $region17
  $region16: #{_lambda_.26} parent=0 // pred_region
    _
  $region17: #{_lambda_.26} parent=0 // pred_fallthru
    _
  %p17 = scmp.eq.s32.totalorder 0, 0
  // Predicated region
  $region18: #{_lambda_.26} parent=0 // pred_check
    %p18 = pneg %p17
  $region19: #{_lambda_.26} parent=0 // pred_check_branch
    %20 = sbr.rel (%p18) target = $region21
  $region20: #{_lambda_.26} parent=0 // pred_region
    %21 = vst [vmem:[#allocation2] sm:$0xff] 0.0
    %22 = vst [vmem:[#allocation2 + $0x8] sm:$0xff] 0.0
    %23 = vst [vmem:[#allocation2 + $0x10] sm:$0xff] 0.0
    %24 = vst [vmem:[#allocation2 + $0x18] sm:$0xff] 0.0
    %25 = vst [vmem:[#allocation2 + $0x20] sm:$0xff] 0.0
    %26 = vst [vmem:[#allocation2 + $0x28] sm:$0xff] 0.0
    %27 = vst [vmem:[#allocation2 + $0x30] sm:$0xff] 0.0
    %28 = vst [vmem:[#allocation2 + $0x38] sm:$0xff] 0.0
    %29 = vst [vmem:[#allocation2 + $0x40] sm:$0xff] 0.0
    %30 = vst [vmem:[#allocation2 + $0x48] sm:$0xff] 0.0
    %31 = vst [vmem:[#allocation2 + $0x50] sm:$0xff] 0.0
    %32 = vst [vmem:[#allocation2 + $0x58] sm:$0xff] 0.0
    %33 = vst [vmem:[#allocation2 + $0x60] sm:$0xff] 0.0
    %34 = vst [vmem:[#allocation2 + $0x68] sm:$0xff] 0.0
    %35 = vst [vmem:[#allocation2 + $0x70] sm:$0xff] 0.0
    %36 = vst [vmem:[#allocation2 + $0x78] sm:$0xff] 0.0
    %37 = vst [vmem:[#allocation2 + $0x80] sm:$0xff] 0.0
    %38 = vst [vmem:[#allocation2 + $0x88] sm:$0xff] 0.0
    %39 = vst [vmem:[#allocation2 + $0x90] sm:$0xff] 0.0
    %40 = vst [vmem:[#allocation2 + $0x98] sm:$0xff] 0.0
    %41 = vst [vmem:[#allocation2 + $0xa0] sm:$0xff] 0.0
    %42 = vst [vmem:[#allocation2 + $0xa8] sm:$0xff] 0.0
    %43 = vst [vmem:[#allocation2 + $0xb0] sm:$0xff] 0.0
    %44 = vst [vmem:[#allocation2 + $0xb8] sm:$0xff] 0.0
    %45 = vst [vmem:[#allocation2 + $0xc0] sm:$0xff] 0.0
    %46 = vst [vmem:[#allocation2 + $0xc8] sm:$0xff] 0.0
    %47 = vst [vmem:[#allocation2 + $0xd0] sm:$0xff] 0.0
    %48 = vst [vmem:[#allocation2 + $0xd8] sm:$0xff] 0.0
    %49 = vst [vmem:[#allocation2 + $0xe0] sm:$0xff] 0.0
    %50 = vst [vmem:[#allocation2 + $0xe8] sm:$0xff] 0.0
    %51 = vst [vmem:[#allocation2 + $0xf0] sm:$0xff] 0.0
    %52 = vst [vmem:[#allocation2 + $0xf8] sm:$0xff] 0.0
    %53 = vst [vmem:[#allocation2 + $0x100] sm:$0xff] 0.0
    %54 = vst [vmem:[#allocation2 + $0x108] sm:$0xff] 0.0
    %55 = vst [vmem:[#allocation2 + $0x110] sm:$0xff] 0.0
    %56 = vst [vmem:[#allocation2 + $0x118] sm:$0xff] 0.0
    %57 = vst [vmem:[#allocation2 + $0x120] sm:$0xff] 0.0
    %58 = vst [vmem:[#allocation2 + $0x128] sm:$0xff] 0.0
    %59 = vst [vmem:[#allocation2 + $0x130] sm:$0xff] 0.0
    %60 = vst [vmem:[#allocation2 + $0x138] sm:$0xff] 0.0
    %61 = vst [vmem:[#allocation2 + $0x140] sm:$0xff] 0.0
    %62 = vst [vmem:[#allocation2 + $0x148] sm:$0xff] 0.0
    %63 = vst [vmem:[#allocation2 + $0x150] sm:$0xff] 0.0
    %64 = vst [vmem:[#allocation2 + $0x158] sm:$0xff] 0.0
    %65 = vst [vmem:[#allocation2 + $0x160] sm:$0xff] 0.0
    %66 = vst [vmem:[#allocation2 + $0x168] sm:$0xff] 0.0
    %67 = vst [vmem:[#allocation2 + $0x170] sm:$0xff] 0.0
    %68 = vst [vmem:[#allocation2 + $0x178] sm:$0xff] 0.0
    %69 = vst [vmem:[#allocation2 + $0x180] sm:$0xff] 0.0
    %70 = vst [vmem:[#allocation2 + $0x188] sm:$0xff] 0.0
    %71 = vst [vmem:[#allocation2 + $0x190] sm:$0xff] 0.0
    %72 = vst [vmem:[#allocation2 + $0x198] sm:$0xff] 0.0
    %73 = vst [vmem:[#allocation2 + $0x1a0] sm:$0xff] 0.0
    %74 = vst [vmem:[#allocation2 + $0x1a8] sm:$0xff] 0.0
    %75 = vst [vmem:[#allocation2 + $0x1b0] sm:$0xff] 0.0
    %76 = vst [vmem:[#allocation2 + $0x1b8] sm:$0xff] 0.0
    %77 = vst [vmem:[#allocation2 + $0x1c0] sm:$0xff] 0.0
    %78 = vst [vmem:[#allocation2 + $0x1c8] sm:$0xff] 0.0
    %79 = vst [vmem:[#allocation2 + $0x1d0] sm:$0xff] 0.0
    %80 = vst [vmem:[#allocation2 + $0x1d8] sm:$0xff] 0.0
    %81 = vst [vmem:[#allocation2 + $0x1e0] sm:$0xff] 0.0
    %82 = vst [vmem:[#allocation2 + $0x1e8] sm:$0xff] 0.0
    %83 = vst [vmem:[#allocation2 + $0x1f0] sm:$0xff] 0.0
    %84 = vst [vmem:[#allocation2 + $0x1f8] sm:$0xff] 0.0
  $region21: #{_lambda_.26} parent=0 // pred_fallthru
    _
  %v85 = vld [vmem:[%s0] sm:$0xff]
  %v86 = vld [vmem:[%s0 + $0x8] sm:$0xff]
  %v87 = vld [vmem:[%s0 + $0x10] sm:$0xff]
  %v88 = vld [vmem:[%s0 + $0x18] sm:$0xff]
  %v89 = vld [vmem:[%s0 + $0x20] sm:$0xff]
  %v90 = vld [vmem:[%s0 + $0x28] sm:$0xff]
  %v91 = vld [vmem:[%s0 + $0x30] sm:$0xff]
  %v92 = vld [vmem:[%s0 + $0x38] sm:$0xff]
  %v93 = vld [vmem:[%s0 + $0x40] sm:$0xff]
  %v94 = vld [vmem:[%s0 + $0x48] sm:$0xff]
  %v95 = vld [vmem:[%s0 + $0x50] sm:$0xff]
  %v96 = vld [vmem:[%s0 + $0x58] sm:$0xff]
  %v97 = vld [vmem:[%s0 + $0x60] sm:$0xff]
  %v98 = vld [vmem:[%s0 + $0x68] sm:$0xff]
  %v99 = vld [vmem:[%s0 + $0x70] sm:$0xff]
  %v100 = vld [vmem:[%s0 + $0x78] sm:$0xff]
  %v101 = vld [vmem:[%s0 + $0x80] sm:$0xff]
  %v102 = vld [vmem:[%s0 + $0x88] sm:$0xff]
  %v103 = vld [vmem:[%s0 + $0x90] sm:$0xff]
  %v104 = vld [vmem:[%s0 + $0x98] sm:$0xff]
  %v105 = vld [vmem:[%s0 + $0xa0] sm:$0xff]
  %v106 = vld [vmem:[%s0 + $0xa8] sm:$0xff]
  %v107 = vld [vmem:[%s0 + $0xb0] sm:$0xff]
  %v108 = vld [vmem:[%s0 + $0xb8] sm:$0xff]
  %v109 = vld [vmem:[%s0 + $0xc0] sm:$0xff]
  %v110 = vld [vmem:[%s0 + $0xc8] sm:$0xff]
  %v111 = vld [vmem:[%s0 + $0xd0] sm:$0xff]
  %v112 = vld [vmem:[%s0 + $0xd8] sm:$0xff]
  %v113 = vld [vmem:[%s0 + $0xe0] sm:$0xff]
  %v114 = vld [vmem:[%s0 + $0xe8] sm:$0xff]
  %v115 = vld [vmem:[%s0 + $0xf0] sm:$0xff]
  %v116 = vld [vmem:[%s0 + $0xf8] sm:$0xff]
  %v117 = vld [vmem:[%s0 + $0x100] sm:$0xff]
  %v118 = vld [vmem:[%s0 + $0x108] sm:$0xff]
  %v119 = vld [vmem:[%s0 + $0x110] sm:$0xff]
  %v120 = vld [vmem:[%s0 + $0x118] sm:$0xff]
  %v121 = vld [vmem:[%s0 + $0x120] sm:$0xff]
  %v122 = vld [vmem:[%s0 + $0x128] sm:$0xff]
  %v123 = vld [vmem:[%s0 + $0x130] sm:$0xff]
  %v124 = vld [vmem:[%s0 + $0x138] sm:$0xff]
  %v125 = vld [vmem:[%s0 + $0x140] sm:$0xff]
  %v126 = vld [vmem:[%s0 + $0x148] sm:$0xff]
  %v127 = vld [vmem:[%s0 + $0x150] sm:$0xff]
  %v128 = vld [vmem:[%s0 + $0x158] sm:$0xff]
  %v129 = vld [vmem:[%s0 + $0x160] sm:$0xff]
  %v130 = vld [vmem:[%s0 + $0x168] sm:$0xff]
  %v131 = vld [vmem:[%s0 + $0x170] sm:$0xff]
  %v132 = vld [vmem:[%s0 + $0x178] sm:$0xff]
  %v133 = vld [vmem:[%s0 + $0x180] sm:$0xff]
  %v134 = vld [vmem:[%s0 + $0x188] sm:$0xff]
  %v135 = vld [vmem:[%s0 + $0x190] sm:$0xff]
  %v136 = vld [vmem:[%s0 + $0x198] sm:$0xff]
  %v137 = vld [vmem:[%s0 + $0x1a0] sm:$0xff]
  %v138 = vld [vmem:[%s0 + $0x1a8] sm:$0xff]
  %v139 = vld [vmem:[%s0 + $0x1b0] sm:$0xff]
  %v140 = vld [vmem:[%s0 + $0x1b8] sm:$0xff]
  %v141 = vld [vmem:[%s0 + $0x1c0] sm:$0xff]
  %v142 = vld [vmem:[%s0 + $0x1c8] sm:$0xff]
  %v143 = vld [vmem:[%s0 + $0x1d0] sm:$0xff]
  %v144 = vld [vmem:[%s0 + $0x1d8] sm:$0xff]
  %v145 = vld [vmem:[%s0 + $0x1e0] sm:$0xff]
  %v146 = vld [vmem:[%s0 + $0x1e8] sm:$0xff]
  %v147 = vld [vmem:[%s0 + $0x1f0] sm:$0xff]
  %v148 = vld [vmem:[%s0 + $0x1f8] sm:$0xff]
  %v149 = vld [vmem:[#allocation2] sm:$0xff]
  %v150 = vld [vmem:[#allocation2 + $0x8] sm:$0xff]
  %v151 = vld [vmem:[#allocation2 + $0x10] sm:$0xff]
  %v152 = vld [vmem:[#allocation2 + $0x18] sm:$0xff]
  %v153 = vld [vmem:[#allocation2 + $0x20] sm:$0xff]
  %v154 = vld [vmem:[#allocation2 + $0x28] sm:$0xff]
  %v155 = vld [vmem:[#allocation2 + $0x30] sm:$0xff]
  %v156 = vld [vmem:[#allocation2 + $0x38] sm:$0xff]
  %v157 = vld [vmem:[#allocation2 + $0x40] sm:$0xff]
  %v158 = vld [vmem:[#allocation2 + $0x48] sm:$0xff]
  %v159 = vld [vmem:[#allocation2 + $0x50] sm:$0xff]
  %v160 = vld [vmem:[#allocation2 + $0x58] sm:$0xff]
  %v161 = vld [vmem:[#allocation2 + $0x60] sm:$0xff]
  %v162 = vld [vmem:[#allocation2 + $0x68] sm:$0xff]
  %v163 = vld [vmem:[#allocation2 + $0x70] sm:$0xff]
  %v164 = vld [vmem:[#allocation2 + $0x78] sm:$0xff]
  %v165 = vld [vmem:[#allocation2 + $0x80] sm:$0xff]
  %v166 = vld [vmem:[#allocation2 + $0x88] sm:$0xff]
  %v167 = vld [vmem:[#allocation2 + $0x90] sm:$0xff]
  %v168 = vld [vmem:[#allocation2 + $0x98] sm:$0xff]
  %v169 = vld [vmem:[#allocation2 + $0xa0] sm:$0xff]
  %v170 = vld [vmem:[#allocation2 + $0xa8] sm:$0xff]
  %v171 = vld [vmem:[#allocation2 + $0xb0] sm:$0xff]
  %v172 = vld [vmem:[#allocation2 + $0xb8] sm:$0xff]
  %v173 = vld [vmem:[#allocation2 + $0xc0] sm:$0xff]
  %v174 = vld [vmem:[#allocation2 + $0xc8] sm:$0xff]
  %v175 = vld [vmem:[#allocation2 + $0xd0] sm:$0xff]
  %v176 = vld [vmem:[#allocation2 + $0xd8] sm:$0xff]
  %v177 = vld [vmem:[#allocation2 + $0xe0] sm:$0xff]
  %v178 = vld [vmem:[#allocation2 + $0xe8] sm:$0xff]
  %v179 = vld [vmem:[#allocation2 + $0xf0] sm:$0xff]
  %v180 = vld [vmem:[#allocation2 + $0xf8] sm:$0xff]
  %v181 = vld [vmem:[#allocation2 + $0x100] sm:$0xff]
  %v182 = vld [vmem:[#allocation2 + $0x108] sm:$0xff]
  %v183 = vld [vmem:[#allocation2 + $0x110] sm:$0xff]
  %v184 = vld [vmem:[#allocation2 + $0x118] sm:$0xff]
  %v185 = vld [vmem:[#allocation2 + $0x120] sm:$0xff]
  %v186 = vld [vmem:[#allocation2 + $0x128] sm:$0xff]
  %v187 = vld [vmem:[#allocation2 + $0x130] sm:$0xff]
  %v188 = vld [vmem:[#allocation2 + $0x138] sm:$0xff]
  %v189 = vld [vmem:[#allocation2 + $0x140] sm:$0xff]
  %v190 = vld [vmem:[#allocation2 + $0x148] sm:$0xff]
  %v191 = vld [vmem:[#allocation2 + $0x150] sm:$0xff]
  %v192 = vld [vmem:[#allocation2 + $0x158] sm:$0xff]
  %v193 = vld [vmem:[#allocation2 + $0x160] sm:$0xff]
  %v194 = vld [vmem:[#allocation2 + $0x168] sm:$0xff]
  %v195 = vld [vmem:[#allocation2 + $0x170] sm:$0xff]
  %v196 = vld [vmem:[#allocation2 + $0x178] sm:$0xff]
  %v197 = vld [vmem:[#allocation2 + $0x180] sm:$0xff]
  %v198 = vld [vmem:[#allocation2 + $0x188] sm:$0xff]
  %v199 = vld [vmem:[#allocation2 + $0x190] sm:$0xff]
  %v200 = vld [vmem:[#allocation2 + $0x198] sm:$0xff]
  %v201 = vld [vmem:[#allocation2 + $0x1a0] sm:$0xff]
  %v202 = vld [vmem:[#allocation2 + $0x1a8] sm:$0xff]
  %v203 = vld [vmem:[#allocation2 + $0x1b0] sm:$0xff]
  %v204 = vld [vmem:[#allocation2 + $0x1b8] sm:$0xff]
  %v205 = vld [vmem:[#allocation2 + $0x1c0] sm:$0xff]
  %v206 = vld [vmem:[#allocation2 + $0x1c8] sm:$0xff]
  %v207 = vld [vmem:[#allocation2 + $0x1d0] sm:$0xff]
  %v208 = vld [vmem:[#allocation2 + $0x1d8] sm:$0xff]
  %v209 = vld [vmem:[#allocation2 + $0x1e0] sm:$0xff]
  %v210 = vld [vmem:[#allocation2 + $0x1e8] sm:$0xff]
  %v211 = vld [vmem:[#allocation2 + $0x1f0] sm:$0xff]
  %v212 = vld [vmem:[#allocation2 + $0x1f8] sm:$0xff]
  %v213 = vld [vmem:[%s1] sm:$0xf]
  %v214 = vld [vmem:[%s1 + $0x4] sm:$0xf]
  %v215 = vld [vmem:[%s1 + $0x8] sm:$0xf]
  %v216 = vld [vmem:[%s1 + $0xc] sm:$0xf]
  %v217 = vld [vmem:[%s1 + $0x10] sm:$0xf]
  %v218 = vld [vmem:[%s1 + $0x14] sm:$0xf]
  %v219 = vld [vmem:[%s1 + $0x18] sm:$0xf]
  %v220 = vld [vmem:[%s1 + $0x1c] sm:$0xf]
  %v221 = vld [vmem:[%s1 + $0x20] sm:$0xf]
  %v222 = vld [vmem:[%s1 + $0x24] sm:$0xf]
  %v223 = vld [vmem:[%s1 + $0x28] sm:$0xf]
  %v224 = vld [vmem:[%s1 + $0x2c] sm:$0xf]
  %v225 = vld [vmem:[%s1 + $0x30] sm:$0xf]
  %v226 = vld [vmem:[%s1 + $0x34] sm:$0xf]
  %v227 = vld [vmem:[%s1 + $0x38] sm:$0xf]
  %v228 = vld [vmem:[%s1 + $0x3c] sm:$0xf]
  %v229 = vld [vmem:[%s1 + $0x40] sm:$0xf]
  %v230 = vld [vmem:[%s1 + $0x44] sm:$0xf]
  %v231 = vld [vmem:[%s1 + $0x48] sm:$0xf]
  %v232 = vld [vmem:[%s1 + $0x4c] sm:$0xf]
  %v233 = vld [vmem:[%s1 + $0x50] sm:$0xf]
  %v234 = vld [vmem:[%s1 + $0x54] sm:$0xf]
  %v235 = vld [vmem:[%s1 + $0x58] sm:$0xf]
  %v236 = vld [vmem:[%s1 + $0x5c] sm:$0xf]
  %v237 = vld [vmem:[%s1 + $0x60] sm:$0xf]
  %v238 = vld [vmem:[%s1 + $0x64] sm:$0xf]
  %v239 = vld [vmem:[%s1 + $0x68] sm:$0xf]
  %v240 = vld [vmem:[%s1 + $0x6c] sm:$0xf]
  %v241 = vld [vmem:[%s1 + $0x70] sm:$0xf]
  %v242 = vld [vmem:[%s1 + $0x74] sm:$0xf]
  %v243 = vld [vmem:[%s1 + $0x78] sm:$0xf]
  %v244 = vld [vmem:[%s1 + $0x7c] sm:$0xf]
  %v309 = vunpack.c.l.b16 %v85
  %v310 = vunpack.c.h.b16 %v85
  %v311 = vunpack.c.l.b16 %v86
  %v312 = vunpack.c.h.b16 %v86
  %v313 = vunpack.c.l.b16 %v87
  %v314 = vunpack.c.h.b16 %v87
  %v315 = vunpack.c.l.b16 %v88
  %v316 = vunpack.c.h.b16 %v88
  %v317 = vunpack.c.l.b16 %v89
  %v318 = vunpack.c.h.b16 %v89
  %v319 = vunpack.c.l.b16 %v90
  %v320 = vunpack.c.h.b16 %v90
  %v321 = vunpack.c.l.b16 %v91
  %v322 = vunpack.c.h.b16 %v91
  %v323 = vunpack.c.l.b16 %v92
  %v324 = vunpack.c.h.b16 %v92
  %v325 = vunpack.c.l.b16 %v93
  %v326 = vunpack.c.h.b16 %v93
  %v327 = vunpack.c.l.b16 %v94
  %v328 = vunpack.c.h.b16 %v94
  %v329 = vunpack.c.l.b16 %v95
  %v330 = vunpack.c.h.b16 %v95
  %v331 = vunpack.c.l.b16 %v96
  %v332 = vunpack.c.h.b16 %v96
  %v333 = vunpack.c.l.b16 %v97
  %v334 = vunpack.c.h.b16 %v97
  %v335 = vunpack.c.l.b16 %v98
  %v336 = vunpack.c.h.b16 %v98
  %v337 = vunpack.c.l.b16 %v99
  %v338 = vunpack.c.h.b16 %v99
  %v339 = vunpack.c.l.b16 %v100
  %v340 = vunpack.c.h.b16 %v100
  %v341 = vunpack.c.l.b16 %v101
  %v342 = vunpack.c.h.b16 %v101
  %v343 = vunpack.c.l.b16 %v102
  %v344 = vunpack.c.h.b16 %v102
  %v345 = vunpack.c.l.b16 %v103
  %v346 = vunpack.c.h.b16 %v103
  %v347 = vunpack.c.l.b16 %v104
  %v348 = vunpack.c.h.b16 %v104
  %v349 = vunpack.c.l.b16 %v105
  %v350 = vunpack.c.h.b16 %v105
  %v351 = vunpack.c.l.b16 %v106
  %v352 = vunpack.c.h.b16 %v106
  %v353 = vunpack.c.l.b16 %v107
  %v354 = vunpack.c.h.b16 %v107
  %v355 = vunpack.c.l.b16 %v108
  %v356 = vunpack.c.h.b16 %v108
  %v357 = vunpack.c.l.b16 %v109
  %v358 = vunpack.c.h.b16 %v109
  %v359 = vunpack.c.l.b16 %v110
  %v360 = vunpack.c.h.b16 %v110
  %v361 = vunpack.c.l.b16 %v111
  %v362 = vunpack.c.h.b16 %v111
  %v363 = vunpack.c.l.b16 %v112
  %v364 = vunpack.c.h.b16 %v112
  %v365 = vunpack.c.l.b16 %v113
  %v366 = vunpack.c.h.b16 %v113
  %v367 = vunpack.c.l.b16 %v114
  %v368 = vunpack.c.h.b16 %v114
  %v369 = vunpack.c.l.b16 %v115
  %v370 = vunpack.c.h.b16 %v115
  %v371 = vunpack.c.l.b16 %v116
  %v372 = vunpack.c.h.b16 %v116
  %v373 = vunpack.c.l.b16 %v117
  %v374 = vunpack.c.h.b16 %v117
  %v375 = vunpack.c.l.b16 %v118
  %v376 = vunpack.c.h.b16 %v118
  %v377 = vunpack.c.l.b16 %v119
  %v378 = vunpack.c.h.b16 %v119
  %v379 = vunpack.c.l.b16 %v120
  %v380 = vunpack.c.h.b16 %v120
  %v381 = vunpack.c.l.b16 %v121
  %v382 = vunpack.c.h.b16 %v121
  %v383 = vunpack.c.l.b16 %v122
  %v384 = vunpack.c.h.b16 %v122
  %v385 = vunpack.c.l.b16 %v123
  %v386 = vunpack.c.h.b16 %v123
  %v387 = vunpack.c.l.b16 %v124
  %v388 = vunpack.c.h.b16 %v124
  %v389 = vunpack.c.l.b16 %v125
  %v390 = vunpack.c.h.b16 %v125
  %v391 = vunpack.c.l.b16 %v126
  %v392 = vunpack.c.h.b16 %v126
  %v393 = vunpack.c.l.b16 %v127
  %v394 = vunpack.c.h.b16 %v127
  %v395 = vunpack.c.l.b16 %v128
  %v396 = vunpack.c.h.b16 %v128
  %v397 = vunpack.c.l.b16 %v129
  %v398 = vunpack.c.h.b16 %v129
  %v399 = vunpack.c.l.b16 %v130
  %v400 = vunpack.c.h.b16 %v130
  %v401 = vunpack.c.l.b16 %v131
  %v402 = vunpack.c.h.b16 %v131
  %v403 = vunpack.c.l.b16 %v132
  %v404 = vunpack.c.h.b16 %v132
  %v405 = vunpack.c.l.b16 %v133
  %v406 = vunpack.c.h.b16 %v133
  %v407 = vunpack.c.l.b16 %v134
  %v408 = vunpack.c.h.b16 %v134
  %v409 = vunpack.c.l.b16 %v135
  %v410 = vunpack.c.h.b16 %v135
  %v411 = vunpack.c.l.b16 %v136
  %v412 = vunpack.c.h.b16 %v136
  %v413 = vunpack.c.l.b16 %v137
  %v414 = vunpack.c.h.b16 %v137
  %v415 = vunpack.c.l.b16 %v138
  %v416 = vunpack.c.h.b16 %v138
  %v417 = vunpack.c.l.b16 %v139
  %v418 = vunpack.c.h.b16 %v139
  %v419 = vunpack.c.l.b16 %v140
  %v420 = vunpack.c.h.b16 %v140
  %v421 = vunpack.c.l.b16 %v141
  %v422 = vunpack.c.h.b16 %v141
  %v423 = vunpack.c.l.b16 %v142
  %v424 = vunpack.c.h.b16 %v142
  %v425 = vunpack.c.l.b16 %v143
  %v426 = vunpack.c.h.b16 %v143
  %v427 = vunpack.c.l.b16 %v144
  %v428 = vunpack.c.h.b16 %v144
  %v429 = vunpack.c.l.b16 %v145
  %v430 = vunpack.c.h.b16 %v145
  %v431 = vunpack.c.l.b16 %v146
  %v432 = vunpack.c.h.b16 %v146
  %v433 = vunpack.c.l.b16 %v147
  %v434 = vunpack.c.h.b16 %v147
  %v435 = vunpack.c.l.b16 %v148
  %v436 = vunpack.c.h.b16 %v148
  %v437 = vpack.c.b16 %v311, %v309
  %v438 = vpack.c.b16 %v312, %v310
  %v439 = vpack.c.b16 %v315, %v313
  %v440 = vpack.c.b16 %v316, %v314
  %v441 = vpack.c.b16 %v319, %v317
  %v442 = vpack.c.b16 %v320, %v318
  %v443 = vpack.c.b16 %v323, %v321
  %v444 = vpack.c.b16 %v324, %v322
  %v445 = vpack.c.b16 %v327, %v325
  %v446 = vpack.c.b16 %v328, %v326
  %v447 = vpack.c.b16 %v331, %v329
  %v448 = vpack.c.b16 %v332, %v330
  %v449 = vpack.c.b16 %v335, %v333
  %v450 = vpack.c.b16 %v336, %v334
  %v451 = vpack.c.b16 %v339, %v337
  %v452 = vpack.c.b16 %v340, %v338
  %v453 = vpack.c.b16 %v343, %v341
  %v454 = vpack.c.b16 %v344, %v342
  %v455 = vpack.c.b16 %v347, %v345
  %v456 = vpack.c.b16 %v348, %v346
  %v457 = vpack.c.b16 %v351, %v349
  %v458 = vpack.c.b16 %v352, %v350
  %v459 = vpack.c.b16 %v355, %v353
  %v460 = vpack.c.b16 %v356, %v354
  %v461 = vpack.c.b16 %v359, %v357
  %v462 = vpack.c.b16 %v360, %v358
  %v463 = vpack.c.b16 %v363, %v361
  %v464 = vpack.c.b16 %v364, %v362
  %v465 = vpack.c.b16 %v367, %v365
  %v466 = vpack.c.b16 %v368, %v366
  %v467 = vpack.c.b16 %v371, %v369
  %v468 = vpack.c.b16 %v372, %v370
  %v469 = vpack.c.b16 %v375, %v373
  %v470 = vpack.c.b16 %v376, %v374
  %v471 = vpack.c.b16 %v379, %v377
  %v472 = vpack.c.b16 %v380, %v378
  %v473 = vpack.c.b16 %v383, %v381
  %v474 = vpack.c.b16 %v384, %v382
  %v475 = vpack.c.b16 %v387, %v385
  %v476 = vpack.c.b16 %v388, %v386
  %v477 = vpack.c.b16 %v391, %v389
  %v478 = vpack.c.b16 %v392, %v390
  %v479 = vpack.c.b16 %v395, %v393
  %v480 = vpack.c.b16 %v396, %v394
  %v481 = vpack.c.b16 %v399, %v397
  %v482 = vpack.c.b16 %v400, %v398
  %v483 = vpack.c.b16 %v403, %v401
  %v484 = vpack.c.b16 %v404, %v402
  %v485 = vpack.c.b16 %v407, %v405
  %v486 = vpack.c.b16 %v408, %v406
  %v487 = vpack.c.b16 %v411, %v409
  %v488 = vpack.c.b16 %v412, %v410
  %v489 = vpack.c.b16 %v415, %v413
  %v490 = vpack.c.b16 %v416, %v414
  %v491 = vpack.c.b16 %v419, %v417
  %v492 = vpack.c.b16 %v420, %v418
  %v493 = vpack.c.b16 %v423, %v421
  %v494 = vpack.c.b16 %v424, %v422
  %v495 = vpack.c.b16 %v427, %v425
  %v496 = vpack.c.b16 %v428, %v426
  %v497 = vpack.c.b16 %v431, %v429
  %v498 = vpack.c.b16 %v432, %v430
  %v499 = vpack.c.b16 %v435, %v433
  %v500 = vpack.c.b16 %v436, %v434
  %v597 = vunpack.c.l.b16 %v213
  %v598 = vunpack.c.l.b16 %v214
  %v599 = vunpack.c.l.b16 %v215
  %v600 = vunpack.c.l.b16 %v216
  %v601 = vunpack.c.l.b16 %v217
  %v602 = vunpack.c.l.b16 %v218
  %v603 = vunpack.c.l.b16 %v219
  %v604 = vunpack.c.l.b16 %v220
  %v605 = vunpack.c.l.b16 %v221
  %v606 = vunpack.c.l.b16 %v222
  %v607 = vunpack.c.l.b16 %v223
  %v608 = vunpack.c.l.b16 %v224
  %v609 = vunpack.c.l.b16 %v225
  %v610 = vunpack.c.l.b16 %v226
  %v611 = vunpack.c.l.b16 %v227
  %v612 = vunpack.c.l.b16 %v228
  %v613 = vunpack.c.l.b16 %v229
  %v614 = vunpack.c.l.b16 %v230
  %v615 = vunpack.c.l.b16 %v231
  %v616 = vunpack.c.l.b16 %v232
  %v617 = vunpack.c.l.b16 %v233
  %v618 = vunpack.c.l.b16 %v234
  %v619 = vunpack.c.l.b16 %v235
  %v620 = vunpack.c.l.b16 %v236
  %v621 = vunpack.c.l.b16 %v237
  %v622 = vunpack.c.l.b16 %v238
  %v623 = vunpack.c.l.b16 %v239
  %v624 = vunpack.c.l.b16 %v240
  %v625 = vunpack.c.l.b16 %v241
  %v626 = vunpack.c.l.b16 %v242
  %v627 = vunpack.c.l.b16 %v243
  %v628 = vunpack.c.l.b16 %v244
  %v629 = vpack.c.b16 %v598, %v597
  %v630 = vpack.c.b16 %v600, %v599
  %v631 = vpack.c.b16 %v602, %v601
  %v632 = vpack.c.b16 %v604, %v603
  %v633 = vpack.c.b16 %v606, %v605
  %v634 = vpack.c.b16 %v608, %v607
  %v635 = vpack.c.b16 %v610, %v609
  %v636 = vpack.c.b16 %v612, %v611
  %v637 = vpack.c.b16 %v614, %v613
  %v638 = vpack.c.b16 %v616, %v615
  %v639 = vpack.c.b16 %v618, %v617
  %v640 = vpack.c.b16 %v620, %v619
  %v641 = vpack.c.b16 %v622, %v621
  %v642 = vpack.c.b16 %v624, %v623
  %v643 = vpack.c.b16 %v626, %v625
  %v644 = vpack.c.b16 %v628, %v627
  %661 = vmatpush.bf16.msra.mxu0 %v636
  %662 = vmatpush.bf16.msra.mxu0 %v635
  %663 = vmatpush.bf16.msra.mxu0 %v634
  %664 = vmatpush.bf16.msra.mxu0 %v633
  %665 = vmatpush.bf16.msra.mxu0 %v632
  %666 = vmatpush.bf16.msra.mxu0 %v631
  %667 = vmatpush.bf16.msra.mxu0 %v630
  %668 = vmatpush.bf16.msra.mxu0 %v629
  %669 = vmatmul.bf16.gmra.mxu0 %v437
  %v670 = vpop.f32.mrf.mxu0
  %v671 = vadd.f32 0.0, %v670
  %v672 = vpop.f32.mrf.mxu0
  %v673 = vadd.f32 0.0, %v672
  %674 = vmatmul.bf16.gmra.mxu0 %v439
  %v675 = vpop.f32.mrf.mxu0
  %v676 = vadd.f32 0.0, %v675
  %v677 = vpop.f32.mrf.mxu0
  %v678 = vadd.f32 0.0, %v677
  %679 = vmatmul.bf16.gmra.mxu0 %v441
  %v680 = vpop.f32.mrf.mxu0
  %v681 = vadd.f32 0.0, %v680
  %v682 = vpop.f32.mrf.mxu0
  %v683 = vadd.f32 0.0, %v682
  %684 = vmatmul.bf16.gmra.mxu0 %v443
  %v685 = vpop.f32.mrf.mxu0
  %v686 = vadd.f32 0.0, %v685
  %v687 = vpop.f32.mrf.mxu0
  %v688 = vadd.f32 0.0, %v687
  %689 = vmatmul.bf16.gmra.mxu0 %v445
  %v690 = vpop.f32.mrf.mxu0
  %v691 = vadd.f32 0.0, %v690
  %v692 = vpop.f32.mrf.mxu0
  %v693 = vadd.f32 0.0, %v692
  %694 = vmatmul.bf16.gmra.mxu0 %v447
  %v695 = vpop.f32.mrf.mxu0
  %v696 = vadd.f32 0.0, %v695
  %v697 = vpop.f32.mrf.mxu0
  %v698 = vadd.f32 0.0, %v697
  %699 = vmatmul.bf16.gmra.mxu0 %v449
  %v700 = vpop.f32.mrf.mxu0
  %v701 = vadd.f32 0.0, %v700
  %v702 = vpop.f32.mrf.mxu0
  %v703 = vadd.f32 0.0, %v702
  %704 = vmatmul.bf16.gmra.mxu0 %v451
  %v705 = vpop.f32.mrf.mxu0
  %v706 = vadd.f32 0.0, %v705
  %v707 = vpop.f32.mrf.mxu0
  %v708 = vadd.f32 0.0, %v707
  %709 = vmatmul.bf16.gmra.mxu0 %v453
  %v710 = vpop.f32.mrf.mxu0
  %v711 = vadd.f32 0.0, %v710
  %v712 = vpop.f32.mrf.mxu0
  %v713 = vadd.f32 0.0, %v712
  %714 = vmatmul.bf16.gmra.mxu0 %v455
  %v715 = vpop.f32.mrf.mxu0
  %v716 = vadd.f32 0.0, %v715
  %v717 = vpop.f32.mrf.mxu0
  %v718 = vadd.f32 0.0, %v717
  %719 = vmatmul.bf16.gmra.mxu0 %v457
  %v720 = vpop.f32.mrf.mxu0
  %v721 = vadd.f32 0.0, %v720
  %v722 = vpop.f32.mrf.mxu0
  %v723 = vadd.f32 0.0, %v722
  %724 = vmatmul.bf16.gmra.mxu0 %v459
  %v725 = vpop.f32.mrf.mxu0
  %v726 = vadd.f32 0.0, %v725
  %v727 = vpop.f32.mrf.mxu0
  %v728 = vadd.f32 0.0, %v727
  %729 = vmatmul.bf16.gmra.mxu0 %v461
  %v730 = vpop.f32.mrf.mxu0
  %v731 = vadd.f32 0.0, %v730
  %v732 = vpop.f32.mrf.mxu0
  %v733 = vadd.f32 0.0, %v732
  %734 = vmatmul.bf16.gmra.mxu0 %v463
  %v735 = vpop.f32.mrf.mxu0
  %v736 = vadd.f32 0.0, %v735
  %v737 = vpop.f32.mrf.mxu0
  %v738 = vadd.f32 0.0, %v737
  %739 = vmatmul.bf16.gmra.mxu0 %v465
  %v740 = vpop.f32.mrf.mxu0
  %v741 = vadd.f32 0.0, %v740
  %v742 = vpop.f32.mrf.mxu0
  %v743 = vadd.f32 0.0, %v742
  %744 = vmatmul.bf16.gmra.mxu0 %v467
  %v745 = vpop.f32.mrf.mxu0
  %v746 = vadd.f32 0.0, %v745
  %v747 = vpop.f32.mrf.mxu0
  %v748 = vadd.f32 0.0, %v747
  %749 = vmatmul.bf16.gmra.mxu0 %v469
  %v750 = vpop.f32.mrf.mxu0
  %v751 = vadd.f32 0.0, %v750
  %v752 = vpop.f32.mrf.mxu0
  %v753 = vadd.f32 0.0, %v752
  %754 = vmatmul.bf16.gmra.mxu0 %v471
  %v755 = vpop.f32.mrf.mxu0
  %v756 = vadd.f32 0.0, %v755
  %v757 = vpop.f32.mrf.mxu0
  %v758 = vadd.f32 0.0, %v757
  %759 = vmatmul.bf16.gmra.mxu0 %v473
  %v760 = vpop.f32.mrf.mxu0
  %v761 = vadd.f32 0.0, %v760
  %v762 = vpop.f32.mrf.mxu0
  %v763 = vadd.f32 0.0, %v762
  %764 = vmatmul.bf16.gmra.mxu0 %v475
  %v765 = vpop.f32.mrf.mxu0
  %v766 = vadd.f32 0.0, %v765
  %v767 = vpop.f32.mrf.mxu0
  %v768 = vadd.f32 0.0, %v767
  %769 = vmatmul.bf16.gmra.mxu0 %v477
  %v770 = vpop.f32.mrf.mxu0
  %v771 = vadd.f32 0.0, %v770
  %v772 = vpop.f32.mrf.mxu0
  %v773 = vadd.f32 0.0, %v772
  %774 = vmatmul.bf16.gmra.mxu0 %v479
  %v775 = vpop.f32.mrf.mxu0
  %v776 = vadd.f32 0.0, %v775
  %v777 = vpop.f32.mrf.mxu0
  %v778 = vadd.f32 0.0, %v777
  %779 = vmatmul.bf16.gmra.mxu0 %v481
  %v780 = vpop.f32.mrf.mxu0
  %v781 = vadd.f32 0.0, %v780
  %v782 = vpop.f32.mrf.mxu0
  %v783 = vadd.f32 0.0, %v782
  %784 = vmatmul.bf16.gmra.mxu0 %v483
  %v785 = vpop.f32.mrf.mxu0
  %v786 = vadd.f32 0.0, %v785
  %v787 = vpop.f32.mrf.mxu0
  %v788 = vadd.f32 0.0, %v787
  %789 = vmatmul.bf16.gmra.mxu0 %v485
  %v790 = vpop.f32.mrf.mxu0
  %v791 = vadd.f32 0.0, %v790
  %v792 = vpop.f32.mrf.mxu0
  %v793 = vadd.f32 0.0, %v792
  %794 = vmatmul.bf16.gmra.mxu0 %v487
  %v795 = vpop.f32.mrf.mxu0
  %v796 = vadd.f32 0.0, %v795
  %v797 = vpop.f32.mrf.mxu0
  %v798 = vadd.f32 0.0, %v797
  %799 = vmatmul.bf16.gmra.mxu0 %v489
  %v800 = vpop.f32.mrf.mxu0
  %v801 = vadd.f32 0.0, %v800
  %v802 = vpop.f32.mrf.mxu0
  %v803 = vadd.f32 0.0, %v802
  %804 = vmatmul.bf16.gmra.mxu0 %v491
  %v805 = vpop.f32.mrf.mxu0
  %v806 = vadd.f32 0.0, %v805
  %v807 = vpop.f32.mrf.mxu0
  %v808 = vadd.f32 0.0, %v807
  %809 = vmatmul.bf16.gmra.mxu0 %v493
  %v810 = vpop.f32.mrf.mxu0
  %v811 = vadd.f32 0.0, %v810
  %v812 = vpop.f32.mrf.mxu0
  %v813 = vadd.f32 0.0, %v812
  %814 = vmatmul.bf16.gmra.mxu0 %v495
  %v815 = vpop.f32.mrf.mxu0
  %v816 = vadd.f32 0.0, %v815
  %v817 = vpop.f32.mrf.mxu0
  %v818 = vadd.f32 0.0, %v817
  %819 = vmatmul.bf16.gmra.mxu0 %v497
  %v820 = vpop.f32.mrf.mxu0
  %v821 = vadd.f32 0.0, %v820
  %v822 = vpop.f32.mrf.mxu0
  %v823 = vadd.f32 0.0, %v822
  %824 = vmatmul.bf16.gmra.mxu0 %v499
  %v825 = vpop.f32.mrf.mxu0
  %v826 = vadd.f32 0.0, %v825
  %v827 = vpop.f32.mrf.mxu0
  %v828 = vadd.f32 0.0, %v827
  %829 = vdwg.mxu0
  %830 = vmatpush.bf16.msra.mxu0 %v644
  %831 = vmatpush.bf16.msra.mxu0 %v643
  %832 = vmatpush.bf16.msra.mxu0 %v642
  %833 = vmatpush.bf16.msra.mxu0 %v641
  %834 = vmatpush.bf16.msra.mxu0 %v640
  %835 = vmatpush.bf16.msra.mxu0 %v639
  %836 = vmatpush.bf16.msra.mxu0 %v638
  %837 = vmatpush.bf16.msra.mxu0 %v637
  %838 = vmatmul.bf16.gmra.mxu0 %v438
  %v839 = vpop.f32.mrf.mxu0
  %v840 = vadd.f32 %v671, %v839
  %v841 = vpop.f32.mrf.mxu0
  %v842 = vadd.f32 %v673, %v841
  %843 = vmatmul.bf16.gmra.mxu0 %v440
  %v844 = vpop.f32.mrf.mxu0
  %v845 = vadd.f32 %v676, %v844
  %v846 = vpop.f32.mrf.mxu0
  %v847 = vadd.f32 %v678, %v846
  %848 = vmatmul.bf16.gmra.mxu0 %v442
  %v849 = vpop.f32.mrf.mxu0
  %v850 = vadd.f32 %v681, %v849
  %v851 = vpop.f32.mrf.mxu0
  %v852 = vadd.f32 %v683, %v851
  %853 = vmatmul.bf16.gmra.mxu0 %v444
  %v854 = vpop.f32.mrf.mxu0
  %v855 = vadd.f32 %v686, %v854
  %v856 = vpop.f32.mrf.mxu0
  %v857 = vadd.f32 %v688, %v856
  %858 = vmatmul.bf16.gmra.mxu0 %v446
  %v859 = vpop.f32.mrf.mxu0
  %v860 = vadd.f32 %v691, %v859
  %v861 = vpop.f32.mrf.mxu0
  %v862 = vadd.f32 %v693, %v861
  %863 = vmatmul.bf16.gmra.mxu0 %v448
  %v864 = vpop.f32.mrf.mxu0
  %v865 = vadd.f32 %v696, %v864
  %v866 = vpop.f32.mrf.mxu0
  %v867 = vadd.f32 %v698, %v866
  %868 = vmatmul.bf16.gmra.mxu0 %v450
  %v869 = vpop.f32.mrf.mxu0
  %v870 = vadd.f32 %v701, %v869
  %v871 = vpop.f32.mrf.mxu0
  %v872 = vadd.f32 %v703, %v871
  %873 = vmatmul.bf16.gmra.mxu0 %v452
  %v874 = vpop.f32.mrf.mxu0
  %v875 = vadd.f32 %v706, %v874
  %v876 = vpop.f32.mrf.mxu0
  %v877 = vadd.f32 %v708, %v876
  %878 = vmatmul.bf16.gmra.mxu0 %v454
  %v879 = vpop.f32.mrf.mxu0
  %v880 = vadd.f32 %v711, %v879
  %v881 = vpop.f32.mrf.mxu0
  %v882 = vadd.f32 %v713, %v881
  %883 = vmatmul.bf16.gmra.mxu0 %v456
  %v884 = vpop.f32.mrf.mxu0
  %v885 = vadd.f32 %v716, %v884
  %v886 = vpop.f32.mrf.mxu0
  %v887 = vadd.f32 %v718, %v886
  %888 = vmatmul.bf16.gmra.mxu0 %v458
  %v889 = vpop.f32.mrf.mxu0
  %v890 = vadd.f32 %v721, %v889
  %v891 = vpop.f32.mrf.mxu0
  %v892 = vadd.f32 %v723, %v891
  %893 = vmatmul.bf16.gmra.mxu0 %v460
  %v894 = vpop.f32.mrf.mxu0
  %v895 = vadd.f32 %v726, %v894
  %v896 = vpop.f32.mrf.mxu0
  %v897 = vadd.f32 %v728, %v896
  %898 = vmatmul.bf16.gmra.mxu0 %v462
  %v899 = vpop.f32.mrf.mxu0
  %v900 = vadd.f32 %v731, %v899
  %v901 = vpop.f32.mrf.mxu0
  %v902 = vadd.f32 %v733, %v901
  %903 = vmatmul.bf16.gmra.mxu0 %v464
  %v904 = vpop.f32.mrf.mxu0
  %v905 = vadd.f32 %v736, %v904
  %v906 = vpop.f32.mrf.mxu0
  %v907 = vadd.f32 %v738, %v906
  %908 = vmatmul.bf16.gmra.mxu0 %v466
  %v909 = vpop.f32.mrf.mxu0
  %v910 = vadd.f32 %v741, %v909
  %v911 = vpop.f32.mrf.mxu0
  %v912 = vadd.f32 %v743, %v911
  %913 = vmatmul.bf16.gmra.mxu0 %v468
  %v914 = vpop.f32.mrf.mxu0
  %v915 = vadd.f32 %v746, %v914
  %v916 = vpop.f32.mrf.mxu0
  %v917 = vadd.f32 %v748, %v916
  %918 = vmatmul.bf16.gmra.mxu0 %v470
  %v919 = vpop.f32.mrf.mxu0
  %v920 = vadd.f32 %v751, %v919
  %v921 = vpop.f32.mrf.mxu0
  %v922 = vadd.f32 %v753, %v921
  %923 = vmatmul.bf16.gmra.mxu0 %v472
  %v924 = vpop.f32.mrf.mxu0
  %v925 = vadd.f32 %v756, %v924
  %v926 = vpop.f32.mrf.mxu0
  %v927 = vadd.f32 %v758, %v926
  %928 = vmatmul.bf16.gmra.mxu0 %v474
  %v929 = vpop.f32.mrf.mxu0
  %v930 = vadd.f32 %v761, %v929
  %v931 = vpop.f32.mrf.mxu0
  %v932 = vadd.f32 %v763, %v931
  %933 = vmatmul.bf16.gmra.mxu0 %v476
  %v934 = vpop.f32.mrf.mxu0
  %v935 = vadd.f32 %v766, %v934
  %v936 = vpop.f32.mrf.mxu0
  %v937 = vadd.f32 %v768, %v936
  %938 = vmatmul.bf16.gmra.mxu0 %v478
  %v939 = vpop.f32.mrf.mxu0
  %v940 = vadd.f32 %v771, %v939
  %v941 = vpop.f32.mrf.mxu0
  %v942 = vadd.f32 %v773, %v941
  %943 = vmatmul.bf16.gmra.mxu0 %v480
  %v944 = vpop.f32.mrf.mxu0
  %v945 = vadd.f32 %v776, %v944
  %v946 = vpop.f32.mrf.mxu0
  %v947 = vadd.f32 %v778, %v946
  %948 = vmatmul.bf16.gmra.mxu0 %v482
  %v949 = vpop.f32.mrf.mxu0
  %v950 = vadd.f32 %v781, %v949
  %v951 = vpop.f32.mrf.mxu0
  %v952 = vadd.f32 %v783, %v951
  %953 = vmatmul.bf16.gmra.mxu0 %v484
  %v954 = vpop.f32.mrf.mxu0
  %v955 = vadd.f32 %v786, %v954
  %v956 = vpop.f32.mrf.mxu0
  %v957 = vadd.f32 %v788, %v956
  %958 = vmatmul.bf16.gmra.mxu0 %v486
  %v959 = vpop.f32.mrf.mxu0
  %v960 = vadd.f32 %v791, %v959
  %v961 = vpop.f32.mrf.mxu0
  %v962 = vadd.f32 %v793, %v961
  %963 = vmatmul.bf16.gmra.mxu0 %v488
  %v964 = vpop.f32.mrf.mxu0
  %v965 = vadd.f32 %v796, %v964
  %v966 = vpop.f32.mrf.mxu0
  %v967 = vadd.f32 %v798, %v966
  %968 = vmatmul.bf16.gmra.mxu0 %v490
  %v969 = vpop.f32.mrf.mxu0
  %v970 = vadd.f32 %v801, %v969
  %v971 = vpop.f32.mrf.mxu0
  %v972 = vadd.f32 %v803, %v971
  %973 = vmatmul.bf16.gmra.mxu0 %v492
  %v974 = vpop.f32.mrf.mxu0
  %v975 = vadd.f32 %v806, %v974
  %v976 = vpop.f32.mrf.mxu0
  %v977 = vadd.f32 %v808, %v976
  %978 = vmatmul.bf16.gmra.mxu0 %v494
  %v979 = vpop.f32.mrf.mxu0
  %v980 = vadd.f32 %v811, %v979
  %v981 = vpop.f32.mrf.mxu0
  %v982 = vadd.f32 %v813, %v981
  %983 = vmatmul.bf16.gmra.mxu0 %v496
  %v984 = vpop.f32.mrf.mxu0
  %v985 = vadd.f32 %v816, %v984
  %v986 = vpop.f32.mrf.mxu0
  %v987 = vadd.f32 %v818, %v986
  %988 = vmatmul.bf16.gmra.mxu0 %v498
  %v989 = vpop.f32.mrf.mxu0
  %v990 = vadd.f32 %v821, %v989
  %v991 = vpop.f32.mrf.mxu0
  %v992 = vadd.f32 %v823, %v991
  %993 = vmatmul.bf16.gmra.mxu0 %v500
  %v994 = vpop.f32.mrf.mxu0
  %v995 = vadd.f32 %v826, %v994
  %v996 = vpop.f32.mrf.mxu0
  %v997 = vadd.f32 %v828, %v996
  %998 = vdwg.mxu0
  %v999 = vadd.f32 %v149, %v840
  %v1000 = vadd.f32 %v150, %v842
  %v1001 = vadd.f32 %v151, %v845
  %v1002 = vadd.f32 %v152, %v847
  %v1003 = vadd.f32 %v153, %v850
  %v1004 = vadd.f32 %v154, %v852
  %v1005 = vadd.f32 %v155, %v855
  %v1006 = vadd.f32 %v156, %v857
  %v1007 = vadd.f32 %v157, %v860
  %v1008 = vadd.f32 %v158, %v862
  %v1009 = vadd.f32 %v159, %v865
  %v1010 = vadd.f32 %v160, %v867
  %v1011 = vadd.f32 %v161, %v870
  %v1012 = vadd.f32 %v162, %v872
  %v1013 = vadd.f32 %v163, %v875
  %v1014 = vadd.f32 %v164, %v877
  %v1015 = vadd.f32 %v165, %v880
  %v1016 = vadd.f32 %v166, %v882
  %v1017 = vadd.f32 %v167, %v885
  %v1018 = vadd.f32 %v168, %v887
  %v1019 = vadd.f32 %v169, %v890
  %v1020 = vadd.f32 %v170, %v892
  %v1021 = vadd.f32 %v171, %v895
  %v1022 = vadd.f32 %v172, %v897
  %v1023 = vadd.f32 %v173, %v900
  %v1024 = vadd.f32 %v174, %v902
  %v1025 = vadd.f32 %v175, %v905
  %v1026 = vadd.f32 %v176, %v907
  %v1027 = vadd.f32 %v177, %v910
  %v1028 = vadd.f32 %v178, %v912
  %v1029 = vadd.f32 %v179, %v915
  %v1030 = vadd.f32 %v180, %v917
  %v1031 = vadd.f32 %v181, %v920
  %v1032 = vadd.f32 %v182, %v922
  %v1033 = vadd.f32 %v183, %v925
  %v1034 = vadd.f32 %v184, %v927
  %v1035 = vadd.f32 %v185, %v930
  %v1036 = vadd.f32 %v186, %v932
  %v1037 = vadd.f32 %v187, %v935
  %v1038 = vadd.f32 %v188, %v937
  %v1039 = vadd.f32 %v189, %v940
  %v1040 = vadd.f32 %v190, %v942
  %v1041 = vadd.f32 %v191, %v945
  %v1042 = vadd.f32 %v192, %v947
  %v1043 = vadd.f32 %v193, %v950
  %v1044 = vadd.f32 %v194, %v952
  %v1045 = vadd.f32 %v195, %v955
  %v1046 = vadd.f32 %v196, %v957
  %v1047 = vadd.f32 %v197, %v960
  %v1048 = vadd.f32 %v198, %v962
  %v1049 = vadd.f32 %v199, %v965
  %v1050 = vadd.f32 %v200, %v967
  %v1051 = vadd.f32 %v201, %v970
  %v1052 = vadd.f32 %v202, %v972
  %v1053 = vadd.f32 %v203, %v975
  %v1054 = vadd.f32 %v204, %v977
  %v1055 = vadd.f32 %v205, %v980
  %v1056 = vadd.f32 %v206, %v982
  %v1057 = vadd.f32 %v207, %v985
  %v1058 = vadd.f32 %v208, %v987
  %v1059 = vadd.f32 %v209, %v990
  %v1060 = vadd.f32 %v210, %v992
  %v1061 = vadd.f32 %v211, %v995
  %v1062 = vadd.f32 %v212, %v997
  %1063 = vst [vmem:[#allocation2] sm:$0xff] %v999
  %1064 = vst [vmem:[#allocation2 + $0x8] sm:$0xff] %v1000
  %1065 = vst [vmem:[#allocation2 + $0x10] sm:$0xff] %v1001
  %1066 = vst [vmem:[#allocation2 + $0x18] sm:$0xff] %v1002
  %1067 = vst [vmem:[#allocation2 + $0x20] sm:$0xff] %v1003
  %1068 = vst [vmem:[#allocation2 + $0x28] sm:$0xff] %v1004
  %1069 = vst [vmem:[#allocation2 + $0x30] sm:$0xff] %v1005
  %1070 = vst [vmem:[#allocation2 + $0x38] sm:$0xff] %v1006
  %1071 = vst [vmem:[#allocation2 + $0x40] sm:$0xff] %v1007
  %1072 = vst [vmem:[#allocation2 + $0x48] sm:$0xff] %v1008
  %1073 = vst [vmem:[#allocation2 + $0x50] sm:$0xff] %v1009
  %1074 = vst [vmem:[#allocation2 + $0x58] sm:$0xff] %v1010
  %1075 = vst [vmem:[#allocation2 + $0x60] sm:$0xff] %v1011
  %1076 = vst [vmem:[#allocation2 + $0x68] sm:$0xff] %v1012
  %1077 = vst [vmem:[#allocation2 + $0x70] sm:$0xff] %v1013
  %1078 = vst [vmem:[#allocation2 + $0x78] sm:$0xff] %v1014
  %1079 = vst [vmem:[#allocation2 + $0x80] sm:$0xff] %v1015
  %1080 = vst [vmem:[#allocation2 + $0x88] sm:$0xff] %v1016
  %1081 = vst [vmem:[#allocation2 + $0x90] sm:$0xff] %v1017
  %1082 = vst [vmem:[#allocation2 + $0x98] sm:$0xff] %v1018
  %1083 = vst [vmem:[#allocation2 + $0xa0] sm:$0xff] %v1019
  %1084 = vst [vmem:[#allocation2 + $0xa8] sm:$0xff] %v1020
  %1085 = vst [vmem:[#allocation2 + $0xb0] sm:$0xff] %v1021
  %1086 = vst [vmem:[#allocation2 + $0xb8] sm:$0xff] %v1022
  %1087 = vst [vmem:[#allocation2 + $0xc0] sm:$0xff] %v1023
  %1088 = vst [vmem:[#allocation2 + $0xc8] sm:$0xff] %v1024
  %1089 = vst [vmem:[#allocation2 + $0xd0] sm:$0xff] %v1025
  %1090 = vst [vmem:[#allocation2 + $0xd8] sm:$0xff] %v1026
  %1091 = vst [vmem:[#allocation2 + $0xe0] sm:$0xff] %v1027
  %1092 = vst [vmem:[#allocation2 + $0xe8] sm:$0xff] %v1028
  %1093 = vst [vmem:[#allocation2 + $0xf0] sm:$0xff] %v1029
  %1094 = vst [vmem:[#allocation2 + $0xf8] sm:$0xff] %v1030
  %1095 = vst [vmem:[#allocation2 + $0x100] sm:$0xff] %v1031
  %1096 = vst [vmem:[#allocation2 + $0x108] sm:$0xff] %v1032
  %1097 = vst [vmem:[#allocation2 + $0x110] sm:$0xff] %v1033
  %1098 = vst [vmem:[#allocation2 + $0x118] sm:$0xff] %v1034
  %1099 = vst [vmem:[#allocation2 + $0x120] sm:$0xff] %v1035
  %1100 = vst [vmem:[#allocation2 + $0x128] sm:$0xff] %v1036
  %1101 = vst [vmem:[#allocation2 + $0x130] sm:$0xff] %v1037
  %1102 = vst [vmem:[#allocation2 + $0x138] sm:$0xff] %v1038
  %1103 = vst [vmem:[#allocation2 + $0x140] sm:$0xff] %v1039
  %1104 = vst [vmem:[#allocation2 + $0x148] sm:$0xff] %v1040
  %1105 = vst [vmem:[#allocation2 + $0x150] sm:$0xff] %v1041
  %1106 = vst [vmem:[#allocation2 + $0x158] sm:$0xff] %v1042
  %1107 = vst [vmem:[#allocation2 + $0x160] sm:$0xff] %v1043
  %1108 = vst [vmem:[#allocation2 + $0x168] sm:$0xff] %v1044
  %1109 = vst [vmem:[#allocation2 + $0x170] sm:$0xff] %v1045
  %1110 = vst [vmem:[#allocation2 + $0x178] sm:$0xff] %v1046
  %1111 = vst [vmem:[#allocation2 + $0x180] sm:$0xff] %v1047
  %1112 = vst [vmem:[#allocation2 + $0x188] sm:$0xff] %v1048
  %1113 = vst [vmem:[#allocation2 + $0x190] sm:$0xff] %v1049
  %1114 = vst [vmem:[#allocation2 + $0x198] sm:$0xff] %v1050
  %1115 = vst [vmem:[#allocation2 + $0x1a0] sm:$0xff] %v1051
  %1116 = vst [vmem:[#allocation2 + $0x1a8] sm:$0xff] %v1052
  %1117 = vst [vmem:[#allocation2 + $0x1b0] sm:$0xff] %v1053
  %1118 = vst [vmem:[#allocation2 + $0x1b8] sm:$0xff] %v1054
  %1119 = vst [vmem:[#allocation2 + $0x1c0] sm:$0xff] %v1055
  %1120 = vst [vmem:[#allocation2 + $0x1c8] sm:$0xff] %v1056
  %1121 = vst [vmem:[#allocation2 + $0x1d0] sm:$0xff] %v1057
  %1122 = vst [vmem:[#allocation2 + $0x1d8] sm:$0xff] %v1058
  %1123 = vst [vmem:[#allocation2 + $0x1e0] sm:$0xff] %v1059
  %1124 = vst [vmem:[#allocation2 + $0x1e8] sm:$0xff] %v1060
  %1125 = vst [vmem:[#allocation2 + $0x1f0] sm:$0xff] %v1061
  %1126 = vst [vmem:[#allocation2 + $0x1f8] sm:$0xff] %v1062
  // Predicated region
  $region22: #{_lambda_.26} parent=0 // pred_check
    %p1127 = pneg %p17
  $region23: #{_lambda_.26} parent=0 // pred_check_branch
    %1129 = sbr.rel (%p1127) target = $region25
  $region24: #{_lambda_.26} parent=0 // pred_region
    %v1130 = vld [vmem:[#allocation2] sm:$0xff]
    %v1131 = vld [vmem:[#allocation2 + $0x8] sm:$0xff]
    %v1132 = vld [vmem:[#allocation2 + $0x10] sm:$0xff]
    %v1133 = vld [vmem:[#allocation2 + $0x18] sm:$0xff]
    %v1134 = vld [vmem:[#allocation2 + $0x20] sm:$0xff]
    %v1135 = vld [vmem:[#allocation2 + $0x28] sm:$0xff]
    %v1136 = vld [vmem:[#allocation2 + $0x30] sm:$0xff]
    %v1137 = vld [vmem:[#allocation2 + $0x38] sm:$0xff]
    %v1138 = vld [vmem:[#allocation2 + $0x40] sm:$0xff]
    %v1139 = vld [vmem:[#allocation2 + $0x48] sm:$0xff]
    %v1140 = vld [vmem:[#allocation2 + $0x50] sm:$0xff]
    %v1141 = vld [vmem:[#allocation2 + $0x58] sm:$0xff]
    %v1142 = vld [vmem:[#allocation2 + $0x60] sm:$0xff]
    %v1143 = vld [vmem:[#allocation2 + $0x68] sm:$0xff]
    %v1144 = vld [vmem:[#allocation2 + $0x70] sm:$0xff]
    %v1145 = vld [vmem:[#allocation2 + $0x78] sm:$0xff]
    %v1146 = vld [vmem:[#allocation2 + $0x80] sm:$0xff]
    %v1147 = vld [vmem:[#allocation2 + $0x88] sm:$0xff]
    %v1148 = vld [vmem:[#allocation2 + $0x90] sm:$0xff]
    %v1149 = vld [vmem:[#allocation2 + $0x98] sm:$0xff]
    %v1150 = vld [vmem:[#allocation2 + $0xa0] sm:$0xff]
    %v1151 = vld [vmem:[#allocation2 + $0xa8] sm:$0xff]
    %v1152 = vld [vmem:[#allocation2 + $0xb0] sm:$0xff]
    %v1153 = vld [vmem:[#allocation2 + $0xb8] sm:$0xff]
    %v1154 = vld [vmem:[#allocation2 + $0xc0] sm:$0xff]
    %v1155 = vld [vmem:[#allocation2 + $0xc8] sm:$0xff]
    %v1156 = vld [vmem:[#allocation2 + $0xd0] sm:$0xff]
    %v1157 = vld [vmem:[#allocation2 + $0xd8] sm:$0xff]
    %v1158 = vld [vmem:[#allocation2 + $0xe0] sm:$0xff]
    %v1159 = vld [vmem:[#allocation2 + $0xe8] sm:$0xff]
    %v1160 = vld [vmem:[#allocation2 + $0xf0] sm:$0xff]
    %v1161 = vld [vmem:[#allocation2 + $0xf8] sm:$0xff]
    %v1162 = vld [vmem:[#allocation2 + $0x100] sm:$0xff]
    %v1163 = vld [vmem:[#allocation2 + $0x108] sm:$0xff]
    %v1164 = vld [vmem:[#allocation2 + $0x110] sm:$0xff]
    %v1165 = vld [vmem:[#allocation2 + $0x118] sm:$0xff]
    %v1166 = vld [vmem:[#allocation2 + $0x120] sm:$0xff]
    %v1167 = vld [vmem:[#allocation2 + $0x128] sm:$0xff]
    %v1168 = vld [vmem:[#allocation2 + $0x130] sm:$0xff]
    %v1169 = vld [vmem:[#allocation2 + $0x138] sm:$0xff]
    %v1170 = vld [vmem:[#allocation2 + $0x140] sm:$0xff]
    %v1171 = vld [vmem:[#allocation2 + $0x148] sm:$0xff]
    %v1172 = vld [vmem:[#allocation2 + $0x150] sm:$0xff]
    %v1173 = vld [vmem:[#allocation2 + $0x158] sm:$0xff]
    %v1174 = vld [vmem:[#allocation2 + $0x160] sm:$0xff]
    %v1175 = vld [vmem:[#allocation2 + $0x168] sm:$0xff]
    %v1176 = vld [vmem:[#allocation2 + $0x170] sm:$0xff]
    %v1177 = vld [vmem:[#allocation2 + $0x178] sm:$0xff]
    %v1178 = vld [vmem:[#allocation2 + $0x180] sm:$0xff]
    %v1179 = vld [vmem:[#allocation2 + $0x188] sm:$0xff]
    %v1180 = vld [vmem:[#allocation2 + $0x190] sm:$0xff]
    %v1181 = vld [vmem:[#allocation2 + $0x198] sm:$0xff]
    %v1182 = vld [vmem:[#allocation2 + $0x1a0] sm:$0xff]
    %v1183 = vld [vmem:[#allocation2 + $0x1a8] sm:$0xff]
    %v1184 = vld [vmem:[#allocation2 + $0x1b0] sm:$0xff]
    %v1185 = vld [vmem:[#allocation2 + $0x1b8] sm:$0xff]
    %v1186 = vld [vmem:[#allocation2 + $0x1c0] sm:$0xff]
    %v1187 = vld [vmem:[#allocation2 + $0x1c8] sm:$0xff]
    %v1188 = vld [vmem:[#allocation2 + $0x1d0] sm:$0xff]
    %v1189 = vld [vmem:[#allocation2 + $0x1d8] sm:$0xff]
    %v1190 = vld [vmem:[#allocation2 + $0x1e0] sm:$0xff]
    %v1191 = vld [vmem:[#allocation2 + $0x1e8] sm:$0xff]
    %v1192 = vld [vmem:[#allocation2 + $0x1f0] sm:$0xff]
    %v1193 = vld [vmem:[#allocation2 + $0x1f8] sm:$0xff]
    %v1194 = vld [vmem:[%s2] sm:$0x1]
    %v1196 = vperm.slane %v1194, 0
    %v1198 = vmul.f32 %v1130, %v1196
    %v1199 = vmul.f32 %v1131, %v1196
    %v1200 = vmul.f32 %v1132, %v1196
    %v1201 = vmul.f32 %v1133, %v1196
    %v1202 = vmul.f32 %v1134, %v1196
    %v1203 = vmul.f32 %v1135, %v1196
    %v1204 = vmul.f32 %v1136, %v1196
    %v1205 = vmul.f32 %v1137, %v1196
    %v1206 = vmul.f32 %v1138, %v1196
    %v1207 = vmul.f32 %v1139, %v1196
    %v1208 = vmul.f32 %v1140, %v1196
    %v1209 = vmul.f32 %v1141, %v1196
    %v1210 = vmul.f32 %v1142, %v1196
    %v1211 = vmul.f32 %v1143, %v1196
    %v1212 = vmul.f32 %v1144, %v1196
    %v1213 = vmul.f32 %v1145, %v1196
    %v1214 = vmul.f32 %v1146, %v1196
    %v1215 = vmul.f32 %v1147, %v1196
    %v1216 = vmul.f32 %v1148, %v1196
    %v1217 = vmul.f32 %v1149, %v1196
    %v1218 = vmul.f32 %v1150, %v1196
    %v1219 = vmul.f32 %v1151, %v1196
    %v1220 = vmul.f32 %v1152, %v1196
    %v1221 = vmul.f32 %v1153, %v1196
    %v1222 = vmul.f32 %v1154, %v1196
    %v1223 = vmul.f32 %v1155, %v1196
    %v1224 = vmul.f32 %v1156, %v1196
    %v1225 = vmul.f32 %v1157, %v1196
    %v1226 = vmul.f32 %v1158, %v1196
    %v1227 = vmul.f32 %v1159, %v1196
    %v1228 = vmul.f32 %v1160, %v1196
    %v1229 = vmul.f32 %v1161, %v1196
    %v1230 = vmul.f32 %v1162, %v1196
    %v1231 = vmul.f32 %v1163, %v1196
    %v1232 = vmul.f32 %v1164, %v1196
    %v1233 = vmul.f32 %v1165, %v1196
    %v1234 = vmul.f32 %v1166, %v1196
    %v1235 = vmul.f32 %v1167, %v1196
    %v1236 = vmul.f32 %v1168, %v1196
    %v1237 = vmul.f32 %v1169, %v1196
    %v1238 = vmul.f32 %v1170, %v1196
    %v1239 = vmul.f32 %v1171, %v1196
    %v1240 = vmul.f32 %v1172, %v1196
    %v1241 = vmul.f32 %v1173, %v1196
    %v1242 = vmul.f32 %v1174, %v1196
    %v1243 = vmul.f32 %v1175, %v1196
    %v1244 = vmul.f32 %v1176, %v1196
    %v1245 = vmul.f32 %v1177, %v1196
    %v1246 = vmul.f32 %v1178, %v1196
    %v1247 = vmul.f32 %v1179, %v1196
    %v1248 = vmul.f32 %v1180, %v1196
    %v1249 = vmul.f32 %v1181, %v1196
    %v1250 = vmul.f32 %v1182, %v1196
    %v1251 = vmul.f32 %v1183, %v1196
    %v1252 = vmul.f32 %v1184, %v1196
    %v1253 = vmul.f32 %v1185, %v1196
    %v1254 = vmul.f32 %v1186, %v1196
    %v1255 = vmul.f32 %v1187, %v1196
    %v1256 = vmul.f32 %v1188, %v1196
    %v1257 = vmul.f32 %v1189, %v1196
    %v1258 = vmul.f32 %v1190, %v1196
    %v1259 = vmul.f32 %v1191, %v1196
    %v1260 = vmul.f32 %v1192, %v1196
    %v1261 = vmul.f32 %v1193, %v1196
    %v1262 = vld [vmem:[%s3] sm:$0x1]
    %v1264 = vperm.slane %v1262, 0
    %v1266 = vadd.f32 %v1198, %v1264
    %v1267 = vadd.f32 %v1199, %v1264
    %v1268 = vadd.f32 %v1200, %v1264
    %v1269 = vadd.f32 %v1201, %v1264
    %v1270 = vadd.f32 %v1202, %v1264
    %v1271 = vadd.f32 %v1203, %v1264
    %v1272 = vadd.f32 %v1204, %v1264
    %v1273 = vadd.f32 %v1205, %v1264
    %v1274 = vadd.f32 %v1206, %v1264
    %v1275 = vadd.f32 %v1207, %v1264
    %v1276 = vadd.f32 %v1208, %v1264
    %v1277 = vadd.f32 %v1209, %v1264
    %v1278 = vadd.f32 %v1210, %v1264
    %v1279 = vadd.f32 %v1211, %v1264
    %v1280 = vadd.f32 %v1212, %v1264
    %v1281 = vadd.f32 %v1213, %v1264
    %v1282 = vadd.f32 %v1214, %v1264
    %v1283 = vadd.f32 %v1215, %v1264
    %v1284 = vadd.f32 %v1216, %v1264
    %v1285 = vadd.f32 %v1217, %v1264
    %v1286 = vadd.f32 %v1218, %v1264
    %v1287 = vadd.f32 %v1219, %v1264
    %v1288 = vadd.f32 %v1220, %v1264
    %v1289 = vadd.f32 %v1221, %v1264
    %v1290 = vadd.f32 %v1222, %v1264
    %v1291 = vadd.f32 %v1223, %v1264
    %v1292 = vadd.f32 %v1224, %v1264
    %v1293 = vadd.f32 %v1225, %v1264
    %v1294 = vadd.f32 %v1226, %v1264
    %v1295 = vadd.f32 %v1227, %v1264
    %v1296 = vadd.f32 %v1228, %v1264
    %v1297 = vadd.f32 %v1229, %v1264
    %v1298 = vadd.f32 %v1230, %v1264
    %v1299 = vadd.f32 %v1231, %v1264
    %v1300 = vadd.f32 %v1232, %v1264
    %v1301 = vadd.f32 %v1233, %v1264
    %v1302 = vadd.f32 %v1234, %v1264
    %v1303 = vadd.f32 %v1235, %v1264
    %v1304 = vadd.f32 %v1236, %v1264
    %v1305 = vadd.f32 %v1237, %v1264
    %v1306 = vadd.f32 %v1238, %v1264
    %v1307 = vadd.f32 %v1239, %v1264
    %v1308 = vadd.f32 %v1240, %v1264
    %v1309 = vadd.f32 %v1241, %v1264
    %v1310 = vadd.f32 %v1242, %v1264
    %v1311 = vadd.f32 %v1243, %v1264
    %v1312 = vadd.f32 %v1244, %v1264
    %v1313 = vadd.f32 %v1245, %v1264
    %v1314 = vadd.f32 %v1246, %v1264
    %v1315 = vadd.f32 %v1247, %v1264
    %v1316 = vadd.f32 %v1248, %v1264
    %v1317 = vadd.f32 %v1249, %v1264
    %v1318 = vadd.f32 %v1250, %v1264
    %v1319 = vadd.f32 %v1251, %v1264
    %v1320 = vadd.f32 %v1252, %v1264
    %v1321 = vadd.f32 %v1253, %v1264
    %v1322 = vadd.f32 %v1254, %v1264
    %v1323 = vadd.f32 %v1255, %v1264
    %v1324 = vadd.f32 %v1256, %v1264
    %v1325 = vadd.f32 %v1257, %v1264
    %v1326 = vadd.f32 %v1258, %v1264
    %v1327 = vadd.f32 %v1259, %v1264
    %v1328 = vadd.f32 %v1260, %v1264
    %v1329 = vadd.f32 %v1261, %v1264
    %v1330 = vmax.f32 %v1266, 0.0
    %v1331 = vmax.f32 %v1267, 0.0
    %v1332 = vmax.f32 %v1268, 0.0
    %v1333 = vmax.f32 %v1269, 0.0
    %v1334 = vmax.f32 %v1270, 0.0
    %v1335 = vmax.f32 %v1271, 0.0
    %v1336 = vmax.f32 %v1272, 0.0
    %v1337 = vmax.f32 %v1273, 0.0
    %v1338 = vmax.f32 %v1274, 0.0
    %v1339 = vmax.f32 %v1275, 0.0
    %v1340 = vmax.f32 %v1276, 0.0
    %v1341 = vmax.f32 %v1277, 0.0
    %v1342 = vmax.f32 %v1278, 0.0
    %v1343 = vmax.f32 %v1279, 0.0
    %v1344 = vmax.f32 %v1280, 0.0
    %v1345 = vmax.f32 %v1281, 0.0
    %v1346 = vmax.f32 %v1282, 0.0
    %v1347 = vmax.f32 %v1283, 0.0
    %v1348 = vmax.f32 %v1284, 0.0
    %v1349 = vmax.f32 %v1285, 0.0
    %v1350 = vmax.f32 %v1286, 0.0
    %v1351 = vmax.f32 %v1287, 0.0
    %v1352 = vmax.f32 %v1288, 0.0
    %v1353 = vmax.f32 %v1289, 0.0
    %v1354 = vmax.f32 %v1290, 0.0
    %v1355 = vmax.f32 %v1291, 0.0
    %v1356 = vmax.f32 %v1292, 0.0
    %v1357 = vmax.f32 %v1293, 0.0
    %v1358 = vmax.f32 %v1294, 0.0
    %v1359 = vmax.f32 %v1295, 0.0
    %v1360 = vmax.f32 %v1296, 0.0
    %v1361 = vmax.f32 %v1297, 0.0
    %v1362 = vmax.f32 %v1298, 0.0
    %v1363 = vmax.f32 %v1299, 0.0
    %v1364 = vmax.f32 %v1300, 0.0
    %v1365 = vmax.f32 %v1301, 0.0
    %v1366 = vmax.f32 %v1302, 0.0
    %v1367 = vmax.f32 %v1303, 0.0
    %v1368 = vmax.f32 %v1304, 0.0
    %v1369 = vmax.f32 %v1305, 0.0
    %v1370 = vmax.f32 %v1306, 0.0
    %v1371 = vmax.f32 %v1307, 0.0
    %v1372 = vmax.f32 %v1308, 0.0
    %v1373 = vmax.f32 %v1309, 0.0
    %v1374 = vmax.f32 %v1310, 0.0
    %v1375 = vmax.f32 %v1311, 0.0
    %v1376 = vmax.f32 %v1312, 0.0
    %v1377 = vmax.f32 %v1313, 0.0
    %v1378 = vmax.f32 %v1314, 0.0
    %v1379 = vmax.f32 %v1315, 0.0
    %v1380 = vmax.f32 %v1316, 0.0
    %v1381 = vmax.f32 %v1317, 0.0
    %v1382 = vmax.f32 %v1318, 0.0
    %v1383 = vmax.f32 %v1319, 0.0
    %v1384 = vmax.f32 %v1320, 0.0
    %v1385 = vmax.f32 %v1321, 0.0
    %v1386 = vmax.f32 %v1322, 0.0
    %v1387 = vmax.f32 %v1323, 0.0
    %v1388 = vmax.f32 %v1324, 0.0
    %v1389 = vmax.f32 %v1325, 0.0
    %v1390 = vmax.f32 %v1326, 0.0
    %v1391 = vmax.f32 %v1327, 0.0
    %v1392 = vmax.f32 %v1328, 0.0
    %v1393 = vmax.f32 %v1329, 0.0
    %v1394 = vpack.c.bf16 %v1330, %v1330
    %v1395 = vpack.c.bf16 %v1331, %v1331
    %v1396 = vpack.c.bf16 %v1332, %v1332
    %v1397 = vpack.c.bf16 %v1333, %v1333
    %v1398 = vpack.c.bf16 %v1334, %v1334
    %v1399 = vpack.c.bf16 %v1335, %v1335
    %v1400 = vpack.c.bf16 %v1336, %v1336
    %v1401 = vpack.c.bf16 %v1337, %v1337
    %v1402 = vpack.c.bf16 %v1338, %v1338
    %v1403 = vpack.c.bf16 %v1339, %v1339
    %v1404 = vpack.c.bf16 %v1340, %v1340
    %v1405 = vpack.c.bf16 %v1341, %v1341
    %v1406 = vpack.c.bf16 %v1342, %v1342
    %v1407 = vpack.c.bf16 %v1343, %v1343
    %v1408 = vpack.c.bf16 %v1344, %v1344
    %v1409 = vpack.c.bf16 %v1345, %v1345
    %v1410 = vpack.c.bf16 %v1346, %v1346
    %v1411 = vpack.c.bf16 %v1347, %v1347
    %v1412 = vpack.c.bf16 %v1348, %v1348
    %v1413 = vpack.c.bf16 %v1349, %v1349
    %v1414 = vpack.c.bf16 %v1350, %v1350
    %v1415 = vpack.c.bf16 %v1351, %v1351
    %v1416 = vpack.c.bf16 %v1352, %v1352
    %v1417 = vpack.c.bf16 %v1353, %v1353
    %v1418 = vpack.c.bf16 %v1354, %v1354
    %v1419 = vpack.c.bf16 %v1355, %v1355
    %v1420 = vpack.c.bf16 %v1356, %v1356
    %v1421 = vpack.c.bf16 %v1357, %v1357
    %v1422 = vpack.c.bf16 %v1358, %v1358
    %v1423 = vpack.c.bf16 %v1359, %v1359
    %v1424 = vpack.c.bf16 %v1360, %v1360
    %v1425 = vpack.c.bf16 %v1361, %v1361
    %v1426 = vpack.c.bf16 %v1362, %v1362
    %v1427 = vpack.c.bf16 %v1363, %v1363
    %v1428 = vpack.c.bf16 %v1364, %v1364
    %v1429 = vpack.c.bf16 %v1365, %v1365
    %v1430 = vpack.c.bf16 %v1366, %v1366
    %v1431 = vpack.c.bf16 %v1367, %v1367
    %v1432 = vpack.c.bf16 %v1368, %v1368
    %v1433 = vpack.c.bf16 %v1369, %v1369
    %v1434 = vpack.c.bf16 %v1370, %v1370
    %v1435 = vpack.c.bf16 %v1371, %v1371
    %v1436 = vpack.c.bf16 %v1372, %v1372
    %v1437 = vpack.c.bf16 %v1373, %v1373
    %v1438 = vpack.c.bf16 %v1374, %v1374
    %v1439 = vpack.c.bf16 %v1375, %v1375
    %v1440 = vpack.c.bf16 %v1376, %v1376
    %v1441 = vpack.c.bf16 %v1377, %v1377
    %v1442 = vpack.c.bf16 %v1378, %v1378
    %v1443 = vpack.c.bf16 %v1379, %v1379
    %v1444 = vpack.c.bf16 %v1380, %v1380
    %v1445 = vpack.c.bf16 %v1381, %v1381
    %v1446 = vpack.c.bf16 %v1382, %v1382
    %v1447 = vpack.c.bf16 %v1383, %v1383
    %v1448 = vpack.c.bf16 %v1384, %v1384
    %v1449 = vpack.c.bf16 %v1385, %v1385
    %v1450 = vpack.c.bf16 %v1386, %v1386
    %v1451 = vpack.c.bf16 %v1387, %v1387
    %v1452 = vpack.c.bf16 %v1388, %v1388
    %v1453 = vpack.c.bf16 %v1389, %v1389
    %v1454 = vpack.c.bf16 %v1390, %v1390
    %v1455 = vpack.c.bf16 %v1391, %v1391
    %v1456 = vpack.c.bf16 %v1392, %v1392
    %v1457 = vpack.c.bf16 %v1393, %v1393
    %1458 = vst [vmem:[%s4] sm:$0xf] %v1394
    %1459 = vst [vmem:[%s4 + $0x4] sm:$0xf] %v1395
    %1460 = vst [vmem:[%s4 + $0x8] sm:$0xf] %v1396
    %1461 = vst [vmem:[%s4 + $0xc] sm:$0xf] %v1397
    %1462 = vst [vmem:[%s4 + $0x10] sm:$0xf] %v1398
    %1463 = vst [vmem:[%s4 + $0x14] sm:$0xf] %v1399
    %1464 = vst [vmem:[%s4 + $0x18] sm:$0xf] %v1400
    %1465 = vst [vmem:[%s4 + $0x1c] sm:$0xf] %v1401
    %1466 = vst [vmem:[%s4 + $0x20] sm:$0xf] %v1402
    %1467 = vst [vmem:[%s4 + $0x24] sm:$0xf] %v1403
    %1468 = vst [vmem:[%s4 + $0x28] sm:$0xf] %v1404
    %1469 = vst [vmem:[%s4 + $0x2c] sm:$0xf] %v1405
    %1470 = vst [vmem:[%s4 + $0x30] sm:$0xf] %v1406
    %1471 = vst [vmem:[%s4 + $0x34] sm:$0xf] %v1407
    %1472 = vst [vmem:[%s4 + $0x38] sm:$0xf] %v1408
    %1473 = vst [vmem:[%s4 + $0x3c] sm:$0xf] %v1409
    %1474 = vst [vmem:[%s4 + $0x40] sm:$0xf] %v1410
    %1475 = vst [vmem:[%s4 + $0x44] sm:$0xf] %v1411
    %1476 = vst [vmem:[%s4 + $0x48] sm:$0xf] %v1412
    %1477 = vst [vmem:[%s4 + $0x4c] sm:$0xf] %v1413
    %1478 = vst [vmem:[%s4 + $0x50] sm:$0xf] %v1414
    %1479 = vst [vmem:[%s4 + $0x54] sm:$0xf] %v1415
    %1480 = vst [vmem:[%s4 + $0x58] sm:$0xf] %v1416
    %1481 = vst [vmem:[%s4 + $0x5c] sm:$0xf] %v1417
    %1482 = vst [vmem:[%s4 + $0x60] sm:$0xf] %v1418
    %1483 = vst [vmem:[%s4 + $0x64] sm:$0xf] %v1419
    %1484 = vst [vmem:[%s4 + $0x68] sm:$0xf] %v1420
    %1485 = vst [vmem:[%s4 + $0x6c] sm:$0xf] %v1421
    %1486 = vst [vmem:[%s4 + $0x70] sm:$0xf] %v1422
    %1487 = vst [vmem:[%s4 + $0x74] sm:$0xf] %v1423
    %1488 = vst [vmem:[%s4 + $0x78] sm:$0xf] %v1424
    %1489 = vst [vmem:[%s4 + $0x7c] sm:$0xf] %v1425
    %1490 = vst [vmem:[%s4 + $0x80] sm:$0xf] %v1426
    %1491 = vst [vmem:[%s4 + $0x84] sm:$0xf] %v1427
    %1492 = vst [vmem:[%s4 + $0x88] sm:$0xf] %v1428
    %1493 = vst [vmem:[%s4 + $0x8c] sm:$0xf] %v1429
    %1494 = vst [vmem:[%s4 + $0x90] sm:$0xf] %v1430
    %1495 = vst [vmem:[%s4 + $0x94] sm:$0xf] %v1431
    %1496 = vst [vmem:[%s4 + $0x98] sm:$0xf] %v1432
    %1497 = vst [vmem:[%s4 + $0x9c] sm:$0xf] %v1433
    %1498 = vst [vmem:[%s4 + $0xa0] sm:$0xf] %v1434
    %1499 = vst [vmem:[%s4 + $0xa4] sm:$0xf] %v1435
    %1500 = vst [vmem:[%s4 + $0xa8] sm:$0xf] %v1436
    %1501 = vst [vmem:[%s4 + $0xac] sm:$0xf] %v1437
    %1502 = vst [vmem:[%s4 + $0xb0] sm:$0xf] %v1438
    %1503 = vst [vmem:[%s4 + $0xb4] sm:$0xf] %v1439
    %1504 = vst [vmem:[%s4 + $0xb8] sm:$0xf] %v1440
    %1505 = vst [vmem:[%s4 + $0xbc] sm:$0xf] %v1441
    %1506 = vst [vmem:[%s4 + $0xc0] sm:$0xf] %v1442
    %1507 = vst [vmem:[%s4 + $0xc4] sm:$0xf] %v1443
    %1508 = vst [vmem:[%s4 + $0xc8] sm:$0xf] %v1444
    %1509 = vst [vmem:[%s4 + $0xcc] sm:$0xf] %v1445
    %1510 = vst [vmem:[%s4 + $0xd0] sm:$0xf] %v1446
    %1511 = vst [vmem:[%s4 + $0xd4] sm:$0xf] %v1447
    %1512 = vst [vmem:[%s4 + $0xd8] sm:$0xf] %v1448
    %1513 = vst [vmem:[%s4 + $0xdc] sm:$0xf] %v1449
    %1514 = vst [vmem:[%s4 + $0xe0] sm:$0xf] %v1450
    %1515 = vst [vmem:[%s4 + $0xe4] sm:$0xf] %v1451
    %1516 = vst [vmem:[%s4 + $0xe8] sm:$0xf] %v1452
    %1517 = vst [vmem:[%s4 + $0xec] sm:$0xf] %v1453
    %1518 = vst [vmem:[%s4 + $0xf0] sm:$0xf] %v1454
    %1519 = vst [vmem:[%s4 + $0xf4] sm:$0xf] %v1455
    %1520 = vst [vmem:[%s4 + $0xf8] sm:$0xf] %v1456
    %1521 = vst [vmem:[%s4 + $0xfc] sm:$0xf] %v1457
  $region25: #{_lambda_.26} parent=0 // pred_fallthru
    _
  // Predicated region
  $region26: #{_lambda_.26} parent=0 // pred_check
    _
  $region27: #{_lambda_.26} parent=0 // pred_check_branch
    %1523 = sbr.rel (0) target = $region29
  $region28: #{_lambda_.26} parent=0 // pred_region
    _
  $region29: #{_lambda_.26} parent=0 // pred_fallthru
    _
  // Predicated region
  $region30: #{_lambda_.26} parent=0 // pred_check
    _
  $region31: #{_lambda_.26} parent=0 // pred_check_branch
    %1525 = sbr.rel (0) target = $region33
  $region32: #{_lambda_.26} parent=0 // pred_region
    _
  $region33: #{_lambda_.26} parent=0 // pred_fallthru
    _

// kernel: _lambda_.27
$region0: #{_lambda_.27}
  #allocation0 [shape = 'u32[]', space=smem, size = 0x4, offset = 0x4, fixed_abs, tag = 'smem constant byte address 0x4 - core index']
  #allocation1 [shape = 'u32[72,128]{1,0:T(1,128)}', space=vmem, size = 0x9000, scoped, tag = 'internal scratch']
  %s0 = inlined_call_operand.vmem [shape: bf16[9,128,16], index: 0, kind: input, shape index: {}]
  %s1 = inlined_call_operand.vmem [shape: bf16[128,16], index: 1, kind: output, shape index: {}]
  %s2 = sld [smem:[#allocation0]]
  $region14: #{_lambda_.27} parent=0
    _
  %s4 = ssub.s32 1, %s2
  %s5 = scalar_select 0, %s4, %s2
  // Predicated region
  $region2: #{_lambda_.27} parent=0 // pred_check
    _
  $region3: #{_lambda_.27} parent=0 // pred_check_branch
    %7 = sbr.rel (0) target = $region5
  $region4: #{_lambda_.27} parent=0 // pred_region
    _
  $region5: #{_lambda_.27} parent=0 // pred_fallthru
    _
  %v8 = vld [vmem:[%s0] sm:$0xf]
  %v9 = vld [vmem:[%s0 + $0x4] sm:$0xf]
  %v10 = vld [vmem:[%s0 + $0x8] sm:$0xf]
  %v11 = vld [vmem:[%s0 + $0xc] sm:$0xf]
  %v12 = vld [vmem:[%s0 + $0x10] sm:$0xf]
  %v13 = vld [vmem:[%s0 + $0x14] sm:$0xf]
  %v14 = vld [vmem:[%s0 + $0x18] sm:$0xf]
  %v15 = vld [vmem:[%s0 + $0x1c] sm:$0xf]
  %v16 = vld [vmem:[%s0 + $0x20] sm:$0xf]
  %v17 = vld [vmem:[%s0 + $0x24] sm:$0xf]
  %v18 = vld [vmem:[%s0 + $0x28] sm:$0xf]
  %v19 = vld [vmem:[%s0 + $0x2c] sm:$0xf]
  %v20 = vld [vmem:[%s0 + $0x30] sm:$0xf]
  %v21 = vld [vmem:[%s0 + $0x34] sm:$0xf]
  %v22 = vld [vmem:[%s0 + $0x38] sm:$0xf]
  %v23 = vld [vmem:[%s0 + $0x3c] sm:$0xf]
  %v24 = vld [vmem:[%s0 + $0x40] sm:$0xf]
  %v25 = vld [vmem:[%s0 + $0x44] sm:$0xf]
  %v26 = vld [vmem:[%s0 + $0x48] sm:$0xf]
  %v27 = vld [vmem:[%s0 + $0x4c] sm:$0xf]
  %v28 = vld [vmem:[%s0 + $0x50] sm:$0xf]
  %v29 = vld [vmem:[%s0 + $0x54] sm:$0xf]
  %v30 = vld [vmem:[%s0 + $0x58] sm:$0xf]
  %v31 = vld [vmem:[%s0 + $0x5c] sm:$0xf]
  %v32 = vld [vmem:[%s0 + $0x60] sm:$0xf]
  %v33 = vld [vmem:[%s0 + $0x64] sm:$0xf]
  %v34 = vld [vmem:[%s0 + $0x68] sm:$0xf]
  %v35 = vld [vmem:[%s0 + $0x6c] sm:$0xf]
  %v36 = vld [vmem:[%s0 + $0x70] sm:$0xf]
  %v37 = vld [vmem:[%s0 + $0x74] sm:$0xf]
  %v38 = vld [vmem:[%s0 + $0x78] sm:$0xf]
  %v39 = vld [vmem:[%s0 + $0x7c] sm:$0xf]
  %v40 = vld [vmem:[%s0 + $0x80] sm:$0xf]
  %v41 = vld [vmem:[%s0 + $0x84] sm:$0xf]
  %v42 = vld [vmem:[%s0 + $0x88] sm:$0xf]
  %v43 = vld [vmem:[%s0 + $0x8c] sm:$0xf]
  %v44 = vld [vmem:[%s0 + $0x90] sm:$0xf]
  %v45 = vld [vmem:[%s0 + $0x94] sm:$0xf]
  %v46 = vld [vmem:[%s0 + $0x98] sm:$0xf]
  %v47 = vld [vmem:[%s0 + $0x9c] sm:$0xf]
  %v48 = vld [vmem:[%s0 + $0xa0] sm:$0xf]
  %v49 = vld [vmem:[%s0 + $0xa4] sm:$0xf]
  %v50 = vld [vmem:[%s0 + $0xa8] sm:$0xf]
  %v51 = vld [vmem:[%s0 + $0xac] sm:$0xf]
  %v52 = vld [vmem:[%s0 + $0xb0] sm:$0xf]
  %v53 = vld [vmem:[%s0 + $0xb4] sm:$0xf]
  %v54 = vld [vmem:[%s0 + $0xb8] sm:$0xf]
  %v55 = vld [vmem:[%s0 + $0xbc] sm:$0xf]
  %v56 = vld [vmem:[%s0 + $0xc0] sm:$0xf]
  %v57 = vld [vmem:[%s0 + $0xc4] sm:$0xf]
  %v58 = vld [vmem:[%s0 + $0xc8] sm:$0xf]
  %v59 = vld [vmem:[%s0 + $0xcc] sm:$0xf]
  %v60 = vld [vmem:[%s0 + $0xd0] sm:$0xf]
  %v61 = vld [vmem:[%s0 + $0xd4] sm:$0xf]
  %v62 = vld [vmem:[%s0 + $0xd8] sm:$0xf]
  %v63 = vld [vmem:[%s0 + $0xdc] sm:$0xf]
  %v64 = vld [vmem:[%s0 + $0xe0] sm:$0xf]
  %v65 = vld [vmem:[%s0 + $0xe4] sm:$0xf]
  %v66 = vld [vmem:[%s0 + $0xe8] sm:$0xf]
  %v67 = vld [vmem:[%s0 + $0xec] sm:$0xf]
  %v68 = vld [vmem:[%s0 + $0xf0] sm:$0xf]
  %v69 = vld [vmem:[%s0 + $0xf4] sm:$0xf]
  %v70 = vld [vmem:[%s0 + $0xf8] sm:$0xf]
  %v71 = vld [vmem:[%s0 + $0xfc] sm:$0xf]
  %v72 = vld [vmem:[%s0 + $0x100] sm:$0xf]
  %v73 = vld [vmem:[%s0 + $0x104] sm:$0xf]
  %v74 = vld [vmem:[%s0 + $0x108] sm:$0xf]
  %v75 = vld [vmem:[%s0 + $0x10c] sm:$0xf]
  %v76 = vld [vmem:[%s0 + $0x110] sm:$0xf]
  %v77 = vld [vmem:[%s0 + $0x114] sm:$0xf]
  %v78 = vld [vmem:[%s0 + $0x118] sm:$0xf]
  %v79 = vld [vmem:[%s0 + $0x11c] sm:$0xf]
  %v80 = vld [vmem:[%s0 + $0x120] sm:$0xf]
  %v81 = vld [vmem:[%s0 + $0x124] sm:$0xf]
  %v82 = vld [vmem:[%s0 + $0x128] sm:$0xf]
  %v83 = vld [vmem:[%s0 + $0x12c] sm:$0xf]
  %v84 = vld [vmem:[%s0 + $0x130] sm:$0xf]
  %v85 = vld [vmem:[%s0 + $0x134] sm:$0xf]
  %v86 = vld [vmem:[%s0 + $0x138] sm:$0xf]
  %v87 = vld [vmem:[%s0 + $0x13c] sm:$0xf]
  %v88 = vld [vmem:[%s0 + $0x140] sm:$0xf]
  %v89 = vld [vmem:[%s0 + $0x144] sm:$0xf]
  %v90 = vld [vmem:[%s0 + $0x148] sm:$0xf]
  %v91 = vld [vmem:[%s0 + $0x14c] sm:$0xf]
  %v92 = vld [vmem:[%s0 + $0x150] sm:$0xf]
  %v93 = vld [vmem:[%s0 + $0x154] sm:$0xf]
  %v94 = vld [vmem:[%s0 + $0x158] sm:$0xf]
  %v95 = vld [vmem:[%s0 + $0x15c] sm:$0xf]
  %v96 = vld [vmem:[%s0 + $0x160] sm:$0xf]
  %v97 = vld [vmem:[%s0 + $0x164] sm:$0xf]
  %v98 = vld [vmem:[%s0 + $0x168] sm:$0xf]
  %v99 = vld [vmem:[%s0 + $0x16c] sm:$0xf]
  %v100 = vld [vmem:[%s0 + $0x170] sm:$0xf]
  %v101 = vld [vmem:[%s0 + $0x174] sm:$0xf]
  %v102 = vld [vmem:[%s0 + $0x178] sm:$0xf]
  %v103 = vld [vmem:[%s0 + $0x17c] sm:$0xf]
  %v104 = vld [vmem:[%s0 + $0x180] sm:$0xf]
  %v105 = vld [vmem:[%s0 + $0x184] sm:$0xf]
  %v106 = vld [vmem:[%s0 + $0x188] sm:$0xf]
  %v107 = vld [vmem:[%s0 + $0x18c] sm:$0xf]
  %v108 = vld [vmem:[%s0 + $0x190] sm:$0xf]
  %v109 = vld [vmem:[%s0 + $0x194] sm:$0xf]
  %v110 = vld [vmem:[%s0 + $0x198] sm:$0xf]
  %v111 = vld [vmem:[%s0 + $0x19c] sm:$0xf]
  %v112 = vld [vmem:[%s0 + $0x1a0] sm:$0xf]
  %v113 = vld [vmem:[%s0 + $0x1a4] sm:$0xf]
  %v114 = vld [vmem:[%s0 + $0x1a8] sm:$0xf]
  %v115 = vld [vmem:[%s0 + $0x1ac] sm:$0xf]
  %v116 = vld [vmem:[%s0 + $0x1b0] sm:$0xf]
  %v117 = vld [vmem:[%s0 + $0x1b4] sm:$0xf]
  %v118 = vld [vmem:[%s0 + $0x1b8] sm:$0xf]
  %v119 = vld [vmem:[%s0 + $0x1bc] sm:$0xf]
  %v120 = vld [vmem:[%s0 + $0x1c0] sm:$0xf]
  %v121 = vld [vmem:[%s0 + $0x1c4] sm:$0xf]
  %v122 = vld [vmem:[%s0 + $0x1c8] sm:$0xf]
  %v123 = vld [vmem:[%s0 + $0x1cc] sm:$0xf]
  %v124 = vld [vmem:[%s0 + $0x1d0] sm:$0xf]
  %v125 = vld [vmem:[%s0 + $0x1d4] sm:$0xf]
  %v126 = vld [vmem:[%s0 + $0x1d8] sm:$0xf]
  %v127 = vld [vmem:[%s0 + $0x1dc] sm:$0xf]
  %v128 = vld [vmem:[%s0 + $0x1e0] sm:$0xf]
  %v129 = vld [vmem:[%s0 + $0x1e4] sm:$0xf]
  %v130 = vld [vmem:[%s0 + $0x1e8] sm:$0xf]
  %v131 = vld [vmem:[%s0 + $0x1ec] sm:$0xf]
  %v132 = vld [vmem:[%s0 + $0x1f0] sm:$0xf]
  %v133 = vld [vmem:[%s0 + $0x1f4] sm:$0xf]
  %v134 = vld [vmem:[%s0 + $0x1f8] sm:$0xf]
  %v135 = vld [vmem:[%s0 + $0x1fc] sm:$0xf]
  %v136 = vld [vmem:[%s0 + $0x200] sm:$0xf]
  %v137 = vld [vmem:[%s0 + $0x204] sm:$0xf]
  %v138 = vld [vmem:[%s0 + $0x208] sm:$0xf]
  %v139 = vld [vmem:[%s0 + $0x20c] sm:$0xf]
  %v140 = vld [vmem:[%s0 + $0x210] sm:$0xf]
  %v141 = vld [vmem:[%s0 + $0x214] sm:$0xf]
  %v142 = vld [vmem:[%s0 + $0x218] sm:$0xf]
  %v143 = vld [vmem:[%s0 + $0x21c] sm:$0xf]
  %v144 = vld [vmem:[%s0 + $0x220] sm:$0xf]
  %v145 = vld [vmem:[%s0 + $0x224] sm:$0xf]
  %v146 = vld [vmem:[%s0 + $0x228] sm:$0xf]
  %v147 = vld [vmem:[%s0 + $0x22c] sm:$0xf]
  %v148 = vld [vmem:[%s0 + $0x230] sm:$0xf]
  %v149 = vld [vmem:[%s0 + $0x234] sm:$0xf]
  %v150 = vld [vmem:[%s0 + $0x238] sm:$0xf]
  %v151 = vld [vmem:[%s0 + $0x23c] sm:$0xf]
  %v152 = vunpack.c.l.bf16 %v8
  %v153 = vunpack.c.l.bf16 %v9
  %v154 = vunpack.c.l.bf16 %v10
  %v155 = vunpack.c.l.bf16 %v11
  %v156 = vunpack.c.l.bf16 %v12
  %v157 = vunpack.c.l.bf16 %v13
  %v158 = vunpack.c.l.bf16 %v14
  %v159 = vunpack.c.l.bf16 %v15
  %v160 = vunpack.c.l.bf16 %v16
  %v161 = vunpack.c.l.bf16 %v17
  %v162 = vunpack.c.l.bf16 %v18
  %v163 = vunpack.c.l.bf16 %v19
  %v164 = vunpack.c.l.bf16 %v20
  %v165 = vunpack.c.l.bf16 %v21
  %v166 = vunpack.c.l.bf16 %v22
  %v167 = vunpack.c.l.bf16 %v23
  %v168 = vunpack.c.l.bf16 %v24
  %v169 = vunpack.c.l.bf16 %v25
  %v170 = vunpack.c.l.bf16 %v26
  %v171 = vunpack.c.l.bf16 %v27
  %v172 = vunpack.c.l.bf16 %v28
  %v173 = vunpack.c.l.bf16 %v29
  %v174 = vunpack.c.l.bf16 %v30
  %v175 = vunpack.c.l.bf16 %v31
  %v176 = vunpack.c.l.bf16 %v32
  %v177 = vunpack.c.l.bf16 %v33
  %v178 = vunpack.c.l.bf16 %v34
  %v179 = vunpack.c.l.bf16 %v35
  %v180 = vunpack.c.l.bf16 %v36
  %v181 = vunpack.c.l.bf16 %v37
  %v182 = vunpack.c.l.bf16 %v38
  %v183 = vunpack.c.l.bf16 %v39
  %v184 = vunpack.c.l.bf16 %v40
  %v185 = vunpack.c.l.bf16 %v41
  %v186 = vunpack.c.l.bf16 %v42
  %v187 = vunpack.c.l.bf16 %v43
  %v188 = vunpack.c.l.bf16 %v44
  %v189 = vunpack.c.l.bf16 %v45
  %v190 = vunpack.c.l.bf16 %v46
  %v191 = vunpack.c.l.bf16 %v47
  %v192 = vunpack.c.l.bf16 %v48
  %v193 = vunpack.c.l.bf16 %v49
  %v194 = vunpack.c.l.bf16 %v50
  %v195 = vunpack.c.l.bf16 %v51
  %v196 = vunpack.c.l.bf16 %v52
  %v197 = vunpack.c.l.bf16 %v53
  %v198 = vunpack.c.l.bf16 %v54
  %v199 = vunpack.c.l.bf16 %v55
  %v200 = vunpack.c.l.bf16 %v56
  %v201 = vunpack.c.l.bf16 %v57
  %v202 = vunpack.c.l.bf16 %v58
  %v203 = vunpack.c.l.bf16 %v59
  %v204 = vunpack.c.l.bf16 %v60
  %v205 = vunpack.c.l.bf16 %v61
  %v206 = vunpack.c.l.bf16 %v62
  %v207 = vunpack.c.l.bf16 %v63
  %v208 = vunpack.c.l.bf16 %v64
  %v209 = vunpack.c.l.bf16 %v65
  %v210 = vunpack.c.l.bf16 %v66
  %v211 = vunpack.c.l.bf16 %v67
  %v212 = vunpack.c.l.bf16 %v68
  %v213 = vunpack.c.l.bf16 %v69
  %v214 = vunpack.c.l.bf16 %v70
  %v215 = vunpack.c.l.bf16 %v71
  %v216 = vunpack.c.l.bf16 %v72
  %v217 = vunpack.c.l.bf16 %v73
  %v218 = vunpack.c.l.bf16 %v74
  %v219 = vunpack.c.l.bf16 %v75
  %v220 = vunpack.c.l.bf16 %v76
  %v221 = vunpack.c.l.bf16 %v77
  %v222 = vunpack.c.l.bf16 %v78
  %v223 = vunpack.c.l.bf16 %v79
  %v224 = vunpack.c.l.bf16 %v80
  %v225 = vunpack.c.l.bf16 %v81
  %v226 = vunpack.c.l.bf16 %v82
  %v227 = vunpack.c.l.bf16 %v83
  %v228 = vunpack.c.l.bf16 %v84
  %v229 = vunpack.c.l.bf16 %v85
  %v230 = vunpack.c.l.bf16 %v86
  %v231 = vunpack.c.l.bf16 %v87
  %v232 = vunpack.c.l.bf16 %v88
  %v233 = vunpack.c.l.bf16 %v89
  %v234 = vunpack.c.l.bf16 %v90
  %v235 = vunpack.c.l.bf16 %v91
  %v236 = vunpack.c.l.bf16 %v92
  %v237 = vunpack.c.l.bf16 %v93
  %v238 = vunpack.c.l.bf16 %v94
  %v239 = vunpack.c.l.bf16 %v95
  %v240 = vunpack.c.l.bf16 %v96
  %v241 = vunpack.c.l.bf16 %v97
  %v242 = vunpack.c.l.bf16 %v98
  %v243 = vunpack.c.l.bf16 %v99
  %v244 = vunpack.c.l.bf16 %v100
  %v245 = vunpack.c.l.bf16 %v101
  %v246 = vunpack.c.l.bf16 %v102
  %v247 = vunpack.c.l.bf16 %v103
  %v248 = vunpack.c.l.bf16 %v104
  %v249 = vunpack.c.l.bf16 %v105
  %v250 = vunpack.c.l.bf16 %v106
  %v251 = vunpack.c.l.bf16 %v107
  %v252 = vunpack.c.l.bf16 %v108
  %v253 = vunpack.c.l.bf16 %v109
  %v254 = vunpack.c.l.bf16 %v110
  %v255 = vunpack.c.l.bf16 %v111
  %v256 = vunpack.c.l.bf16 %v112
  %v257 = vunpack.c.l.bf16 %v113
  %v258 = vunpack.c.l.bf16 %v114
  %v259 = vunpack.c.l.bf16 %v115
  %v260 = vunpack.c.l.bf16 %v116
  %v261 = vunpack.c.l.bf16 %v117
  %v262 = vunpack.c.l.bf16 %v118
  %v263 = vunpack.c.l.bf16 %v119
  %v264 = vunpack.c.l.bf16 %v120
  %v265 = vunpack.c.l.bf16 %v121
  %v266 = vunpack.c.l.bf16 %v122
  %v267 = vunpack.c.l.bf16 %v123
  %v268 = vunpack.c.l.bf16 %v124
  %v269 = vunpack.c.l.bf16 %v125
  %v270 = vunpack.c.l.bf16 %v126
  %v271 = vunpack.c.l.bf16 %v127
  %v272 = vunpack.c.l.bf16 %v128
  %v273 = vunpack.c.l.bf16 %v129
  %v274 = vunpack.c.l.bf16 %v130
  %v275 = vunpack.c.l.bf16 %v131
  %v276 = vunpack.c.l.bf16 %v132
  %v277 = vunpack.c.l.bf16 %v133
  %v278 = vunpack.c.l.bf16 %v134
  %v279 = vunpack.c.l.bf16 %v135
  %v280 = vunpack.c.l.bf16 %v136
  %v281 = vunpack.c.l.bf16 %v137
  %v282 = vunpack.c.l.bf16 %v138
  %v283 = vunpack.c.l.bf16 %v139
  %v284 = vunpack.c.l.bf16 %v140
  %v285 = vunpack.c.l.bf16 %v141
  %v286 = vunpack.c.l.bf16 %v142
  %v287 = vunpack.c.l.bf16 %v143
  %v288 = vunpack.c.l.bf16 %v144
  %v289 = vunpack.c.l.bf16 %v145
  %v290 = vunpack.c.l.bf16 %v146
  %v291 = vunpack.c.l.bf16 %v147
  %v292 = vunpack.c.l.bf16 %v148
  %v293 = vunpack.c.l.bf16 %v149
  %v294 = vunpack.c.l.bf16 %v150
  %v295 = vunpack.c.l.bf16 %v151
  %vm296 = vcmask 130048
  %v297 = vsel %vm296, %v152, -inf
  %v298 = vsel %vm296, %v168, -inf
  %v299 = vmax.f32 %v297, %v298
  %v300 = vsel %vm296, %v184, -inf
  %v301 = vmax.f32 %v299, %v300
  %v302 = vsel %vm296, %v200, -inf
  %v303 = vmax.f32 %v301, %v302
  %v304 = vsel %vm296, %v216, -inf
  %v305 = vmax.f32 %v303, %v304
  %v306 = vsel %vm296, %v232, -inf
  %v307 = vmax.f32 %v305, %v306
  %v308 = vsel %vm296, %v248, -inf
  %v309 = vmax.f32 %v307, %v308
  %v310 = vsel %vm296, %v264, -inf
  %v311 = vmax.f32 %v309, %v310
  %v312 = vsel %vm296, %v280, -inf
  %v313 = vmax.f32 %v311, %v312
  %v314 = vsel %vm296, %v153, -inf
  %v315 = vsel %vm296, %v169, -inf
  %v316 = vmax.f32 %v314, %v315
  %v317 = vsel %vm296, %v185, -inf
  %v318 = vmax.f32 %v316, %v317
  %v319 = vsel %vm296, %v201, -inf
  %v320 = vmax.f32 %v318, %v319
  %v321 = vsel %vm296, %v217, -inf
  %v322 = vmax.f32 %v320, %v321
  %v323 = vsel %vm296, %v233, -inf
  %v324 = vmax.f32 %v322, %v323
  %v325 = vsel %vm296, %v249, -inf
  %v326 = vmax.f32 %v324, %v325
  %v327 = vsel %vm296, %v265, -inf
  %v328 = vmax.f32 %v326, %v327
  %v329 = vsel %vm296, %v281, -inf
  %v330 = vmax.f32 %v328, %v329
  %v331 = vsel %vm296, %v154, -inf
  %v332 = vsel %vm296, %v170, -inf
  %v333 = vmax.f32 %v331, %v332
  %v334 = vsel %vm296, %v186, -inf
  %v335 = vmax.f32 %v333, %v334
  %v336 = vsel %vm296, %v202, -inf
  %v337 = vmax.f32 %v335, %v336
  %v338 = vsel %vm296, %v218, -inf
  %v339 = vmax.f32 %v337, %v338
  %v340 = vsel %vm296, %v234, -inf
  %v341 = vmax.f32 %v339, %v340
  %v342 = vsel %vm296, %v250, -inf
  %v343 = vmax.f32 %v341, %v342
  %v344 = vsel %vm296, %v266, -inf
  %v345 = vmax.f32 %v343, %v344
  %v346 = vsel %vm296, %v282, -inf
  %v347 = vmax.f32 %v345, %v346
  %v348 = vsel %vm296, %v155, -inf
  %v349 = vsel %vm296, %v171, -inf
  %v350 = vmax.f32 %v348, %v349
  %v351 = vsel %vm296, %v187, -inf
  %v352 = vmax.f32 %v350, %v351
  %v353 = vsel %vm296, %v203, -inf
  %v354 = vmax.f32 %v352, %v353
  %v355 = vsel %vm296, %v219, -inf
  %v356 = vmax.f32 %v354, %v355
  %v357 = vsel %vm296, %v235, -inf
  %v358 = vmax.f32 %v356, %v357
  %v359 = vsel %vm296, %v251, -inf
  %v360 = vmax.f32 %v358, %v359
  %v361 = vsel %vm296, %v267, -inf
  %v362 = vmax.f32 %v360, %v361
  %v363 = vsel %vm296, %v283, -inf
  %v364 = vmax.f32 %v362, %v363
  %v365 = vsel %vm296, %v156, -inf
  %v366 = vsel %vm296, %v172, -inf
  %v367 = vmax.f32 %v365, %v366
  %v368 = vsel %vm296, %v188, -inf
  %v369 = vmax.f32 %v367, %v368
  %v370 = vsel %vm296, %v204, -inf
  %v371 = vmax.f32 %v369, %v370
  %v372 = vsel %vm296, %v220, -inf
  %v373 = vmax.f32 %v371, %v372
  %v374 = vsel %vm296, %v236, -inf
  %v375 = vmax.f32 %v373, %v374
  %v376 = vsel %vm296, %v252, -inf
  %v377 = vmax.f32 %v375, %v376
  %v378 = vsel %vm296, %v268, -inf
  %v379 = vmax.f32 %v377, %v378
  %v380 = vsel %vm296, %v284, -inf
  %v381 = vmax.f32 %v379, %v380
  %v382 = vsel %vm296, %v157, -inf
  %v383 = vsel %vm296, %v173, -inf
  %v384 = vmax.f32 %v382, %v383
  %v385 = vsel %vm296, %v189, -inf
  %v386 = vmax.f32 %v384, %v385
  %v387 = vsel %vm296, %v205, -inf
  %v388 = vmax.f32 %v386, %v387
  %v389 = vsel %vm296, %v221, -inf
  %v390 = vmax.f32 %v388, %v389
  %v391 = vsel %vm296, %v237, -inf
  %v392 = vmax.f32 %v390, %v391
  %v393 = vsel %vm296, %v253, -inf
  %v394 = vmax.f32 %v392, %v393
  %v395 = vsel %vm296, %v269, -inf
  %v396 = vmax.f32 %v394, %v395
  %v397 = vsel %vm296, %v285, -inf
  %v398 = vmax.f32 %v396, %v397
  %v399 = vsel %vm296, %v158, -inf
  %v400 = vsel %vm296, %v174, -inf
  %v401 = vmax.f32 %v399, %v400
  %v402 = vsel %vm296, %v190, -inf
  %v403 = vmax.f32 %v401, %v402
  %v404 = vsel %vm296, %v206, -inf
  %v405 = vmax.f32 %v403, %v404
  %v406 = vsel %vm296, %v222, -inf
  %v407 = vmax.f32 %v405, %v406
  %v408 = vsel %vm296, %v238, -inf
  %v409 = vmax.f32 %v407, %v408
  %v410 = vsel %vm296, %v254, -inf
  %v411 = vmax.f32 %v409, %v410
  %v412 = vsel %vm296, %v270, -inf
  %v413 = vmax.f32 %v411, %v412
  %v414 = vsel %vm296, %v286, -inf
  %v415 = vmax.f32 %v413, %v414
  %v416 = vsel %vm296, %v159, -inf
  %v417 = vsel %vm296, %v175, -inf
  %v418 = vmax.f32 %v416, %v417
  %v419 = vsel %vm296, %v191, -inf
  %v420 = vmax.f32 %v418, %v419
  %v421 = vsel %vm296, %v207, -inf
  %v422 = vmax.f32 %v420, %v421
  %v423 = vsel %vm296, %v223, -inf
  %v424 = vmax.f32 %v422, %v423
  %v425 = vsel %vm296, %v239, -inf
  %v426 = vmax.f32 %v424, %v425
  %v427 = vsel %vm296, %v255, -inf
  %v428 = vmax.f32 %v426, %v427
  %v429 = vsel %vm296, %v271, -inf
  %v430 = vmax.f32 %v428, %v429
  %v431 = vsel %vm296, %v287, -inf
  %v432 = vmax.f32 %v430, %v431
  %v433 = vsel %vm296, %v160, -inf
  %v434 = vsel %vm296, %v176, -inf
  %v435 = vmax.f32 %v433, %v434
  %v436 = vsel %vm296, %v192, -inf
  %v437 = vmax.f32 %v435, %v436
  %v438 = vsel %vm296, %v208, -inf
  %v439 = vmax.f32 %v437, %v438
  %v440 = vsel %vm296, %v224, -inf
  %v441 = vmax.f32 %v439, %v440
  %v442 = vsel %vm296, %v240, -inf
  %v443 = vmax.f32 %v441, %v442
  %v444 = vsel %vm296, %v256, -inf
  %v445 = vmax.f32 %v443, %v444
  %v446 = vsel %vm296, %v272, -inf
  %v447 = vmax.f32 %v445, %v446
  %v448 = vsel %vm296, %v288, -inf
  %v449 = vmax.f32 %v447, %v448
  %v450 = vsel %vm296, %v161, -inf
  %v451 = vsel %vm296, %v177, -inf
  %v452 = vmax.f32 %v450, %v451
  %v453 = vsel %vm296, %v193, -inf
  %v454 = vmax.f32 %v452, %v453
  %v455 = vsel %vm296, %v209, -inf
  %v456 = vmax.f32 %v454, %v455
  %v457 = vsel %vm296, %v225, -inf
  %v458 = vmax.f32 %v456, %v457
  %v459 = vsel %vm296, %v241, -inf
  %v460 = vmax.f32 %v458, %v459
  %v461 = vsel %vm296, %v257, -inf
  %v462 = vmax.f32 %v460, %v461
  %v463 = vsel %vm296, %v273, -inf
  %v464 = vmax.f32 %v462, %v463
  %v465 = vsel %vm296, %v289, -inf
  %v466 = vmax.f32 %v464, %v465
  %v467 = vsel %vm296, %v162, -inf
  %v468 = vsel %vm296, %v178, -inf
  %v469 = vmax.f32 %v467, %v468
  %v470 = vsel %vm296, %v194, -inf
  %v471 = vmax.f32 %v469, %v470
  %v472 = vsel %vm296, %v210, -inf
  %v473 = vmax.f32 %v471, %v472
  %v474 = vsel %vm296, %v226, -inf
  %v475 = vmax.f32 %v473, %v474
  %v476 = vsel %vm296, %v242, -inf
  %v477 = vmax.f32 %v475, %v476
  %v478 = vsel %vm296, %v258, -inf
  %v479 = vmax.f32 %v477, %v478
  %v480 = vsel %vm296, %v274, -inf
  %v481 = vmax.f32 %v479, %v480
  %v482 = vsel %vm296, %v290, -inf
  %v483 = vmax.f32 %v481, %v482
  %v484 = vsel %vm296, %v163, -inf
  %v485 = vsel %vm296, %v179, -inf
  %v486 = vmax.f32 %v484, %v485
  %v487 = vsel %vm296, %v195, -inf
  %v488 = vmax.f32 %v486, %v487
  %v489 = vsel %vm296, %v211, -inf
  %v490 = vmax.f32 %v488, %v489
  %v491 = vsel %vm296, %v227, -inf
  %v492 = vmax.f32 %v490, %v491
  %v493 = vsel %vm296, %v243, -inf
  %v494 = vmax.f32 %v492, %v493
  %v495 = vsel %vm296, %v259, -inf
  %v496 = vmax.f32 %v494, %v495
  %v497 = vsel %vm296, %v275, -inf
  %v498 = vmax.f32 %v496, %v497
  %v499 = vsel %vm296, %v291, -inf
  %v500 = vmax.f32 %v498, %v499
  %v501 = vsel %vm296, %v164, -inf
  %v502 = vsel %vm296, %v180, -inf
  %v503 = vmax.f32 %v501, %v502
  %v504 = vsel %vm296, %v196, -inf
  %v505 = vmax.f32 %v503, %v504
  %v506 = vsel %vm296, %v212, -inf
  %v507 = vmax.f32 %v505, %v506
  %v508 = vsel %vm296, %v228, -inf
  %v509 = vmax.f32 %v507, %v508
  %v510 = vsel %vm296, %v244, -inf
  %v511 = vmax.f32 %v509, %v510
  %v512 = vsel %vm296, %v260, -inf
  %v513 = vmax.f32 %v511, %v512
  %v514 = vsel %vm296, %v276, -inf
  %v515 = vmax.f32 %v513, %v514
  %v516 = vsel %vm296, %v292, -inf
  %v517 = vmax.f32 %v515, %v516
  %v518 = vsel %vm296, %v165, -inf
  %v519 = vsel %vm296, %v181, -inf
  %v520 = vmax.f32 %v518, %v519
  %v521 = vsel %vm296, %v197, -inf
  %v522 = vmax.f32 %v520, %v521
  %v523 = vsel %vm296, %v213, -inf
  %v524 = vmax.f32 %v522, %v523
  %v525 = vsel %vm296, %v229, -inf
  %v526 = vmax.f32 %v524, %v525
  %v527 = vsel %vm296, %v245, -inf
  %v528 = vmax.f32 %v526, %v527
  %v529 = vsel %vm296, %v261, -inf
  %v530 = vmax.f32 %v528, %v529
  %v531 = vsel %vm296, %v277, -inf
  %v532 = vmax.f32 %v530, %v531
  %v533 = vsel %vm296, %v293, -inf
  %v534 = vmax.f32 %v532, %v533
  %v535 = vsel %vm296, %v166, -inf
  %v536 = vsel %vm296, %v182, -inf
  %v537 = vmax.f32 %v535, %v536
  %v538 = vsel %vm296, %v198, -inf
  %v539 = vmax.f32 %v537, %v538
  %v540 = vsel %vm296, %v214, -inf
  %v541 = vmax.f32 %v539, %v540
  %v542 = vsel %vm296, %v230, -inf
  %v543 = vmax.f32 %v541, %v542
  %v544 = vsel %vm296, %v246, -inf
  %v545 = vmax.f32 %v543, %v544
  %v546 = vsel %vm296, %v262, -inf
  %v547 = vmax.f32 %v545, %v546
  %v548 = vsel %vm296, %v278, -inf
  %v549 = vmax.f32 %v547, %v548
  %v550 = vsel %vm296, %v294, -inf
  %v551 = vmax.f32 %v549, %v550
  %v552 = vsel %vm296, %v167, -inf
  %v553 = vsel %vm296, %v183, -inf
  %v554 = vmax.f32 %v552, %v553
  %v555 = vsel %vm296, %v199, -inf
  %v556 = vmax.f32 %v554, %v555
  %v557 = vsel %vm296, %v215, -inf
  %v558 = vmax.f32 %v556, %v557
  %v559 = vsel %vm296, %v231, -inf
  %v560 = vmax.f32 %v558, %v559
  %v561 = vsel %vm296, %v247, -inf
  %v562 = vmax.f32 %v560, %v561
  %v563 = vsel %vm296, %v263, -inf
  %v564 = vmax.f32 %v562, %v563
  %v565 = vsel %vm296, %v279, -inf
  %v566 = vmax.f32 %v564, %v565
  %v567 = vsel %vm296, %v295, -inf
  %v568 = vmax.f32 %v566, %v567
  %v569 = vpack.c.bf16 %v313, %v313
  %v570 = vpack.c.bf16 %v330, %v330
  %v571 = vpack.c.bf16 %v347, %v347
  %v572 = vpack.c.bf16 %v364, %v364
  %v573 = vpack.c.bf16 %v381, %v381
  %v574 = vpack.c.bf16 %v398, %v398
  %v575 = vpack.c.bf16 %v415, %v415
  %v576 = vpack.c.bf16 %v432, %v432
  %v577 = vpack.c.bf16 %v449, %v449
  %v578 = vpack.c.bf16 %v466, %v466
  %v579 = vpack.c.bf16 %v483, %v483
  %v580 = vpack.c.bf16 %v500, %v500
  %v581 = vpack.c.bf16 %v517, %v517
  %v582 = vpack.c.bf16 %v534, %v534
  %v583 = vpack.c.bf16 %v551, %v551
  %v584 = vpack.c.bf16 %v568, %v568
  %vm585 = vcmask 125952
  %586 = vst.msk [vmem:[%s1] sm:$0xf] %vm585, %v569
  %587 = vst.msk [vmem:[%s1 + $0x4] sm:$0xf] %vm585, %v570
  %588 = vst.msk [vmem:[%s1 + $0x8] sm:$0xf] %vm585, %v571
  %589 = vst.msk [vmem:[%s1 + $0xc] sm:$0xf] %vm585, %v572
  %590 = vst.msk [vmem:[%s1 + $0x10] sm:$0xf] %vm585, %v573
  %591 = vst.msk [vmem:[%s1 + $0x14] sm:$0xf] %vm585, %v574
  %592 = vst.msk [vmem:[%s1 + $0x18] sm:$0xf] %vm585, %v575
  %593 = vst.msk [vmem:[%s1 + $0x1c] sm:$0xf] %vm585, %v576
  %594 = vst.msk [vmem:[%s1 + $0x20] sm:$0xf] %vm585, %v577
  %595 = vst.msk [vmem:[%s1 + $0x24] sm:$0xf] %vm585, %v578
  %596 = vst.msk [vmem:[%s1 + $0x28] sm:$0xf] %vm585, %v579
  %597 = vst.msk [vmem:[%s1 + $0x2c] sm:$0xf] %vm585, %v580
  %598 = vst.msk [vmem:[%s1 + $0x30] sm:$0xf] %vm585, %v581
  %599 = vst.msk [vmem:[%s1 + $0x34] sm:$0xf] %vm585, %v582
  %600 = vst.msk [vmem:[%s1 + $0x38] sm:$0xf] %vm585, %v583
  %601 = vst.msk [vmem:[%s1 + $0x3c] sm:$0xf] %vm585, %v584
  // Predicated region
  $region6: #{_lambda_.27} parent=0 // pred_check
    _
  $region7: #{_lambda_.27} parent=0 // pred_check_branch
    %603 = sbr.rel (0) target = $region9
  $region8: #{_lambda_.27} parent=0 // pred_region
    _
  $region9: #{_lambda_.27} parent=0 // pred_fallthru
    _
  // Predicated region
  $region10: #{_lambda_.27} parent=0 // pred_check
    _
  $region11: #{_lambda_.27} parent=0 // pred_check_branch
    %605 = sbr.rel (0) target = $region13
  $region12: #{_lambda_.27} parent=0 // pred_region
    _
  $region13: #{_lambda_.27} parent=0 // pred_fallthru
    _

// kernel: _lambda_.29
$region0: #{_lambda_.29}
  #allocation0 [shape = 'u32[]', space=smem, size = 0x4, offset = 0x4, fixed_abs, tag = 'smem constant byte address 0x4 - core index']
  #allocation1 [shape = 'u32[72,128]{1,0:T(1,128)}', space=vmem, size = 0x9000, scoped, tag = 'internal scratch']
  #allocation2 [shape = 'f32[128,128]{1,0:T(8,128)}', space=vmem, size = 0x10000, scoped, tag = 'scratch operand']
  %s0 = inlined_call_operand.vmem [shape: bf16[128,512], index: 0, kind: input, shape index: {}]
  %s1 = inlined_call_operand.vmem [shape: bf16[512,128], index: 1, kind: input, shape index: {}]
  %s2 = inlined_call_operand.vmem [shape: bf16[128,128], index: 2, kind: output, shape index: {}]
  %s3 = sld [smem:[#allocation0]]
  $region87: #{_lambda_.29} parent=0
    _
  %s5 = ssub.s32 1, %s3
  %s6 = scalar_select 0, %s5, %s3
  $region1: #{_lambda_.29} parent=0
    #allocation3 [shape = 'u8[131072]{0}', space=vmem, size = 0x20000, scoped, tag = 'input window, operand 0']
    loop: start=0, step=1, limit=4
    $region2: #{_lambda_.29} parent=1 // loop_pre_header
      _
    $region3: #{_lambda_.29} parent=1 // loop_header
      %s8 = sphi 0, %s12
      %p9 = scmp.ge.s32.totalorder %s8, 4
      %s15 = sphi 0, %s34
      %s16 = sphi 0, %s30
      %s17 = sphi 0, %s26
      %s18 = sphi 0, %s15
      %s19 = sphi 0, %s16
      %s20 = sphi 0, %s17
      %s21 = sphi 0, %s18
      %s22 = sphi 0, %s19
      %s23 = sphi 0, %s20
      %s39 = sphi 0, %s41
      %s42 = sphi 0, %s39
      %s43 = sphi 0, %s42
      %s59 = sphi 0, %s43
      %s67 = sphi 0, %s69
      %s70 = sphi 0, %s67
      %s71 = sphi 0, %s70
      %s87 = sphi 0, %s71
      %s95 = sphi 0, %s97
      %s98 = sphi 0, %s95
      %s99 = sphi 0, %s98
      %s115 = sphi 0, %s99
    $region4: #{_lambda_.29} parent=1 // loop_header_branch
      %11 = sbr.rel (%p9) target = $region8
    $region5: #{_lambda_.29} parent=1 // loop_body
      %s13 = ssub.s32 %s8, 1
      %s14 = ssub.s32 %s8, 2
      %s24 = sadd.s32 1, %s17
      %p25 = scmp.ge.s32.totalorder %s24, 2
      %s26 = scalar_select %p25, 0, %s24
      %s27 = sadd.s32 1, %s16
      %s28 = scalar_select %p25, %s27, %s16
      %p29 = scmp.ge.s32.totalorder %s28, 1
      %s30 = scalar_select %p29, 0, %s28
      %s31 = sadd.s32 1, %s15
      %s32 = scalar_select %p29, %s31, %s15
      %p33 = scmp.ge.s32.totalorder %s32, 1
      %s34 = scalar_select %p33, 0, %s32
      %s35 = ssub.s32 %s15, %s34
      %s36 = ssub.s32 %s17, %s26
      %s37 = sor.u32 %s35, %s36
      %p38 = scmp.eq.s32.totalorder %s37, 0
      %s40 = sadd.s32 %s39, 1
      %s41 = scalar_select %p38, %s39, %s40
      %p44 = pneg %p38
      %p45 = scmp.eq.s32.totalorder %s8, 1
      %p46 = por %p44, %p45
      %p47 = scmp.ne.s32.totalorder %s39, %s42
      %p48 = scmp.eq.s32.totalorder %s8, 0
      %p49 = por %p47, %p48
      %p50 = scmp.ne.s32.totalorder %s39, %s42
      %p51 = scmp.eq.s32.totalorder %s13, 1
      %p52 = por %p50, %p51
      %p53 = scmp.ne.s32.totalorder %s42, %s43
      %p54 = scmp.eq.s32.totalorder %s13, 0
      %p55 = por %p53, %p54
      %p56 = scmp.ne.s32.totalorder %s42, %s43
      %p57 = scmp.eq.s32.totalorder %s14, 1
      %p58 = por %p56, %p57
      %p60 = scmp.ne.s32.totalorder %s43, %s59
      %p61 = scmp.eq.s32.totalorder %s14, 0
      %p62 = por %p60, %p61
      %s63 = ssub.s32 %s17, %s26
      %s64 = ssub.s32 %s16, %s30
      %s65 = sor.u32 %s63, %s64
      %p66 = scmp.eq.s32.totalorder %s65, 0
      %s68 = sadd.s32 %s67, 1
      %s69 = scalar_select %p66, %s67, %s68
      %p72 = pneg %p66
      %p73 = scmp.eq.s32.totalorder %s8, 1
      %p74 = por %p72, %p73
      %p75 = scmp.ne.s32.totalorder %s67, %s70
      %p76 = scmp.eq.s32.totalorder %s8, 0
      %p77 = por %p75, %p76
      %p78 = scmp.ne.s32.totalorder %s67, %s70
      %p79 = scmp.eq.s32.totalorder %s13, 1
      %p80 = por %p78, %p79
      %p81 = scmp.ne.s32.totalorder %s70, %s71
      %p82 = scmp.eq.s32.totalorder %s13, 0
      %p83 = por %p81, %p82
      %p84 = scmp.ne.s32.totalorder %s70, %s71
      %p85 = scmp.eq.s32.totalorder %s14, 1
      %p86 = por %p84, %p85
      %p88 = scmp.ne.s32.totalorder %s71, %s87
      %p89 = scmp.eq.s32.totalorder %s14, 0
      %p90 = por %p88, %p89
      %s91 = ssub.s32 %s15, %s34
      %s92 = ssub.s32 %s16, %s30
      %s93 = sor.u32 %s91, %s92
      %p94 = scmp.eq.s32.totalorder %s93, 0
      %s96 = sadd.s32 %s95, 1
      %s97 = scalar_select %p94, %s95, %s96
      %p100 = pneg %p94
      %p101 = scmp.eq.s32.totalorder %s8, 1
      %p102 = por %p100, %p101
      %p103 = scmp.ne.s32.totalorder %s95, %s98
      %p104 = scmp.eq.s32.totalorder %s8, 0
      %p105 = por %p103, %p104
      %p106 = scmp.ne.s32.totalorder %s95, %s98
      %p107 = scmp.eq.s32.totalorder %s13, 1
      %p108 = por %p106, %p107
      %p109 = scmp.ne.s32.totalorder %s98, %s99
      %p110 = scmp.eq.s32.totalorder %s13, 0
      %p111 = por %p109, %p110
      %p112 = scmp.ne.s32.totalorder %s98, %s99
      %p113 = scmp.eq.s32.totalorder %s14, 1
      %p114 = por %p112, %p113
      %p116 = scmp.ne.s32.totalorder %s99, %s115
      %p117 = scmp.eq.s32.totalorder %s14, 0
      %p118 = por %p116, %p117
      %p119 = scmp.le.s32.totalorder 1, %s8
      %p120 = scmp.lt.s32.totalorder %s8, 3
      %p121 = pnand %p119, %p120
      %p122 = pneg %p121
      // Predicated region
      $region9: #{_lambda_.29} parent=5 // pred_check
        _
      $region10: #{_lambda_.29} parent=5 // pred_check_branch
        %124 = sbr.rel (%p121) target = $region12
      $region11: #{_lambda_.29} parent=5 // pred_region
        %s125 = ssub.s32 %s8, 1
      $region12: #{_lambda_.29} parent=5 // pred_fallthru
        _
      %p126 = scmp.lt.s32.totalorder %s8, 2
      // Predicated region
      $region13: #{_lambda_.29} parent=5 // pred_check
        %p127 = pneg %p126
      $region14: #{_lambda_.29} parent=5 // pred_check_branch
        %129 = sbr.rel (%p127) target = $region16
      $region15: #{_lambda_.29} parent=5 // pred_region
        // Predicated region
        $region17: #{_lambda_.29} parent=15 // pred_check
          %p130 = pneg %p49
        $region18: #{_lambda_.29} parent=15 // pred_check_branch
          %132 = sbr.rel (%p130) target = $region20
        $region19: #{_lambda_.29} parent=15 // pred_region
          %s133 = sand.u32 %s39, 1
          %s134 = sand.u32 %s39, 1
          %s135 = smul.addr %s134, 128
          %s136 = scalar_lea.vmem [#allocation3], %s135
          %s137 = smul.u32 16, %s15
          %s138 = smul.u32 2, %s17
          %s139 = smul.addr %s137, 4
          %s140 = sadd.s32 %s138, %s139
          %s141 = smul.addr %s140, 4
          %s142 = scalar_lea.vmem %s0, %s141
          // Predicated region
          $region21: #{_lambda_.29} parent=19 // pred_check
            _
          $region22: #{_lambda_.29} parent=19 // pred_check_branch
            %144 = sbr.rel (0) target = $region24
          $region23: #{_lambda_.29} parent=19 // pred_region
            // Predicated region
            $region25: #{_lambda_.29} parent=23 // pred_check
              _
            $region26: #{_lambda_.29} parent=23 // pred_check_branch
              %146 = sbr.rel (0) target = $region28
            $region27: #{_lambda_.29} parent=23 // pred_region
              // Predicated region
              $region40: #{_lambda_.29} parent=27 // pred_check
                _
              $region41: #{_lambda_.29} parent=27 // pred_check_branch
                %192 = sbr.rel (0) target = $region43
              $region42: #{_lambda_.29} parent=27 // pred_region
                loop: start=0, step=1, limit=1
                $region44: #{_lambda_.29} parent=42 // loop_pre_header
                  _
                $region45: #{_lambda_.29} parent=42 // loop_header
                  %s194 = sphi 0, %s198
                  %p195 = scmp.ge.s32.totalorder %s194, 1
                  %s199 = sphi %s142, %s142
                  %s200 = sphi %s136, %s136
                $region46: #{_lambda_.29} parent=42 // loop_header_branch
                  %197 = sbr.rel (%p195) target = $region50
                $region47: #{_lambda_.29} parent=42 // loop_body
                  %v201 = vld [vmem:[%s199] sm:$0xff]
                  %202 = vst [vmem:[%s200] sm:$0xff] %v201
                  %v203 = vld [vmem:[%s199 + $0x10] sm:$0xff]
                  %204 = vst [vmem:[%s200 + $0x8] sm:$0xff] %v203
                  %v205 = vld [vmem:[%s199 + $0x20] sm:$0xff]
                  %206 = vst [vmem:[%s200 + $0x10] sm:$0xff] %v205
                  %v207 = vld [vmem:[%s199 + $0x30] sm:$0xff]
                  %208 = vst [vmem:[%s200 + $0x18] sm:$0xff] %v207
                  %v209 = vld [vmem:[%s199 + $0x40] sm:$0xff]
                  %210 = vst [vmem:[%s200 + $0x20] sm:$0xff] %v209
                  %v211 = vld [vmem:[%s199 + $0x50] sm:$0xff]
                  %212 = vst [vmem:[%s200 + $0x28] sm:$0xff] %v211
                  %v213 = vld [vmem:[%s199 + $0x60] sm:$0xff]
                  %214 = vst [vmem:[%s200 + $0x30] sm:$0xff] %v213
                  %v215 = vld [vmem:[%s199 + $0x70] sm:$0xff]
                  %216 = vst [vmem:[%s200 + $0x38] sm:$0xff] %v215
                  %v217 = vld [vmem:[%s199 + $0x80] sm:$0xff]
                  %218 = vst [vmem:[%s200 + $0x40] sm:$0xff] %v217
                  %v219 = vld [vmem:[%s199 + $0x90] sm:$0xff]
                  %220 = vst [vmem:[%s200 + $0x48] sm:$0xff] %v219
                  %v221 = vld [vmem:[%s199 + $0xa0] sm:$0xff]
                  %222 = vst [vmem:[%s200 + $0x50] sm:$0xff] %v221
                  %v223 = vld [vmem:[%s199 + $0xb0] sm:$0xff]
                  %224 = vst [vmem:[%s200 + $0x58] sm:$0xff] %v223
                  %v225 = vld [vmem:[%s199 + $0xc0] sm:$0xff]
                  %226 = vst [vmem:[%s200 + $0x60] sm:$0xff] %v225
                  %v227 = vld [vmem:[%s199 + $0xd0] sm:$0xff]
                  %228 = vst [vmem:[%s200 + $0x68] sm:$0xff] %v227
                  %v229 = vld [vmem:[%s199 + $0xe0] sm:$0xff]
                  %230 = vst [vmem:[%s200 + $0x70] sm:$0xff] %v229
                  %v231 = vld [vmem:[%s199 + $0xf0] sm:$0xff]
                  %232 = vst [vmem:[%s200 + $0x78] sm:$0xff] %v231
                $region48: #{_lambda_.29} parent=42 // loop_footer
                  %s198 = sadd.s32 1, %s194
                $region49: #{_lambda_.29} parent=42 // loop_footer_branch
                  %193 = sbr.rel target = $region45
                $region50: #{_lambda_.29} parent=42 // loop_exit
                  _
              $region43: #{_lambda_.29} parent=27 // pred_fallthru
                _
              // Predicated region
              $region51: #{_lambda_.29} parent=27 // pred_check
                _
              $region52: #{_lambda_.29} parent=27 // pred_check_branch
                %234 = sbr.rel target = $region54
              $region53: #{_lambda_.29} parent=27 // pred_region
                _
              $region54: #{_lambda_.29} parent=27 // pred_fallthru
                _
            $region28: #{_lambda_.29} parent=23 // pred_fallthru
              _
            // Predicated region
            $region29: #{_lambda_.29} parent=23 // pred_check
              _
            $region30: #{_lambda_.29} parent=23 // pred_check_branch
              %148 = sbr.rel target = $region32
            $region31: #{_lambda_.29} parent=23 // pred_region
              %s150 = ssub.s32 256, 1
              loop: start=0, step=1, limit=1
              $region33: #{_lambda_.29} parent=31 // loop_pre_header
                _
              $region34: #{_lambda_.29} parent=31 // loop_header
                %s152 = sphi 0, %s156
                %p153 = scmp.ge.s32.totalorder %s152, 1
                %s157 = sphi %s142, %s142
                %s158 = sphi %s136, %s136
              $region35: #{_lambda_.29} parent=31 // loop_header_branch
                %155 = sbr.rel (%p153) target = $region39
              $region36: #{_lambda_.29} parent=31 // loop_body
                %v159 = vld [vmem:[%s157] sm:%s150]
                %160 = vst [vmem:[%s158] sm:%s150] %v159
                %v161 = vld [vmem:[%s157 + $0x10] sm:%s150]
                %162 = vst [vmem:[%s158 + $0x8] sm:%s150] %v161
                %v163 = vld [vmem:[%s157 + $0x20] sm:%s150]
                %164 = vst [vmem:[%s158 + $0x10] sm:%s150] %v163
                %v165 = vld [vmem:[%s157 + $0x30] sm:%s150]
                %166 = vst [vmem:[%s158 + $0x18] sm:%s150] %v165
                %v167 = vld [vmem:[%s157 + $0x40] sm:%s150]
                %168 = vst [vmem:[%s158 + $0x20] sm:%s150] %v167
                %v169 = vld [vmem:[%s157 + $0x50] sm:%s150]
                %170 = vst [vmem:[%s158 + $0x28] sm:%s150] %v169
                %v171 = vld [vmem:[%s157 + $0x60] sm:%s150]
                %172 = vst [vmem:[%s158 + $0x30] sm:%s150] %v171
                %v173 = vld [vmem:[%s157 + $0x70] sm:%s150]
                %174 = vst [vmem:[%s158 + $0x38] sm:%s150] %v173
                %v175 = vld [vmem:[%s157 + $0x80] sm:%s150]
                %176 = vst [vmem:[%s158 + $0x40] sm:%s150] %v175
                %v177 = vld [vmem:[%s157 + $0x90] sm:%s150]
                %178 = vst [vmem:[%s158 + $0x48] sm:%s150] %v177
                %v179 = vld [vmem:[%s157 + $0xa0] sm:%s150]
                %180 = vst [vmem:[%s158 + $0x50] sm:%s150] %v179
                %v181 = vld [vmem:[%s157 + $0xb0] sm:%s150]
                %182 = vst [vmem:[%s158 + $0x58] sm:%s150] %v181
                %v183 = vld [vmem:[%s157 + $0xc0] sm:%s150]
                %184 = vst [vmem:[%s158 + $0x60] sm:%s150] %v183
                %v185 = vld [vmem:[%s157 + $0xd0] sm:%s150]
                %186 = vst [vmem:[%s158 + $0x68] sm:%s150] %v185
                %v187 = vld [vmem:[%s157 + $0xe0] sm:%s150]
                %188 = vst [vmem:[%s158 + $0x70] sm:%s150] %v187
                %v189 = vld [vmem:[%s157 + $0xf0] sm:%s150]
                %190 = vst [vmem:[%s158 + $0x78] sm:%s150] %v189
              $region37: #{_lambda_.29} parent=31 // loop_footer
                %s156 = sadd.s32 1, %s152
              $region38: #{_lambda_.29} parent=31 // loop_footer_branch
                %151 = sbr.rel target = $region34
              $region39: #{_lambda_.29} parent=31 // loop_exit
                _
            $region32: #{_lambda_.29} parent=23 // pred_fallthru
              _
          $region24: #{_lambda_.29} parent=19 // pred_fallthru
            _
          %235 = vnop
        $region20: #{_lambda_.29} parent=15 // pred_fallthru
          _
        // Predicated region
        $region55: #{_lambda_.29} parent=15 // pred_check
          %p236 = pneg %p77
        $region56: #{_lambda_.29} parent=15 // pred_check_branch
          %238 = sbr.rel (%p236) target = $region58
        $region57: #{_lambda_.29} parent=15 // pred_region
          %s239 = smul.u32 32, %s17
          %p240 = scmp.lt.s32.totalorder %s239, 63
          %s241 = scalar_select %p240, %s239, 63
          %p242 = scmp.lt.s32.totalorder %s16, 0
          %s243 = scalar_select %p242, %s16, 0
          %s244 = sadd.s32 %s243, %s241
          %s245 = smul.addr %s244, 4
          %s246 = scalar_lea.vmem %s1, %s245
          %s247 = smul.u32 32, %s17
        $region58: #{_lambda_.29} parent=15 // pred_fallthru
          _
      $region16: #{_lambda_.29} parent=5 // pred_fallthru
        _
      %p248 = scmp.le.s32.totalorder 1, %s8
      %p249 = scmp.lt.s32.totalorder %s8, 3
      %p250 = pnand %p248, %p249
      %p251 = pneg %p250
      // Predicated region
      $region59: #{_lambda_.29} parent=5 // pred_check
        _
      $region60: #{_lambda_.29} parent=5 // pred_check_branch
        %253 = sbr.rel (%p250) target = $region62
      $region61: #{_lambda_.29} parent=5 // pred_region
        %s254 = ssub.s32 %s8, 1
        %s255 = sand.u32 %s42, 1
        %s256 = sand.u32 %s42, 1
        %s257 = smul.addr %s256, 128
        %s258 = scalar_lea.vmem [#allocation3], %s257
        // Predicated region
        $region63: #{_lambda_.29} parent=61 // pred_check
          %p259 = pneg %p55
        $region64: #{_lambda_.29} parent=61 // pred_check_branch
          %261 = sbr.rel (%p259) target = $region66
        $region65: #{_lambda_.29} parent=61 // pred_region
          _
        $region66: #{_lambda_.29} parent=61 // pred_fallthru
          _
        %s262 = sand.u32 %s42, 1
        %s263 = sand.u32 %s42, 1
        %s264 = smul.addr %s263, 128
        %s265 = scalar_lea.vmem [#allocation3], %s264
        %p266 = pneg %p55
        %p267 = pneg %p52
        %s268 = smul.u32 32, %s20
        %p269 = scmp.lt.s32.totalorder %s268, 63
        %s270 = scalar_select %p269, %s268, 63
        %p271 = scmp.lt.s32.totalorder %s19, 0
        %s272 = scalar_select %p271, %s19, 0
        %s273 = sadd.s32 %s272, %s270
        %s274 = smul.addr %s273, 4
        %s275 = scalar_lea.vmem %s1, %s274
        %p276 = pneg %p83
        %p277 = pneg %p80
        %p278 = pneg %p111
        %p279 = pneg %p108
        %s280 = smul.u32 16, %s18
        %p281 = scmp.lt.s32.totalorder %s280, 15
        %s282 = scalar_select %p281, %s280, 15
        %p283 = scmp.lt.s32.totalorder %s19, 0
        %s284 = scalar_select %p283, %s19, 0
        %s285 = sadd.s32 %s284, %s282
        %s286 = smul.addr %s285, 4
        %s287 = scalar_lea.vmem %s2, %s286
        %s288 = smul.u32 16, %s18
        %s289 = smul.u32 2, %s20
        %s290 = smul.u32 32, %s20
        %p291 = scmp.lt.s32.totalorder %s290, 63
        %s292 = scalar_select %p291, %s290, 63
        %p293 = scmp.lt.s32.totalorder %s19, 0
        %s294 = scalar_select %p293, %s19, 0
        %s295 = sadd.s32 %s294, %s292
        %s296 = smul.addr %s295, 4
        %s297 = scalar_lea.vmem %s1, %s296
        %s298 = smul.u32 32, %s20
        %s299 = smul.u32 16, %s18
        %p300 = scmp.lt.s32.totalorder %s299, 15
        %s301 = scalar_select %p300, %s299, 15
        %p302 = scmp.lt.s32.totalorder %s19, 0
        %s303 = scalar_select %p302, %s19, 0
        %s304 = sadd.s32 %s303, %s301
        %s305 = smul.addr %s304, 4
        %s306 = scalar_lea.vmem %s2, %s305
        %s307 = smul.u32 16, %s18
        %p308 = scmp.eq.s32.totalorder %s20, 0
        // Predicated region
        $region67: #{_lambda_.29} parent=61 // pred_check
          %p309 = pneg %p308
        $region68: #{_lambda_.29} parent=61 // pred_check_branch
          %311 = sbr.rel (%p309) target = $region70
        $region69: #{_lambda_.29} parent=61 // pred_region
          %312 = vst [vmem:[#allocation2] sm:$0xff] 0.0
          %313 = vst [vmem:[#allocation2 + $0x8] sm:$0xff] 0.0
          %314 = vst [vmem:[#allocation2 + $0x10] sm:$0xff] 0.0
          %315 = vst [vmem:[#allocation2 + $0x18] sm:$0xff] 0.0
          %316 = vst [vmem:[#allocation2 + $0x20] sm:$0xff] 0.0
          %317 = vst [vmem:[#allocation2 + $0x28] sm:$0xff] 0.0
          %318 = vst [vmem:[#allocation2 + $0x30] sm:$0xff] 0.0
          %319 = vst [vmem:[#allocation2 + $0x38] sm:$0xff] 0.0
          %320 = vst [vmem:[#allocation2 + $0x40] sm:$0xff] 0.0
          %321 = vst [vmem:[#allocation2 + $0x48] sm:$0xff] 0.0
          %322 = vst [vmem:[#allocation2 + $0x50] sm:$0xff] 0.0
          %323 = vst [vmem:[#allocation2 + $0x58] sm:$0xff] 0.0
          %324 = vst [vmem:[#allocation2 + $0x60] sm:$0xff] 0.0
          %325 = vst [vmem:[#allocation2 + $0x68] sm:$0xff] 0.0
          %326 = vst [vmem:[#allocation2 + $0x70] sm:$0xff] 0.0
          %327 = vst [vmem:[#allocation2 + $0x78] sm:$0xff] 0.0
        $region70: #{_lambda_.29} parent=61 // pred_fallthru
          _
        %v328 = vld [vmem:[%s258] sm:$0xff]
        %v329 = vld [vmem:[%s258 + $0x8] sm:$0xff]
        %v330 = vld [vmem:[%s258 + $0x10] sm:$0xff]
        %v331 = vld [vmem:[%s258 + $0x18] sm:$0xff]
        %v332 = vld [vmem:[%s258 + $0x20] sm:$0xff]
        %v333 = vld [vmem:[%s258 + $0x28] sm:$0xff]
        %v334 = vld [vmem:[%s258 + $0x30] sm:$0xff]
        %v335 = vld [vmem:[%s258 + $0x38] sm:$0xff]
        %v336 = vld [vmem:[%s258 + $0x40] sm:$0xff]
        %v337 = vld [vmem:[%s258 + $0x48] sm:$0xff]
        %v338 = vld [vmem:[%s258 + $0x50] sm:$0xff]
        %v339 = vld [vmem:[%s258 + $0x58] sm:$0xff]
        %v340 = vld [vmem:[%s258 + $0x60] sm:$0xff]
        %v341 = vld [vmem:[%s258 + $0x68] sm:$0xff]
        %v342 = vld [vmem:[%s258 + $0x70] sm:$0xff]
        %v343 = vld [vmem:[%s258 + $0x78] sm:$0xff]
        %v344 = vld [vmem:[#allocation2] sm:$0xff]
        %v345 = vld [vmem:[#allocation2 + $0x8] sm:$0xff]
        %v346 = vld [vmem:[#allocation2 + $0x10] sm:$0xff]
        %v347 = vld [vmem:[#allocation2 + $0x18] sm:$0xff]
        %v348 = vld [vmem:[#allocation2 + $0x20] sm:$0xff]
        %v349 = vld [vmem:[#allocation2 + $0x28] sm:$0xff]
        %v350 = vld [vmem:[#allocation2 + $0x30] sm:$0xff]
        %v351 = vld [vmem:[#allocation2 + $0x38] sm:$0xff]
        %v352 = vld [vmem:[#allocation2 + $0x40] sm:$0xff]
        %v353 = vld [vmem:[#allocation2 + $0x48] sm:$0xff]
        %v354 = vld [vmem:[#allocation2 + $0x50] sm:$0xff]
        %v355 = vld [vmem:[#allocation2 + $0x58] sm:$0xff]
        %v356 = vld [vmem:[#allocation2 + $0x60] sm:$0xff]
        %v357 = vld [vmem:[#allocation2 + $0x68] sm:$0xff]
        %v358 = vld [vmem:[#allocation2 + $0x70] sm:$0xff]
        %v359 = vld [vmem:[#allocation2 + $0x78] sm:$0xff]
        %v360 = vld [vmem:[%s297] sm:$0xf]
        %v361 = vld [vmem:[%s297 + $0x4] sm:$0xf]
        %v362 = vld [vmem:[%s297 + $0x8] sm:$0xf]
        %v363 = vld [vmem:[%s297 + $0xc] sm:$0xf]
        %v364 = vld [vmem:[%s297 + $0x10] sm:$0xf]
        %v365 = vld [vmem:[%s297 + $0x14] sm:$0xf]
        %v366 = vld [vmem:[%s297 + $0x18] sm:$0xf]
        %v367 = vld [vmem:[%s297 + $0x1c] sm:$0xf]
        %v368 = vld [vmem:[%s297 + $0x20] sm:$0xf]
        %v369 = vld [vmem:[%s297 + $0x24] sm:$0xf]
        %v370 = vld [vmem:[%s297 + $0x28] sm:$0xf]
        %v371 = vld [vmem:[%s297 + $0x2c] sm:$0xf]
        %v372 = vld [vmem:[%s297 + $0x30] sm:$0xf]
        %v373 = vld [vmem:[%s297 + $0x34] sm:$0xf]
        %v374 = vld [vmem:[%s297 + $0x38] sm:$0xf]
        %v375 = vld [vmem:[%s297 + $0x3c] sm:$0xf]
        %v376 = vld [vmem:[%s297 + $0x40] sm:$0xf]
        %v377 = vld [vmem:[%s297 + $0x44] sm:$0xf]
        %v378 = vld [vmem:[%s297 + $0x48] sm:$0xf]
        %v379 = vld [vmem:[%s297 + $0x4c] sm:$0xf]
        %v380 = vld [vmem:[%s297 + $0x50] sm:$0xf]
        %v381 = vld [vmem:[%s297 + $0x54] sm:$0xf]
        %v382 = vld [vmem:[%s297 + $0x58] sm:$0xf]
        %v383 = vld [vmem:[%s297 + $0x5c] sm:$0xf]
        %v384 = vld [vmem:[%s297 + $0x60] sm:$0xf]
        %v385 = vld [vmem:[%s297 + $0x64] sm:$0xf]
        %v386 = vld [vmem:[%s297 + $0x68] sm:$0xf]
        %v387 = vld [vmem:[%s297 + $0x6c] sm:$0xf]
        %v388 = vld [vmem:[%s297 + $0x70] sm:$0xf]
        %v389 = vld [vmem:[%s297 + $0x74] sm:$0xf]
        %v390 = vld [vmem:[%s297 + $0x78] sm:$0xf]
        %v391 = vld [vmem:[%s297 + $0x7c] sm:$0xf]
        %v408 = vunpack.c.l.b16 %v328
        %v409 = vunpack.c.h.b16 %v328
        %v410 = vunpack.c.l.b16 %v329
        %v411 = vunpack.c.h.b16 %v329
        %v412 = vunpack.c.l.b16 %v330
        %v413 = vunpack.c.h.b16 %v330
        %v414 = vunpack.c.l.b16 %v331
        %v415 = vunpack.c.h.b16 %v331
        %v416 = vunpack.c.l.b16 %v332
        %v417 = vunpack.c.h.b16 %v332
        %v418 = vunpack.c.l.b16 %v333
        %v419 = vunpack.c.h.b16 %v333
        %v420 = vunpack.c.l.b16 %v334
        %v421 = vunpack.c.h.b16 %v334
        %v422 = vunpack.c.l.b16 %v335
        %v423 = vunpack.c.h.b16 %v335
        %v424 = vunpack.c.l.b16 %v336
        %v425 = vunpack.c.h.b16 %v336
        %v426 = vunpack.c.l.b16 %v337
        %v427 = vunpack.c.h.b16 %v337
        %v428 = vunpack.c.l.b16 %v338
        %v429 = vunpack.c.h.b16 %v338
        %v430 = vunpack.c.l.b16 %v339
        %v431 = vunpack.c.h.b16 %v339
        %v432 = vunpack.c.l.b16 %v340
        %v433 = vunpack.c.h.b16 %v340
        %v434 = vunpack.c.l.b16 %v341
        %v435 = vunpack.c.h.b16 %v341
        %v436 = vunpack.c.l.b16 %v342
        %v437 = vunpack.c.h.b16 %v342
        %v438 = vunpack.c.l.b16 %v343
        %v439 = vunpack.c.h.b16 %v343
        %v440 = vpack.c.b16 %v410, %v408
        %v441 = vpack.c.b16 %v411, %v409
        %v442 = vpack.c.b16 %v414, %v412
        %v443 = vpack.c.b16 %v415, %v413
        %v444 = vpack.c.b16 %v418, %v416
        %v445 = vpack.c.b16 %v419, %v417
        %v446 = vpack.c.b16 %v422, %v420
        %v447 = vpack.c.b16 %v423, %v421
        %v448 = vpack.c.b16 %v426, %v424
        %v449 = vpack.c.b16 %v427, %v425
        %v450 = vpack.c.b16 %v430, %v428
        %v451 = vpack.c.b16 %v431, %v429
        %v452 = vpack.c.b16 %v434, %v432
        %v453 = vpack.c.b16 %v435, %v433
        %v454 = vpack.c.b16 %v438, %v436
        %v455 = vpack.c.b16 %v439, %v437
        %v504 = vunpack.c.l.b16 %v360
        %v505 = vunpack.c.l.b16 %v361
        %v506 = vunpack.c.l.b16 %v362
        %v507 = vunpack.c.l.b16 %v363
        %v508 = vunpack.c.l.b16 %v364
        %v509 = vunpack.c.l.b16 %v365
        %v510 = vunpack.c.l.b16 %v366
        %v511 = vunpack.c.l.b16 %v367
        %v512 = vunpack.c.l.b16 %v368
        %v513 = vunpack.c.l.b16 %v369
        %v514 = vunpack.c.l.b16 %v370
        %v515 = vunpack.c.l.b16 %v371
        %v516 = vunpack.c.l.b16 %v372
        %v517 = vunpack.c.l.b16 %v373
        %v518 = vunpack.c.l.b16 %v374
        %v519 = vunpack.c.l.b16 %v375
        %v520 = vunpack.c.l.b16 %v376
        %v521 = vunpack.c.l.b16 %v377
        %v522 = vunpack.c.l.b16 %v378
        %v523 = vunpack.c.l.b16 %v379
        %v524 = vunpack.c.l.b16 %v380
        %v525 = vunpack.c.l.b16 %v381
        %v526 = vunpack.c.l.b16 %v382
        %v527 = vunpack.c.l.b16 %v383
        %v528 = vunpack.c.l.b16 %v384
        %v529 = vunpack.c.l.b16 %v385
        %v530 = vunpack.c.l.b16 %v386
        %v531 = vunpack.c.l.b16 %v387
        %v532 = vunpack.c.l.b16 %v388
        %v533 = vunpack.c.l.b16 %v389
        %v534 = vunpack.c.l.b16 %v390
        %v535 = vunpack.c.l.b16 %v391
        %v536 = vpack.c.b16 %v505, %v504
        %v537 = vpack.c.b16 %v507, %v506
        %v538 = vpack.c.b16 %v509, %v508
        %v539 = vpack.c.b16 %v511, %v510
        %v540 = vpack.c.b16 %v513, %v512
        %v541 = vpack.c.b16 %v515, %v514
        %v542 = vpack.c.b16 %v517, %v516
        %v543 = vpack.c.b16 %v519, %v518
        %v544 = vpack.c.b16 %v521, %v520
        %v545 = vpack.c.b16 %v523, %v522
        %v546 = vpack.c.b16 %v525, %v524
        %v547 = vpack.c.b16 %v527, %v526
        %v548 = vpack.c.b16 %v529, %v528
        %v549 = vpack.c.b16 %v531, %v530
        %v550 = vpack.c.b16 %v533, %v532
        %v551 = vpack.c.b16 %v535, %v534
        %568 = vmatpush.bf16.msra.mxu0 %v543
        %569 = vmatpush.bf16.msra.mxu0 %v542
        %570 = vmatpush.bf16.msra.mxu0 %v541
        %571 = vmatpush.bf16.msra.mxu0 %v540
        %572 = vmatpush.bf16.msra.mxu0 %v539
        %573 = vmatpush.bf16.msra.mxu0 %v538
        %574 = vmatpush.bf16.msra.mxu0 %v537
        %575 = vmatpush.bf16.msra.mxu0 %v536
        %576 = vmatmul.bf16.gmra.mxu0 %v440
        %v577 = vpop.f32.mrf.mxu0
        %v578 = vadd.f32 0.0, %v577
        %v579 = vpop.f32.mrf.mxu0
        %v580 = vadd.f32 0.0, %v579
        %581 = vmatmul.bf16.gmra.mxu0 %v442
        %v582 = vpop.f32.mrf.mxu0
        %v583 = vadd.f32 0.0, %v582
        %v584 = vpop.f32.mrf.mxu0
        %v585 = vadd.f32 0.0, %v584
        %586 = vmatmul.bf16.gmra.mxu0 %v444
        %v587 = vpop.f32.mrf.mxu0
        %v588 = vadd.f32 0.0, %v587
        %v589 = vpop.f32.mrf.mxu0
        %v590 = vadd.f32 0.0, %v589
        %591 = vmatmul.bf16.gmra.mxu0 %v446
        %v592 = vpop.f32.mrf.mxu0
        %v593 = vadd.f32 0.0, %v592
        %v594 = vpop.f32.mrf.mxu0
        %v595 = vadd.f32 0.0, %v594
        %596 = vmatmul.bf16.gmra.mxu0 %v448
        %v597 = vpop.f32.mrf.mxu0
        %v598 = vadd.f32 0.0, %v597
        %v599 = vpop.f32.mrf.mxu0
        %v600 = vadd.f32 0.0, %v599
        %601 = vmatmul.bf16.gmra.mxu0 %v450
        %v602 = vpop.f32.mrf.mxu0
        %v603 = vadd.f32 0.0, %v602
        %v604 = vpop.f32.mrf.mxu0
        %v605 = vadd.f32 0.0, %v604
        %606 = vmatmul.bf16.gmra.mxu0 %v452
        %v607 = vpop.f32.mrf.mxu0
        %v608 = vadd.f32 0.0, %v607
        %v609 = vpop.f32.mrf.mxu0
        %v610 = vadd.f32 0.0, %v609
        %611 = vmatmul.bf16.gmra.mxu0 %v454
        %v612 = vpop.f32.mrf.mxu0
        %v613 = vadd.f32 0.0, %v612
        %v614 = vpop.f32.mrf.mxu0
        %v615 = vadd.f32 0.0, %v614
        %616 = vdwg.mxu0
        %617 = vmatpush.bf16.msra.mxu0 %v551
        %618 = vmatpush.bf16.msra.mxu0 %v550
        %619 = vmatpush.bf16.msra.mxu0 %v549
        %620 = vmatpush.bf16.msra.mxu0 %v548
        %621 = vmatpush.bf16.msra.mxu0 %v547
        %622 = vmatpush.bf16.msra.mxu0 %v546
        %623 = vmatpush.bf16.msra.mxu0 %v545
        %624 = vmatpush.bf16.msra.mxu0 %v544
        %625 = vmatmul.bf16.gmra.mxu0 %v441
        %v626 = vpop.f32.mrf.mxu0
        %v627 = vadd.f32 %v578, %v626
        %v628 = vpop.f32.mrf.mxu0
        %v629 = vadd.f32 %v580, %v628
        %630 = vmatmul.bf16.gmra.mxu0 %v443
        %v631 = vpop.f32.mrf.mxu0
        %v632 = vadd.f32 %v583, %v631
        %v633 = vpop.f32.mrf.mxu0
        %v634 = vadd.f32 %v585, %v633
        %635 = vmatmul.bf16.gmra.mxu0 %v445
        %v636 = vpop.f32.mrf.mxu0
        %v637 = vadd.f32 %v588, %v636
        %v638 = vpop.f32.mrf.mxu0
        %v639 = vadd.f32 %v590, %v638
        %640 = vmatmul.bf16.gmra.mxu0 %v447
        %v641 = vpop.f32.mrf.mxu0
        %v642 = vadd.f32 %v593, %v641
        %v643 = vpop.f32.mrf.mxu0
        %v644 = vadd.f32 %v595, %v643
        %645 = vmatmul.bf16.gmra.mxu0 %v449
        %v646 = vpop.f32.mrf.mxu0
        %v647 = vadd.f32 %v598, %v646
        %v648 = vpop.f32.mrf.mxu0
        %v649 = vadd.f32 %v600, %v648
        %650 = vmatmul.bf16.gmra.mxu0 %v451
        %v651 = vpop.f32.mrf.mxu0
        %v652 = vadd.f32 %v603, %v651
        %v653 = vpop.f32.mrf.mxu0
        %v654 = vadd.f32 %v605, %v653
        %655 = vmatmul.bf16.gmra.mxu0 %v453
        %v656 = vpop.f32.mrf.mxu0
        %v657 = vadd.f32 %v608, %v656
        %v658 = vpop.f32.mrf.mxu0
        %v659 = vadd.f32 %v610, %v658
        %660 = vmatmul.bf16.gmra.mxu0 %v455
        %v661 = vpop.f32.mrf.mxu0
        %v662 = vadd.f32 %v613, %v661
        %v663 = vpop.f32.mrf.mxu0
        %v664 = vadd.f32 %v615, %v663
        %665 = vdwg.mxu0
        %v666 = vadd.f32 %v344, %v627
        %v667 = vadd.f32 %v345, %v629
        %v668 = vadd.f32 %v346, %v632
        %v669 = vadd.f32 %v347, %v634
        %v670 = vadd.f32 %v348, %v637
        %v671 = vadd.f32 %v349, %v639
        %v672 = vadd.f32 %v350, %v642
        %v673 = vadd.f32 %v351, %v644
        %v674 = vadd.f32 %v352, %v647
        %v675 = vadd.f32 %v353, %v649
        %v676 = vadd.f32 %v354, %v652
        %v677 = vadd.f32 %v355, %v654
        %v678 = vadd.f32 %v356, %v657
        %v679 = vadd.f32 %v357, %v659
        %v680 = vadd.f32 %v358, %v662
        %v681 = vadd.f32 %v359, %v664
        %682 = vst [vmem:[#allocation2] sm:$0xff] %v666
        %683 = vst [vmem:[#allocation2 + $0x8] sm:$0xff] %v667
        %684 = vst [vmem:[#allocation2 + $0x10] sm:$0xff] %v668
        %685 = vst [vmem:[#allocation2 + $0x18] sm:$0xff] %v669
        %686 = vst [vmem:[#allocation2 + $0x20] sm:$0xff] %v670
        %687 = vst [vmem:[#allocation2 + $0x28] sm:$0xff] %v671
        %688 = vst [vmem:[#allocation2 + $0x30] sm:$0xff] %v672
        %689 = vst [vmem:[#allocation2 + $0x38] sm:$0xff] %v673
        %690 = vst [vmem:[#allocation2 + $0x40] sm:$0xff] %v674
        %691 = vst [vmem:[#allocation2 + $0x48] sm:$0xff] %v675
        %692 = vst [vmem:[#allocation2 + $0x50] sm:$0xff] %v676
        %693 = vst [vmem:[#allocation2 + $0x58] sm:$0xff] %v677
        %694 = vst [vmem:[#allocation2 + $0x60] sm:$0xff] %v678
        %695 = vst [vmem:[#allocation2 + $0x68] sm:$0xff] %v679
        %696 = vst [vmem:[#allocation2 + $0x70] sm:$0xff] %v680
        %697 = vst [vmem:[#allocation2 + $0x78] sm:$0xff] %v681
        %p698 = scmp.eq.s32.totalorder %s20, 1
        // Predicated region
        $region71: #{_lambda_.29} parent=61 // pred_check
          %p699 = pneg %p698
        $region72: #{_lambda_.29} parent=61 // pred_check_branch
          %701 = sbr.rel (%p699) target = $region74
        $region73: #{_lambda_.29} parent=61 // pred_region
          %v702 = vld [vmem:[#allocation2] sm:$0xff]
          %v703 = vld [vmem:[#allocation2 + $0x8] sm:$0xff]
          %v704 = vld [vmem:[#allocation2 + $0x10] sm:$0xff]
          %v705 = vld [vmem:[#allocation2 + $0x18] sm:$0xff]
          %v706 = vld [vmem:[#allocation2 + $0x20] sm:$0xff]
          %v707 = vld [vmem:[#allocation2 + $0x28] sm:$0xff]
          %v708 = vld [vmem:[#allocation2 + $0x30] sm:$0xff]
          %v709 = vld [vmem:[#allocation2 + $0x38] sm:$0xff]
          %v710 = vld [vmem:[#allocation2 + $0x40] sm:$0xff]
          %v711 = vld [vmem:[#allocation2 + $0x48] sm:$0xff]
          %v712 = vld [vmem:[#allocation2 + $0x50] sm:$0xff]
          %v713 = vld [vmem:[#allocation2 + $0x58] sm:$0xff]
          %v714 = vld [vmem:[#allocation2 + $0x60] sm:$0xff]
          %v715 = vld [vmem:[#allocation2 + $0x68] sm:$0xff]
          %v716 = vld [vmem:[#allocation2 + $0x70] sm:$0xff]
          %v717 = vld [vmem:[#allocation2 + $0x78] sm:$0xff]
          %v718 = vpack.c.bf16 %v702, %v702
          %v719 = vpack.c.bf16 %v703, %v703
          %v720 = vpack.c.bf16 %v704, %v704
          %v721 = vpack.c.bf16 %v705, %v705
          %v722 = vpack.c.bf16 %v706, %v706
          %v723 = vpack.c.bf16 %v707, %v707
          %v724 = vpack.c.bf16 %v708, %v708
          %v725 = vpack.c.bf16 %v709, %v709
          %v726 = vpack.c.bf16 %v710, %v710
          %v727 = vpack.c.bf16 %v711, %v711
          %v728 = vpack.c.bf16 %v712, %v712
          %v729 = vpack.c.bf16 %v713, %v713
          %v730 = vpack.c.bf16 %v714, %v714
          %v731 = vpack.c.bf16 %v715, %v715
          %v732 = vpack.c.bf16 %v716, %v716
          %v733 = vpack.c.bf16 %v717, %v717
          %734 = vst [vmem:[%s306] sm:$0xf] %v718
          %735 = vst [vmem:[%s306 + $0x4] sm:$0xf] %v719
          %736 = vst [vmem:[%s306 + $0x8] sm:$0xf] %v720
          %737 = vst [vmem:[%s306 + $0xc] sm:$0xf] %v721
          %738 = vst [vmem:[%s306 + $0x10] sm:$0xf] %v722
          %739 = vst [vmem:[%s306 + $0x14] sm:$0xf] %v723
          %740 = vst [vmem:[%s306 + $0x18] sm:$0xf] %v724
          %741 = vst [vmem:[%s306 + $0x1c] sm:$0xf] %v725
          %742 = vst [vmem:[%s306 + $0x20] sm:$0xf] %v726
          %743 = vst [vmem:[%s306 + $0x24] sm:$0xf] %v727
          %744 = vst [vmem:[%s306 + $0x28] sm:$0xf] %v728
          %745 = vst [vmem:[%s306 + $0x2c] sm:$0xf] %v729
          %746 = vst [vmem:[%s306 + $0x30] sm:$0xf] %v730
          %747 = vst [vmem:[%s306 + $0x34] sm:$0xf] %v731
          %748 = vst [vmem:[%s306 + $0x38] sm:$0xf] %v732
          %749 = vst [vmem:[%s306 + $0x3c] sm:$0xf] %v733
        $region74: #{_lambda_.29} parent=61 // pred_fallthru
          _
        %s750 = smul.u32 16, %s18
        %p751 = scmp.lt.s32.totalorder %s750, 15
        %s752 = scalar_select %p751, %s750, 15
        %p753 = scmp.lt.s32.totalorder %s19, 0
        %s754 = scalar_select %p753, %s19, 0
        %s755 = sadd.s32 %s754, %s752
        %s756 = smul.addr %s755, 4
        %s757 = scalar_lea.vmem %s2, %s756
        // Predicated region
        $region75: #{_lambda_.29} parent=61 // pred_check
          %p758 = pneg %p108
        $region76: #{_lambda_.29} parent=61 // pred_check_branch
          %760 = sbr.rel (%p758) target = $region78
        $region77: #{_lambda_.29} parent=61 // pred_region
          %s761 = smul.u32 16, %s18
        $region78: #{_lambda_.29} parent=61 // pred_fallthru
          _
        // Predicated region
        $region79: #{_lambda_.29} parent=61 // pred_check
          %p762 = pneg %p108
        $region80: #{_lambda_.29} parent=61 // pred_check_branch
          %764 = sbr.rel (%p762) target = $region82
        $region81: #{_lambda_.29} parent=61 // pred_region
          %s765 = smul.u32 16, %s18
          %p766 = scmp.lt.s32.totalorder %s765, 15
          %s767 = scalar_select %p766, %s765, 15
          %p768 = scmp.lt.s32.totalorder %s19, 0
          %s769 = scalar_select %p768, %s19, 0
          %s770 = sadd.s32 %s769, %s767
          %s771 = smul.addr %s770, 4
          %s772 = scalar_lea.vmem %s2, %s771
        $region82: #{_lambda_.29} parent=61 // pred_fallthru
          _
      $region62: #{_lambda_.29} parent=5 // pred_fallthru
        _
      %p773 = scmp.le.s32.totalorder 2, %s8
      // Predicated region
      $region83: #{_lambda_.29} parent=5 // pred_check
        %p774 = pneg %p773
      $region84: #{_lambda_.29} parent=5 // pred_check_branch
        %776 = sbr.rel (%p774) target = $region86
      $region85: #{_lambda_.29} parent=5 // pred_region
        %s777 = ssub.s32 %s8, 2
      $region86: #{_lambda_.29} parent=5 // pred_fallthru
        _
    $region6: #{_lambda_.29} parent=1 // loop_footer
      %s12 = sadd.s32 1, %s8
    $region7: #{_lambda_.29} parent=1 // loop_footer_branch
      %7 = sbr.rel target = $region3
    $region8: #{_lambda_.29} parent=1 // loop_exit
      _

// kernel: _lambda_.32
$region0: #{_lambda_.32}
  #allocation0 [shape = 'u32[]', space=smem, size = 0x4, offset = 0x4, fixed_abs, tag = 'smem constant byte address 0x4 - core index']
  #allocation1 [shape = 'u32[72,128]{1,0:T(1,128)}', space=vmem, size = 0x9000, scoped, tag = 'internal scratch']
  #allocation2 [shape = 'f32[128,128]{1,0:T(8,128)}', space=vmem, size = 0x10000, scoped, tag = 'scratch operand']
  %s0 = inlined_call_operand.vmem [shape: bf16[128,128], index: 0, kind: input, shape index: {}]
  %s1 = inlined_call_operand.vmem [shape: bf16[128,128], index: 1, kind: input, shape index: {}]
  %s2 = inlined_call_operand.vmem [shape: f32[1,128], index: 2, kind: input, shape index: {}]
  %s3 = inlined_call_operand.vmem [shape: f32[1,128], index: 3, kind: input, shape index: {}]
  %s4 = inlined_call_operand.vmem [shape: bf16[128,128], index: 4, kind: output, shape index: {}]
  %s5 = sld [smem:[#allocation0]]
  $region34: #{_lambda_.32} parent=0
    _
  %s7 = ssub.s32 1, %s5
  %s8 = scalar_select 0, %s7, %s5
  // Predicated region
  $region2: #{_lambda_.32} parent=0 // pred_check
    _
  $region3: #{_lambda_.32} parent=0 // pred_check_branch
    %10 = sbr.rel (0) target = $region5
  $region4: #{_lambda_.32} parent=0 // pred_region
    _
  $region5: #{_lambda_.32} parent=0 // pred_fallthru
    _
  // Predicated region
  $region6: #{_lambda_.32} parent=0 // pred_check
    _
  $region7: #{_lambda_.32} parent=0 // pred_check_branch
    %12 = sbr.rel (0) target = $region9
  $region8: #{_lambda_.32} parent=0 // pred_region
    _
  $region9: #{_lambda_.32} parent=0 // pred_fallthru
    _
  // Predicated region
  $region10: #{_lambda_.32} parent=0 // pred_check
    _
  $region11: #{_lambda_.32} parent=0 // pred_check_branch
    %14 = sbr.rel (0) target = $region13
  $region12: #{_lambda_.32} parent=0 // pred_region
    _
  $region13: #{_lambda_.32} parent=0 // pred_fallthru
    _
  // Predicated region
  $region14: #{_lambda_.32} parent=0 // pred_check
    _
  $region15: #{_lambda_.32} parent=0 // pred_check_branch
    %16 = sbr.rel (0) target = $region17
  $region16: #{_lambda_.32} parent=0 // pred_region
    _
  $region17: #{_lambda_.32} parent=0 // pred_fallthru
    _
  %p17 = scmp.eq.s32.totalorder 0, 0
  // Predicated region
  $region18: #{_lambda_.32} parent=0 // pred_check
    %p18 = pneg %p17
  $region19: #{_lambda_.32} parent=0 // pred_check_branch
    %20 = sbr.rel (%p18) target = $region21
  $region20: #{_lambda_.32} parent=0 // pred_region
    %21 = vst [vmem:[#allocation2] sm:$0xff] 0.0
    %22 = vst [vmem:[#allocation2 + $0x8] sm:$0xff] 0.0
    %23 = vst [vmem:[#allocation2 + $0x10] sm:$0xff] 0.0
    %24 = vst [vmem:[#allocation2 + $0x18] sm:$0xff] 0.0
    %25 = vst [vmem:[#allocation2 + $0x20] sm:$0xff] 0.0
    %26 = vst [vmem:[#allocation2 + $0x28] sm:$0xff] 0.0
    %27 = vst [vmem:[#allocation2 + $0x30] sm:$0xff] 0.0
    %28 = vst [vmem:[#allocation2 + $0x38] sm:$0xff] 0.0
    %29 = vst [vmem:[#allocation2 + $0x40] sm:$0xff] 0.0
    %30 = vst [vmem:[#allocation2 + $0x48] sm:$0xff] 0.0
    %31 = vst [vmem:[#allocation2 + $0x50] sm:$0xff] 0.0
    %32 = vst [vmem:[#allocation2 + $0x58] sm:$0xff] 0.0
    %33 = vst [vmem:[#allocation2 + $0x60] sm:$0xff] 0.0
    %34 = vst [vmem:[#allocation2 + $0x68] sm:$0xff] 0.0
    %35 = vst [vmem:[#allocation2 + $0x70] sm:$0xff] 0.0
    %36 = vst [vmem:[#allocation2 + $0x78] sm:$0xff] 0.0
  $region21: #{_lambda_.32} parent=0 // pred_fallthru
    _
  %v37 = vld [vmem:[%s0] sm:$0xf]
  %v38 = vld [vmem:[%s0 + $0x4] sm:$0xf]
  %v39 = vld [vmem:[%s0 + $0x8] sm:$0xf]
  %v40 = vld [vmem:[%s0 + $0xc] sm:$0xf]
  %v41 = vld [vmem:[%s0 + $0x10] sm:$0xf]
  %v42 = vld [vmem:[%s0 + $0x14] sm:$0xf]
  %v43 = vld [vmem:[%s0 + $0x18] sm:$0xf]
  %v44 = vld [vmem:[%s0 + $0x1c] sm:$0xf]
  %v45 = vld [vmem:[%s0 + $0x20] sm:$0xf]
  %v46 = vld [vmem:[%s0 + $0x24] sm:$0xf]
  %v47 = vld [vmem:[%s0 + $0x28] sm:$0xf]
  %v48 = vld [vmem:[%s0 + $0x2c] sm:$0xf]
  %v49 = vld [vmem:[%s0 + $0x30] sm:$0xf]
  %v50 = vld [vmem:[%s0 + $0x34] sm:$0xf]
  %v51 = vld [vmem:[%s0 + $0x38] sm:$0xf]
  %v52 = vld [vmem:[%s0 + $0x3c] sm:$0xf]
  %v53 = vunpack.c.l.bf16 %v37
  %v54 = vunpack.c.l.bf16 %v38
  %v55 = vunpack.c.l.bf16 %v39
  %v56 = vunpack.c.l.bf16 %v40
  %v57 = vunpack.c.l.bf16 %v41
  %v58 = vunpack.c.l.bf16 %v42
  %v59 = vunpack.c.l.bf16 %v43
  %v60 = vunpack.c.l.bf16 %v44
  %v61 = vunpack.c.l.bf16 %v45
  %v62 = vunpack.c.l.bf16 %v46
  %v63 = vunpack.c.l.bf16 %v47
  %v64 = vunpack.c.l.bf16 %v48
  %v65 = vunpack.c.l.bf16 %v49
  %v66 = vunpack.c.l.bf16 %v50
  %v67 = vunpack.c.l.bf16 %v51
  %v68 = vunpack.c.l.bf16 %v52
  %v69 = vld [vmem:[%s2] sm:$0x1]
  %v71 = vperm.slane %v69, 0
  %v73 = vmul.f32 %v53, %v71
  %v74 = vmul.f32 %v54, %v71
  %v75 = vmul.f32 %v55, %v71
  %v76 = vmul.f32 %v56, %v71
  %v77 = vmul.f32 %v57, %v71
  %v78 = vmul.f32 %v58, %v71
  %v79 = vmul.f32 %v59, %v71
  %v80 = vmul.f32 %v60, %v71
  %v81 = vmul.f32 %v61, %v71
  %v82 = vmul.f32 %v62, %v71
  %v83 = vmul.f32 %v63, %v71
  %v84 = vmul.f32 %v64, %v71
  %v85 = vmul.f32 %v65, %v71
  %v86 = vmul.f32 %v66, %v71
  %v87 = vmul.f32 %v67, %v71
  %v88 = vmul.f32 %v68, %v71
  %v89 = vld [vmem:[%s3] sm:$0x1]
  %v91 = vperm.slane %v89, 0
  %v93 = vadd.f32 %v73, %v91
  %v94 = vadd.f32 %v74, %v91
  %v95 = vadd.f32 %v75, %v91
  %v96 = vadd.f32 %v76, %v91
  %v97 = vadd.f32 %v77, %v91
  %v98 = vadd.f32 %v78, %v91
  %v99 = vadd.f32 %v79, %v91
  %v100 = vadd.f32 %v80, %v91
  %v101 = vadd.f32 %v81, %v91
  %v102 = vadd.f32 %v82, %v91
  %v103 = vadd.f32 %v83, %v91
  %v104 = vadd.f32 %v84, %v91
  %v105 = vadd.f32 %v85, %v91
  %v106 = vadd.f32 %v86, %v91
  %v107 = vadd.f32 %v87, %v91
  %v108 = vadd.f32 %v88, %v91
  %v109 = vmax.f32 %v93, 0.0
  %v110 = vmax.f32 %v94, 0.0
  %v111 = vmax.f32 %v95, 0.0
  %v112 = vmax.f32 %v96, 0.0
  %v113 = vmax.f32 %v97, 0.0
  %v114 = vmax.f32 %v98, 0.0
  %v115 = vmax.f32 %v99, 0.0
  %v116 = vmax.f32 %v100, 0.0
  %v117 = vmax.f32 %v101, 0.0
  %v118 = vmax.f32 %v102, 0.0
  %v119 = vmax.f32 %v103, 0.0
  %v120 = vmax.f32 %v104, 0.0
  %v121 = vmax.f32 %v105, 0.0
  %v122 = vmax.f32 %v106, 0.0
  %v123 = vmax.f32 %v107, 0.0
  %v124 = vmax.f32 %v108, 0.0
  %v125 = vpack.c.bf16 %v110, %v109
  %v126 = vpack.c.bf16 %v112, %v111
  %v127 = vpack.c.bf16 %v114, %v113
  %v128 = vpack.c.bf16 %v116, %v115
  %v129 = vpack.c.bf16 %v118, %v117
  %v130 = vpack.c.bf16 %v120, %v119
  %v131 = vpack.c.bf16 %v122, %v121
  %v132 = vpack.c.bf16 %v124, %v123
  %v133 = vld [vmem:[#allocation2] sm:$0xff]
  %v134 = vld [vmem:[#allocation2 + $0x8] sm:$0xff]
  %v135 = vld [vmem:[#allocation2 + $0x10] sm:$0xff]
  %v136 = vld [vmem:[#allocation2 + $0x18] sm:$0xff]
  %v137 = vld [vmem:[#allocation2 + $0x20] sm:$0xff]
  %v138 = vld [vmem:[#allocation2 + $0x28] sm:$0xff]
  %v139 = vld [vmem:[#allocation2 + $0x30] sm:$0xff]
  %v140 = vld [vmem:[#allocation2 + $0x38] sm:$0xff]
  %v141 = vld [vmem:[#allocation2 + $0x40] sm:$0xff]
  %v142 = vld [vmem:[#allocation2 + $0x48] sm:$0xff]
  %v143 = vld [vmem:[#allocation2 + $0x50] sm:$0xff]
  %v144 = vld [vmem:[#allocation2 + $0x58] sm:$0xff]
  %v145 = vld [vmem:[#allocation2 + $0x60] sm:$0xff]
  %v146 = vld [vmem:[#allocation2 + $0x68] sm:$0xff]
  %v147 = vld [vmem:[#allocation2 + $0x70] sm:$0xff]
  %v148 = vld [vmem:[#allocation2 + $0x78] sm:$0xff]
  %v149 = vld [vmem:[%s1] sm:$0xf]
  %v150 = vld [vmem:[%s1 + $0x4] sm:$0xf]
  %v151 = vld [vmem:[%s1 + $0x8] sm:$0xf]
  %v152 = vld [vmem:[%s1 + $0xc] sm:$0xf]
  %v153 = vld [vmem:[%s1 + $0x10] sm:$0xf]
  %v154 = vld [vmem:[%s1 + $0x14] sm:$0xf]
  %v155 = vld [vmem:[%s1 + $0x18] sm:$0xf]
  %v156 = vld [vmem:[%s1 + $0x1c] sm:$0xf]
  %v157 = vld [vmem:[%s1 + $0x20] sm:$0xf]
  %v158 = vld [vmem:[%s1 + $0x24] sm:$0xf]
  %v159 = vld [vmem:[%s1 + $0x28] sm:$0xf]
  %v160 = vld [vmem:[%s1 + $0x2c] sm:$0xf]
  %v161 = vld [vmem:[%s1 + $0x30] sm:$0xf]
  %v162 = vld [vmem:[%s1 + $0x34] sm:$0xf]
  %v163 = vld [vmem:[%s1 + $0x38] sm:$0xf]
  %v164 = vld [vmem:[%s1 + $0x3c] sm:$0xf]
  %v181 = vunpack.c.l.b16 %v149
  %v182 = vunpack.c.l.b16 %v150
  %v183 = vunpack.c.l.b16 %v151
  %v184 = vunpack.c.l.b16 %v152
  %v185 = vunpack.c.l.b16 %v153
  %v186 = vunpack.c.l.b16 %v154
  %v187 = vunpack.c.l.b16 %v155
  %v188 = vunpack.c.l.b16 %v156
  %v189 = vunpack.c.l.b16 %v157
  %v190 = vunpack.c.l.b16 %v158
  %v191 = vunpack.c.l.b16 %v159
  %v192 = vunpack.c.l.b16 %v160
  %v193 = vunpack.c.l.b16 %v161
  %v194 = vunpack.c.l.b16 %v162
  %v195 = vunpack.c.l.b16 %v163
  %v196 = vunpack.c.l.b16 %v164
  %v197 = vpack.c.b16 %v182, %v181
  %v198 = vpack.c.b16 %v184, %v183
  %v199 = vpack.c.b16 %v186, %v185
  %v200 = vpack.c.b16 %v188, %v187
  %v201 = vpack.c.b16 %v190, %v189
  %v202 = vpack.c.b16 %v192, %v191
  %v203 = vpack.c.b16 %v194, %v193
  %v204 = vpack.c.b16 %v196, %v195
  %213 = vmatpush.bf16.msra.mxu0 %v204
  %214 = vmatpush.bf16.msra.mxu0 %v203
  %215 = vmatpush.bf16.msra.mxu0 %v202
  %216 = vmatpush.bf16.msra.mxu0 %v201
  %217 = vmatpush.bf16.msra.mxu0 %v200
  %218 = vmatpush.bf16.msra.mxu0 %v199
  %219 = vmatpush.bf16.msra.mxu0 %v198
  %220 = vmatpush.bf16.msra.mxu0 %v197
  %221 = vmatmul.bf16.gmra.mxu0 %v125
  %v222 = vpop.f32.mrf.mxu0
  %v223 = vadd.f32 0.0, %v222
  %v224 = vpop.f32.mrf.mxu0
  %v225 = vadd.f32 0.0, %v224
  %226 = vmatmul.bf16.gmra.mxu0 %v126
  %v227 = vpop.f32.mrf.mxu0
  %v228 = vadd.f32 0.0, %v227
  %v229 = vpop.f32.mrf.mxu0
  %v230 = vadd.f32 0.0, %v229
  %231 = vmatmul.bf16.gmra.mxu0 %v127
  %v232 = vpop.f32.mrf.mxu0
  %v233 = vadd.f32 0.0, %v232
  %v234 = vpop.f32.mrf.mxu0
  %v235 = vadd.f32 0.0, %v234
  %236 = vmatmul.bf16.gmra.mxu0 %v128
  %v237 = vpop.f32.mrf.mxu0
  %v238 = vadd.f32 0.0, %v237
  %v239 = vpop.f32.mrf.mxu0
  %v240 = vadd.f32 0.0, %v239
  %241 = vmatmul.bf16.gmra.mxu0 %v129
  %v242 = vpop.f32.mrf.mxu0
  %v243 = vadd.f32 0.0, %v242
  %v244 = vpop.f32.mrf.mxu0
  %v245 = vadd.f32 0.0, %v244
  %246 = vmatmul.bf16.gmra.mxu0 %v130
  %v247 = vpop.f32.mrf.mxu0
  %v248 = vadd.f32 0.0, %v247
  %v249 = vpop.f32.mrf.mxu0
  %v250 = vadd.f32 0.0, %v249
  %251 = vmatmul.bf16.gmra.mxu0 %v131
  %v252 = vpop.f32.mrf.mxu0
  %v253 = vadd.f32 0.0, %v252
  %v254 = vpop.f32.mrf.mxu0
  %v255 = vadd.f32 0.0, %v254
  %256 = vmatmul.bf16.gmra.mxu0 %v132
  %v257 = vpop.f32.mrf.mxu0
  %v258 = vadd.f32 0.0, %v257
  %v259 = vpop.f32.mrf.mxu0
  %v260 = vadd.f32 0.0, %v259
  %261 = vdwg.mxu0
  %v262 = vadd.f32 %v133, %v223
  %v263 = vadd.f32 %v134, %v225
  %v264 = vadd.f32 %v135, %v228
  %v265 = vadd.f32 %v136, %v230
  %v266 = vadd.f32 %v137, %v233
  %v267 = vadd.f32 %v138, %v235
  %v268 = vadd.f32 %v139, %v238
  %v269 = vadd.f32 %v140, %v240
  %v270 = vadd.f32 %v141, %v243
  %v271 = vadd.f32 %v142, %v245
  %v272 = vadd.f32 %v143, %v248
  %v273 = vadd.f32 %v144, %v250
  %v274 = vadd.f32 %v145, %v253
  %v275 = vadd.f32 %v146, %v255
  %v276 = vadd.f32 %v147, %v258
  %v277 = vadd.f32 %v148, %v260
  %278 = vst [vmem:[#allocation2] sm:$0xff] %v262
  %279 = vst [vmem:[#allocation2 + $0x8] sm:$0xff] %v263
  %280 = vst [vmem:[#allocation2 + $0x10] sm:$0xff] %v264
  %281 = vst [vmem:[#allocation2 + $0x18] sm:$0xff] %v265
  %282 = vst [vmem:[#allocation2 + $0x20] sm:$0xff] %v266
  %283 = vst [vmem:[#allocation2 + $0x28] sm:$0xff] %v267
  %284 = vst [vmem:[#allocation2 + $0x30] sm:$0xff] %v268
  %285 = vst [vmem:[#allocation2 + $0x38] sm:$0xff] %v269
  %286 = vst [vmem:[#allocation2 + $0x40] sm:$0xff] %v270
  %287 = vst [vmem:[#allocation2 + $0x48] sm:$0xff] %v271
  %288 = vst [vmem:[#allocation2 + $0x50] sm:$0xff] %v272
  %289 = vst [vmem:[#allocation2 + $0x58] sm:$0xff] %v273
  %290 = vst [vmem:[#allocation2 + $0x60] sm:$0xff] %v274
  %291 = vst [vmem:[#allocation2 + $0x68] sm:$0xff] %v275
  %292 = vst [vmem:[#allocation2 + $0x70] sm:$0xff] %v276
  %293 = vst [vmem:[#allocation2 + $0x78] sm:$0xff] %v277
  // Predicated region
  $region22: #{_lambda_.32} parent=0 // pred_check
    %p294 = pneg %p17
  $region23: #{_lambda_.32} parent=0 // pred_check_branch
    %296 = sbr.rel (%p294) target = $region25
  $region24: #{_lambda_.32} parent=0 // pred_region
    %v297 = vld [vmem:[#allocation2] sm:$0xff]
    %v298 = vld [vmem:[#allocation2 + $0x8] sm:$0xff]
    %v299 = vld [vmem:[#allocation2 + $0x10] sm:$0xff]
    %v300 = vld [vmem:[#allocation2 + $0x18] sm:$0xff]
    %v301 = vld [vmem:[#allocation2 + $0x20] sm:$0xff]
    %v302 = vld [vmem:[#allocation2 + $0x28] sm:$0xff]
    %v303 = vld [vmem:[#allocation2 + $0x30] sm:$0xff]
    %v304 = vld [vmem:[#allocation2 + $0x38] sm:$0xff]
    %v305 = vld [vmem:[#allocation2 + $0x40] sm:$0xff]
    %v306 = vld [vmem:[#allocation2 + $0x48] sm:$0xff]
    %v307 = vld [vmem:[#allocation2 + $0x50] sm:$0xff]
    %v308 = vld [vmem:[#allocation2 + $0x58] sm:$0xff]
    %v309 = vld [vmem:[#allocation2 + $0x60] sm:$0xff]
    %v310 = vld [vmem:[#allocation2 + $0x68] sm:$0xff]
    %v311 = vld [vmem:[#allocation2 + $0x70] sm:$0xff]
    %v312 = vld [vmem:[#allocation2 + $0x78] sm:$0xff]
    %v313 = vpack.c.bf16 %v297, %v297
    %v314 = vpack.c.bf16 %v298, %v298
    %v315 = vpack.c.bf16 %v299, %v299
    %v316 = vpack.c.bf16 %v300, %v300
    %v317 = vpack.c.bf16 %v301, %v301
    %v318 = vpack.c.bf16 %v302, %v302
    %v319 = vpack.c.bf16 %v303, %v303
    %v320 = vpack.c.bf16 %v304, %v304
    %v321 = vpack.c.bf16 %v305, %v305
    %v322 = vpack.c.bf16 %v306, %v306
    %v323 = vpack.c.bf16 %v307, %v307
    %v324 = vpack.c.bf16 %v308, %v308
    %v325 = vpack.c.bf16 %v309, %v309
    %v326 = vpack.c.bf16 %v310, %v310
    %v327 = vpack.c.bf16 %v311, %v311
    %v328 = vpack.c.bf16 %v312, %v312
    %329 = vst [vmem:[%s4] sm:$0xf] %v313
    %330 = vst [vmem:[%s4 + $0x4] sm:$0xf] %v314
    %331 = vst [vmem:[%s4 + $0x8] sm:$0xf] %v315
    %332 = vst [vmem:[%s4 + $0xc] sm:$0xf] %v316
    %333 = vst [vmem:[%s4 + $0x10] sm:$0xf] %v317
    %334 = vst [vmem:[%s4 + $0x14] sm:$0xf] %v318
    %335 = vst [vmem:[%s4 + $0x18] sm:$0xf] %v319
    %336 = vst [vmem:[%s4 + $0x1c] sm:$0xf] %v320
    %337 = vst [vmem:[%s4 + $0x20] sm:$0xf] %v321
    %338 = vst [vmem:[%s4 + $0x24] sm:$0xf] %v322
    %339 = vst [vmem:[%s4 + $0x28] sm:$0xf] %v323
    %340 = vst [vmem:[%s4 + $0x2c] sm:$0xf] %v324
    %341 = vst [vmem:[%s4 + $0x30] sm:$0xf] %v325
    %342 = vst [vmem:[%s4 + $0x34] sm:$0xf] %v326
    %343 = vst [vmem:[%s4 + $0x38] sm:$0xf] %v327
    %344 = vst [vmem:[%s4 + $0x3c] sm:$0xf] %v328
  $region25: #{_lambda_.32} parent=0 // pred_fallthru
    _
  // Predicated region
  $region26: #{_lambda_.32} parent=0 // pred_check
    _
  $region27: #{_lambda_.32} parent=0 // pred_check_branch
    %346 = sbr.rel (0) target = $region29
  $region28: #{_lambda_.32} parent=0 // pred_region
    _
  $region29: #{_lambda_.32} parent=0 // pred_fallthru
    _
  // Predicated region
  $region30: #{_lambda_.32} parent=0 // pred_check
    _
  $region31: #{_lambda_.32} parent=0 // pred_check_branch
    %348 = sbr.rel (0) target = $region33
  $region32: #{_lambda_.32} parent=0 // pred_region
    _
  $region33: #{_lambda_.32} parent=0 // pred_fallthru
    _

// kernel: _lambda_.33
$region0: #{_lambda_.33}
  #allocation0 [shape = 'u32[]', space=smem, size = 0x4, offset = 0x4, fixed_abs, tag = 'smem constant byte address 0x4 - core index']
  #allocation1 [shape = 'u32[72,128]{1,0:T(1,128)}', space=vmem, size = 0x9000, scoped, tag = 'internal scratch']
  %s0 = inlined_call_operand.vmem [shape: bf16[4,32,16], index: 0, kind: input, shape index: {}]
  %s1 = inlined_call_operand.vmem [shape: bf16[32,16], index: 1, kind: output, shape index: {}]
  %s2 = sld [smem:[#allocation0]]
  $region14: #{_lambda_.33} parent=0
    _
  %s4 = ssub.s32 1, %s2
  %s5 = scalar_select 0, %s4, %s2
  // Predicated region
  $region2: #{_lambda_.33} parent=0 // pred_check
    _
  $region3: #{_lambda_.33} parent=0 // pred_check_branch
    %7 = sbr.rel (0) target = $region5
  $region4: #{_lambda_.33} parent=0 // pred_region
    _
  $region5: #{_lambda_.33} parent=0 // pred_fallthru
    _
  %v8 = vld [vmem:[%s0] sm:$0xf]
  %v9 = vld [vmem:[%s0 + $0x4] sm:$0xf]
  %v10 = vld [vmem:[%s0 + $0x8] sm:$0xf]
  %v11 = vld [vmem:[%s0 + $0xc] sm:$0xf]
  %v12 = vld [vmem:[%s0 + $0x10] sm:$0xf]
  %v13 = vld [vmem:[%s0 + $0x14] sm:$0xf]
  %v14 = vld [vmem:[%s0 + $0x18] sm:$0xf]
  %v15 = vld [vmem:[%s0 + $0x1c] sm:$0xf]
  %v16 = vld [vmem:[%s0 + $0x20] sm:$0xf]
  %v17 = vld [vmem:[%s0 + $0x24] sm:$0xf]
  %v18 = vld [vmem:[%s0 + $0x28] sm:$0xf]
  %v19 = vld [vmem:[%s0 + $0x2c] sm:$0xf]
  %v20 = vld [vmem:[%s0 + $0x30] sm:$0xf]
  %v21 = vld [vmem:[%s0 + $0x34] sm:$0xf]
  %v22 = vld [vmem:[%s0 + $0x38] sm:$0xf]
  %v23 = vld [vmem:[%s0 + $0x3c] sm:$0xf]
  %v24 = vunpack.c.l.bf16 %v8
  %v25 = vunpack.c.l.bf16 %v9
  %v26 = vunpack.c.l.bf16 %v10
  %v27 = vunpack.c.l.bf16 %v11
  %v28 = vunpack.c.l.bf16 %v12
  %v29 = vunpack.c.l.bf16 %v13
  %v30 = vunpack.c.l.bf16 %v14
  %v31 = vunpack.c.l.bf16 %v15
  %v32 = vunpack.c.l.bf16 %v16
  %v33 = vunpack.c.l.bf16 %v17
  %v34 = vunpack.c.l.bf16 %v18
  %v35 = vunpack.c.l.bf16 %v19
  %v36 = vunpack.c.l.bf16 %v20
  %v37 = vunpack.c.l.bf16 %v21
  %v38 = vunpack.c.l.bf16 %v22
  %v39 = vunpack.c.l.bf16 %v23
  %vm40 = vcmask 130048
  %v41 = vsel %vm40, %v24, 0.0
  %v42 = vsel %vm40, %v28, 0.0
  %v43 = vadd.f32 %v41, %v42
  %v44 = vsel %vm40, %v32, 0.0
  %v45 = vadd.f32 %v43, %v44
  %v46 = vsel %vm40, %v36, 0.0
  %v47 = vadd.f32 %v45, %v46
  %v48 = vsel %vm40, %v25, 0.0
  %v49 = vsel %vm40, %v29, 0.0
  %v50 = vadd.f32 %v48, %v49
  %v51 = vsel %vm40, %v33, 0.0
  %v52 = vadd.f32 %v50, %v51
  %v53 = vsel %vm40, %v37, 0.0
  %v54 = vadd.f32 %v52, %v53
  %v55 = vsel %vm40, %v26, 0.0
  %v56 = vsel %vm40, %v30, 0.0
  %v57 = vadd.f32 %v55, %v56
  %v58 = vsel %vm40, %v34, 0.0
  %v59 = vadd.f32 %v57, %v58
  %v60 = vsel %vm40, %v38, 0.0
  %v61 = vadd.f32 %v59, %v60
  %v62 = vsel %vm40, %v27, 0.0
  %v63 = vsel %vm40, %v31, 0.0
  %v64 = vadd.f32 %v62, %v63
  %v65 = vsel %vm40, %v35, 0.0
  %v66 = vadd.f32 %v64, %v65
  %v67 = vsel %vm40, %v39, 0.0
  %v68 = vadd.f32 %v66, %v67
  %v69 = vrcp.pop 4.0
  %v70 = vmul.f32 4.0, %v69
  %v71 = vsub.f32 1.0, %v70
  %v72 = vmul.f32 %v69, %v71
  %v73 = vadd.f32 %v69, %v72
  %vm74 = vweird.f32 %v69
  %v75 = vsel %vm74, %v69, %v73
  %v76 = vmul.f32 %v47, %v75
  %v77 = vmul.f32 %v54, %v75
  %v78 = vmul.f32 %v61, %v75
  %v79 = vmul.f32 %v68, %v75
  %v80 = vpack.c.bf16 %v76, %v76
  %v81 = vpack.c.bf16 %v77, %v77
  %v82 = vpack.c.bf16 %v78, %v78
  %v83 = vpack.c.bf16 %v79, %v79
  %vm84 = vcmask 125952
  %85 = vst.msk [vmem:[%s1] sm:$0xf] %vm84, %v80
  %86 = vst.msk [vmem:[%s1 + $0x4] sm:$0xf] %vm84, %v81
  %87 = vst.msk [vmem:[%s1 + $0x8] sm:$0xf] %vm84, %v82
  %88 = vst.msk [vmem:[%s1 + $0xc] sm:$0xf] %vm84, %v83
  // Predicated region
  $region6: #{_lambda_.33} parent=0 // pred_check
    _
  $region7: #{_lambda_.33} parent=0 // pred_check_branch
    %90 = sbr.rel (0) target = $region9
  $region8: #{_lambda_.33} parent=0 // pred_region
    _
  $region9: #{_lambda_.33} parent=0 // pred_fallthru
    _
  // Predicated region
  $region10: #{_lambda_.33} parent=0 // pred_check
    _
  $region11: #{_lambda_.33} parent=0 // pred_check_branch
    %92 = sbr.rel (0) target = $region13
  $region12: #{_lambda_.33} parent=0 // pred_region
    _
  $region13: #{_lambda_.33} parent=0 // pred_fallthru
    _

// kernel: _lambda_.34
$region0: #{_lambda_.34}
  #allocation0 [shape = 'u32[]', space=smem, size = 0x4, offset = 0x4, fixed_abs, tag = 'smem constant byte address 0x4 - core index']
  #allocation1 [shape = 'u32[72,128]{1,0:T(1,128)}', space=vmem, size = 0x9000, scoped, tag = 'internal scratch']
  #allocation2 [shape = 'f32[32,128]{1,0:T(8,128)}', space=vmem, size = 0x4000, scoped, tag = 'scratch operand']
  %s0 = inlined_call_operand.vmem [shape: bf16[32,128], index: 0, kind: input, shape index: {}]
  %s1 = inlined_call_operand.vmem [shape: bf16[128,128], index: 1, kind: input, shape index: {}]
  %s2 = inlined_call_operand.vmem [shape: f32[1,128], index: 2, kind: input, shape index: {}]
  %s3 = inlined_call_operand.vmem [shape: f32[1,128], index: 3, kind: input, shape index: {}]
  %s4 = inlined_call_operand.vmem [shape: f32[1,128], index: 4, kind: input, shape index: {}]
  %s5 = inlined_call_operand.vmem [shape: f32[1,128], index: 5, kind: input, shape index: {}]
  %s6 = inlined_call_operand.vmem [shape: bf16[32,128], index: 6, kind: output, shape index: {}]
  %s7 = sld [smem:[#allocation0]]
  $region42: #{_lambda_.34} parent=0
    _
  %s9 = ssub.s32 1, %s7
  %s10 = scalar_select 0, %s9, %s7
  // Predicated region
  $region2: #{_lambda_.34} parent=0 // pred_check
    _
  $region3: #{_lambda_.34} parent=0 // pred_check_branch
    %12 = sbr.rel (0) target = $region5
  $region4: #{_lambda_.34} parent=0 // pred_region
    _
  $region5: #{_lambda_.34} parent=0 // pred_fallthru
    _
  // Predicated region
  $region6: #{_lambda_.34} parent=0 // pred_check
    _
  $region7: #{_lambda_.34} parent=0 // pred_check_branch
    %14 = sbr.rel (0) target = $region9
  $region8: #{_lambda_.34} parent=0 // pred_region
    _
  $region9: #{_lambda_.34} parent=0 // pred_fallthru
    _
  // Predicated region
  $region10: #{_lambda_.34} parent=0 // pred_check
    _
  $region11: #{_lambda_.34} parent=0 // pred_check_branch
    %16 = sbr.rel (0) target = $region13
  $region12: #{_lambda_.34} parent=0 // pred_region
    _
  $region13: #{_lambda_.34} parent=0 // pred_fallthru
    _
  // Predicated region
  $region14: #{_lambda_.34} parent=0 // pred_check
    _
  $region15: #{_lambda_.34} parent=0 // pred_check_branch
    %18 = sbr.rel (0) target = $region17
  $region16: #{_lambda_.34} parent=0 // pred_region
    _
  $region17: #{_lambda_.34} parent=0 // pred_fallthru
    _
  // Predicated region
  $region18: #{_lambda_.34} parent=0 // pred_check
    _
  $region19: #{_lambda_.34} parent=0 // pred_check_branch
    %20 = sbr.rel (0) target = $region21
  $region20: #{_lambda_.34} parent=0 // pred_region
    _
  $region21: #{_lambda_.34} parent=0 // pred_fallthru
    _
  // Predicated region
  $region22: #{_lambda_.34} parent=0 // pred_check
    _
  $region23: #{_lambda_.34} parent=0 // pred_check_branch
    %22 = sbr.rel (0) target = $region25
  $region24: #{_lambda_.34} parent=0 // pred_region
    _
  $region25: #{_lambda_.34} parent=0 // pred_fallthru
    _
  %p23 = scmp.eq.s32.totalorder 0, 0
  // Predicated region
  $region26: #{_lambda_.34} parent=0 // pred_check
    %p24 = pneg %p23
  $region27: #{_lambda_.34} parent=0 // pred_check_branch
    %26 = sbr.rel (%p24) target = $region29
  $region28: #{_lambda_.34} parent=0 // pred_region
    %27 = vst [vmem:[#allocation2] sm:$0xff] 0.0
    %28 = vst [vmem:[#allocation2 + $0x8] sm:$0xff] 0.0
    %29 = vst [vmem:[#allocation2 + $0x10] sm:$0xff] 0.0
    %30 = vst [vmem:[#allocation2 + $0x18] sm:$0xff] 0.0
  $region29: #{_lambda_.34} parent=0 // pred_fallthru
    _
  %v31 = vld [vmem:[%s0] sm:$0xf]
  %v32 = vld [vmem:[%s0 + $0x4] sm:$0xf]
  %v33 = vld [vmem:[%s0 + $0x8] sm:$0xf]
  %v34 = vld [vmem:[%s0 + $0xc] sm:$0xf]
  %v35 = vunpack.c.l.bf16 %v31
  %v36 = vunpack.c.l.bf16 %v32
  %v37 = vunpack.c.l.bf16 %v33
  %v38 = vunpack.c.l.bf16 %v34
  %v39 = vld [vmem:[%s2] sm:$0x1]
  %v41 = vperm.slane %v39, 0
  %v43 = vmul.f32 %v35, %v41
  %v44 = vmul.f32 %v36, %v41
  %v45 = vmul.f32 %v37, %v41
  %v46 = vmul.f32 %v38, %v41
  %v47 = vld [vmem:[%s3] sm:$0x1]
  %v49 = vperm.slane %v47, 0
  %v51 = vadd.f32 %v43, %v49
  %v52 = vadd.f32 %v44, %v49
  %v53 = vadd.f32 %v45, %v49
  %v54 = vadd.f32 %v46, %v49
  %v55 = vmax.f32 %v51, 0.0
  %v56 = vmax.f32 %v52, 0.0
  %v57 = vmax.f32 %v53, 0.0
  %v58 = vmax.f32 %v54, 0.0
  %v59 = vpack.c.bf16 %v56, %v55
  %v60 = vpack.c.bf16 %v58, %v57
  %v61 = vld [vmem:[#allocation2] sm:$0xff]
  %v62 = vld [vmem:[#allocation2 + $0x8] sm:$0xff]
  %v63 = vld [vmem:[#allocation2 + $0x10] sm:$0xff]
  %v64 = vld [vmem:[#allocation2 + $0x18] sm:$0xff]
  %v65 = vld [vmem:[%s1] sm:$0xf]
  %v66 = vld [vmem:[%s1 + $0x4] sm:$0xf]
  %v67 = vld [vmem:[%s1 + $0x8] sm:$0xf]
  %v68 = vld [vmem:[%s1 + $0xc] sm:$0xf]
  %v69 = vld [vmem:[%s1 + $0x10] sm:$0xf]
  %v70 = vld [vmem:[%s1 + $0x14] sm:$0xf]
  %v71 = vld [vmem:[%s1 + $0x18] sm:$0xf]
  %v72 = vld [vmem:[%s1 + $0x1c] sm:$0xf]
  %v73 = vld [vmem:[%s1 + $0x20] sm:$0xf]
  %v74 = vld [vmem:[%s1 + $0x24] sm:$0xf]
  %v75 = vld [vmem:[%s1 + $0x28] sm:$0xf]
  %v76 = vld [vmem:[%s1 + $0x2c] sm:$0xf]
  %v77 = vld [vmem:[%s1 + $0x30] sm:$0xf]
  %v78 = vld [vmem:[%s1 + $0x34] sm:$0xf]
  %v79 = vld [vmem:[%s1 + $0x38] sm:$0xf]
  %v80 = vld [vmem:[%s1 + $0x3c] sm:$0xf]
  %v97 = vunpack.c.l.b16 %v65
  %v98 = vunpack.c.l.b16 %v66
  %v99 = vunpack.c.l.b16 %v67
  %v100 = vunpack.c.l.b16 %v68
  %v101 = vunpack.c.l.b16 %v69
  %v102 = vunpack.c.l.b16 %v70
  %v103 = vunpack.c.l.b16 %v71
  %v104 = vunpack.c.l.b16 %v72
  %v105 = vunpack.c.l.b16 %v73
  %v106 = vunpack.c.l.b16 %v74
  %v107 = vunpack.c.l.b16 %v75
  %v108 = vunpack.c.l.b16 %v76
  %v109 = vunpack.c.l.b16 %v77
  %v110 = vunpack.c.l.b16 %v78
  %v111 = vunpack.c.l.b16 %v79
  %v112 = vunpack.c.l.b16 %v80
  %v113 = vpack.c.b16 %v98, %v97
  %v114 = vpack.c.b16 %v100, %v99
  %v115 = vpack.c.b16 %v102, %v101
  %v116 = vpack.c.b16 %v104, %v103
  %v117 = vpack.c.b16 %v106, %v105
  %v118 = vpack.c.b16 %v108, %v107
  %v119 = vpack.c.b16 %v110, %v109
  %v120 = vpack.c.b16 %v112, %v111
  %129 = vmatpush.bf16.msra.mxu0 %v120
  %130 = vmatpush.bf16.msra.mxu0 %v119
  %131 = vmatpush.bf16.msra.mxu0 %v118
  %132 = vmatpush.bf16.msra.mxu0 %v117
  %133 = vmatpush.bf16.msra.mxu0 %v116
  %134 = vmatpush.bf16.msra.mxu0 %v115
  %135 = vmatpush.bf16.msra.mxu0 %v114
  %136 = vmatpush.bf16.msra.mxu0 %v113
  %137 = vmatmul.bf16.gmra.mxu0 %v59
  %v138 = vpop.f32.mrf.mxu0
  %v139 = vadd.f32 0.0, %v138
  %v140 = vpop.f32.mrf.mxu0
  %v141 = vadd.f32 0.0, %v140
  %142 = vmatmul.bf16.gmra.mxu0 %v60
  %v143 = vpop.f32.mrf.mxu0
  %v144 = vadd.f32 0.0, %v143
  %v145 = vpop.f32.mrf.mxu0
  %v146 = vadd.f32 0.0, %v145
  %147 = vdwg.mxu0
  %v148 = vadd.f32 %v61, %v139
  %v149 = vadd.f32 %v62, %v141
  %v150 = vadd.f32 %v63, %v144
  %v151 = vadd.f32 %v64, %v146
  %152 = vst [vmem:[#allocation2] sm:$0xff] %v148
  %153 = vst [vmem:[#allocation2 + $0x8] sm:$0xff] %v149
  %154 = vst [vmem:[#allocation2 + $0x10] sm:$0xff] %v150
  %155 = vst [vmem:[#allocation2 + $0x18] sm:$0xff] %v151
  // Predicated region
  $region30: #{_lambda_.34} parent=0 // pred_check
    %p156 = pneg %p23
  $region31: #{_lambda_.34} parent=0 // pred_check_branch
    %158 = sbr.rel (%p156) target = $region33
  $region32: #{_lambda_.34} parent=0 // pred_region
    %v159 = vld [vmem:[#allocation2] sm:$0xff]
    %v160 = vld [vmem:[#allocation2 + $0x8] sm:$0xff]
    %v161 = vld [vmem:[#allocation2 + $0x10] sm:$0xff]
    %v162 = vld [vmem:[#allocation2 + $0x18] sm:$0xff]
    %v163 = vld [vmem:[%s4] sm:$0x1]
    %v165 = vperm.slane %v163, 0
    %v167 = vmul.f32 %v159, %v165
    %v168 = vmul.f32 %v160, %v165
    %v169 = vmul.f32 %v161, %v165
    %v170 = vmul.f32 %v162, %v165
    %v171 = vld [vmem:[%s5] sm:$0x1]
    %v173 = vperm.slane %v171, 0
    %v175 = vadd.f32 %v167, %v173
    %v176 = vadd.f32 %v168, %v173
    %v177 = vadd.f32 %v169, %v173
    %v178 = vadd.f32 %v170, %v173
    %v179 = vmax.f32 %v175, 0.0
    %v180 = vmax.f32 %v176, 0.0
    %v181 = vmax.f32 %v177, 0.0
    %v182 = vmax.f32 %v178, 0.0
    %v183 = vpack.c.bf16 %v179, %v179
    %v184 = vpack.c.bf16 %v180, %v180
    %v185 = vpack.c.bf16 %v181, %v181
    %v186 = vpack.c.bf16 %v182, %v182
    %187 = vst [vmem:[%s6] sm:$0xf] %v183
    %188 = vst [vmem:[%s6 + $0x4] sm:$0xf] %v184
    %189 = vst [vmem:[%s6 + $0x8] sm:$0xf] %v185
    %190 = vst [vmem:[%s6 + $0xc] sm:$0xf] %v186
  $region33: #{_lambda_.34} parent=0 // pred_fallthru
    _
  // Predicated region
  $region34: #{_lambda_.34} parent=0 // pred_check
    _
  $region35: #{_lambda_.34} parent=0 // pred_check_branch
    %192 = sbr.rel (0) target = $region37
  $region36: #{_lambda_.34} parent=0 // pred_region
    _
  $region37: #{_lambda_.34} parent=0 // pred_fallthru
    _
  // Predicated region
  $region38: #{_lambda_.34} parent=0 // pred_check
    _
  $region39: #{_lambda_.34} parent=0 // pred_check_branch
    %194 = sbr.rel (0) target = $region41
  $region40: #{_lambda_.34} parent=0 // pred_region
    _
  $region41: #{_lambda_.34} parent=0 // pred_fallthru
    _

// kernel: _lambda_.35
$region0: #{_lambda_.35}
  #allocation0 [shape = 'u32[]', space=smem, size = 0x4, offset = 0x4, fixed_abs, tag = 'smem constant byte address 0x4 - core index']
  #allocation1 [shape = 'u32[72,128]{1,0:T(1,128)}', space=vmem, size = 0x9000, scoped, tag = 'internal scratch']
  #allocation2 [shape = 'f32[32,128]{1,0:T(8,128)}', space=vmem, size = 0x4000, scoped, tag = 'scratch operand']
  %s0 = inlined_call_operand.vmem [shape: bf16[32,512], index: 0, kind: input, shape index: {}]
  %s1 = inlined_call_operand.vmem [shape: bf16[512,128], index: 1, kind: input, shape index: {}]
  %s2 = inlined_call_operand.vmem [shape: bf16[32,128], index: 2, kind: output, shape index: {}]
  %s3 = sld [smem:[#allocation0]]
  $region87: #{_lambda_.35} parent=0
    _
  %s5 = ssub.s32 1, %s3
  %s6 = scalar_select 0, %s5, %s3
  $region1: #{_lambda_.35} parent=0
    #allocation3 [shape = 'u8[32768]{0}', space=vmem, size = 0x8000, scoped, tag = 'input window, operand 0']
    loop: start=0, step=1, limit=4
    $region2: #{_lambda_.35} parent=1 // loop_pre_header
      _
    $region3: #{_lambda_.35} parent=1 // loop_header
      %s8 = sphi 0, %s12
      %p9 = scmp.ge.s32.totalorder %s8, 4
      %s15 = sphi 0, %s34
      %s16 = sphi 0, %s30
      %s17 = sphi 0, %s26
      %s18 = sphi 0, %s15
      %s19 = sphi 0, %s16
      %s20 = sphi 0, %s17
      %s21 = sphi 0, %s18
      %s22 = sphi 0, %s19
      %s23 = sphi 0, %s20
      %s39 = sphi 0, %s41
      %s42 = sphi 0, %s39
      %s43 = sphi 0, %s42
      %s59 = sphi 0, %s43
      %s67 = sphi 0, %s69
      %s70 = sphi 0, %s67
      %s71 = sphi 0, %s70
      %s87 = sphi 0, %s71
      %s95 = sphi 0, %s97
      %s98 = sphi 0, %s95
      %s99 = sphi 0, %s98
      %s115 = sphi 0, %s99
    $region4: #{_lambda_.35} parent=1 // loop_header_branch
      %11 = sbr.rel (%p9) target = $region8
    $region5: #{_lambda_.35} parent=1 // loop_body
      %s13 = ssub.s32 %s8, 1
      %s14 = ssub.s32 %s8, 2
      %s24 = sadd.s32 1, %s17
      %p25 = scmp.ge.s32.totalorder %s24, 2
      %s26 = scalar_select %p25, 0, %s24
      %s27 = sadd.s32 1, %s16
      %s28 = scalar_select %p25, %s27, %s16
      %p29 = scmp.ge.s32.totalorder %s28, 1
      %s30 = scalar_select %p29, 0, %s28
      %s31 = sadd.s32 1, %s15
      %s32 = scalar_select %p29, %s31, %s15
      %p33 = scmp.ge.s32.totalorder %s32, 1
      %s34 = scalar_select %p33, 0, %s32
      %s35 = ssub.s32 %s15, %s34
      %s36 = ssub.s32 %s17, %s26
      %s37 = sor.u32 %s35, %s36
      %p38 = scmp.eq.s32.totalorder %s37, 0
      %s40 = sadd.s32 %s39, 1
      %s41 = scalar_select %p38, %s39, %s40
      %p44 = pneg %p38
      %p45 = scmp.eq.s32.totalorder %s8, 1
      %p46 = por %p44, %p45
      %p47 = scmp.ne.s32.totalorder %s39, %s42
      %p48 = scmp.eq.s32.totalorder %s8, 0
      %p49 = por %p47, %p48
      %p50 = scmp.ne.s32.totalorder %s39, %s42
      %p51 = scmp.eq.s32.totalorder %s13, 1
      %p52 = por %p50, %p51
      %p53 = scmp.ne.s32.totalorder %s42, %s43
      %p54 = scmp.eq.s32.totalorder %s13, 0
      %p55 = por %p53, %p54
      %p56 = scmp.ne.s32.totalorder %s42, %s43
      %p57 = scmp.eq.s32.totalorder %s14, 1
      %p58 = por %p56, %p57
      %p60 = scmp.ne.s32.totalorder %s43, %s59
      %p61 = scmp.eq.s32.totalorder %s14, 0
      %p62 = por %p60, %p61
      %s63 = ssub.s32 %s17, %s26
      %s64 = ssub.s32 %s16, %s30
      %s65 = sor.u32 %s63, %s64
      %p66 = scmp.eq.s32.totalorder %s65, 0
      %s68 = sadd.s32 %s67, 1
      %s69 = scalar_select %p66, %s67, %s68
      %p72 = pneg %p66
      %p73 = scmp.eq.s32.totalorder %s8, 1
      %p74 = por %p72, %p73
      %p75 = scmp.ne.s32.totalorder %s67, %s70
      %p76 = scmp.eq.s32.totalorder %s8, 0
      %p77 = por %p75, %p76
      %p78 = scmp.ne.s32.totalorder %s67, %s70
      %p79 = scmp.eq.s32.totalorder %s13, 1
      %p80 = por %p78, %p79
      %p81 = scmp.ne.s32.totalorder %s70, %s71
      %p82 = scmp.eq.s32.totalorder %s13, 0
      %p83 = por %p81, %p82
      %p84 = scmp.ne.s32.totalorder %s70, %s71
      %p85 = scmp.eq.s32.totalorder %s14, 1
      %p86 = por %p84, %p85
      %p88 = scmp.ne.s32.totalorder %s71, %s87
      %p89 = scmp.eq.s32.totalorder %s14, 0
      %p90 = por %p88, %p89
      %s91 = ssub.s32 %s15, %s34
      %s92 = ssub.s32 %s16, %s30
      %s93 = sor.u32 %s91, %s92
      %p94 = scmp.eq.s32.totalorder %s93, 0
      %s96 = sadd.s32 %s95, 1
      %s97 = scalar_select %p94, %s95, %s96
      %p100 = pneg %p94
      %p101 = scmp.eq.s32.totalorder %s8, 1
      %p102 = por %p100, %p101
      %p103 = scmp.ne.s32.totalorder %s95, %s98
      %p104 = scmp.eq.s32.totalorder %s8, 0
      %p105 = por %p103, %p104
      %p106 = scmp.ne.s32.totalorder %s95, %s98
      %p107 = scmp.eq.s32.totalorder %s13, 1
      %p108 = por %p106, %p107
      %p109 = scmp.ne.s32.totalorder %s98, %s99
      %p110 = scmp.eq.s32.totalorder %s13, 0
      %p111 = por %p109, %p110
      %p112 = scmp.ne.s32.totalorder %s98, %s99
      %p113 = scmp.eq.s32.totalorder %s14, 1
      %p114 = por %p112, %p113
      %p116 = scmp.ne.s32.totalorder %s99, %s115
      %p117 = scmp.eq.s32.totalorder %s14, 0
      %p118 = por %p116, %p117
      %p119 = scmp.le.s32.totalorder 1, %s8
      %p120 = scmp.lt.s32.totalorder %s8, 3
      %p121 = pnand %p119, %p120
      %p122 = pneg %p121
      // Predicated region
      $region9: #{_lambda_.35} parent=5 // pred_check
        _
      $region10: #{_lambda_.35} parent=5 // pred_check_branch
        %124 = sbr.rel (%p121) target = $region12
      $region11: #{_lambda_.35} parent=5 // pred_region
        %s125 = ssub.s32 %s8, 1
      $region12: #{_lambda_.35} parent=5 // pred_fallthru
        _
      %p126 = scmp.lt.s32.totalorder %s8, 2
      // Predicated region
      $region13: #{_lambda_.35} parent=5 // pred_check
        %p127 = pneg %p126
      $region14: #{_lambda_.35} parent=5 // pred_check_branch
        %129 = sbr.rel (%p127) target = $region16
      $region15: #{_lambda_.35} parent=5 // pred_region
        // Predicated region
        $region17: #{_lambda_.35} parent=15 // pred_check
          %p130 = pneg %p49
        $region18: #{_lambda_.35} parent=15 // pred_check_branch
          %132 = sbr.rel (%p130) target = $region20
        $region19: #{_lambda_.35} parent=15 // pred_region
          %s133 = sand.u32 %s39, 1
          %s134 = sand.u32 %s39, 1
          %s135 = smul.addr %s134, 32
          %s136 = scalar_lea.vmem [#allocation3], %s135
          %s137 = smul.u32 4, %s15
          %s138 = smul.u32 2, %s17
          %s139 = smul.addr %s137, 4
          %s140 = sadd.s32 %s138, %s139
          %s141 = smul.addr %s140, 4
          %s142 = scalar_lea.vmem %s0, %s141
          // Predicated region
          $region21: #{_lambda_.35} parent=19 // pred_check
            _
          $region22: #{_lambda_.35} parent=19 // pred_check_branch
            %144 = sbr.rel (0) target = $region24
          $region23: #{_lambda_.35} parent=19 // pred_region
            // Predicated region
            $region25: #{_lambda_.35} parent=23 // pred_check
              _
            $region26: #{_lambda_.35} parent=23 // pred_check_branch
              %146 = sbr.rel (0) target = $region28
            $region27: #{_lambda_.35} parent=23 // pred_region
              // Predicated region
              $region40: #{_lambda_.35} parent=27 // pred_check
                _
              $region41: #{_lambda_.35} parent=27 // pred_check_branch
                %168 = sbr.rel (0) target = $region43
              $region42: #{_lambda_.35} parent=27 // pred_region
                loop: start=0, step=1, limit=1
                $region44: #{_lambda_.35} parent=42 // loop_pre_header
                  _
                $region45: #{_lambda_.35} parent=42 // loop_header
                  %s170 = sphi 0, %s174
                  %p171 = scmp.ge.s32.totalorder %s170, 1
                  %s175 = sphi %s142, %s142
                  %s176 = sphi %s136, %s136
                $region46: #{_lambda_.35} parent=42 // loop_header_branch
                  %173 = sbr.rel (%p171) target = $region50
                $region47: #{_lambda_.35} parent=42 // loop_body
                  %v177 = vld [vmem:[%s175] sm:$0xff]
                  %178 = vst [vmem:[%s176] sm:$0xff] %v177
                  %v179 = vld [vmem:[%s175 + $0x10] sm:$0xff]
                  %180 = vst [vmem:[%s176 + $0x8] sm:$0xff] %v179
                  %v181 = vld [vmem:[%s175 + $0x20] sm:$0xff]
                  %182 = vst [vmem:[%s176 + $0x10] sm:$0xff] %v181
                  %v183 = vld [vmem:[%s175 + $0x30] sm:$0xff]
                  %184 = vst [vmem:[%s176 + $0x18] sm:$0xff] %v183
                $region48: #{_lambda_.35} parent=42 // loop_footer
                  %s174 = sadd.s32 1, %s170
                $region49: #{_lambda_.35} parent=42 // loop_footer_branch
                  %169 = sbr.rel target = $region45
                $region50: #{_lambda_.35} parent=42 // loop_exit
                  _
              $region43: #{_lambda_.35} parent=27 // pred_fallthru
                _
              // Predicated region
              $region51: #{_lambda_.35} parent=27 // pred_check
                _
              $region52: #{_lambda_.35} parent=27 // pred_check_branch
                %186 = sbr.rel target = $region54
              $region53: #{_lambda_.35} parent=27 // pred_region
                _
              $region54: #{_lambda_.35} parent=27 // pred_fallthru
                _
            $region28: #{_lambda_.35} parent=23 // pred_fallthru
              _
            // Predicated region
            $region29: #{_lambda_.35} parent=23 // pred_check
              _
            $region30: #{_lambda_.35} parent=23 // pred_check_branch
              %148 = sbr.rel target = $region32
            $region31: #{_lambda_.35} parent=23 // pred_region
              %s150 = ssub.s32 256, 1
              loop: start=0, step=1, limit=1
              $region33: #{_lambda_.35} parent=31 // loop_pre_header
                _
              $region34: #{_lambda_.35} parent=31 // loop_header
                %s152 = sphi 0, %s156
                %p153 = scmp.ge.s32.totalorder %s152, 1
                %s157 = sphi %s142, %s142
                %s158 = sphi %s136, %s136
              $region35: #{_lambda_.35} parent=31 // loop_header_branch
                %155 = sbr.rel (%p153) target = $region39
              $region36: #{_lambda_.35} parent=31 // loop_body
                %v159 = vld [vmem:[%s157] sm:%s150]
                %160 = vst [vmem:[%s158] sm:%s150] %v159
                %v161 = vld [vmem:[%s157 + $0x10] sm:%s150]
                %162 = vst [vmem:[%s158 + $0x8] sm:%s150] %v161
                %v163 = vld [vmem:[%s157 + $0x20] sm:%s150]
                %164 = vst [vmem:[%s158 + $0x10] sm:%s150] %v163
                %v165 = vld [vmem:[%s157 + $0x30] sm:%s150]
                %166 = vst [vmem:[%s158 + $0x18] sm:%s150] %v165
              $region37: #{_lambda_.35} parent=31 // loop_footer
                %s156 = sadd.s32 1, %s152
              $region38: #{_lambda_.35} parent=31 // loop_footer_branch
                %151 = sbr.rel target = $region34
              $region39: #{_lambda_.35} parent=31 // loop_exit
                _
            $region32: #{_lambda_.35} parent=23 // pred_fallthru
              _
          $region24: #{_lambda_.35} parent=19 // pred_fallthru
            _
          %187 = vnop
        $region20: #{_lambda_.35} parent=15 // pred_fallthru
          _
        // Predicated region
        $region55: #{_lambda_.35} parent=15 // pred_check
          %p188 = pneg %p77
        $region56: #{_lambda_.35} parent=15 // pred_check_branch
          %190 = sbr.rel (%p188) target = $region58
        $region57: #{_lambda_.35} parent=15 // pred_region
          %s191 = smul.u32 32, %s17
          %p192 = scmp.lt.s32.totalorder %s191, 63
          %s193 = scalar_select %p192, %s191, 63
          %p194 = scmp.lt.s32.totalorder %s16, 0
          %s195 = scalar_select %p194, %s16, 0
          %s196 = sadd.s32 %s195, %s193
          %s197 = smul.addr %s196, 4
          %s198 = scalar_lea.vmem %s1, %s197
          %s199 = smul.u32 32, %s17
        $region58: #{_lambda_.35} parent=15 // pred_fallthru
          _
      $region16: #{_lambda_.35} parent=5 // pred_fallthru
        _
      %p200 = scmp.le.s32.totalorder 1, %s8
      %p201 = scmp.lt.s32.totalorder %s8, 3
      %p202 = pnand %p200, %p201
      %p203 = pneg %p202
      // Predicated region
      $region59: #{_lambda_.35} parent=5 // pred_check
        _
      $region60: #{_lambda_.35} parent=5 // pred_check_branch
        %205 = sbr.rel (%p202) target = $region62
      $region61: #{_lambda_.35} parent=5 // pred_region
        %s206 = ssub.s32 %s8, 1
        %s207 = sand.u32 %s42, 1
        %s208 = sand.u32 %s42, 1
        %s209 = smul.addr %s208, 32
        %s210 = scalar_lea.vmem [#allocation3], %s209
        // Predicated region
        $region63: #{_lambda_.35} parent=61 // pred_check
          %p211 = pneg %p55
        $region64: #{_lambda_.35} parent=61 // pred_check_branch
          %213 = sbr.rel (%p211) target = $region66
        $region65: #{_lambda_.35} parent=61 // pred_region
          _
        $region66: #{_lambda_.35} parent=61 // pred_fallthru
          _
        %s214 = sand.u32 %s42, 1
        %s215 = sand.u32 %s42, 1
        %s216 = smul.addr %s215, 32
        %s217 = scalar_lea.vmem [#allocation3], %s216
        %p218 = pneg %p55
        %p219 = pneg %p52
        %s220 = smul.u32 32, %s20
        %p221 = scmp.lt.s32.totalorder %s220, 63
        %s222 = scalar_select %p221, %s220, 63
        %p223 = scmp.lt.s32.totalorder %s19, 0
        %s224 = scalar_select %p223, %s19, 0
        %s225 = sadd.s32 %s224, %s222
        %s226 = smul.addr %s225, 4
        %s227 = scalar_lea.vmem %s1, %s226
        %p228 = pneg %p83
        %p229 = pneg %p80
        %p230 = pneg %p111
        %p231 = pneg %p108
        %s232 = smul.u32 4, %s18
        %p233 = scmp.lt.s32.totalorder %s232, 3
        %s234 = scalar_select %p233, %s232, 3
        %p235 = scmp.lt.s32.totalorder %s19, 0
        %s236 = scalar_select %p235, %s19, 0
        %s237 = sadd.s32 %s236, %s234
        %s238 = smul.addr %s237, 4
        %s239 = scalar_lea.vmem %s2, %s238
        %s240 = smul.u32 4, %s18
        %s241 = smul.u32 2, %s20
        %s242 = smul.u32 32, %s20
        %p243 = scmp.lt.s32.totalorder %s242, 63
        %s244 = scalar_select %p243, %s242, 63
        %p245 = scmp.lt.s32.totalorder %s19, 0
        %s246 = scalar_select %p245, %s19, 0
        %s247 = sadd.s32 %s246, %s244
        %s248 = smul.addr %s247, 4
        %s249 = scalar_lea.vmem %s1, %s248
        %s250 = smul.u32 32, %s20
        %s251 = smul.u32 4, %s18
        %p252 = scmp.lt.s32.totalorder %s251, 3
        %s253 = scalar_select %p252, %s251, 3
        %p254 = scmp.lt.s32.totalorder %s19, 0
        %s255 = scalar_select %p254, %s19, 0
        %s256 = sadd.s32 %s255, %s253
        %s257 = smul.addr %s256, 4
        %s258 = scalar_lea.vmem %s2, %s257
        %s259 = smul.u32 4, %s18
        %p260 = scmp.eq.s32.totalorder %s20, 0
        // Predicated region
        $region67: #{_lambda_.35} parent=61 // pred_check
          %p261 = pneg %p260
        $region68: #{_lambda_.35} parent=61 // pred_check_branch
          %263 = sbr.rel (%p261) target = $region70
        $region69: #{_lambda_.35} parent=61 // pred_region
          %264 = vst [vmem:[#allocation2] sm:$0xff] 0.0
          %265 = vst [vmem:[#allocation2 + $0x8] sm:$0xff] 0.0
          %266 = vst [vmem:[#allocation2 + $0x10] sm:$0xff] 0.0
          %267 = vst [vmem:[#allocation2 + $0x18] sm:$0xff] 0.0
        $region70: #{_lambda_.35} parent=61 // pred_fallthru
          _
        %v268 = vld [vmem:[%s210] sm:$0xff]
        %v269 = vld [vmem:[%s210 + $0x8] sm:$0xff]
        %v270 = vld [vmem:[%s210 + $0x10] sm:$0xff]
        %v271 = vld [vmem:[%s210 + $0x18] sm:$0xff]
        %v272 = vld [vmem:[#allocation2] sm:$0xff]
        %v273 = vld [vmem:[#allocation2 + $0x8] sm:$0xff]
        %v274 = vld [vmem:[#allocation2 + $0x10] sm:$0xff]
        %v275 = vld [vmem:[#allocation2 + $0x18] sm:$0xff]
        %v276 = vld [vmem:[%s249] sm:$0xf]
        %v277 = vld [vmem:[%s249 + $0x4] sm:$0xf]
        %v278 = vld [vmem:[%s249 + $0x8] sm:$0xf]
        %v279 = vld [vmem:[%s249 + $0xc] sm:$0xf]
        %v280 = vld [vmem:[%s249 + $0x10] sm:$0xf]
        %v281 = vld [vmem:[%s249 + $0x14] sm:$0xf]
        %v282 = vld [vmem:[%s249 + $0x18] sm:$0xf]
        %v283 = vld [vmem:[%s249 + $0x1c] sm:$0xf]
        %v284 = vld [vmem:[%s249 + $0x20] sm:$0xf]
        %v285 = vld [vmem:[%s249 + $0x24] sm:$0xf]
        %v286 = vld [vmem:[%s249 + $0x28] sm:$0xf]
        %v287 = vld [vmem:[%s249 + $0x2c] sm:$0xf]
        %v288 = vld [vmem:[%s249 + $0x30] sm:$0xf]
        %v289 = vld [vmem:[%s249 + $0x34] sm:$0xf]
        %v290 = vld [vmem:[%s249 + $0x38] sm:$0xf]
        %v291 = vld [vmem:[%s249 + $0x3c] sm:$0xf]
        %v292 = vld [vmem:[%s249 + $0x40] sm:$0xf]
        %v293 = vld [vmem:[%s249 + $0x44] sm:$0xf]
        %v294 = vld [vmem:[%s249 + $0x48] sm:$0xf]
        %v295 = vld [vmem:[%s249 + $0x4c] sm:$0xf]
        %v296 = vld [vmem:[%s249 + $0x50] sm:$0xf]
        %v297 = vld [vmem:[%s249 + $0x54] sm:$0xf]
        %v298 = vld [vmem:[%s249 + $0x58] sm:$0xf]
        %v299 = vld [vmem:[%s249 + $0x5c] sm:$0xf]
        %v300 = vld [vmem:[%s249 + $0x60] sm:$0xf]
        %v301 = vld [vmem:[%s249 + $0x64] sm:$0xf]
        %v302 = vld [vmem:[%s249 + $0x68] sm:$0xf]
        %v303 = vld [vmem:[%s249 + $0x6c] sm:$0xf]
        %v304 = vld [vmem:[%s249 + $0x70] sm:$0xf]
        %v305 = vld [vmem:[%s249 + $0x74] sm:$0xf]
        %v306 = vld [vmem:[%s249 + $0x78] sm:$0xf]
        %v307 = vld [vmem:[%s249 + $0x7c] sm:$0xf]
        %v312 = vunpack.c.l.b16 %v268
        %v313 = vunpack.c.h.b16 %v268
        %v314 = vunpack.c.l.b16 %v269
        %v315 = vunpack.c.h.b16 %v269
        %v316 = vunpack.c.l.b16 %v270
        %v317 = vunpack.c.h.b16 %v270
        %v318 = vunpack.c.l.b16 %v271
        %v319 = vunpack.c.h.b16 %v271
        %v320 = vpack.c.b16 %v314, %v312
        %v321 = vpack.c.b16 %v315, %v313
        %v322 = vpack.c.b16 %v318, %v316
        %v323 = vpack.c.b16 %v319, %v317
        %v360 = vunpack.c.l.b16 %v276
        %v361 = vunpack.c.l.b16 %v277
        %v362 = vunpack.c.l.b16 %v278
        %v363 = vunpack.c.l.b16 %v279
        %v364 = vunpack.c.l.b16 %v280
        %v365 = vunpack.c.l.b16 %v281
        %v366 = vunpack.c.l.b16 %v282
        %v367 = vunpack.c.l.b16 %v283
        %v368 = vunpack.c.l.b16 %v284
        %v369 = vunpack.c.l.b16 %v285
        %v370 = vunpack.c.l.b16 %v286
        %v371 = vunpack.c.l.b16 %v287
        %v372 = vunpack.c.l.b16 %v288
        %v373 = vunpack.c.l.b16 %v289
        %v374 = vunpack.c.l.b16 %v290
        %v375 = vunpack.c.l.b16 %v291
        %v376 = vunpack.c.l.b16 %v292
        %v377 = vunpack.c.l.b16 %v293
        %v378 = vunpack.c.l.b16 %v294
        %v379 = vunpack.c.l.b16 %v295
        %v380 = vunpack.c.l.b16 %v296
        %v381 = vunpack.c.l.b16 %v297
        %v382 = vunpack.c.l.b16 %v298
        %v383 = vunpack.c.l.b16 %v299
        %v384 = vunpack.c.l.b16 %v300
        %v385 = vunpack.c.l.b16 %v301
        %v386 = vunpack.c.l.b16 %v302
        %v387 = vunpack.c.l.b16 %v303
        %v388 = vunpack.c.l.b16 %v304
        %v389 = vunpack.c.l.b16 %v305
        %v390 = vunpack.c.l.b16 %v306
        %v391 = vunpack.c.l.b16 %v307
        %v392 = vpack.c.b16 %v361, %v360
        %v393 = vpack.c.b16 %v363, %v362
        %v394 = vpack.c.b16 %v365, %v364
        %v395 = vpack.c.b16 %v367, %v366
        %v396 = vpack.c.b16 %v369, %v368
        %v397 = vpack.c.b16 %v371, %v370
        %v398 = vpack.c.b16 %v373, %v372
        %v399 = vpack.c.b16 %v375, %v374
        %v400 = vpack.c.b16 %v377, %v376
        %v401 = vpack.c.b16 %v379, %v378
        %v402 = vpack.c.b16 %v381, %v380
        %v403 = vpack.c.b16 %v383, %v382
        %v404 = vpack.c.b16 %v385, %v384
        %v405 = vpack.c.b16 %v387, %v386
        %v406 = vpack.c.b16 %v389, %v388
        %v407 = vpack.c.b16 %v391, %v390
        %424 = vmatpush.bf16.msra.mxu0 %v399
        %425 = vmatpush.bf16.msra.mxu0 %v398
        %426 = vmatpush.bf16.msra.mxu0 %v397
        %427 = vmatpush.bf16.msra.mxu0 %v396
        %428 = vmatpush.bf16.msra.mxu0 %v395
        %429 = vmatpush.bf16.msra.mxu0 %v394
        %430 = vmatpush.bf16.msra.mxu0 %v393
        %431 = vmatpush.bf16.msra.mxu0 %v392
        %432 = vmatmul.bf16.gmra.mxu0 %v320
        %v433 = vpop.f32.mrf.mxu0
        %v434 = vadd.f32 0.0, %v433
        %v435 = vpop.f32.mrf.mxu0
        %v436 = vadd.f32 0.0, %v435
        %437 = vmatmul.bf16.gmra.mxu0 %v322
        %v438 = vpop.f32.mrf.mxu0
        %v439 = vadd.f32 0.0, %v438
        %v440 = vpop.f32.mrf.mxu0
        %v441 = vadd.f32 0.0, %v440
        %442 = vdwg.mxu0
        %443 = vmatpush.bf16.msra.mxu0 %v407
        %444 = vmatpush.bf16.msra.mxu0 %v406
        %445 = vmatpush.bf16.msra.mxu0 %v405
        %446 = vmatpush.bf16.msra.mxu0 %v404
        %447 = vmatpush.bf16.msra.mxu0 %v403
        %448 = vmatpush.bf16.msra.mxu0 %v402
        %449 = vmatpush.bf16.msra.mxu0 %v401
        %450 = vmatpush.bf16.msra.mxu0 %v400
        %451 = vmatmul.bf16.gmra.mxu0 %v321
        %v452 = vpop.f32.mrf.mxu0
        %v453 = vadd.f32 %v434, %v452
        %v454 = vpop.f32.mrf.mxu0
        %v455 = vadd.f32 %v436, %v454
        %456 = vmatmul.bf16.gmra.mxu0 %v323
        %v457 = vpop.f32.mrf.mxu0
        %v458 = vadd.f32 %v439, %v457
        %v459 = vpop.f32.mrf.mxu0
        %v460 = vadd.f32 %v441, %v459
        %461 = vdwg.mxu0
        %v462 = vadd.f32 %v272, %v453
        %v463 = vadd.f32 %v273, %v455
        %v464 = vadd.f32 %v274, %v458
        %v465 = vadd.f32 %v275, %v460
        %466 = vst [vmem:[#allocation2] sm:$0xff] %v462
        %467 = vst [vmem:[#allocation2 + $0x8] sm:$0xff] %v463
        %468 = vst [vmem:[#allocation2 + $0x10] sm:$0xff] %v464
        %469 = vst [vmem:[#allocation2 + $0x18] sm:$0xff] %v465
        %p470 = scmp.eq.s32.totalorder %s20, 1
        // Predicated region
        $region71: #{_lambda_.35} parent=61 // pred_check
          %p471 = pneg %p470
        $region72: #{_lambda_.35} parent=61 // pred_check_branch
          %473 = sbr.rel (%p471) target = $region74
        $region73: #{_lambda_.35} parent=61 // pred_region
          %v474 = vld [vmem:[#allocation2] sm:$0xff]
          %v475 = vld [vmem:[#allocation2 + $0x8] sm:$0xff]
          %v476 = vld [vmem:[#allocation2 + $0x10] sm:$0xff]
          %v477 = vld [vmem:[#allocation2 + $0x18] sm:$0xff]
          %v478 = vpack.c.bf16 %v474, %v474
          %v479 = vpack.c.bf16 %v475, %v475
          %v480 = vpack.c.bf16 %v476, %v476
          %v481 = vpack.c.bf16 %v477, %v477
          %482 = vst [vmem:[%s258] sm:$0xf] %v478
          %483 = vst [vmem:[%s258 + $0x4] sm:$0xf] %v479
          %484 = vst [vmem:[%s258 + $0x8] sm:$0xf] %v480
          %485 = vst [vmem:[%s258 + $0xc] sm:$0xf] %v481
        $region74: #{_lambda_.35} parent=61 // pred_fallthru
          _
        %s486 = smul.u32 4, %s18
        %p487 = scmp.lt.s32.totalorder %s486, 3
        %s488 = scalar_select %p487, %s486, 3
        %p489 = scmp.lt.s32.totalorder %s19, 0
        %s490 = scalar_select %p489, %s19, 0
        %s491 = sadd.s32 %s490, %s488
        %s492 = smul.addr %s491, 4
        %s493 = scalar_lea.vmem %s2, %s492
        // Predicated region
        $region75: #{_lambda_.35} parent=61 // pred_check
          %p494 = pneg %p108
        $region76: #{_lambda_.35} parent=61 // pred_check_branch
          %496 = sbr.rel (%p494) target = $region78
        $region77: #{_lambda_.35} parent=61 // pred_region
          %s497 = smul.u32 4, %s18
        $region78: #{_lambda_.35} parent=61 // pred_fallthru
          _
        // Predicated region
        $region79: #{_lambda_.35} parent=61 // pred_check
          %p498 = pneg %p108
        $region80: #{_lambda_.35} parent=61 // pred_check_branch
          %500 = sbr.rel (%p498) target = $region82
        $region81: #{_lambda_.35} parent=61 // pred_region
          %s501 = smul.u32 4, %s18
          %p502 = scmp.lt.s32.totalorder %s501, 3
          %s503 = scalar_select %p502, %s501, 3
          %p504 = scmp.lt.s32.totalorder %s19, 0
          %s505 = scalar_select %p504, %s19, 0
          %s506 = sadd.s32 %s505, %s503
          %s507 = smul.addr %s506, 4
          %s508 = scalar_lea.vmem %s2, %s507
        $region82: #{_lambda_.35} parent=61 // pred_fallthru
          _
      $region62: #{_lambda_.35} parent=5 // pred_fallthru
        _
      %p509 = scmp.le.s32.totalorder 2, %s8
      // Predicated region
      $region83: #{_lambda_.35} parent=5 // pred_check
        %p510 = pneg %p509
      $region84: #{_lambda_.35} parent=5 // pred_check_branch
        %512 = sbr.rel (%p510) target = $region86
      $region85: #{_lambda_.35} parent=5 // pred_region
        %s513 = ssub.s32 %s8, 2
      $region86: #{_lambda_.35} parent=5 // pred_fallthru
        _
    $region6: #{_lambda_.35} parent=1 // loop_footer
      %s12 = sadd.s32 1, %s8
    $region7: #{_lambda_.35} parent=1 // loop_footer_branch
      %7 = sbr.rel target = $region3
    $region8: #{_lambda_.35} parent=1 // loop_exit
      _

// kernel: _lambda_.38
$region0: #{_lambda_.38}
  #allocation0 [shape = 'u32[]', space=smem, size = 0x4, offset = 0x4, fixed_abs, tag = 'smem constant byte address 0x4 - core index']
  #allocation1 [shape = 'u32[72,128]{1,0:T(1,128)}', space=vmem, size = 0x9000, scoped, tag = 'internal scratch']
  #allocation2 [shape = 'f32[32,128]{1,0:T(8,128)}', space=vmem, size = 0x4000, scoped, tag = 'scratch operand']
  %s0 = inlined_call_operand.vmem [shape: bf16[32,128], index: 0, kind: input, shape index: {}]
  %s1 = inlined_call_operand.vmem [shape: bf16[128,128], index: 1, kind: input, shape index: {}]
  %s2 = inlined_call_operand.vmem [shape: f32[1,128], index: 2, kind: input, shape index: {}]
  %s3 = inlined_call_operand.vmem [shape: f32[1,128], index: 3, kind: input, shape index: {}]
  %s4 = inlined_call_operand.vmem [shape: bf16[32,128], index: 4, kind: output, shape index: {}]
  %s5 = sld [smem:[#allocation0]]
  $region34: #{_lambda_.38} parent=0
    _
  %s7 = ssub.s32 1, %s5
  %s8 = scalar_select 0, %s7, %s5
  // Predicated region
  $region2: #{_lambda_.38} parent=0 // pred_check
    _
  $region3: #{_lambda_.38} parent=0 // pred_check_branch
    %10 = sbr.rel (0) target = $region5
  $region4: #{_lambda_.38} parent=0 // pred_region
    _
  $region5: #{_lambda_.38} parent=0 // pred_fallthru
    _
  // Predicated region
  $region6: #{_lambda_.38} parent=0 // pred_check
    _
  $region7: #{_lambda_.38} parent=0 // pred_check_branch
    %12 = sbr.rel (0) target = $region9
  $region8: #{_lambda_.38} parent=0 // pred_region
    _
  $region9: #{_lambda_.38} parent=0 // pred_fallthru
    _
  // Predicated region
  $region10: #{_lambda_.38} parent=0 // pred_check
    _
  $region11: #{_lambda_.38} parent=0 // pred_check_branch
    %14 = sbr.rel (0) target = $region13
  $region12: #{_lambda_.38} parent=0 // pred_region
    _
  $region13: #{_lambda_.38} parent=0 // pred_fallthru
    _
  // Predicated region
  $region14: #{_lambda_.38} parent=0 // pred_check
    _
  $region15: #{_lambda_.38} parent=0 // pred_check_branch
    %16 = sbr.rel (0) target = $region17
  $region16: #{_lambda_.38} parent=0 // pred_region
    _
  $region17: #{_lambda_.38} parent=0 // pred_fallthru
    _
  %p17 = scmp.eq.s32.totalorder 0, 0
  // Predicated region
  $region18: #{_lambda_.38} parent=0 // pred_check
    %p18 = pneg %p17
  $region19: #{_lambda_.38} parent=0 // pred_check_branch
    %20 = sbr.rel (%p18) target = $region21
  $region20: #{_lambda_.38} parent=0 // pred_region
    %21 = vst [vmem:[#allocation2] sm:$0xff] 0.0
    %22 = vst [vmem:[#allocation2 + $0x8] sm:$0xff] 0.0
    %23 = vst [vmem:[#allocation2 + $0x10] sm:$0xff] 0.0
    %24 = vst [vmem:[#allocation2 + $0x18] sm:$0xff] 0.0
  $region21: #{_lambda_.38} parent=0 // pred_fallthru
    _
  %v25 = vld [vmem:[%s0] sm:$0xf]
  %v26 = vld [vmem:[%s0 + $0x4] sm:$0xf]
  %v27 = vld [vmem:[%s0 + $0x8] sm:$0xf]
  %v28 = vld [vmem:[%s0 + $0xc] sm:$0xf]
  %v29 = vunpack.c.l.bf16 %v25
  %v30 = vunpack.c.l.bf16 %v26
  %v31 = vunpack.c.l.bf16 %v27
  %v32 = vunpack.c.l.bf16 %v28
  %v33 = vld [vmem:[%s2] sm:$0x1]
  %v35 = vperm.slane %v33, 0
  %v37 = vmul.f32 %v29, %v35
  %v38 = vmul.f32 %v30, %v35
  %v39 = vmul.f32 %v31, %v35
  %v40 = vmul.f32 %v32, %v35
  %v41 = vld [vmem:[%s3] sm:$0x1]
  %v43 = vperm.slane %v41, 0
  %v45 = vadd.f32 %v37, %v43
  %v46 = vadd.f32 %v38, %v43
  %v47 = vadd.f32 %v39, %v43
  %v48 = vadd.f32 %v40, %v43
  %v49 = vmax.f32 %v45, 0.0
  %v50 = vmax.f32 %v46, 0.0
  %v51 = vmax.f32 %v47, 0.0
  %v52 = vmax.f32 %v48, 0.0
  %v53 = vpack.c.bf16 %v50, %v49
  %v54 = vpack.c.bf16 %v52, %v51
  %v55 = vld [vmem:[#allocation2] sm:$0xff]
  %v56 = vld [vmem:[#allocation2 + $0x8] sm:$0xff]
  %v57 = vld [vmem:[#allocation2 + $0x10] sm:$0xff]
  %v58 = vld [vmem:[#allocation2 + $0x18] sm:$0xff]
  %v59 = vld [vmem:[%s1] sm:$0xf]
  %v60 = vld [vmem:[%s1 + $0x4] sm:$0xf]
  %v61 = vld [vmem:[%s1 + $0x8] sm:$0xf]
  %v62 = vld [vmem:[%s1 + $0xc] sm:$0xf]
  %v63 = vld [vmem:[%s1 + $0x10] sm:$0xf]
  %v64 = vld [vmem:[%s1 + $0x14] sm:$0xf]
  %v65 = vld [vmem:[%s1 + $0x18] sm:$0xf]
  %v66 = vld [vmem:[%s1 + $0x1c] sm:$0xf]
  %v67 = vld [vmem:[%s1 + $0x20] sm:$0xf]
  %v68 = vld [vmem:[%s1 + $0x24] sm:$0xf]
  %v69 = vld [vmem:[%s1 + $0x28] sm:$0xf]
  %v70 = vld [vmem:[%s1 + $0x2c] sm:$0xf]
  %v71 = vld [vmem:[%s1 + $0x30] sm:$0xf]
  %v72 = vld [vmem:[%s1 + $0x34] sm:$0xf]
  %v73 = vld [vmem:[%s1 + $0x38] sm:$0xf]
  %v74 = vld [vmem:[%s1 + $0x3c] sm:$0xf]
  %v91 = vunpack.c.l.b16 %v59
  %v92 = vunpack.c.l.b16 %v60
  %v93 = vunpack.c.l.b16 %v61
  %v94 = vunpack.c.l.b16 %v62
  %v95 = vunpack.c.l.b16 %v63
  %v96 = vunpack.c.l.b16 %v64
  %v97 = vunpack.c.l.b16 %v65
  %v98 = vunpack.c.l.b16 %v66
  %v99 = vunpack.c.l.b16 %v67
  %v100 = vunpack.c.l.b16 %v68
  %v101 = vunpack.c.l.b16 %v69
  %v102 = vunpack.c.l.b16 %v70
  %v103 = vunpack.c.l.b16 %v71
  %v104 = vunpack.c.l.b16 %v72
  %v105 = vunpack.c.l.b16 %v73
  %v106 = vunpack.c.l.b16 %v74
  %v107 = vpack.c.b16 %v92, %v91
  %v108 = vpack.c.b16 %v94, %v93
  %v109 = vpack.c.b16 %v96, %v95
  %v110 = vpack.c.b16 %v98, %v97
  %v111 = vpack.c.b16 %v100, %v99
  %v112 = vpack.c.b16 %v102, %v101
  %v113 = vpack.c.b16 %v104, %v103
  %v114 = vpack.c.b16 %v106, %v105
  %123 = vmatpush.bf16.msra.mxu0 %v114
  %124 = vmatpush.bf16.msra.mxu0 %v113
  %125 = vmatpush.bf16.msra.mxu0 %v112
  %126 = vmatpush.bf16.msra.mxu0 %v111
  %127 = vmatpush.bf16.msra.mxu0 %v110
  %128 = vmatpush.bf16.msra.mxu0 %v109
  %129 = vmatpush.bf16.msra.mxu0 %v108
  %130 = vmatpush.bf16.msra.mxu0 %v107
  %131 = vmatmul.bf16.gmra.mxu0 %v53
  %v132 = vpop.f32.mrf.mxu0
  %v133 = vadd.f32 0.0, %v132
  %v134 = vpop.f32.mrf.mxu0
  %v135 = vadd.f32 0.0, %v134
  %136 = vmatmul.bf16.gmra.mxu0 %v54
  %v137 = vpop.f32.mrf.mxu0
  %v138 = vadd.f32 0.0, %v137
  %v139 = vpop.f32.mrf.mxu0
  %v140 = vadd.f32 0.0, %v139
  %141 = vdwg.mxu0
  %v142 = vadd.f32 %v55, %v133
  %v143 = vadd.f32 %v56, %v135
  %v144 = vadd.f32 %v57, %v138
  %v145 = vadd.f32 %v58, %v140
  %146 = vst [vmem:[#allocation2] sm:$0xff] %v142
  %147 = vst [vmem:[#allocation2 + $0x8] sm:$0xff] %v143
  %148 = vst [vmem:[#allocation2 + $0x10] sm:$0xff] %v144
  %149 = vst [vmem:[#allocation2 + $0x18] sm:$0xff] %v145
  // Predicated region
  $region22: #{_lambda_.38} parent=0 // pred_check
    %p150 = pneg %p17
  $region23: #{_lambda_.38} parent=0 // pred_check_branch
    %152 = sbr.rel (%p150) target = $region25
  $region24: #{_lambda_.38} parent=0 // pred_region
    %v153 = vld [vmem:[#allocation2] sm:$0xff]
    %v154 = vld [vmem:[#allocation2 + $0x8] sm:$0xff]
    %v155 = vld [vmem:[#allocation2 + $0x10] sm:$0xff]
    %v156 = vld [vmem:[#allocation2 + $0x18] sm:$0xff]
    %v157 = vpack.c.bf16 %v153, %v153
    %v158 = vpack.c.bf16 %v154, %v154
    %v159 = vpack.c.bf16 %v155, %v155
    %v160 = vpack.c.bf16 %v156, %v156
    %161 = vst [vmem:[%s4] sm:$0xf] %v157
    %162 = vst [vmem:[%s4 + $0x4] sm:$0xf] %v158
    %163 = vst [vmem:[%s4 + $0x8] sm:$0xf] %v159
    %164 = vst [vmem:[%s4 + $0xc] sm:$0xf] %v160
  $region25: #{_lambda_.38} parent=0 // pred_fallthru
    _
  // Predicated region
  $region26: #{_lambda_.38} parent=0 // pred_check
    _
  $region27: #{_lambda_.38} parent=0 // pred_check_branch
    %166 = sbr.rel (0) target = $region29
  $region28: #{_lambda_.38} parent=0 // pred_region
    _
  $region29: #{_lambda_.38} parent=0 // pred_fallthru
    _
  // Predicated region
  $region30: #{_lambda_.38} parent=0 // pred_check
    _
  $region31: #{_lambda_.38} parent=0 // pred_check_branch
    %168 = sbr.rel (0) target = $region33
  $region32: #{_lambda_.38} parent=0 // pred_region
    _
  $region33: #{_lambda_.38} parent=0 // pred_fallthru
    _

// kernel: _lambda_.39
$region0: #{_lambda_.39}
  #allocation0 [shape = 'u32[]', space=smem, size = 0x4, offset = 0x4, fixed_abs, tag = 'smem constant byte address 0x4 - core index']
  #allocation1 [shape = 'u32[72,128]{1,0:T(1,128)}', space=vmem, size = 0x9000, scoped, tag = 'internal scratch']
  %s0 = inlined_call_operand.vmem [shape: bf16[4,8,16], index: 0, kind: input, shape index: {}]
  %s1 = inlined_call_operand.vmem [shape: bf16[8,16], index: 1, kind: output, shape index: {}]
  %s2 = sld [smem:[#allocation0]]
  $region14: #{_lambda_.39} parent=0
    _
  %s4 = ssub.s32 1, %s2
  %s5 = scalar_select 0, %s4, %s2
  // Predicated region
  $region2: #{_lambda_.39} parent=0 // pred_check
    _
  $region3: #{_lambda_.39} parent=0 // pred_check_branch
    %7 = sbr.rel (0) target = $region5
  $region4: #{_lambda_.39} parent=0 // pred_region
    _
  $region5: #{_lambda_.39} parent=0 // pred_fallthru
    _
  %v8 = vld [vmem:[%s0] sm:$0xf]
  %v9 = vld [vmem:[%s0 + $0x4] sm:$0xf]
  %v10 = vld [vmem:[%s0 + $0x8] sm:$0xf]
  %v11 = vld [vmem:[%s0 + $0xc] sm:$0xf]
  %v12 = vunpack.c.l.bf16 %v8
  %v13 = vunpack.c.l.bf16 %v9
  %v14 = vunpack.c.l.bf16 %v10
  %v15 = vunpack.c.l.bf16 %v11
  %vm16 = vcmask 130048
  %v17 = vsel %vm16, %v12, 0.0
  %v18 = vsel %vm16, %v13, 0.0
  %v19 = vadd.f32 %v17, %v18
  %v20 = vsel %vm16, %v14, 0.0
  %v21 = vadd.f32 %v19, %v20
  %v22 = vsel %vm16, %v15, 0.0
  %v23 = vadd.f32 %v21, %v22
  %v24 = vrcp.pop 4.0
  %v25 = vmul.f32 4.0, %v24
  %v26 = vsub.f32 1.0, %v25
  %v27 = vmul.f32 %v24, %v26
  %v28 = vadd.f32 %v24, %v27
  %vm29 = vweird.f32 %v24
  %v30 = vsel %vm29, %v24, %v28
  %v31 = vmul.f32 %v23, %v30
  %v32 = vpack.c.bf16 %v31, %v31
  %vm33 = vcmask 125952
  %34 = vst.msk [vmem:[%s1] sm:$0xf] %vm33, %v32
  // Predicated region
  $region6: #{_lambda_.39} parent=0 // pred_check
    _
  $region7: #{_lambda_.39} parent=0 // pred_check_branch
    %36 = sbr.rel (0) target = $region9
  $region8: #{_lambda_.39} parent=0 // pred_region
    _
  $region9: #{_lambda_.39} parent=0 // pred_fallthru
    _
  // Predicated region
  $region10: #{_lambda_.39} parent=0 // pred_check
    _
  $region11: #{_lambda_.39} parent=0 // pred_check_branch
    %38 = sbr.rel (0) target = $region13
  $region12: #{_lambda_.39} parent=0 // pred_region
    _
  $region13: #{_lambda_.39} parent=0 // pred_fallthru
    _

// kernel: _lambda_.40
$region0: #{_lambda_.40}
  #allocation0 [shape = 'u32[]', space=smem, size = 0x4, offset = 0x4, fixed_abs, tag = 'smem constant byte address 0x4 - core index']
  #allocation1 [shape = 'u32[72,128]{1,0:T(1,128)}', space=vmem, size = 0x9000, scoped, tag = 'internal scratch']
  #allocation2 [shape = 'f32[8,128]{1,0:T(8,128)}', space=vmem, size = 0x1000, scoped, tag = 'scratch operand']
  %s0 = inlined_call_operand.vmem [shape: bf16[8,128], index: 0, kind: input, shape index: {}]
  %s1 = inlined_call_operand.vmem [shape: bf16[128,128], index: 1, kind: input, shape index: {}]
  %s2 = inlined_call_operand.vmem [shape: f32[1,128], index: 2, kind: input, shape index: {}]
  %s3 = inlined_call_operand.vmem [shape: f32[1,128], index: 3, kind: input, shape index: {}]
  %s4 = inlined_call_operand.vmem [shape: f32[1,128], index: 4, kind: input, shape index: {}]
  %s5 = inlined_call_operand.vmem [shape: f32[1,128], index: 5, kind: input, shape index: {}]
  %s6 = inlined_call_operand.vmem [shape: bf16[8,128], index: 6, kind: output, shape index: {}]
  %s7 = sld [smem:[#allocation0]]
  $region42: #{_lambda_.40} parent=0
    _
  %s9 = ssub.s32 1, %s7
  %s10 = scalar_select 0, %s9, %s7
  // Predicated region
  $region2: #{_lambda_.40} parent=0 // pred_check
    _
  $region3: #{_lambda_.40} parent=0 // pred_check_branch
    %12 = sbr.rel (0) target = $region5
  $region4: #{_lambda_.40} parent=0 // pred_region
    _
  $region5: #{_lambda_.40} parent=0 // pred_fallthru
    _
  // Predicated region
  $region6: #{_lambda_.40} parent=0 // pred_check
    _
  $region7: #{_lambda_.40} parent=0 // pred_check_branch
    %14 = sbr.rel (0) target = $region9
  $region8: #{_lambda_.40} parent=0 // pred_region
    _
  $region9: #{_lambda_.40} parent=0 // pred_fallthru
    _
  // Predicated region
  $region10: #{_lambda_.40} parent=0 // pred_check
    _
  $region11: #{_lambda_.40} parent=0 // pred_check_branch
    %16 = sbr.rel (0) target = $region13
  $region12: #{_lambda_.40} parent=0 // pred_region
    _
  $region13: #{_lambda_.40} parent=0 // pred_fallthru
    _
  // Predicated region
  $region14: #{_lambda_.40} parent=0 // pred_check
    _
  $region15: #{_lambda_.40} parent=0 // pred_check_branch
    %18 = sbr.rel (0) target = $region17
  $region16: #{_lambda_.40} parent=0 // pred_region
    _
  $region17: #{_lambda_.40} parent=0 // pred_fallthru
    _
  // Predicated region
  $region18: #{_lambda_.40} parent=0 // pred_check
    _
  $region19: #{_lambda_.40} parent=0 // pred_check_branch
    %20 = sbr.rel (0) target = $region21
  $region20: #{_lambda_.40} parent=0 // pred_region
    _
  $region21: #{_lambda_.40} parent=0 // pred_fallthru
    _
  // Predicated region
  $region22: #{_lambda_.40} parent=0 // pred_check
    _
  $region23: #{_lambda_.40} parent=0 // pred_check_branch
    %22 = sbr.rel (0) target = $region25
  $region24: #{_lambda_.40} parent=0 // pred_region
    _
  $region25: #{_lambda_.40} parent=0 // pred_fallthru
    _
  %p23 = scmp.eq.s32.totalorder 0, 0
  // Predicated region
  $region26: #{_lambda_.40} parent=0 // pred_check
    %p24 = pneg %p23
  $region27: #{_lambda_.40} parent=0 // pred_check_branch
    %26 = sbr.rel (%p24) target = $region29
  $region28: #{_lambda_.40} parent=0 // pred_region
    %27 = vst [vmem:[#allocation2] sm:$0xff] 0.0
  $region29: #{_lambda_.40} parent=0 // pred_fallthru
    _
  %v28 = vld [vmem:[%s0] sm:$0xf]
  %v29 = vunpack.c.l.bf16 %v28
  %v30 = vld [vmem:[%s2] sm:$0x1]
  %v32 = vperm.slane %v30, 0
  %v34 = vmul.f32 %v29, %v32
  %v35 = vld [vmem:[%s3] sm:$0x1]
  %v37 = vperm.slane %v35, 0
  %v39 = vadd.f32 %v34, %v37
  %v40 = vmax.f32 %v39, 0.0
  %v41 = vpack.c.bf16 %v40, %v40
  %v42 = vld [vmem:[#allocation2] sm:$0xff]
  %v43 = vld [vmem:[%s1] sm:$0xf]
  %v44 = vld [vmem:[%s1 + $0x4] sm:$0xf]
  %v45 = vld [vmem:[%s1 + $0x8] sm:$0xf]
  %v46 = vld [vmem:[%s1 + $0xc] sm:$0xf]
  %v47 = vld [vmem:[%s1 + $0x10] sm:$0xf]
  %v48 = vld [vmem:[%s1 + $0x14] sm:$0xf]
  %v49 = vld [vmem:[%s1 + $0x18] sm:$0xf]
  %v50 = vld [vmem:[%s1 + $0x1c] sm:$0xf]
  %v51 = vld [vmem:[%s1 + $0x20] sm:$0xf]
  %v52 = vld [vmem:[%s1 + $0x24] sm:$0xf]
  %v53 = vld [vmem:[%s1 + $0x28] sm:$0xf]
  %v54 = vld [vmem:[%s1 + $0x2c] sm:$0xf]
  %v55 = vld [vmem:[%s1 + $0x30] sm:$0xf]
  %v56 = vld [vmem:[%s1 + $0x34] sm:$0xf]
  %v57 = vld [vmem:[%s1 + $0x38] sm:$0xf]
  %v58 = vld [vmem:[%s1 + $0x3c] sm:$0xf]
  %v75 = vunpack.c.l.b16 %v43
  %v76 = vunpack.c.l.b16 %v44
  %v77 = vunpack.c.l.b16 %v45
  %v78 = vunpack.c.l.b16 %v46
  %v79 = vunpack.c.l.b16 %v47
  %v80 = vunpack.c.l.b16 %v48
  %v81 = vunpack.c.l.b16 %v49
  %v82 = vunpack.c.l.b16 %v50
  %v83 = vunpack.c.l.b16 %v51
  %v84 = vunpack.c.l.b16 %v52
  %v85 = vunpack.c.l.b16 %v53
  %v86 = vunpack.c.l.b16 %v54
  %v87 = vunpack.c.l.b16 %v55
  %v88 = vunpack.c.l.b16 %v56
  %v89 = vunpack.c.l.b16 %v57
  %v90 = vunpack.c.l.b16 %v58
  %v91 = vpack.c.b16 %v76, %v75
  %v92 = vpack.c.b16 %v78, %v77
  %v93 = vpack.c.b16 %v80, %v79
  %v94 = vpack.c.b16 %v82, %v81
  %v95 = vpack.c.b16 %v84, %v83
  %v96 = vpack.c.b16 %v86, %v85
  %v97 = vpack.c.b16 %v88, %v87
  %v98 = vpack.c.b16 %v90, %v89
  %107 = vmatpush.bf16.msra.mxu0 %v98
  %108 = vmatpush.bf16.msra.mxu0 %v97
  %109 = vmatpush.bf16.msra.mxu0 %v96
  %110 = vmatpush.bf16.msra.mxu0 %v95
  %111 = vmatpush.bf16.msra.mxu0 %v94
  %112 = vmatpush.bf16.msra.mxu0 %v93
  %113 = vmatpush.bf16.msra.mxu0 %v92
  %114 = vmatpush.bf16.msra.mxu0 %v91
  %115 = vmatmul.bf16.gmra.mxu0 %v41
  %v116 = vpop.f32.mrf.mxu0
  %v117 = vadd.f32 0.0, %v116
  %v118 = vpop.f32.mrf.mxu0
  %119 = vdwg.mxu0
  %v120 = vadd.f32 %v42, %v117
  %121 = vst [vmem:[#allocation2] sm:$0xff] %v120
  // Predicated region
  $region30: #{_lambda_.40} parent=0 // pred_check
    %p122 = pneg %p23
  $region31: #{_lambda_.40} parent=0 // pred_check_branch
    %124 = sbr.rel (%p122) target = $region33
  $region32: #{_lambda_.40} parent=0 // pred_region
    %v125 = vld [vmem:[#allocation2] sm:$0xff]
    %v126 = vld [vmem:[%s4] sm:$0x1]
    %v128 = vperm.slane %v126, 0
    %v130 = vmul.f32 %v125, %v128
    %v131 = vld [vmem:[%s5] sm:$0x1]
    %v133 = vperm.slane %v131, 0
    %v135 = vadd.f32 %v130, %v133
    %v136 = vmax.f32 %v135, 0.0
    %v137 = vpack.c.bf16 %v136, %v136
    %138 = vst [vmem:[%s6] sm:$0xf] %v137
  $region33: #{_lambda_.40} parent=0 // pred_fallthru
    _
  // Predicated region
  $region34: #{_lambda_.40} parent=0 // pred_check
    _
  $region35: #{_lambda_.40} parent=0 // pred_check_branch
    %140 = sbr.rel (0) target = $region37
  $region36: #{_lambda_.40} parent=0 // pred_region
    _
  $region37: #{_lambda_.40} parent=0 // pred_fallthru
    _
  // Predicated region
  $region38: #{_lambda_.40} parent=0 // pred_check
    _
  $region39: #{_lambda_.40} parent=0 // pred_check_branch
    %142 = sbr.rel (0) target = $region41
  $region40: #{_lambda_.40} parent=0 // pred_region
    _
  $region41: #{_lambda_.40} parent=0 // pred_fallthru
    _

// kernel: _lambda_.41
$region0: #{_lambda_.41}
  #allocation0 [shape = 'u32[]', space=smem, size = 0x4, offset = 0x4, fixed_abs, tag = 'smem constant byte address 0x4 - core index']
  #allocation1 [shape = 'u32[72,128]{1,0:T(1,128)}', space=vmem, size = 0x9000, scoped, tag = 'internal scratch']
  #allocation2 [shape = 'f32[8,128]{1,0:T(8,128)}', space=vmem, size = 0x1000, scoped, tag = 'scratch operand']
  %s0 = inlined_call_operand.vmem [shape: bf16[8,512], index: 0, kind: input, shape index: {}]
  %s1 = inlined_call_operand.vmem [shape: bf16[512,128], index: 1, kind: input, shape index: {}]
  %s2 = inlined_call_operand.vmem [shape: bf16[8,128], index: 2, kind: output, shape index: {}]
  %s3 = sld [smem:[#allocation0]]
  $region49: #{_lambda_.41} parent=0
    _
  %s5 = ssub.s32 1, %s3
  %s6 = scalar_select 0, %s5, %s3
  loop: start=0, step=1, limit=4
  $region2: #{_lambda_.41} parent=0 // loop_pre_header
    _
  $region3: #{_lambda_.41} parent=0 // loop_header
    %s8 = sphi 0, %s12
    %p9 = scmp.ge.s32.totalorder %s8, 4
    %s15 = sphi 0, %s34
    %s16 = sphi 0, %s30
    %s17 = sphi 0, %s26
    %s18 = sphi 0, %s15
    %s19 = sphi 0, %s16
    %s20 = sphi 0, %s17
    %s21 = sphi 0, %s18
    %s22 = sphi 0, %s19
    %s23 = sphi 0, %s20
    %s39 = sphi 0, %s41
    %s42 = sphi 0, %s39
    %s43 = sphi 0, %s42
    %s59 = sphi 0, %s43
    %s67 = sphi 0, %s69
    %s70 = sphi 0, %s67
    %s71 = sphi 0, %s70
    %s87 = sphi 0, %s71
    %s95 = sphi 0, %s97
    %s98 = sphi 0, %s95
    %s99 = sphi 0, %s98
    %s115 = sphi 0, %s99
  $region4: #{_lambda_.41} parent=0 // loop_header_branch
    %11 = sbr.rel (%p9) target = $region8
  $region5: #{_lambda_.41} parent=0 // loop_body
    %s13 = ssub.s32 %s8, 1
    %s14 = ssub.s32 %s8, 2
    %s24 = sadd.s32 1, %s17
    %p25 = scmp.ge.s32.totalorder %s24, 2
    %s26 = scalar_select %p25, 0, %s24
    %s27 = sadd.s32 1, %s16
    %s28 = scalar_select %p25, %s27, %s16
    %p29 = scmp.ge.s32.totalorder %s28, 1
    %s30 = scalar_select %p29, 0, %s28
    %s31 = sadd.s32 1, %s15
    %s32 = scalar_select %p29, %s31, %s15
    %p33 = scmp.ge.s32.totalorder %s32, 1
    %s34 = scalar_select %p33, 0, %s32
    %s35 = ssub.s32 %s15, %s34
    %s36 = ssub.s32 %s17, %s26
    %s37 = sor.u32 %s35, %s36
    %p38 = scmp.eq.s32.totalorder %s37, 0
    %s40 = sadd.s32 %s39, 1
    %s41 = scalar_select %p38, %s39, %s40
    %p44 = pneg %p38
    %p45 = scmp.eq.s32.totalorder %s8, 1
    %p46 = por %p44, %p45
    %p47 = scmp.ne.s32.totalorder %s39, %s42
    %p48 = scmp.eq.s32.totalorder %s8, 0
    %p49 = por %p47, %p48
    %p50 = scmp.ne.s32.totalorder %s39, %s42
    %p51 = scmp.eq.s32.totalorder %s13, 1
    %p52 = por %p50, %p51
    %p53 = scmp.ne.s32.totalorder %s42, %s43
    %p54 = scmp.eq.s32.totalorder %s13, 0
    %p55 = por %p53, %p54
    %p56 = scmp.ne.s32.totalorder %s42, %s43
    %p57 = scmp.eq.s32.totalorder %s14, 1
    %p58 = por %p56, %p57
    %p60 = scmp.ne.s32.totalorder %s43, %s59
    %p61 = scmp.eq.s32.totalorder %s14, 0
    %p62 = por %p60, %p61
    %s63 = ssub.s32 %s17, %s26
    %s64 = ssub.s32 %s16, %s30
    %s65 = sor.u32 %s63, %s64
    %p66 = scmp.eq.s32.totalorder %s65, 0
    %s68 = sadd.s32 %s67, 1
    %s69 = scalar_select %p66, %s67, %s68
    %p72 = pneg %p66
    %p73 = scmp.eq.s32.totalorder %s8, 1
    %p74 = por %p72, %p73
    %p75 = scmp.ne.s32.totalorder %s67, %s70
    %p76 = scmp.eq.s32.totalorder %s8, 0
    %p77 = por %p75, %p76
    %p78 = scmp.ne.s32.totalorder %s67, %s70
    %p79 = scmp.eq.s32.totalorder %s13, 1
    %p80 = por %p78, %p79
    %p81 = scmp.ne.s32.totalorder %s70, %s71
    %p82 = scmp.eq.s32.totalorder %s13, 0
    %p83 = por %p81, %p82
    %p84 = scmp.ne.s32.totalorder %s70, %s71
    %p85 = scmp.eq.s32.totalorder %s14, 1
    %p86 = por %p84, %p85
    %p88 = scmp.ne.s32.totalorder %s71, %s87
    %p89 = scmp.eq.s32.totalorder %s14, 0
    %p90 = por %p88, %p89
    %s91 = ssub.s32 %s15, %s34
    %s92 = ssub.s32 %s16, %s30
    %s93 = sor.u32 %s91, %s92
    %p94 = scmp.eq.s32.totalorder %s93, 0
    %s96 = sadd.s32 %s95, 1
    %s97 = scalar_select %p94, %s95, %s96
    %p100 = pneg %p94
    %p101 = scmp.eq.s32.totalorder %s8, 1
    %p102 = por %p100, %p101
    %p103 = scmp.ne.s32.totalorder %s95, %s98
    %p104 = scmp.eq.s32.totalorder %s8, 0
    %p105 = por %p103, %p104
    %p106 = scmp.ne.s32.totalorder %s95, %s98
    %p107 = scmp.eq.s32.totalorder %s13, 1
    %p108 = por %p106, %p107
    %p109 = scmp.ne.s32.totalorder %s98, %s99
    %p110 = scmp.eq.s32.totalorder %s13, 0
    %p111 = por %p109, %p110
    %p112 = scmp.ne.s32.totalorder %s98, %s99
    %p113 = scmp.eq.s32.totalorder %s14, 1
    %p114 = por %p112, %p113
    %p116 = scmp.ne.s32.totalorder %s99, %s115
    %p117 = scmp.eq.s32.totalorder %s14, 0
    %p118 = por %p116, %p117
    %p119 = scmp.le.s32.totalorder 1, %s8
    %p120 = scmp.lt.s32.totalorder %s8, 3
    %p121 = pnand %p119, %p120
    %p122 = pneg %p121
    // Predicated region
    $region9: #{_lambda_.41} parent=5 // pred_check
      _
    $region10: #{_lambda_.41} parent=5 // pred_check_branch
      %124 = sbr.rel (%p121) target = $region12
    $region11: #{_lambda_.41} parent=5 // pred_region
      %s125 = ssub.s32 %s8, 1
    $region12: #{_lambda_.41} parent=5 // pred_fallthru
      _
    %p126 = scmp.lt.s32.totalorder %s8, 2
    // Predicated region
    $region13: #{_lambda_.41} parent=5 // pred_check
      %p127 = pneg %p126
    $region14: #{_lambda_.41} parent=5 // pred_check_branch
      %129 = sbr.rel (%p127) target = $region16
    $region15: #{_lambda_.41} parent=5 // pred_region
      // Predicated region
      $region17: #{_lambda_.41} parent=15 // pred_check
        %p130 = pneg %p49
      $region18: #{_lambda_.41} parent=15 // pred_check_branch
        %132 = sbr.rel (%p130) target = $region20
      $region19: #{_lambda_.41} parent=15 // pred_region
        %s133 = smul.u32 2, %s17
        %p134 = scmp.lt.s32.totalorder %s15, 0
        %s135 = scalar_select %p134, %s15, 0
        %p136 = scmp.lt.s32.totalorder %s133, 3
        %s137 = scalar_select %p136, %s133, 3
        %s138 = smul.addr %s135, 4
        %s139 = sadd.s32 %s137, %s138
        %s140 = smul.addr %s139, 4
        %s141 = scalar_lea.vmem %s0, %s140
        %s142 = smul.u32 2, %s17
      $region20: #{_lambda_.41} parent=15 // pred_fallthru
        _
      // Predicated region
      $region21: #{_lambda_.41} parent=15 // pred_check
        %p143 = pneg %p77
      $region22: #{_lambda_.41} parent=15 // pred_check_branch
        %145 = sbr.rel (%p143) target = $region24
      $region23: #{_lambda_.41} parent=15 // pred_region
        %s146 = smul.u32 32, %s17
        %p147 = scmp.lt.s32.totalorder %s146, 63
        %s148 = scalar_select %p147, %s146, 63
        %p149 = scmp.lt.s32.totalorder %s16, 0
        %s150 = scalar_select %p149, %s16, 0
        %s151 = sadd.s32 %s150, %s148
        %s152 = smul.addr %s151, 4
        %s153 = scalar_lea.vmem %s1, %s152
        %s154 = smul.u32 32, %s17
      $region24: #{_lambda_.41} parent=15 // pred_fallthru
        _
    $region16: #{_lambda_.41} parent=5 // pred_fallthru
      _
    %p155 = scmp.le.s32.totalorder 1, %s8
    %p156 = scmp.lt.s32.totalorder %s8, 3
    %p157 = pnand %p155, %p156
    %p158 = pneg %p157
    // Predicated region
    $region25: #{_lambda_.41} parent=5 // pred_check
      _
    $region26: #{_lambda_.41} parent=5 // pred_check_branch
      %160 = sbr.rel (%p157) target = $region28
    $region27: #{_lambda_.41} parent=5 // pred_region
      %s161 = ssub.s32 %s8, 1
      %s162 = smul.u32 2, %s20
      %p163 = scmp.lt.s32.totalorder %s18, 0
      %s164 = scalar_select %p163, %s18, 0
      %p165 = scmp.lt.s32.totalorder %s162, 3
      %s166 = scalar_select %p165, %s162, 3
      %s167 = smul.addr %s164, 4
      %s168 = sadd.s32 %s166, %s167
      %s169 = smul.addr %s168, 4
      %s170 = scalar_lea.vmem %s0, %s169
      %p171 = pneg %p55
      %p172 = pneg %p52
      %s173 = smul.u32 32, %s20
      %p174 = scmp.lt.s32.totalorder %s173, 63
      %s175 = scalar_select %p174, %s173, 63
      %p176 = scmp.lt.s32.totalorder %s19, 0
      %s177 = scalar_select %p176, %s19, 0
      %s178 = sadd.s32 %s177, %s175
      %s179 = smul.addr %s178, 4
      %s180 = scalar_lea.vmem %s1, %s179
      %p181 = pneg %p83
      %p182 = pneg %p80
      %p183 = pneg %p111
      %p184 = pneg %p108
      %p185 = scmp.lt.s32.totalorder %s18, 0
      %s186 = scalar_select %p185, %s18, 0
      %p187 = scmp.lt.s32.totalorder %s19, 0
      %s188 = scalar_select %p187, %s19, 0
      %s189 = sadd.s32 %s188, %s186
      %s190 = smul.addr %s189, 4
      %s191 = scalar_lea.vmem %s2, %s190
      %s192 = smul.u32 2, %s20
      %p193 = scmp.lt.s32.totalorder %s18, 0
      %s194 = scalar_select %p193, %s18, 0
      %p195 = scmp.lt.s32.totalorder %s192, 3
      %s196 = scalar_select %p195, %s192, 3
      %s197 = smul.addr %s194, 4
      %s198 = sadd.s32 %s196, %s197
      %s199 = smul.addr %s198, 4
      %s200 = scalar_lea.vmem %s0, %s199
      %s201 = smul.u32 2, %s20
      %s202 = smul.u32 32, %s20
      %p203 = scmp.lt.s32.totalorder %s202, 63
      %s204 = scalar_select %p203, %s202, 63
      %p205 = scmp.lt.s32.totalorder %s19, 0
      %s206 = scalar_select %p205, %s19, 0
      %s207 = sadd.s32 %s206, %s204
      %s208 = smul.addr %s207, 4
      %s209 = scalar_lea.vmem %s1, %s208
      %s210 = smul.u32 32, %s20
      %p211 = scmp.lt.s32.totalorder %s18, 0
      %s212 = scalar_select %p211, %s18, 0
      %p213 = scmp.lt.s32.totalorder %s19, 0
      %s214 = scalar_select %p213, %s19, 0
      %s215 = sadd.s32 %s214, %s212
      %s216 = smul.addr %s215, 4
      %s217 = scalar_lea.vmem %s2, %s216
      %p218 = scmp.eq.s32.totalorder %s20, 0
      // Predicated region
      $region29: #{_lambda_.41} parent=27 // pred_check
        %p219 = pneg %p218
      $region30: #{_lambda_.41} parent=27 // pred_check_branch
        %221 = sbr.rel (%p219) target = $region32
      $region31: #{_lambda_.41} parent=27 // pred_region
        %222 = vst [vmem:[#allocation2] sm:$0xff] 0.0
      $region32: #{_lambda_.41} parent=27 // pred_fallthru
        _
      %v223 = vld [vmem:[%s200] sm:$0xff]
      %v224 = vld [vmem:[#allocation2] sm:$0xff]
      %v225 = vld [vmem:[%s209] sm:$0xf]
      %v226 = vld [vmem:[%s209 + $0x4] sm:$0xf]
      %v227 = vld [vmem:[%s209 + $0x8] sm:$0xf]
      %v228 = vld [vmem:[%s209 + $0xc] sm:$0xf]
      %v229 = vld [vmem:[%s209 + $0x10] sm:$0xf]
      %v230 = vld [vmem:[%s209 + $0x14] sm:$0xf]
      %v231 = vld [vmem:[%s209 + $0x18] sm:$0xf]
      %v232 = vld [vmem:[%s209 + $0x1c] sm:$0xf]
      %v233 = vld [vmem:[%s209 + $0x20] sm:$0xf]
      %v234 = vld [vmem:[%s209 + $0x24] sm:$0xf]
      %v235 = vld [vmem:[%s209 + $0x28] sm:$0xf]
      %v236 = vld [vmem:[%s209 + $0x2c] sm:$0xf]
      %v237 = vld [vmem:[%s209 + $0x30] sm:$0xf]
      %v238 = vld [vmem:[%s209 + $0x34] sm:$0xf]
      %v239 = vld [vmem:[%s209 + $0x38] sm:$0xf]
      %v240 = vld [vmem:[%s209 + $0x3c] sm:$0xf]
      %v241 = vld [vmem:[%s209 + $0x40] sm:$0xf]
      %v242 = vld [vmem:[%s209 + $0x44] sm:$0xf]
      %v243 = vld [vmem:[%s209 + $0x48] sm:$0xf]
      %v244 = vld [vmem:[%s209 + $0x4c] sm:$0xf]
      %v245 = vld [vmem:[%s209 + $0x50] sm:$0xf]
      %v246 = vld [vmem:[%s209 + $0x54] sm:$0xf]
      %v247 = vld [vmem:[%s209 + $0x58] sm:$0xf]
      %v248 = vld [vmem:[%s209 + $0x5c] sm:$0xf]
      %v249 = vld [vmem:[%s209 + $0x60] sm:$0xf]
      %v250 = vld [vmem:[%s209 + $0x64] sm:$0xf]
      %v251 = vld [vmem:[%s209 + $0x68] sm:$0xf]
      %v252 = vld [vmem:[%s209 + $0x6c] sm:$0xf]
      %v253 = vld [vmem:[%s209 + $0x70] sm:$0xf]
      %v254 = vld [vmem:[%s209 + $0x74] sm:$0xf]
      %v255 = vld [vmem:[%s209 + $0x78] sm:$0xf]
      %v256 = vld [vmem:[%s209 + $0x7c] sm:$0xf]
      %v258 = vunpack.c.l.b16 %v223
      %v259 = vunpack.c.h.b16 %v223
      %v260 = vpack.c.b16 %v258, %v258
      %v261 = vpack.c.b16 %v259, %v259
      %v296 = vunpack.c.l.b16 %v225
      %v297 = vunpack.c.l.b16 %v226
      %v298 = vunpack.c.l.b16 %v227
      %v299 = vunpack.c.l.b16 %v228
      %v300 = vunpack.c.l.b16 %v229
      %v301 = vunpack.c.l.b16 %v230
      %v302 = vunpack.c.l.b16 %v231
      %v303 = vunpack.c.l.b16 %v232
      %v304 = vunpack.c.l.b16 %v233
      %v305 = vunpack.c.l.b16 %v234
      %v306 = vunpack.c.l.b16 %v235
      %v307 = vunpack.c.l.b16 %v236
      %v308 = vunpack.c.l.b16 %v237
      %v309 = vunpack.c.l.b16 %v238
      %v310 = vunpack.c.l.b16 %v239
      %v311 = vunpack.c.l.b16 %v240
      %v312 = vunpack.c.l.b16 %v241
      %v313 = vunpack.c.l.b16 %v242
      %v314 = vunpack.c.l.b16 %v243
      %v315 = vunpack.c.l.b16 %v244
      %v316 = vunpack.c.l.b16 %v245
      %v317 = vunpack.c.l.b16 %v246
      %v318 = vunpack.c.l.b16 %v247
      %v319 = vunpack.c.l.b16 %v248
      %v320 = vunpack.c.l.b16 %v249
      %v321 = vunpack.c.l.b16 %v250
      %v322 = vunpack.c.l.b16 %v251
      %v323 = vunpack.c.l.b16 %v252
      %v324 = vunpack.c.l.b16 %v253
      %v325 = vunpack.c.l.b16 %v254
      %v326 = vunpack.c.l.b16 %v255
      %v327 = vunpack.c.l.b16 %v256
      %v328 = vpack.c.b16 %v297, %v296
      %v329 = vpack.c.b16 %v299, %v298
      %v330 = vpack.c.b16 %v301, %v300
      %v331 = vpack.c.b16 %v303, %v302
      %v332 = vpack.c.b16 %v305, %v304
      %v333 = vpack.c.b16 %v307, %v306
      %v334 = vpack.c.b16 %v309, %v308
      %v335 = vpack.c.b16 %v311, %v310
      %v336 = vpack.c.b16 %v313, %v312
      %v337 = vpack.c.b16 %v315, %v314
      %v338 = vpack.c.b16 %v317, %v316
      %v339 = vpack.c.b16 %v319, %v318
      %v340 = vpack.c.b16 %v321, %v320
      %v341 = vpack.c.b16 %v323, %v322
      %v342 = vpack.c.b16 %v325, %v324
      %v343 = vpack.c.b16 %v327, %v326
      %360 = vmatpush.bf16.msra.mxu0 %v335
      %361 = vmatpush.bf16.msra.mxu0 %v334
      %362 = vmatpush.bf16.msra.mxu0 %v333
      %363 = vmatpush.bf16.msra.mxu0 %v332
      %364 = vmatpush.bf16.msra.mxu0 %v331
      %365 = vmatpush.bf16.msra.mxu0 %v330
      %366 = vmatpush.bf16.msra.mxu0 %v329
      %367 = vmatpush.bf16.msra.mxu0 %v328
      %368 = vmatmul.bf16.gmra.mxu0 %v260
      %v369 = vpop.f32.mrf.mxu0
      %v370 = vadd.f32 0.0, %v369
      %v371 = vpop.f32.mrf.mxu0
      %372 = vdwg.mxu0
      %373 = vmatpush.bf16.msra.mxu0 %v343
      %374 = vmatpush.bf16.msra.mxu0 %v342
      %375 = vmatpush.bf16.msra.mxu0 %v341
      %376 = vmatpush.bf16.msra.mxu0 %v340
      %377 = vmatpush.bf16.msra.mxu0 %v339
      %378 = vmatpush.bf16.msra.mxu0 %v338
      %379 = vmatpush.bf16.msra.mxu0 %v337
      %380 = vmatpush.bf16.msra.mxu0 %v336
      %381 = vmatmul.bf16.gmra.mxu0 %v261
      %v382 = vpop.f32.mrf.mxu0
      %v383 = vadd.f32 %v370, %v382
      %v384 = vpop.f32.mrf.mxu0
      %385 = vdwg.mxu0
      %v386 = vadd.f32 %v224, %v383
      %387 = vst [vmem:[#allocation2] sm:$0xff] %v386
      %p388 = scmp.eq.s32.totalorder %s20, 1
      // Predicated region
      $region33: #{_lambda_.41} parent=27 // pred_check
        %p389 = pneg %p388
      $region34: #{_lambda_.41} parent=27 // pred_check_branch
        %391 = sbr.rel (%p389) target = $region36
      $region35: #{_lambda_.41} parent=27 // pred_region
        %v392 = vld [vmem:[#allocation2] sm:$0xff]
        %v393 = vpack.c.bf16 %v392, %v392
        %394 = vst [vmem:[%s217] sm:$0xf] %v393
      $region36: #{_lambda_.41} parent=27 // pred_fallthru
        _
      %p395 = scmp.lt.s32.totalorder %s18, 0
      %s396 = scalar_select %p395, %s18, 0
      %p397 = scmp.lt.s32.totalorder %s19, 0
      %s398 = scalar_select %p397, %s19, 0
      %s399 = sadd.s32 %s398, %s396
      %s400 = smul.addr %s399, 4
      %s401 = scalar_lea.vmem %s2, %s400
      // Predicated region
      $region37: #{_lambda_.41} parent=27 // pred_check
        %p402 = pneg %p108
      $region38: #{_lambda_.41} parent=27 // pred_check_branch
        %404 = sbr.rel (%p402) target = $region40
      $region39: #{_lambda_.41} parent=27 // pred_region
        _
      $region40: #{_lambda_.41} parent=27 // pred_fallthru
        _
      // Predicated region
      $region41: #{_lambda_.41} parent=27 // pred_check
        %p405 = pneg %p108
      $region42: #{_lambda_.41} parent=27 // pred_check_branch
        %407 = sbr.rel (%p405) target = $region44
      $region43: #{_lambda_.41} parent=27 // pred_region
        %p408 = scmp.lt.s32.totalorder %s18, 0
        %s409 = scalar_select %p408, %s18, 0
        %p410 = scmp.lt.s32.totalorder %s19, 0
        %s411 = scalar_select %p410, %s19, 0
        %s412 = sadd.s32 %s411, %s409
        %s413 = smul.addr %s412, 4
        %s414 = scalar_lea.vmem %s2, %s413
      $region44: #{_lambda_.41} parent=27 // pred_fallthru
        _
    $region28: #{_lambda_.41} parent=5 // pred_fallthru
      _
    %p415 = scmp.le.s32.totalorder 2, %s8
    // Predicated region
    $region45: #{_lambda_.41} parent=5 // pred_check
      %p416 = pneg %p415
    $region46: #{_lambda_.41} parent=5 // pred_check_branch
      %418 = sbr.rel (%p416) target = $region48
    $region47: #{_lambda_.41} parent=5 // pred_region
      %s419 = ssub.s32 %s8, 2
    $region48: #{_lambda_.41} parent=5 // pred_fallthru
      _
  $region6: #{_lambda_.41} parent=0 // loop_footer
    %s12 = sadd.s32 1, %s8
  $region7: #{_lambda_.41} parent=0 // loop_footer_branch
    %7 = sbr.rel target = $region3
  $region8: #{_lambda_.41} parent=0 // loop_exit
    _

// kernel: _lambda_.44
$region0: #{_lambda_.44}
  #allocation0 [shape = 'u32[]', space=smem, size = 0x4, offset = 0x4, fixed_abs, tag = 'smem constant byte address 0x4 - core index']
  #allocation1 [shape = 'u32[72,128]{1,0:T(1,128)}', space=vmem, size = 0x9000, scoped, tag = 'internal scratch']
  #allocation2 [shape = 'f32[8,128]{1,0:T(8,128)}', space=vmem, size = 0x1000, scoped, tag = 'scratch operand']
  %s0 = inlined_call_operand.vmem [shape: bf16[8,128], index: 0, kind: input, shape index: {}]
  %s1 = inlined_call_operand.vmem [shape: bf16[128,128], index: 1, kind: input, shape index: {}]
  %s2 = inlined_call_operand.vmem [shape: f32[1,128], index: 2, kind: input, shape index: {}]
  %s3 = inlined_call_operand.vmem [shape: f32[1,128], index: 3, kind: input, shape index: {}]
  %s4 = inlined_call_operand.vmem [shape: bf16[8,128], index: 4, kind: output, shape index: {}]
  %s5 = sld [smem:[#allocation0]]
  $region34: #{_lambda_.44} parent=0
    _
  %s7 = ssub.s32 1, %s5
  %s8 = scalar_select 0, %s7, %s5
  // Predicated region
  $region2: #{_lambda_.44} parent=0 // pred_check
    _
  $region3: #{_lambda_.44} parent=0 // pred_check_branch
    %10 = sbr.rel (0) target = $region5
  $region4: #{_lambda_.44} parent=0 // pred_region
    _
  $region5: #{_lambda_.44} parent=0 // pred_fallthru
    _
  // Predicated region
  $region6: #{_lambda_.44} parent=0 // pred_check
    _
  $region7: #{_lambda_.44} parent=0 // pred_check_branch
    %12 = sbr.rel (0) target = $region9
  $region8: #{_lambda_.44} parent=0 // pred_region
    _
  $region9: #{_lambda_.44} parent=0 // pred_fallthru
    _
  // Predicated region
  $region10: #{_lambda_.44} parent=0 // pred_check
    _
  $region11: #{_lambda_.44} parent=0 // pred_check_branch
    %14 = sbr.rel (0) target = $region13
  $region12: #{_lambda_.44} parent=0 // pred_region
    _
  $region13: #{_lambda_.44} parent=0 // pred_fallthru
    _
  // Predicated region
  $region14: #{_lambda_.44} parent=0 // pred_check
    _
  $region15: #{_lambda_.44} parent=0 // pred_check_branch
    %16 = sbr.rel (0) target = $region17
  $region16: #{_lambda_.44} parent=0 // pred_region
    _
  $region17: #{_lambda_.44} parent=0 // pred_fallthru
    _
  %p17 = scmp.eq.s32.totalorder 0, 0
  // Predicated region
  $region18: #{_lambda_.44} parent=0 // pred_check
    %p18 = pneg %p17
  $region19: #{_lambda_.44} parent=0 // pred_check_branch
    %20 = sbr.rel (%p18) target = $region21
  $region20: #{_lambda_.44} parent=0 // pred_region
    %21 = vst [vmem:[#allocation2] sm:$0xff] 0.0
  $region21: #{_lambda_.44} parent=0 // pred_fallthru
    _
  %v22 = vld [vmem:[%s0] sm:$0xf]
  %v23 = vunpack.c.l.bf16 %v22
  %v24 = vld [vmem:[%s2] sm:$0x1]
  %v26 = vperm.slane %v24, 0
  %v28 = vmul.f32 %v23, %v26
  %v29 = vld [vmem:[%s3] sm:$0x1]
  %v31 = vperm.slane %v29, 0
  %v33 = vadd.f32 %v28, %v31
  %v34 = vmax.f32 %v33, 0.0
  %v35 = vpack.c.bf16 %v34, %v34
  %v36 = vld [vmem:[#allocation2] sm:$0xff]
  %v37 = vld [vmem:[%s1] sm:$0xf]
  %v38 = vld [vmem:[%s1 + $0x4] sm:$0xf]
  %v39 = vld [vmem:[%s1 + $0x8] sm:$0xf]
  %v40 = vld [vmem:[%s1 + $0xc] sm:$0xf]
  %v41 = vld [vmem:[%s1 + $0x10] sm:$0xf]
  %v42 = vld [vmem:[%s1 + $0x14] sm:$0xf]
  %v43 = vld [vmem:[%s1 + $0x18] sm:$0xf]
  %v44 = vld [vmem:[%s1 + $0x1c] sm:$0xf]
  %v45 = vld [vmem:[%s1 + $0x20] sm:$0xf]
  %v46 = vld [vmem:[%s1 + $0x24] sm:$0xf]
  %v47 = vld [vmem:[%s1 + $0x28] sm:$0xf]
  %v48 = vld [vmem:[%s1 + $0x2c] sm:$0xf]
  %v49 = vld [vmem:[%s1 + $0x30] sm:$0xf]
  %v50 = vld [vmem:[%s1 + $0x34] sm:$0xf]
  %v51 = vld [vmem:[%s1 + $0x38] sm:$0xf]
  %v52 = vld [vmem:[%s1 + $0x3c] sm:$0xf]
  %v69 = vunpack.c.l.b16 %v37
  %v70 = vunpack.c.l.b16 %v38
  %v71 = vunpack.c.l.b16 %v39
  %v72 = vunpack.c.l.b16 %v40
  %v73 = vunpack.c.l.b16 %v41
  %v74 = vunpack.c.l.b16 %v42
  %v75 = vunpack.c.l.b16 %v43
  %v76 = vunpack.c.l.b16 %v44
  %v77 = vunpack.c.l.b16 %v45
  %v78 = vunpack.c.l.b16 %v46
  %v79 = vunpack.c.l.b16 %v47
  %v80 = vunpack.c.l.b16 %v48
  %v81 = vunpack.c.l.b16 %v49
  %v82 = vunpack.c.l.b16 %v50
  %v83 = vunpack.c.l.b16 %v51
  %v84 = vunpack.c.l.b16 %v52
  %v85 = vpack.c.b16 %v70, %v69
  %v86 = vpack.c.b16 %v72, %v71
  %v87 = vpack.c.b16 %v74, %v73
  %v88 = vpack.c.b16 %v76, %v75
  %v89 = vpack.c.b16 %v78, %v77
  %v90 = vpack.c.b16 %v80, %v79
  %v91 = vpack.c.b16 %v82, %v81
  %v92 = vpack.c.b16 %v84, %v83
  %101 = vmatpush.bf16.msra.mxu0 %v92
  %102 = vmatpush.bf16.msra.mxu0 %v91
  %103 = vmatpush.bf16.msra.mxu0 %v90
  %104 = vmatpush.bf16.msra.mxu0 %v89
  %105 = vmatpush.bf16.msra.mxu0 %v88
  %106 = vmatpush.bf16.msra.mxu0 %v87
  %107 = vmatpush.bf16.msra.mxu0 %v86
  %108 = vmatpush.bf16.msra.mxu0 %v85
  %109 = vmatmul.bf16.gmra.mxu0 %v35
  %v110 = vpop.f32.mrf.mxu0
  %v111 = vadd.f32 0.0, %v110
  %v112 = vpop.f32.mrf.mxu0
  %113 = vdwg.mxu0
  %v114 = vadd.f32 %v36, %v111
  %115 = vst [vmem:[#allocation2] sm:$0xff] %v114
  // Predicated region
  $region22: #{_lambda_.44} parent=0 // pred_check
    %p116 = pneg %p17
  $region23: #{_lambda_.44} parent=0 // pred_check_branch
    %118 = sbr.rel (%p116) target = $region25
  $region24: #{_lambda_.44} parent=0 // pred_region
    %v119 = vld [vmem:[#allocation2] sm:$0xff]
    %v120 = vpack.c.bf16 %v119, %v119
    %121 = vst [vmem:[%s4] sm:$0xf] %v120
  $region25: #{_lambda_.44} parent=0 // pred_fallthru
    _
  // Predicated region
  $region26: #{_lambda_.44} parent=0 // pred_check
    _
  $region27: #{_lambda_.44} parent=0 // pred_check_branch
    %123 = sbr.rel (0) target = $region29
  $region28: #{_lambda_.44} parent=0 // pred_region
    _
  $region29: #{_lambda_.44} parent=0 // pred_fallthru
    _
  // Predicated region
  $region30: #{_lambda_.44} parent=0 // pred_check
    _
  $region31: #{_lambda_.44} parent=0 // pred_check_branch
    %125 = sbr.rel (0) target = $region33
  $region32: #{_lambda_.44} parent=0 // pred_region
    _
  $region33: #{_lambda_.44} parent=0 // pred_fallthru
    _

// kernel: _lambda_.50
$region0: #{_lambda_.50}
  #allocation0 [shape = 'u32[]', space=smem, size = 0x4, offset = 0x4, fixed_abs, tag = 'smem constant byte address 0x4 - core index']
  #allocation1 [shape = 'u32[72,128]{1,0:T(1,128)}', space=vmem, size = 0x9000, scoped, tag = 'internal scratch']
  %s0 = inlined_call_operand.vmem [shape: bf16[1,2,32], index: 0, kind: input, shape index: {}]
  %s1 = inlined_call_operand.vmem [shape: f32[1,1,32], index: 1, kind: input, shape index: {}]
  %s2 = inlined_call_operand.vmem [shape: f32[1,1,32], index: 2, kind: input, shape index: {}]
  %s3 = inlined_call_operand.vmem [shape: f32[2,32], index: 3, kind: output, shape index: {}]
  %s4 = sld [smem:[#allocation0]]
  $region22: #{_lambda_.50} parent=0
    _
  %s6 = ssub.s32 1, %s4
  %s7 = scalar_select 0, %s6, %s4
  // Predicated region
  $region2: #{_lambda_.50} parent=0 // pred_check
    _
  $region3: #{_lambda_.50} parent=0 // pred_check_branch
    %9 = sbr.rel (0) target = $region5
  $region4: #{_lambda_.50} parent=0 // pred_region
    _
  $region5: #{_lambda_.50} parent=0 // pred_fallthru
    _
  // Predicated region
  $region6: #{_lambda_.50} parent=0 // pred_check
    _
  $region7: #{_lambda_.50} parent=0 // pred_check_branch
    %11 = sbr.rel (0) target = $region9
  $region8: #{_lambda_.50} parent=0 // pred_region
    _
  $region9: #{_lambda_.50} parent=0 // pred_fallthru
    _
  // Predicated region
  $region10: #{_lambda_.50} parent=0 // pred_check
    _
  $region11: #{_lambda_.50} parent=0 // pred_check_branch
    %13 = sbr.rel (0) target = $region13
  $region12: #{_lambda_.50} parent=0 // pred_region
    _
  $region13: #{_lambda_.50} parent=0 // pred_fallthru
    _
  %v14 = vld [vmem:[%s0] sm:$0x1]
  %v15 = vunpack.c.l.bf16 %v14
  %v16 = vld [vmem:[%s1] sm:$0x1]
  %v18 = vperm.slane %v16, 0
  %v20 = vmul.f32 %v15, %v18
  %v21 = vld [vmem:[%s2] sm:$0x1]
  %v23 = vperm.slane %v21, 0
  %v25 = vadd.f32 %v20, %v23
  %v26 = vmax.f32 %v25, 0.0
  %v27 = vadd.f32 %v26, 0.0
  %vm28 = vcmask 254976
  %29 = vst.msk [vmem:[%s3] sm:$0x3] %vm28, %v27
  // Predicated region
  $region14: #{_lambda_.50} parent=0 // pred_check
    _
  $region15: #{_lambda_.50} parent=0 // pred_check_branch
    %31 = sbr.rel (0) target = $region17
  $region16: #{_lambda_.50} parent=0 // pred_region
    _
  $region17: #{_lambda_.50} parent=0 // pred_fallthru
    _
  // Predicated region
  $region18: #{_lambda_.50} parent=0 // pred_check
    _
  $region19: #{_lambda_.50} parent=0 // pred_check_branch
    %33 = sbr.rel (0) target = $region21
  $region20: #{_lambda_.50} parent=0 // pred_region
    _
  $region21: #{_lambda_.50} parent=0 // pred_fallthru
    _

// kernel: _lambda_.51
$region0: #{_lambda_.51}
  #allocation0 [shape = 'u32[]', space=smem, size = 0x4, offset = 0x4, fixed_abs, tag = 'smem constant byte address 0x4 - core index']
  #allocation1 [shape = 'u32[72,128]{1,0:T(1,128)}', space=vmem, size = 0x9000, scoped, tag = 'internal scratch']
  #allocation2 [shape = 'f32[8,128]{1,0:T(8,128)}', space=vmem, size = 0x1000, scoped, tag = 'scratch operand']
  %s0 = inlined_call_operand.vmem [shape: bf16[8,128], index: 0, kind: input, shape index: {}]
  %s1 = inlined_call_operand.vmem [shape: bf16[128,128], index: 1, kind: input, shape index: {}]
  %s2 = inlined_call_operand.vmem [shape: f32[1,128], index: 2, kind: input, shape index: {}]
  %s3 = inlined_call_operand.vmem [shape: f32[1,128], index: 3, kind: input, shape index: {}]
  %s4 = inlined_call_operand.vmem [shape: f32[8,128], index: 4, kind: output, shape index: {}]
  %s5 = sld [smem:[#allocation0]]
  $region34: #{_lambda_.51} parent=0
    _
  %s7 = ssub.s32 1, %s5
  %s8 = scalar_select 0, %s7, %s5
  // Predicated region
  $region2: #{_lambda_.51} parent=0 // pred_check
    _
  $region3: #{_lambda_.51} parent=0 // pred_check_branch
    %10 = sbr.rel (0) target = $region5
  $region4: #{_lambda_.51} parent=0 // pred_region
    _
  $region5: #{_lambda_.51} parent=0 // pred_fallthru
    _
  // Predicated region
  $region6: #{_lambda_.51} parent=0 // pred_check
    _
  $region7: #{_lambda_.51} parent=0 // pred_check_branch
    %12 = sbr.rel (0) target = $region9
  $region8: #{_lambda_.51} parent=0 // pred_region
    _
  $region9: #{_lambda_.51} parent=0 // pred_fallthru
    _
  // Predicated region
  $region10: #{_lambda_.51} parent=0 // pred_check
    _
  $region11: #{_lambda_.51} parent=0 // pred_check_branch
    %14 = sbr.rel (0) target = $region13
  $region12: #{_lambda_.51} parent=0 // pred_region
    _
  $region13: #{_lambda_.51} parent=0 // pred_fallthru
    _
  // Predicated region
  $region14: #{_lambda_.51} parent=0 // pred_check
    _
  $region15: #{_lambda_.51} parent=0 // pred_check_branch
    %16 = sbr.rel (0) target = $region17
  $region16: #{_lambda_.51} parent=0 // pred_region
    _
  $region17: #{_lambda_.51} parent=0 // pred_fallthru
    _
  %p17 = scmp.eq.s32.totalorder 0, 0
  // Predicated region
  $region18: #{_lambda_.51} parent=0 // pred_check
    %p18 = pneg %p17
  $region19: #{_lambda_.51} parent=0 // pred_check_branch
    %20 = sbr.rel (%p18) target = $region21
  $region20: #{_lambda_.51} parent=0 // pred_region
    %21 = vst [vmem:[#allocation2] sm:$0xff] 0.0
  $region21: #{_lambda_.51} parent=0 // pred_fallthru
    _
  %v22 = vld [vmem:[%s0] sm:$0xf]
  %v23 = vld [vmem:[#allocation2] sm:$0xff]
  %v24 = vld [vmem:[%s1] sm:$0xf]
  %v25 = vld [vmem:[%s1 + $0x4] sm:$0xf]
  %v26 = vld [vmem:[%s1 + $0x8] sm:$0xf]
  %v27 = vld [vmem:[%s1 + $0xc] sm:$0xf]
  %v28 = vld [vmem:[%s1 + $0x10] sm:$0xf]
  %v29 = vld [vmem:[%s1 + $0x14] sm:$0xf]
  %v30 = vld [vmem:[%s1 + $0x18] sm:$0xf]
  %v31 = vld [vmem:[%s1 + $0x1c] sm:$0xf]
  %v32 = vld [vmem:[%s1 + $0x20] sm:$0xf]
  %v33 = vld [vmem:[%s1 + $0x24] sm:$0xf]
  %v34 = vld [vmem:[%s1 + $0x28] sm:$0xf]
  %v35 = vld [vmem:[%s1 + $0x2c] sm:$0xf]
  %v36 = vld [vmem:[%s1 + $0x30] sm:$0xf]
  %v37 = vld [vmem:[%s1 + $0x34] sm:$0xf]
  %v38 = vld [vmem:[%s1 + $0x38] sm:$0xf]
  %v39 = vld [vmem:[%s1 + $0x3c] sm:$0xf]
  %v56 = vunpack.c.l.b16 %v24
  %v57 = vunpack.c.l.b16 %v25
  %v58 = vunpack.c.l.b16 %v26
  %v59 = vunpack.c.l.b16 %v27
  %v60 = vunpack.c.l.b16 %v28
  %v61 = vunpack.c.l.b16 %v29
  %v62 = vunpack.c.l.b16 %v30
  %v63 = vunpack.c.l.b16 %v31
  %v64 = vunpack.c.l.b16 %v32
  %v65 = vunpack.c.l.b16 %v33
  %v66 = vunpack.c.l.b16 %v34
  %v67 = vunpack.c.l.b16 %v35
  %v68 = vunpack.c.l.b16 %v36
  %v69 = vunpack.c.l.b16 %v37
  %v70 = vunpack.c.l.b16 %v38
  %v71 = vunpack.c.l.b16 %v39
  %v72 = vpack.c.b16 %v57, %v56
  %v73 = vpack.c.b16 %v59, %v58
  %v74 = vpack.c.b16 %v61, %v60
  %v75 = vpack.c.b16 %v63, %v62
  %v76 = vpack.c.b16 %v65, %v64
  %v77 = vpack.c.b16 %v67, %v66
  %v78 = vpack.c.b16 %v69, %v68
  %v79 = vpack.c.b16 %v71, %v70
  %88 = vmatpush.bf16.msra.mxu0 %v79
  %89 = vmatpush.bf16.msra.mxu0 %v78
  %90 = vmatpush.bf16.msra.mxu0 %v77
  %91 = vmatpush.bf16.msra.mxu0 %v76
  %92 = vmatpush.bf16.msra.mxu0 %v75
  %93 = vmatpush.bf16.msra.mxu0 %v74
  %94 = vmatpush.bf16.msra.mxu0 %v73
  %95 = vmatpush.bf16.msra.mxu0 %v72
  %96 = vmatmul.bf16.gmra.mxu0 %v22
  %v97 = vpop.f32.mrf.mxu0
  %v98 = vadd.f32 0.0, %v97
  %v99 = vpop.f32.mrf.mxu0
  %100 = vdwg.mxu0
  %v101 = vadd.f32 %v23, %v98
  %102 = vst [vmem:[#allocation2] sm:$0xff] %v101
  // Predicated region
  $region22: #{_lambda_.51} parent=0 // pred_check
    %p103 = pneg %p17
  $region23: #{_lambda_.51} parent=0 // pred_check_branch
    %105 = sbr.rel (%p103) target = $region25
  $region24: #{_lambda_.51} parent=0 // pred_region
    %v106 = vld [vmem:[#allocation2] sm:$0xff]
    %v107 = vld [vmem:[%s2] sm:$0x1]
    %v109 = vperm.slane %v107, 0
    %v111 = vmul.f32 %v106, %v109
    %v112 = vld [vmem:[%s3] sm:$0x1]
    %v114 = vperm.slane %v112, 0
    %v116 = vadd.f32 %v111, %v114
    %117 = vst [vmem:[%s4] sm:$0xff] %v116
  $region25: #{_lambda_.51} parent=0 // pred_fallthru
    _
  // Predicated region
  $region26: #{_lambda_.51} parent=0 // pred_check
    _
  $region27: #{_lambda_.51} parent=0 // pred_check_branch
    %119 = sbr.rel (0) target = $region29
  $region28: #{_lambda_.51} parent=0 // pred_region
    _
  $region29: #{_lambda_.51} parent=0 // pred_fallthru
    _
  // Predicated region
  $region30: #{_lambda_.51} parent=0 // pred_check
    _
  $region31: #{_lambda_.51} parent=0 // pred_check_branch
    %121 = sbr.rel (0) target = $region33
  $region32: #{_lambda_.51} parent=0 // pred_region
    _
  $region33: #{_lambda_.51} parent=0 // pred_fallthru
    _

</llo_original>
